<compile_context>
chip_gen: v5e
topology: v5e:2x2
jax: 0.10.0
libtpu: 0.0.40
codegen_flags: <defaults>
</compile_context>

<pallas_src>
import jax
import jax.numpy as jnp
from jax.experimental import pallas as pl
from jax.experimental.pallas import tpu as pltpu

D_IN = 62
H1 = 128
H2 = 256
N_CLASSES = 2
N_OUT_PAD = 128  # lane-dense padded logit width


# ----------------------------------------------------------------------------
# Fused kernel: (LSTM 62->128) -> (LSTM 128->256) -> last step -> MLP head.
# ----------------------------------------------------------------------------
def _lstm_cell(x_t, h, c, w_ih, w_hh, b, hidden):
    """One LSTM step.  Gate column order is (i, f, o, g): one sigmoid over a
    contiguous (B, 3H) slab, tanh over the trailing (B, H) slab."""
    gates = (
        jnp.dot(x_t, w_ih, preferred_element_type=jnp.float32)
        + jnp.dot(h, w_hh, preferred_element_type=jnp.float32)
        + b                                    # (1, 4H) broadcasts over batch
    )                                          # (B, 4H)
    ifo = jax.nn.sigmoid(gates[:, : 3 * hidden])
    g_g = jnp.tanh(gates[:, 3 * hidden:])
    i_g = ifo[:, :hidden]
    f_g = ifo[:, hidden: 2 * hidden]
    o_g = ifo[:, 2 * hidden:]
    c_new = f_g * c + i_g * g_g
    h_new = o_g * jnp.tanh(c_new)
    return h_new, c_new


def _net_kernel(x_ref,
                w1ih_ref, w1hh_ref, b1_ref,
                w2ih_ref, w2hh_ref, b2_ref,
                fw1_ref, fb1_ref, fw2_ref, fb2_ref, fw3_ref, fb3_ref,
                out_ref):
    B, T, _ = x_ref.shape

    # Weights are VMEM-resident for the whole call; load once.
    w1ih = w1ih_ref[...]; w1hh = w1hh_ref[...]; b1 = b1_ref[...]
    w2ih = w2ih_ref[...]; w2hh = w2hh_ref[...]; b2 = b2_ref[...]

    h1 = jnp.zeros((B, H1), jnp.float32)
    c1 = jnp.zeros((B, H1), jnp.float32)
    h2 = jnp.zeros((B, H2), jnp.float32)
    c2 = jnp.zeros((B, H2), jnp.float32)

    # T is small and static -> fully unrolled recurrence, all indices static.
    # Intermediate hidden sequences never leave VMEM/vregs.
    for t in range(T):
        x_t = x_ref[:, t, :]                               # (B, 62)
        h1, c1 = _lstm_cell(x_t, h1, c1, w1ih, w1hh, b1, H1)
        h2, c2 = _lstm_cell(h1, h2, c2, w2ih, w2hh, b2, H2)

    # MLP head on the last hidden state (dropout == identity in eval mode).
    z = jnp.maximum(
        jnp.dot(h2, fw1_ref[...], preferred_element_type=jnp.float32)
        + fb1_ref[...], 0.0)
    z = jnp.maximum(
        jnp.dot(z, fw2_ref[...], preferred_element_type=jnp.float32)
        + fb2_ref[...], 0.0)
    # fc3 is zero-padded to 128 output lanes -> unmasked, lane-dense store.
    out_ref[...] = (
        jnp.dot(z, fw3_ref[...], preferred_element_type=jnp.float32)
        + fb3_ref[...]
    )


def net_forward_pallas(x_btd, p):
    B = x_btd.shape[0]
    args = (x_btd.astype(jnp.float32),
            p["l1_wih"], p["l1_whh"], p["l1_b"],
            p["l2_wih"], p["l2_whh"], p["l2_b"],
            p["fc1_w"], p["fc1_b"], p["fc2_w"], p["fc2_b"],
            p["fc3_w"], p["fc3_b"])
    out_padded = pl.pallas_call(
        _net_kernel,
        out_shape=jax.ShapeDtypeStruct((B, N_OUT_PAD), jnp.float32),
        # Single grid point; everything explicitly VMEM-resident (~5 MiB total,
        # fits every generation incl. v7x's 64 MiB with large headroom).
        in_specs=[pl.BlockSpec(memory_space=pltpu.MemorySpace.VMEM)
                  for _ in args],
        out_specs=pl.BlockSpec(memory_space=pltpu.MemorySpace.VMEM),
        compiler_params=pltpu.CompilerParams(
            vmem_limit_bytes=32 * 1024 * 1024),
    )(*args)
    return out_padded[:, :N_CLASSES]


@jax.jit
def net_forward(x_btd, params):
    # x_btd: (B, T, 62), batch_first like the PyTorch module.
    return net_forward_pallas(x_btd, params)


# ----------------------------------------------------------------------------
# Parameter construction (deterministic, PyTorch-like uniform init).
# Gate columns are built directly in (i, f, o, g) order; importing PyTorch
# weights would require the same (i,f,g,o)->(i,f,o,g) column permutation.
# ----------------------------------------------------------------------------
def _uniform(key, shape, bound):
    return jax.random.uniform(key, shape, jnp.float32, -bound, bound)


def init_params(key):
    ks = jax.random.split(key, 14)
    p = {}
    # LSTM1: 62 -> 128 (weights stored as (D_in, 4H) / (H, 4H))
    b = 1.0 / jnp.sqrt(H1)
    p["l1_wih"] = _uniform(ks[0], (D_IN, 4 * H1), b)
    p["l1_whh"] = _uniform(ks[1], (H1, 4 * H1), b)
    p["l1_b"] = _uniform(ks[2], (1, 4 * H1), b) + _uniform(ks[3], (1, 4 * H1), b)
    # LSTM2: 128 -> 256
    b = 1.0 / jnp.sqrt(H2)
    p["l2_wih"] = _uniform(ks[4], (H1, 4 * H2), b)
    p["l2_whh"] = _uniform(ks[5], (H2, 4 * H2), b)
    p["l2_b"] = _uniform(ks[6], (1, 4 * H2), b) + _uniform(ks[7], (1, 4 * H2), b)
    # Linear layers stored as (in, out) (transpose of PyTorch weight).
    b = 1.0 / jnp.sqrt(256)
    p["fc1_w"] = _uniform(ks[8], (256, 512), b)
    p["fc1_b"] = _uniform(ks[9], (1, 512), b)
    b = 1.0 / jnp.sqrt(512)
    p["fc2_w"] = _uniform(ks[10], (512, 1024), b)
    p["fc2_b"] = _uniform(ks[11], (1, 1024), b)
    # fc3 zero-padded from (1024, 2) to (1024, 128) for a lane-dense store;
    # the wrapper slices the 2 real logits back out.
    b = 1.0 / jnp.sqrt(1024)
    fc3_w = _uniform(ks[12], (1024, N_CLASSES), b)
    fc3_b = _uniform(ks[13], (1, N_CLASSES), b)
    p["fc3_w"] = jnp.zeros((1024, N_OUT_PAD), jnp.float32).at[:, :N_CLASSES].set(fc3_w)
    p["fc3_b"] = jnp.zeros((1, N_OUT_PAD), jnp.float32).at[:, :N_CLASSES].set(fc3_b)
    return p


if __name__ == "__main__":
    key = jax.random.PRNGKey(0)
    k_param, k_x = jax.random.split(key)

    B, T = 2, 8
    params = init_params(k_param)
    x = jax.random.normal(k_x, (B, T, D_IN), jnp.float32)

    out = net_forward(x, params)
    jax.block_until_ready(out)

    assert out.shape == (B, N_CLASSES), out.shape
    assert out.dtype == jnp.float32
    print("KERNEL_OK")
</pallas_src>

<mosaic_0001>
module attributes {stable_mosaic.version = 11 : i64} {
  func.func @_net_kernel(%arg0: memref<2x8x62xf32, #tpu.memory_space<vmem>>, %arg1: memref<62x512xf32, #tpu.memory_space<vmem>>, %arg2: memref<128x512xf32, #tpu.memory_space<vmem>>, %arg3: memref<1x512xf32, #tpu.memory_space<vmem>>, %arg4: memref<128x1024xf32, #tpu.memory_space<vmem>>, %arg5: memref<256x1024xf32, #tpu.memory_space<vmem>>, %arg6: memref<1x1024xf32, #tpu.memory_space<vmem>>, %arg7: memref<256x512xf32, #tpu.memory_space<vmem>>, %arg8: memref<1x512xf32, #tpu.memory_space<vmem>>, %arg9: memref<512x1024xf32, #tpu.memory_space<vmem>>, %arg10: memref<1x1024xf32, #tpu.memory_space<vmem>>, %arg11: memref<1024x128xf32, #tpu.memory_space<vmem>>, %arg12: memref<1x128xf32, #tpu.memory_space<vmem>>, %arg13: memref<2x128xf32, #tpu.memory_space<vmem>>) attributes {dimension_semantics = [], scalar_prefetch = 0 : i64, scratch_operands = 0 : i64, tpu.core_type = #tpu.core_type<tc>} {
    %c0 = arith.constant 0 : index
    %c0_0 = arith.constant 0 : index
    %0 = vector.load %arg1[%c0, %c0_0] : memref<62x512xf32, #tpu.memory_space<vmem>>, vector<62x512xf32>
    %c0_1 = arith.constant 0 : index
    %c0_2 = arith.constant 0 : index
    %1 = vector.load %arg2[%c0_1, %c0_2] : memref<128x512xf32, #tpu.memory_space<vmem>>, vector<128x512xf32>
    %c0_3 = arith.constant 0 : index
    %c0_4 = arith.constant 0 : index
    %2 = vector.load %arg3[%c0_3, %c0_4] : memref<1x512xf32, #tpu.memory_space<vmem>>, vector<1x512xf32>
    %c0_5 = arith.constant 0 : index
    %c0_6 = arith.constant 0 : index
    %3 = vector.load %arg4[%c0_5, %c0_6] : memref<128x1024xf32, #tpu.memory_space<vmem>>, vector<128x1024xf32>
    %c0_7 = arith.constant 0 : index
    %c0_8 = arith.constant 0 : index
    %4 = vector.load %arg5[%c0_7, %c0_8] : memref<256x1024xf32, #tpu.memory_space<vmem>>, vector<256x1024xf32>
    %c0_9 = arith.constant 0 : index
    %c0_10 = arith.constant 0 : index
    %5 = vector.load %arg6[%c0_9, %c0_10] : memref<1x1024xf32, #tpu.memory_space<vmem>>, vector<1x1024xf32>
    %cst = arith.constant 0.000000e+00 : f32
    %6 = vector.broadcast %cst : f32 to vector<2x128xf32>
    %cst_11 = arith.constant 0.000000e+00 : f32
    %7 = vector.broadcast %cst_11 : f32 to vector<2x128xf32>
    %cst_12 = arith.constant 0.000000e+00 : f32
    %8 = vector.broadcast %cst_12 : f32 to vector<2x256xf32>
    %cst_13 = arith.constant 0.000000e+00 : f32
    %9 = vector.broadcast %cst_13 : f32 to vector<2x256xf32>
    %c0_14 = arith.constant 0 : index
    %c0_15 = arith.constant 0 : index
    %c0_16 = arith.constant 0 : index
    %10 = vector.load %arg0[%c0_14, %c0_15, %c0_16] : memref<2x8x62xf32, #tpu.memory_space<vmem>>, vector<2x1x62xf32>
    %11 = vector.shape_cast %10 : vector<2x1x62xf32> to vector<2x62xf32>
    %cst_17 = arith.constant dense<0.000000e+00> : vector<2x512xf32>
    %12 = tpu.matmul %11, %0, %cst_17 {dimension_numbers = #tpu.dot_dimension_numbers<[1], [0], [0], [1], [0, 0, 1, 1], [], []>} : vector<2x62xf32>, vector<62x512xf32>, vector<2x512xf32> -> vector<2x512xf32>
    %cst_18 = arith.constant dense<0.000000e+00> : vector<2x512xf32>
    %13 = tpu.matmul %6, %1, %cst_18 {dimension_numbers = #tpu.dot_dimension_numbers<[1], [0], [0], [1], [0, 0, 1, 1], [], []>} : vector<2x128xf32>, vector<128x512xf32>, vector<2x512xf32> -> vector<2x512xf32>
    %14 = arith.addf %12, %13 : vector<2x512xf32>
    %15 = vector.broadcast %2 : vector<1x512xf32> to vector<2x512xf32>
    %16 = arith.addf %14, %15 : vector<2x512xf32>
    %17 = vector.extract_strided_slice %16 {offsets = [0, 0], sizes = [2, 384], strides = [1, 1]} : vector<2x512xf32> to vector<2x384xf32>
    %18 = arith.negf %17 : vector<2x384xf32>
    %19 = math.exp %18 : vector<2x384xf32>
    %cst_19 = arith.constant 1.000000e+00 : f32
    %20 = vector.broadcast %cst_19 : f32 to vector<2x384xf32>
    %21 = arith.addf %20, %19 : vector<2x384xf32>
    %22 = arith.divf %20, %21 : vector<2x384xf32>
    %23 = vector.extract_strided_slice %16 {offsets = [0, 384], sizes = [2, 128], strides = [1, 1]} : vector<2x512xf32> to vector<2x128xf32>
    %24 = math.tanh %23 : vector<2x128xf32>
    %25 = vector.extract_strided_slice %22 {offsets = [0, 0], sizes = [2, 128], strides = [1, 1]} : vector<2x384xf32> to vector<2x128xf32>
    %26 = vector.extract_strided_slice %22 {offsets = [0, 128], sizes = [2, 128], strides = [1, 1]} : vector<2x384xf32> to vector<2x128xf32>
    %27 = vector.extract_strided_slice %22 {offsets = [0, 256], sizes = [2, 128], strides = [1, 1]} : vector<2x384xf32> to vector<2x128xf32>
    %28 = arith.mulf %26, %7 : vector<2x128xf32>
    %29 = arith.mulf %25, %24 : vector<2x128xf32>
    %30 = arith.addf %28, %29 : vector<2x128xf32>
    %31 = math.tanh %30 : vector<2x128xf32>
    %32 = arith.mulf %27, %31 : vector<2x128xf32>
    %cst_20 = arith.constant dense<0.000000e+00> : vector<2x1024xf32>
    %33 = tpu.matmul %32, %3, %cst_20 {dimension_numbers = #tpu.dot_dimension_numbers<[1], [0], [0], [1], [0, 0, 1, 1], [], []>} : vector<2x128xf32>, vector<128x1024xf32>, vector<2x1024xf32> -> vector<2x1024xf32>
    %cst_21 = arith.constant dense<0.000000e+00> : vector<2x1024xf32>
    %34 = tpu.matmul %8, %4, %cst_21 {dimension_numbers = #tpu.dot_dimension_numbers<[1], [0], [0], [1], [0, 0, 1, 1], [], []>} : vector<2x256xf32>, vector<256x1024xf32>, vector<2x1024xf32> -> vector<2x1024xf32>
    %35 = arith.addf %33, %34 : vector<2x1024xf32>
    %36 = vector.broadcast %5 : vector<1x1024xf32> to vector<2x1024xf32>
    %37 = arith.addf %35, %36 : vector<2x1024xf32>
    %38 = vector.extract_strided_slice %37 {offsets = [0, 0], sizes = [2, 768], strides = [1, 1]} : vector<2x1024xf32> to vector<2x768xf32>
    %39 = arith.negf %38 : vector<2x768xf32>
    %40 = math.exp %39 : vector<2x768xf32>
    %cst_22 = arith.constant 1.000000e+00 : f32
    %41 = vector.broadcast %cst_22 : f32 to vector<2x768xf32>
    %42 = arith.addf %41, %40 : vector<2x768xf32>
    %43 = arith.divf %41, %42 : vector<2x768xf32>
    %44 = vector.extract_strided_slice %37 {offsets = [0, 768], sizes = [2, 256], strides = [1, 1]} : vector<2x1024xf32> to vector<2x256xf32>
    %45 = math.tanh %44 : vector<2x256xf32>
    %46 = vector.extract_strided_slice %43 {offsets = [0, 0], sizes = [2, 256], strides = [1, 1]} : vector<2x768xf32> to vector<2x256xf32>
    %47 = vector.extract_strided_slice %43 {offsets = [0, 256], sizes = [2, 256], strides = [1, 1]} : vector<2x768xf32> to vector<2x256xf32>
    %48 = vector.extract_strided_slice %43 {offsets = [0, 512], sizes = [2, 256], strides = [1, 1]} : vector<2x768xf32> to vector<2x256xf32>
    %49 = arith.mulf %47, %9 : vector<2x256xf32>
    %50 = arith.mulf %46, %45 : vector<2x256xf32>
    %51 = arith.addf %49, %50 : vector<2x256xf32>
    %52 = math.tanh %51 : vector<2x256xf32>
    %53 = arith.mulf %48, %52 : vector<2x256xf32>
    %c0_23 = arith.constant 0 : index
    %c1 = arith.constant 1 : index
    %c0_24 = arith.constant 0 : index
    %54 = vector.load %arg0[%c0_23, %c1, %c0_24] : memref<2x8x62xf32, #tpu.memory_space<vmem>>, vector<2x1x62xf32>
    %55 = vector.shape_cast %54 : vector<2x1x62xf32> to vector<2x62xf32>
    %cst_25 = arith.constant dense<0.000000e+00> : vector<2x512xf32>
    %56 = tpu.matmul %55, %0, %cst_25 {dimension_numbers = #tpu.dot_dimension_numbers<[1], [0], [0], [1], [0, 0, 1, 1], [], []>} : vector<2x62xf32>, vector<62x512xf32>, vector<2x512xf32> -> vector<2x512xf32>
    %cst_26 = arith.constant dense<0.000000e+00> : vector<2x512xf32>
    %57 = tpu.matmul %32, %1, %cst_26 {dimension_numbers = #tpu.dot_dimension_numbers<[1], [0], [0], [1], [0, 0, 1, 1], [], []>} : vector<2x128xf32>, vector<128x512xf32>, vector<2x512xf32> -> vector<2x512xf32>
    %58 = arith.addf %56, %57 : vector<2x512xf32>
    %59 = vector.broadcast %2 : vector<1x512xf32> to vector<2x512xf32>
    %60 = arith.addf %58, %59 : vector<2x512xf32>
    %61 = vector.extract_strided_slice %60 {offsets = [0, 0], sizes = [2, 384], strides = [1, 1]} : vector<2x512xf32> to vector<2x384xf32>
    %62 = arith.negf %61 : vector<2x384xf32>
    %63 = math.exp %62 : vector<2x384xf32>
    %cst_27 = arith.constant 1.000000e+00 : f32
    %64 = vector.broadcast %cst_27 : f32 to vector<2x384xf32>
    %65 = arith.addf %64, %63 : vector<2x384xf32>
    %66 = arith.divf %64, %65 : vector<2x384xf32>
    %67 = vector.extract_strided_slice %60 {offsets = [0, 384], sizes = [2, 128], strides = [1, 1]} : vector<2x512xf32> to vector<2x128xf32>
    %68 = math.tanh %67 : vector<2x128xf32>
    %69 = vector.extract_strided_slice %66 {offsets = [0, 0], sizes = [2, 128], strides = [1, 1]} : vector<2x384xf32> to vector<2x128xf32>
    %70 = vector.extract_strided_slice %66 {offsets = [0, 128], sizes = [2, 128], strides = [1, 1]} : vector<2x384xf32> to vector<2x128xf32>
    %71 = vector.extract_strided_slice %66 {offsets = [0, 256], sizes = [2, 128], strides = [1, 1]} : vector<2x384xf32> to vector<2x128xf32>
    %72 = arith.mulf %70, %30 : vector<2x128xf32>
    %73 = arith.mulf %69, %68 : vector<2x128xf32>
    %74 = arith.addf %72, %73 : vector<2x128xf32>
    %75 = math.tanh %74 : vector<2x128xf32>
    %76 = arith.mulf %71, %75 : vector<2x128xf32>
    %cst_28 = arith.constant dense<0.000000e+00> : vector<2x1024xf32>
    %77 = tpu.matmul %76, %3, %cst_28 {dimension_numbers = #tpu.dot_dimension_numbers<[1], [0], [0], [1], [0, 0, 1, 1], [], []>} : vector<2x128xf32>, vector<128x1024xf32>, vector<2x1024xf32> -> vector<2x1024xf32>
    %cst_29 = arith.constant dense<0.000000e+00> : vector<2x1024xf32>
    %78 = tpu.matmul %53, %4, %cst_29 {dimension_numbers = #tpu.dot_dimension_numbers<[1], [0], [0], [1], [0, 0, 1, 1], [], []>} : vector<2x256xf32>, vector<256x1024xf32>, vector<2x1024xf32> -> vector<2x1024xf32>
    %79 = arith.addf %77, %78 : vector<2x1024xf32>
    %80 = vector.broadcast %5 : vector<1x1024xf32> to vector<2x1024xf32>
    %81 = arith.addf %79, %80 : vector<2x1024xf32>
    %82 = vector.extract_strided_slice %81 {offsets = [0, 0], sizes = [2, 768], strides = [1, 1]} : vector<2x1024xf32> to vector<2x768xf32>
    %83 = arith.negf %82 : vector<2x768xf32>
    %84 = math.exp %83 : vector<2x768xf32>
    %cst_30 = arith.constant 1.000000e+00 : f32
    %85 = vector.broadcast %cst_30 : f32 to vector<2x768xf32>
    %86 = arith.addf %85, %84 : vector<2x768xf32>
    %87 = arith.divf %85, %86 : vector<2x768xf32>
    %88 = vector.extract_strided_slice %81 {offsets = [0, 768], sizes = [2, 256], strides = [1, 1]} : vector<2x1024xf32> to vector<2x256xf32>
    %89 = math.tanh %88 : vector<2x256xf32>
    %90 = vector.extract_strided_slice %87 {offsets = [0, 0], sizes = [2, 256], strides = [1, 1]} : vector<2x768xf32> to vector<2x256xf32>
    %91 = vector.extract_strided_slice %87 {offsets = [0, 256], sizes = [2, 256], strides = [1, 1]} : vector<2x768xf32> to vector<2x256xf32>
    %92 = vector.extract_strided_slice %87 {offsets = [0, 512], sizes = [2, 256], strides = [1, 1]} : vector<2x768xf32> to vector<2x256xf32>
    %93 = arith.mulf %91, %51 : vector<2x256xf32>
    %94 = arith.mulf %90, %89 : vector<2x256xf32>
    %95 = arith.addf %93, %94 : vector<2x256xf32>
    %96 = math.tanh %95 : vector<2x256xf32>
    %97 = arith.mulf %92, %96 : vector<2x256xf32>
    %c0_31 = arith.constant 0 : index
    %c2 = arith.constant 2 : index
    %c0_32 = arith.constant 0 : index
    %98 = vector.load %arg0[%c0_31, %c2, %c0_32] : memref<2x8x62xf32, #tpu.memory_space<vmem>>, vector<2x1x62xf32>
    %99 = vector.shape_cast %98 : vector<2x1x62xf32> to vector<2x62xf32>
    %cst_33 = arith.constant dense<0.000000e+00> : vector<2x512xf32>
    %100 = tpu.matmul %99, %0, %cst_33 {dimension_numbers = #tpu.dot_dimension_numbers<[1], [0], [0], [1], [0, 0, 1, 1], [], []>} : vector<2x62xf32>, vector<62x512xf32>, vector<2x512xf32> -> vector<2x512xf32>
    %cst_34 = arith.constant dense<0.000000e+00> : vector<2x512xf32>
    %101 = tpu.matmul %76, %1, %cst_34 {dimension_numbers = #tpu.dot_dimension_numbers<[1], [0], [0], [1], [0, 0, 1, 1], [], []>} : vector<2x128xf32>, vector<128x512xf32>, vector<2x512xf32> -> vector<2x512xf32>
    %102 = arith.addf %100, %101 : vector<2x512xf32>
    %103 = vector.broadcast %2 : vector<1x512xf32> to vector<2x512xf32>
    %104 = arith.addf %102, %103 : vector<2x512xf32>
    %105 = vector.extract_strided_slice %104 {offsets = [0, 0], sizes = [2, 384], strides = [1, 1]} : vector<2x512xf32> to vector<2x384xf32>
    %106 = arith.negf %105 : vector<2x384xf32>
    %107 = math.exp %106 : vector<2x384xf32>
    %cst_35 = arith.constant 1.000000e+00 : f32
    %108 = vector.broadcast %cst_35 : f32 to vector<2x384xf32>
    %109 = arith.addf %108, %107 : vector<2x384xf32>
    %110 = arith.divf %108, %109 : vector<2x384xf32>
    %111 = vector.extract_strided_slice %104 {offsets = [0, 384], sizes = [2, 128], strides = [1, 1]} : vector<2x512xf32> to vector<2x128xf32>
    %112 = math.tanh %111 : vector<2x128xf32>
    %113 = vector.extract_strided_slice %110 {offsets = [0, 0], sizes = [2, 128], strides = [1, 1]} : vector<2x384xf32> to vector<2x128xf32>
    %114 = vector.extract_strided_slice %110 {offsets = [0, 128], sizes = [2, 128], strides = [1, 1]} : vector<2x384xf32> to vector<2x128xf32>
    %115 = vector.extract_strided_slice %110 {offsets = [0, 256], sizes = [2, 128], strides = [1, 1]} : vector<2x384xf32> to vector<2x128xf32>
    %116 = arith.mulf %114, %74 : vector<2x128xf32>
    %117 = arith.mulf %113, %112 : vector<2x128xf32>
    %118 = arith.addf %116, %117 : vector<2x128xf32>
    %119 = math.tanh %118 : vector<2x128xf32>
    %120 = arith.mulf %115, %119 : vector<2x128xf32>
    %cst_36 = arith.constant dense<0.000000e+00> : vector<2x1024xf32>
    %121 = tpu.matmul %120, %3, %cst_36 {dimension_numbers = #tpu.dot_dimension_numbers<[1], [0], [0], [1], [0, 0, 1, 1], [], []>} : vector<2x128xf32>, vector<128x1024xf32>, vector<2x1024xf32> -> vector<2x1024xf32>
    %cst_37 = arith.constant dense<0.000000e+00> : vector<2x1024xf32>
    %122 = tpu.matmul %97, %4, %cst_37 {dimension_numbers = #tpu.dot_dimension_numbers<[1], [0], [0], [1], [0, 0, 1, 1], [], []>} : vector<2x256xf32>, vector<256x1024xf32>, vector<2x1024xf32> -> vector<2x1024xf32>
    %123 = arith.addf %121, %122 : vector<2x1024xf32>
    %124 = vector.broadcast %5 : vector<1x1024xf32> to vector<2x1024xf32>
    %125 = arith.addf %123, %124 : vector<2x1024xf32>
    %126 = vector.extract_strided_slice %125 {offsets = [0, 0], sizes = [2, 768], strides = [1, 1]} : vector<2x1024xf32> to vector<2x768xf32>
    %127 = arith.negf %126 : vector<2x768xf32>
    %128 = math.exp %127 : vector<2x768xf32>
    %cst_38 = arith.constant 1.000000e+00 : f32
    %129 = vector.broadcast %cst_38 : f32 to vector<2x768xf32>
    %130 = arith.addf %129, %128 : vector<2x768xf32>
    %131 = arith.divf %129, %130 : vector<2x768xf32>
    %132 = vector.extract_strided_slice %125 {offsets = [0, 768], sizes = [2, 256], strides = [1, 1]} : vector<2x1024xf32> to vector<2x256xf32>
    %133 = math.tanh %132 : vector<2x256xf32>
    %134 = vector.extract_strided_slice %131 {offsets = [0, 0], sizes = [2, 256], strides = [1, 1]} : vector<2x768xf32> to vector<2x256xf32>
    %135 = vector.extract_strided_slice %131 {offsets = [0, 256], sizes = [2, 256], strides = [1, 1]} : vector<2x768xf32> to vector<2x256xf32>
    %136 = vector.extract_strided_slice %131 {offsets = [0, 512], sizes = [2, 256], strides = [1, 1]} : vector<2x768xf32> to vector<2x256xf32>
    %137 = arith.mulf %135, %95 : vector<2x256xf32>
    %138 = arith.mulf %134, %133 : vector<2x256xf32>
    %139 = arith.addf %137, %138 : vector<2x256xf32>
    %140 = math.tanh %139 : vector<2x256xf32>
    %141 = arith.mulf %136, %140 : vector<2x256xf32>
    %c0_39 = arith.constant 0 : index
    %c3 = arith.constant 3 : index
    %c0_40 = arith.constant 0 : index
    %142 = vector.load %arg0[%c0_39, %c3, %c0_40] : memref<2x8x62xf32, #tpu.memory_space<vmem>>, vector<2x1x62xf32>
    %143 = vector.shape_cast %142 : vector<2x1x62xf32> to vector<2x62xf32>
    %cst_41 = arith.constant dense<0.000000e+00> : vector<2x512xf32>
    %144 = tpu.matmul %143, %0, %cst_41 {dimension_numbers = #tpu.dot_dimension_numbers<[1], [0], [0], [1], [0, 0, 1, 1], [], []>} : vector<2x62xf32>, vector<62x512xf32>, vector<2x512xf32> -> vector<2x512xf32>
    %cst_42 = arith.constant dense<0.000000e+00> : vector<2x512xf32>
    %145 = tpu.matmul %120, %1, %cst_42 {dimension_numbers = #tpu.dot_dimension_numbers<[1], [0], [0], [1], [0, 0, 1, 1], [], []>} : vector<2x128xf32>, vector<128x512xf32>, vector<2x512xf32> -> vector<2x512xf32>
    %146 = arith.addf %144, %145 : vector<2x512xf32>
    %147 = vector.broadcast %2 : vector<1x512xf32> to vector<2x512xf32>
    %148 = arith.addf %146, %147 : vector<2x512xf32>
    %149 = vector.extract_strided_slice %148 {offsets = [0, 0], sizes = [2, 384], strides = [1, 1]} : vector<2x512xf32> to vector<2x384xf32>
    %150 = arith.negf %149 : vector<2x384xf32>
    %151 = math.exp %150 : vector<2x384xf32>
    %cst_43 = arith.constant 1.000000e+00 : f32
    %152 = vector.broadcast %cst_43 : f32 to vector<2x384xf32>
    %153 = arith.addf %152, %151 : vector<2x384xf32>
    %154 = arith.divf %152, %153 : vector<2x384xf32>
    %155 = vector.extract_strided_slice %148 {offsets = [0, 384], sizes = [2, 128], strides = [1, 1]} : vector<2x512xf32> to vector<2x128xf32>
    %156 = math.tanh %155 : vector<2x128xf32>
    %157 = vector.extract_strided_slice %154 {offsets = [0, 0], sizes = [2, 128], strides = [1, 1]} : vector<2x384xf32> to vector<2x128xf32>
    %158 = vector.extract_strided_slice %154 {offsets = [0, 128], sizes = [2, 128], strides = [1, 1]} : vector<2x384xf32> to vector<2x128xf32>
    %159 = vector.extract_strided_slice %154 {offsets = [0, 256], sizes = [2, 128], strides = [1, 1]} : vector<2x384xf32> to vector<2x128xf32>
    %160 = arith.mulf %158, %118 : vector<2x128xf32>
    %161 = arith.mulf %157, %156 : vector<2x128xf32>
    %162 = arith.addf %160, %161 : vector<2x128xf32>
    %163 = math.tanh %162 : vector<2x128xf32>
    %164 = arith.mulf %159, %163 : vector<2x128xf32>
    %cst_44 = arith.constant dense<0.000000e+00> : vector<2x1024xf32>
    %165 = tpu.matmul %164, %3, %cst_44 {dimension_numbers = #tpu.dot_dimension_numbers<[1], [0], [0], [1], [0, 0, 1, 1], [], []>} : vector<2x128xf32>, vector<128x1024xf32>, vector<2x1024xf32> -> vector<2x1024xf32>
    %cst_45 = arith.constant dense<0.000000e+00> : vector<2x1024xf32>
    %166 = tpu.matmul %141, %4, %cst_45 {dimension_numbers = #tpu.dot_dimension_numbers<[1], [0], [0], [1], [0, 0, 1, 1], [], []>} : vector<2x256xf32>, vector<256x1024xf32>, vector<2x1024xf32> -> vector<2x1024xf32>
    %167 = arith.addf %165, %166 : vector<2x1024xf32>
    %168 = vector.broadcast %5 : vector<1x1024xf32> to vector<2x1024xf32>
    %169 = arith.addf %167, %168 : vector<2x1024xf32>
    %170 = vector.extract_strided_slice %169 {offsets = [0, 0], sizes = [2, 768], strides = [1, 1]} : vector<2x1024xf32> to vector<2x768xf32>
    %171 = arith.negf %170 : vector<2x768xf32>
    %172 = math.exp %171 : vector<2x768xf32>
    %cst_46 = arith.constant 1.000000e+00 : f32
    %173 = vector.broadcast %cst_46 : f32 to vector<2x768xf32>
    %174 = arith.addf %173, %172 : vector<2x768xf32>
    %175 = arith.divf %173, %174 : vector<2x768xf32>
    %176 = vector.extract_strided_slice %169 {offsets = [0, 768], sizes = [2, 256], strides = [1, 1]} : vector<2x1024xf32> to vector<2x256xf32>
    %177 = math.tanh %176 : vector<2x256xf32>
    %178 = vector.extract_strided_slice %175 {offsets = [0, 0], sizes = [2, 256], strides = [1, 1]} : vector<2x768xf32> to vector<2x256xf32>
    %179 = vector.extract_strided_slice %175 {offsets = [0, 256], sizes = [2, 256], strides = [1, 1]} : vector<2x768xf32> to vector<2x256xf32>
    %180 = vector.extract_strided_slice %175 {offsets = [0, 512], sizes = [2, 256], strides = [1, 1]} : vector<2x768xf32> to vector<2x256xf32>
    %181 = arith.mulf %179, %139 : vector<2x256xf32>
    %182 = arith.mulf %178, %177 : vector<2x256xf32>
    %183 = arith.addf %181, %182 : vector<2x256xf32>
    %184 = math.tanh %183 : vector<2x256xf32>
    %185 = arith.mulf %180, %184 : vector<2x256xf32>
    %c0_47 = arith.constant 0 : index
    %c4 = arith.constant 4 : index
    %c0_48 = arith.constant 0 : index
    %186 = vector.load %arg0[%c0_47, %c4, %c0_48] : memref<2x8x62xf32, #tpu.memory_space<vmem>>, vector<2x1x62xf32>
    %187 = vector.shape_cast %186 : vector<2x1x62xf32> to vector<2x62xf32>
    %cst_49 = arith.constant dense<0.000000e+00> : vector<2x512xf32>
    %188 = tpu.matmul %187, %0, %cst_49 {dimension_numbers = #tpu.dot_dimension_numbers<[1], [0], [0], [1], [0, 0, 1, 1], [], []>} : vector<2x62xf32>, vector<62x512xf32>, vector<2x512xf32> -> vector<2x512xf32>
    %cst_50 = arith.constant dense<0.000000e+00> : vector<2x512xf32>
    %189 = tpu.matmul %164, %1, %cst_50 {dimension_numbers = #tpu.dot_dimension_numbers<[1], [0], [0], [1], [0, 0, 1, 1], [], []>} : vector<2x128xf32>, vector<128x512xf32>, vector<2x512xf32> -> vector<2x512xf32>
    %190 = arith.addf %188, %189 : vector<2x512xf32>
    %191 = vector.broadcast %2 : vector<1x512xf32> to vector<2x512xf32>
    %192 = arith.addf %190, %191 : vector<2x512xf32>
    %193 = vector.extract_strided_slice %192 {offsets = [0, 0], sizes = [2, 384], strides = [1, 1]} : vector<2x512xf32> to vector<2x384xf32>
    %194 = arith.negf %193 : vector<2x384xf32>
    %195 = math.exp %194 : vector<2x384xf32>
    %cst_51 = arith.constant 1.000000e+00 : f32
    %196 = vector.broadcast %cst_51 : f32 to vector<2x384xf32>
    %197 = arith.addf %196, %195 : vector<2x384xf32>
    %198 = arith.divf %196, %197 : vector<2x384xf32>
    %199 = vector.extract_strided_slice %192 {offsets = [0, 384], sizes = [2, 128], strides = [1, 1]} : vector<2x512xf32> to vector<2x128xf32>
    %200 = math.tanh %199 : vector<2x128xf32>
    %201 = vector.extract_strided_slice %198 {offsets = [0, 0], sizes = [2, 128], strides = [1, 1]} : vector<2x384xf32> to vector<2x128xf32>
    %202 = vector.extract_strided_slice %198 {offsets = [0, 128], sizes = [2, 128], strides = [1, 1]} : vector<2x384xf32> to vector<2x128xf32>
    %203 = vector.extract_strided_slice %198 {offsets = [0, 256], sizes = [2, 128], strides = [1, 1]} : vector<2x384xf32> to vector<2x128xf32>
    %204 = arith.mulf %202, %162 : vector<2x128xf32>
    %205 = arith.mulf %201, %200 : vector<2x128xf32>
    %206 = arith.addf %204, %205 : vector<2x128xf32>
    %207 = math.tanh %206 : vector<2x128xf32>
    %208 = arith.mulf %203, %207 : vector<2x128xf32>
    %cst_52 = arith.constant dense<0.000000e+00> : vector<2x1024xf32>
    %209 = tpu.matmul %208, %3, %cst_52 {dimension_numbers = #tpu.dot_dimension_numbers<[1], [0], [0], [1], [0, 0, 1, 1], [], []>} : vector<2x128xf32>, vector<128x1024xf32>, vector<2x1024xf32> -> vector<2x1024xf32>
    %cst_53 = arith.constant dense<0.000000e+00> : vector<2x1024xf32>
    %210 = tpu.matmul %185, %4, %cst_53 {dimension_numbers = #tpu.dot_dimension_numbers<[1], [0], [0], [1], [0, 0, 1, 1], [], []>} : vector<2x256xf32>, vector<256x1024xf32>, vector<2x1024xf32> -> vector<2x1024xf32>
    %211 = arith.addf %209, %210 : vector<2x1024xf32>
    %212 = vector.broadcast %5 : vector<1x1024xf32> to vector<2x1024xf32>
    %213 = arith.addf %211, %212 : vector<2x1024xf32>
    %214 = vector.extract_strided_slice %213 {offsets = [0, 0], sizes = [2, 768], strides = [1, 1]} : vector<2x1024xf32> to vector<2x768xf32>
    %215 = arith.negf %214 : vector<2x768xf32>
    %216 = math.exp %215 : vector<2x768xf32>
    %cst_54 = arith.constant 1.000000e+00 : f32
    %217 = vector.broadcast %cst_54 : f32 to vector<2x768xf32>
    %218 = arith.addf %217, %216 : vector<2x768xf32>
    %219 = arith.divf %217, %218 : vector<2x768xf32>
    %220 = vector.extract_strided_slice %213 {offsets = [0, 768], sizes = [2, 256], strides = [1, 1]} : vector<2x1024xf32> to vector<2x256xf32>
    %221 = math.tanh %220 : vector<2x256xf32>
    %222 = vector.extract_strided_slice %219 {offsets = [0, 0], sizes = [2, 256], strides = [1, 1]} : vector<2x768xf32> to vector<2x256xf32>
    %223 = vector.extract_strided_slice %219 {offsets = [0, 256], sizes = [2, 256], strides = [1, 1]} : vector<2x768xf32> to vector<2x256xf32>
    %224 = vector.extract_strided_slice %219 {offsets = [0, 512], sizes = [2, 256], strides = [1, 1]} : vector<2x768xf32> to vector<2x256xf32>
    %225 = arith.mulf %223, %183 : vector<2x256xf32>
    %226 = arith.mulf %222, %221 : vector<2x256xf32>
    %227 = arith.addf %225, %226 : vector<2x256xf32>
    %228 = math.tanh %227 : vector<2x256xf32>
    %229 = arith.mulf %224, %228 : vector<2x256xf32>
    %c0_55 = arith.constant 0 : index
    %c5 = arith.constant 5 : index
    %c0_56 = arith.constant 0 : index
    %230 = vector.load %arg0[%c0_55, %c5, %c0_56] : memref<2x8x62xf32, #tpu.memory_space<vmem>>, vector<2x1x62xf32>
    %231 = vector.shape_cast %230 : vector<2x1x62xf32> to vector<2x62xf32>
    %cst_57 = arith.constant dense<0.000000e+00> : vector<2x512xf32>
    %232 = tpu.matmul %231, %0, %cst_57 {dimension_numbers = #tpu.dot_dimension_numbers<[1], [0], [0], [1], [0, 0, 1, 1], [], []>} : vector<2x62xf32>, vector<62x512xf32>, vector<2x512xf32> -> vector<2x512xf32>
    %cst_58 = arith.constant dense<0.000000e+00> : vector<2x512xf32>
    %233 = tpu.matmul %208, %1, %cst_58 {dimension_numbers = #tpu.dot_dimension_numbers<[1], [0], [0], [1], [0, 0, 1, 1], [], []>} : vector<2x128xf32>, vector<128x512xf32>, vector<2x512xf32> -> vector<2x512xf32>
    %234 = arith.addf %232, %233 : vector<2x512xf32>
    %235 = vector.broadcast %2 : vector<1x512xf32> to vector<2x512xf32>
    %236 = arith.addf %234, %235 : vector<2x512xf32>
    %237 = vector.extract_strided_slice %236 {offsets = [0, 0], sizes = [2, 384], strides = [1, 1]} : vector<2x512xf32> to vector<2x384xf32>
    %238 = arith.negf %237 : vector<2x384xf32>
    %239 = math.exp %238 : vector<2x384xf32>
    %cst_59 = arith.constant 1.000000e+00 : f32
    %240 = vector.broadcast %cst_59 : f32 to vector<2x384xf32>
    %241 = arith.addf %240, %239 : vector<2x384xf32>
    %242 = arith.divf %240, %241 : vector<2x384xf32>
    %243 = vector.extract_strided_slice %236 {offsets = [0, 384], sizes = [2, 128], strides = [1, 1]} : vector<2x512xf32> to vector<2x128xf32>
    %244 = math.tanh %243 : vector<2x128xf32>
    %245 = vector.extract_strided_slice %242 {offsets = [0, 0], sizes = [2, 128], strides = [1, 1]} : vector<2x384xf32> to vector<2x128xf32>
    %246 = vector.extract_strided_slice %242 {offsets = [0, 128], sizes = [2, 128], strides = [1, 1]} : vector<2x384xf32> to vector<2x128xf32>
    %247 = vector.extract_strided_slice %242 {offsets = [0, 256], sizes = [2, 128], strides = [1, 1]} : vector<2x384xf32> to vector<2x128xf32>
    %248 = arith.mulf %246, %206 : vector<2x128xf32>
    %249 = arith.mulf %245, %244 : vector<2x128xf32>
    %250 = arith.addf %248, %249 : vector<2x128xf32>
    %251 = math.tanh %250 : vector<2x128xf32>
    %252 = arith.mulf %247, %251 : vector<2x128xf32>
    %cst_60 = arith.constant dense<0.000000e+00> : vector<2x1024xf32>
    %253 = tpu.matmul %252, %3, %cst_60 {dimension_numbers = #tpu.dot_dimension_numbers<[1], [0], [0], [1], [0, 0, 1, 1], [], []>} : vector<2x128xf32>, vector<128x1024xf32>, vector<2x1024xf32> -> vector<2x1024xf32>
    %cst_61 = arith.constant dense<0.000000e+00> : vector<2x1024xf32>
    %254 = tpu.matmul %229, %4, %cst_61 {dimension_numbers = #tpu.dot_dimension_numbers<[1], [0], [0], [1], [0, 0, 1, 1], [], []>} : vector<2x256xf32>, vector<256x1024xf32>, vector<2x1024xf32> -> vector<2x1024xf32>
    %255 = arith.addf %253, %254 : vector<2x1024xf32>
    %256 = vector.broadcast %5 : vector<1x1024xf32> to vector<2x1024xf32>
    %257 = arith.addf %255, %256 : vector<2x1024xf32>
    %258 = vector.extract_strided_slice %257 {offsets = [0, 0], sizes = [2, 768], strides = [1, 1]} : vector<2x1024xf32> to vector<2x768xf32>
    %259 = arith.negf %258 : vector<2x768xf32>
    %260 = math.exp %259 : vector<2x768xf32>
    %cst_62 = arith.constant 1.000000e+00 : f32
    %261 = vector.broadcast %cst_62 : f32 to vector<2x768xf32>
    %262 = arith.addf %261, %260 : vector<2x768xf32>
    %263 = arith.divf %261, %262 : vector<2x768xf32>
    %264 = vector.extract_strided_slice %257 {offsets = [0, 768], sizes = [2, 256], strides = [1, 1]} : vector<2x1024xf32> to vector<2x256xf32>
    %265 = math.tanh %264 : vector<2x256xf32>
    %266 = vector.extract_strided_slice %263 {offsets = [0, 0], sizes = [2, 256], strides = [1, 1]} : vector<2x768xf32> to vector<2x256xf32>
    %267 = vector.extract_strided_slice %263 {offsets = [0, 256], sizes = [2, 256], strides = [1, 1]} : vector<2x768xf32> to vector<2x256xf32>
    %268 = vector.extract_strided_slice %263 {offsets = [0, 512], sizes = [2, 256], strides = [1, 1]} : vector<2x768xf32> to vector<2x256xf32>
    %269 = arith.mulf %267, %227 : vector<2x256xf32>
    %270 = arith.mulf %266, %265 : vector<2x256xf32>
    %271 = arith.addf %269, %270 : vector<2x256xf32>
    %272 = math.tanh %271 : vector<2x256xf32>
    %273 = arith.mulf %268, %272 : vector<2x256xf32>
    %c0_63 = arith.constant 0 : index
    %c6 = arith.constant 6 : index
    %c0_64 = arith.constant 0 : index
    %274 = vector.load %arg0[%c0_63, %c6, %c0_64] : memref<2x8x62xf32, #tpu.memory_space<vmem>>, vector<2x1x62xf32>
    %275 = vector.shape_cast %274 : vector<2x1x62xf32> to vector<2x62xf32>
    %cst_65 = arith.constant dense<0.000000e+00> : vector<2x512xf32>
    %276 = tpu.matmul %275, %0, %cst_65 {dimension_numbers = #tpu.dot_dimension_numbers<[1], [0], [0], [1], [0, 0, 1, 1], [], []>} : vector<2x62xf32>, vector<62x512xf32>, vector<2x512xf32> -> vector<2x512xf32>
    %cst_66 = arith.constant dense<0.000000e+00> : vector<2x512xf32>
    %277 = tpu.matmul %252, %1, %cst_66 {dimension_numbers = #tpu.dot_dimension_numbers<[1], [0], [0], [1], [0, 0, 1, 1], [], []>} : vector<2x128xf32>, vector<128x512xf32>, vector<2x512xf32> -> vector<2x512xf32>
    %278 = arith.addf %276, %277 : vector<2x512xf32>
    %279 = vector.broadcast %2 : vector<1x512xf32> to vector<2x512xf32>
    %280 = arith.addf %278, %279 : vector<2x512xf32>
    %281 = vector.extract_strided_slice %280 {offsets = [0, 0], sizes = [2, 384], strides = [1, 1]} : vector<2x512xf32> to vector<2x384xf32>
    %282 = arith.negf %281 : vector<2x384xf32>
    %283 = math.exp %282 : vector<2x384xf32>
    %cst_67 = arith.constant 1.000000e+00 : f32
    %284 = vector.broadcast %cst_67 : f32 to vector<2x384xf32>
    %285 = arith.addf %284, %283 : vector<2x384xf32>
    %286 = arith.divf %284, %285 : vector<2x384xf32>
    %287 = vector.extract_strided_slice %280 {offsets = [0, 384], sizes = [2, 128], strides = [1, 1]} : vector<2x512xf32> to vector<2x128xf32>
    %288 = math.tanh %287 : vector<2x128xf32>
    %289 = vector.extract_strided_slice %286 {offsets = [0, 0], sizes = [2, 128], strides = [1, 1]} : vector<2x384xf32> to vector<2x128xf32>
    %290 = vector.extract_strided_slice %286 {offsets = [0, 128], sizes = [2, 128], strides = [1, 1]} : vector<2x384xf32> to vector<2x128xf32>
    %291 = vector.extract_strided_slice %286 {offsets = [0, 256], sizes = [2, 128], strides = [1, 1]} : vector<2x384xf32> to vector<2x128xf32>
    %292 = arith.mulf %290, %250 : vector<2x128xf32>
    %293 = arith.mulf %289, %288 : vector<2x128xf32>
    %294 = arith.addf %292, %293 : vector<2x128xf32>
    %295 = math.tanh %294 : vector<2x128xf32>
    %296 = arith.mulf %291, %295 : vector<2x128xf32>
    %cst_68 = arith.constant dense<0.000000e+00> : vector<2x1024xf32>
    %297 = tpu.matmul %296, %3, %cst_68 {dimension_numbers = #tpu.dot_dimension_numbers<[1], [0], [0], [1], [0, 0, 1, 1], [], []>} : vector<2x128xf32>, vector<128x1024xf32>, vector<2x1024xf32> -> vector<2x1024xf32>
    %cst_69 = arith.constant dense<0.000000e+00> : vector<2x1024xf32>
    %298 = tpu.matmul %273, %4, %cst_69 {dimension_numbers = #tpu.dot_dimension_numbers<[1], [0], [0], [1], [0, 0, 1, 1], [], []>} : vector<2x256xf32>, vector<256x1024xf32>, vector<2x1024xf32> -> vector<2x1024xf32>
    %299 = arith.addf %297, %298 : vector<2x1024xf32>
    %300 = vector.broadcast %5 : vector<1x1024xf32> to vector<2x1024xf32>
    %301 = arith.addf %299, %300 : vector<2x1024xf32>
    %302 = vector.extract_strided_slice %301 {offsets = [0, 0], sizes = [2, 768], strides = [1, 1]} : vector<2x1024xf32> to vector<2x768xf32>
    %303 = arith.negf %302 : vector<2x768xf32>
    %304 = math.exp %303 : vector<2x768xf32>
    %cst_70 = arith.constant 1.000000e+00 : f32
    %305 = vector.broadcast %cst_70 : f32 to vector<2x768xf32>
    %306 = arith.addf %305, %304 : vector<2x768xf32>
    %307 = arith.divf %305, %306 : vector<2x768xf32>
    %308 = vector.extract_strided_slice %301 {offsets = [0, 768], sizes = [2, 256], strides = [1, 1]} : vector<2x1024xf32> to vector<2x256xf32>
    %309 = math.tanh %308 : vector<2x256xf32>
    %310 = vector.extract_strided_slice %307 {offsets = [0, 0], sizes = [2, 256], strides = [1, 1]} : vector<2x768xf32> to vector<2x256xf32>
    %311 = vector.extract_strided_slice %307 {offsets = [0, 256], sizes = [2, 256], strides = [1, 1]} : vector<2x768xf32> to vector<2x256xf32>
    %312 = vector.extract_strided_slice %307 {offsets = [0, 512], sizes = [2, 256], strides = [1, 1]} : vector<2x768xf32> to vector<2x256xf32>
    %313 = arith.mulf %311, %271 : vector<2x256xf32>
    %314 = arith.mulf %310, %309 : vector<2x256xf32>
    %315 = arith.addf %313, %314 : vector<2x256xf32>
    %316 = math.tanh %315 : vector<2x256xf32>
    %317 = arith.mulf %312, %316 : vector<2x256xf32>
    %c0_71 = arith.constant 0 : index
    %c7 = arith.constant 7 : index
    %c0_72 = arith.constant 0 : index
    %318 = vector.load %arg0[%c0_71, %c7, %c0_72] : memref<2x8x62xf32, #tpu.memory_space<vmem>>, vector<2x1x62xf32>
    %319 = vector.shape_cast %318 : vector<2x1x62xf32> to vector<2x62xf32>
    %cst_73 = arith.constant dense<0.000000e+00> : vector<2x512xf32>
    %320 = tpu.matmul %319, %0, %cst_73 {dimension_numbers = #tpu.dot_dimension_numbers<[1], [0], [0], [1], [0, 0, 1, 1], [], []>} : vector<2x62xf32>, vector<62x512xf32>, vector<2x512xf32> -> vector<2x512xf32>
    %cst_74 = arith.constant dense<0.000000e+00> : vector<2x512xf32>
    %321 = tpu.matmul %296, %1, %cst_74 {dimension_numbers = #tpu.dot_dimension_numbers<[1], [0], [0], [1], [0, 0, 1, 1], [], []>} : vector<2x128xf32>, vector<128x512xf32>, vector<2x512xf32> -> vector<2x512xf32>
    %322 = arith.addf %320, %321 : vector<2x512xf32>
    %323 = vector.broadcast %2 : vector<1x512xf32> to vector<2x512xf32>
    %324 = arith.addf %322, %323 : vector<2x512xf32>
    %325 = vector.extract_strided_slice %324 {offsets = [0, 0], sizes = [2, 384], strides = [1, 1]} : vector<2x512xf32> to vector<2x384xf32>
    %326 = arith.negf %325 : vector<2x384xf32>
    %327 = math.exp %326 : vector<2x384xf32>
    %cst_75 = arith.constant 1.000000e+00 : f32
    %328 = vector.broadcast %cst_75 : f32 to vector<2x384xf32>
    %329 = arith.addf %328, %327 : vector<2x384xf32>
    %330 = arith.divf %328, %329 : vector<2x384xf32>
    %331 = vector.extract_strided_slice %324 {offsets = [0, 384], sizes = [2, 128], strides = [1, 1]} : vector<2x512xf32> to vector<2x128xf32>
    %332 = math.tanh %331 : vector<2x128xf32>
    %333 = vector.extract_strided_slice %330 {offsets = [0, 0], sizes = [2, 128], strides = [1, 1]} : vector<2x384xf32> to vector<2x128xf32>
    %334 = vector.extract_strided_slice %330 {offsets = [0, 128], sizes = [2, 128], strides = [1, 1]} : vector<2x384xf32> to vector<2x128xf32>
    %335 = vector.extract_strided_slice %330 {offsets = [0, 256], sizes = [2, 128], strides = [1, 1]} : vector<2x384xf32> to vector<2x128xf32>
    %336 = arith.mulf %334, %294 : vector<2x128xf32>
    %337 = arith.mulf %333, %332 : vector<2x128xf32>
    %338 = arith.addf %336, %337 : vector<2x128xf32>
    %339 = math.tanh %338 : vector<2x128xf32>
    %340 = arith.mulf %335, %339 : vector<2x128xf32>
    %cst_76 = arith.constant dense<0.000000e+00> : vector<2x1024xf32>
    %341 = tpu.matmul %340, %3, %cst_76 {dimension_numbers = #tpu.dot_dimension_numbers<[1], [0], [0], [1], [0, 0, 1, 1], [], []>} : vector<2x128xf32>, vector<128x1024xf32>, vector<2x1024xf32> -> vector<2x1024xf32>
    %cst_77 = arith.constant dense<0.000000e+00> : vector<2x1024xf32>
    %342 = tpu.matmul %317, %4, %cst_77 {dimension_numbers = #tpu.dot_dimension_numbers<[1], [0], [0], [1], [0, 0, 1, 1], [], []>} : vector<2x256xf32>, vector<256x1024xf32>, vector<2x1024xf32> -> vector<2x1024xf32>
    %343 = arith.addf %341, %342 : vector<2x1024xf32>
    %344 = vector.broadcast %5 : vector<1x1024xf32> to vector<2x1024xf32>
    %345 = arith.addf %343, %344 : vector<2x1024xf32>
    %346 = vector.extract_strided_slice %345 {offsets = [0, 0], sizes = [2, 768], strides = [1, 1]} : vector<2x1024xf32> to vector<2x768xf32>
    %347 = arith.negf %346 : vector<2x768xf32>
    %348 = math.exp %347 : vector<2x768xf32>
    %cst_78 = arith.constant 1.000000e+00 : f32
    %349 = vector.broadcast %cst_78 : f32 to vector<2x768xf32>
    %350 = arith.addf %349, %348 : vector<2x768xf32>
    %351 = arith.divf %349, %350 : vector<2x768xf32>
    %352 = vector.extract_strided_slice %345 {offsets = [0, 768], sizes = [2, 256], strides = [1, 1]} : vector<2x1024xf32> to vector<2x256xf32>
    %353 = math.tanh %352 : vector<2x256xf32>
    %354 = vector.extract_strided_slice %351 {offsets = [0, 0], sizes = [2, 256], strides = [1, 1]} : vector<2x768xf32> to vector<2x256xf32>
    %355 = vector.extract_strided_slice %351 {offsets = [0, 256], sizes = [2, 256], strides = [1, 1]} : vector<2x768xf32> to vector<2x256xf32>
    %356 = vector.extract_strided_slice %351 {offsets = [0, 512], sizes = [2, 256], strides = [1, 1]} : vector<2x768xf32> to vector<2x256xf32>
    %357 = arith.mulf %355, %315 : vector<2x256xf32>
    %358 = arith.mulf %354, %353 : vector<2x256xf32>
    %359 = arith.addf %357, %358 : vector<2x256xf32>
    %360 = math.tanh %359 : vector<2x256xf32>
    %361 = arith.mulf %356, %360 : vector<2x256xf32>
    %c0_79 = arith.constant 0 : index
    %c0_80 = arith.constant 0 : index
    %362 = vector.load %arg7[%c0_79, %c0_80] : memref<256x512xf32, #tpu.memory_space<vmem>>, vector<256x512xf32>
    %cst_81 = arith.constant dense<0.000000e+00> : vector<2x512xf32>
    %363 = tpu.matmul %361, %362, %cst_81 {dimension_numbers = #tpu.dot_dimension_numbers<[1], [0], [0], [1], [0, 0, 1, 1], [], []>} : vector<2x256xf32>, vector<256x512xf32>, vector<2x512xf32> -> vector<2x512xf32>
    %c0_82 = arith.constant 0 : index
    %c0_83 = arith.constant 0 : index
    %364 = vector.load %arg8[%c0_82, %c0_83] : memref<1x512xf32, #tpu.memory_space<vmem>>, vector<1x512xf32>
    %365 = vector.broadcast %364 : vector<1x512xf32> to vector<2x512xf32>
    %366 = arith.addf %363, %365 : vector<2x512xf32>
    %cst_84 = arith.constant 0.000000e+00 : f32
    %367 = vector.broadcast %cst_84 : f32 to vector<2x512xf32>
    %368 = arith.maximumf %366, %367 : vector<2x512xf32>
    %c0_85 = arith.constant 0 : index
    %c0_86 = arith.constant 0 : index
    %369 = vector.load %arg9[%c0_85, %c0_86] : memref<512x1024xf32, #tpu.memory_space<vmem>>, vector<512x1024xf32>
    %cst_87 = arith.constant dense<0.000000e+00> : vector<2x1024xf32>
    %370 = tpu.matmul %368, %369, %cst_87 {dimension_numbers = #tpu.dot_dimension_numbers<[1], [0], [0], [1], [0, 0, 1, 1], [], []>} : vector<2x512xf32>, vector<512x1024xf32>, vector<2x1024xf32> -> vector<2x1024xf32>
    %c0_88 = arith.constant 0 : index
    %c0_89 = arith.constant 0 : index
    %371 = vector.load %arg10[%c0_88, %c0_89] : memref<1x1024xf32, #tpu.memory_space<vmem>>, vector<1x1024xf32>
    %372 = vector.broadcast %371 : vector<1x1024xf32> to vector<2x1024xf32>
    %373 = arith.addf %370, %372 : vector<2x1024xf32>
    %cst_90 = arith.constant 0.000000e+00 : f32
    %374 = vector.broadcast %cst_90 : f32 to vector<2x1024xf32>
    %375 = arith.maximumf %373, %374 : vector<2x1024xf32>
    %c0_91 = arith.constant 0 : index
    %c0_92 = arith.constant 0 : index
    %376 = vector.load %arg11[%c0_91, %c0_92] : memref<1024x128xf32, #tpu.memory_space<vmem>>, vector<1024x128xf32>
    %cst_93 = arith.constant dense<0.000000e+00> : vector<2x128xf32>
    %377 = tpu.matmul %375, %376, %cst_93 {dimension_numbers = #tpu.dot_dimension_numbers<[1], [0], [0], [1], [0, 0, 1, 1], [], []>} : vector<2x1024xf32>, vector<1024x128xf32>, vector<2x128xf32> -> vector<2x128xf32>
    %c0_94 = arith.constant 0 : index
    %c0_95 = arith.constant 0 : index
    %378 = vector.load %arg12[%c0_94, %c0_95] : memref<1x128xf32, #tpu.memory_space<vmem>>, vector<1x128xf32>
    %379 = vector.broadcast %378 : vector<1x128xf32> to vector<2x128xf32>
    %380 = arith.addf %377, %379 : vector<2x128xf32>
    %c0_96 = arith.constant 0 : index
    %c0_97 = arith.constant 0 : index
    %381 = vector.load %arg13[%c0_96, %c0_97] : memref<2x128xf32, #tpu.memory_space<vmem>>, vector<2x128xf32>
    tpu.vector_store %arg13[%c0_96, %c0_97], %380 {strides = array<i32>} : memref<2x128xf32, #tpu.memory_space<vmem>>, vector<2x128xf32>,
    return
  }
}

</mosaic_0001>

<llo_original>
// kernel: net_forward.1
$region0: #{net_forward.1}
  #allocation0 [shape = 'u32[]', space=smem, size = 0x4, offset = 0x4, fixed_abs, tag = 'smem constant byte address 0x4 - core index']
  #allocation1 [shape = 'u32[72,128]{1,0:T(1,128)}', space=vmem, size = 0x9000, scoped, tag = 'internal scratch']
  %s0 = inlined_call_operand.hbm [shape: f32[2,8,62], index: 0, kind: input, shape index: {}]
  %s1 = inlined_call_operand.hbm [shape: f32[62,512], index: 1, kind: input, shape index: {}]
  %s2 = inlined_call_operand.hbm [shape: f32[128,512], index: 2, kind: input, shape index: {}]
  %s3 = inlined_call_operand.hbm [shape: f32[1,512], index: 3, kind: input, shape index: {}]
  %s4 = inlined_call_operand.hbm [shape: f32[128,1024], index: 4, kind: input, shape index: {}]
  %s5 = inlined_call_operand.hbm [shape: f32[256,1024], index: 5, kind: input, shape index: {}]
  %s6 = inlined_call_operand.hbm [shape: f32[1,1024], index: 6, kind: input, shape index: {}]
  %s7 = inlined_call_operand.hbm [shape: f32[256,512], index: 7, kind: input, shape index: {}]
  %s8 = inlined_call_operand.hbm [shape: f32[1,512], index: 8, kind: input, shape index: {}]
  %s9 = inlined_call_operand.hbm [shape: f32[512,1024], index: 9, kind: input, shape index: {}]
  %s10 = inlined_call_operand.hbm [shape: f32[1,1024], index: 10, kind: input, shape index: {}]
  %s11 = inlined_call_operand.hbm [shape: f32[1024,128], index: 11, kind: input, shape index: {}]
  %s12 = inlined_call_operand.hbm [shape: f32[1,128], index: 12, kind: input, shape index: {}]
  %s13 = inlined_call_operand.hbm [shape: f32[2,128], index: 13, kind: output, shape index: {}]
  %s14 = sld [smem:[#allocation0]]
  $region114: #{net_forward.1} parent=0
    _
  %s16 = ssub.s32 1, %s14
  %s17 = scalar_select 0, %s16, %s14
  $region1: #{net_forward.1} parent=0
    #allocation2 [shape = 'u8[8192]{0}', space=vmem, size = 0x2000, scoped, tag = 'input window, operand 0, single buffered']
    #allocation3 [shape = 's32[1]{0}', space=sflag, size = 0x4, scoped, tag = 'scoped memory for net_forward.1']
    #allocation4 [shape = 's32[1]{0}', space=sflag, size = 0x4, scoped, tag = 'scoped memory for net_forward.1']
    #allocation5 [shape = 'u8[131072]{0}', space=vmem, size = 0x20000, scoped, tag = 'input window, operand 1, single buffered']
    #allocation6 [shape = 's32[1]{0}', space=sflag, size = 0x4, scoped, tag = 'scoped memory for net_forward.1']
    #allocation7 [shape = 'u8[262144]{0}', space=vmem, size = 0x40000, scoped, tag = 'input window, operand 2, single buffered']
    #allocation8 [shape = 'u8[2048]{0}', space=vmem, size = 0x800, scoped, tag = 'input window, operand 3, single buffered']
    #allocation9 [shape = 's32[1]{0}', space=sflag, size = 0x4, scoped, tag = 'scoped memory for net_forward.1']
    #allocation10 [shape = 'u8[524288]{0}', space=vmem, size = 0x80000, scoped, tag = 'input window, operand 4, single buffered']
    #allocation11 [shape = 'u8[1048576]{0}', space=vmem, size = 0x100000, scoped, tag = 'input window, operand 5, single buffered']
    #allocation12 [shape = 's32[1]{0}', space=sflag, size = 0x4, scoped, tag = 'scoped memory for net_forward.1']
    #allocation13 [shape = 'u8[4096]{0}', space=vmem, size = 0x1000, scoped, tag = 'input window, operand 6, single buffered']
    #allocation14 [shape = 'u8[524288]{0}', space=vmem, size = 0x80000, scoped, tag = 'input window, operand 7, single buffered']
    #allocation15 [shape = 's32[1]{0}', space=sflag, size = 0x4, scoped, tag = 'scoped memory for net_forward.1']
    #allocation16 [shape = 'u8[2048]{0}', space=vmem, size = 0x800, scoped, tag = 'input window, operand 8, single buffered']
    #allocation17 [shape = 'u8[2097152]{0}', space=vmem, size = 0x200000, scoped, tag = 'input window, operand 9, single buffered']
    #allocation18 [shape = 's32[1]{0}', space=sflag, size = 0x4, scoped, tag = 'scoped memory for net_forward.1']
    #allocation19 [shape = 'u8[4096]{0}', space=vmem, size = 0x1000, scoped, tag = 'input window, operand 10, single buffered']
    #allocation20 [shape = 'u8[524288]{0}', space=vmem, size = 0x80000, scoped, tag = 'input window, operand 11, single buffered']
    #allocation21 [shape = 's32[1]{0}', space=sflag, size = 0x4, scoped, tag = 'scoped memory for net_forward.1']
    #allocation22 [shape = 'u8[512]{0}', space=vmem, size = 0x400, scoped, tag = 'input window, operand 12, single buffered']
    #allocation23 [shape = 'u8[1024]{0}', space=vmem, size = 0x400, scoped, tag = 'output window, operand 0, single buffered']
    %18 = vsyncpa [#allocation3], 0
    %19 = vsyncpa [#allocation6], 0
    %20 = vsyncpa [#allocation9], 0
    %21 = vsyncpa [#allocation12], 0
    %22 = vsyncpa [#allocation15], 0
    %23 = vsyncpa [#allocation18], 0
    %24 = vsyncpa [#allocation21], 0
    %25 = vsyncpa [#allocation4], 0
    // Predicated region
    $region2: #{net_forward.1} parent=1 // pred_check
      _
    $region3: #{net_forward.1} parent=1 // pred_check_branch
      %27 = sbr.rel (0) target = $region5
    $region4: #{net_forward.1} parent=1 // pred_region
      %29 = vsyncadd [#allocation3], 0
      %s30 = sshll.u32 %s0, 4
      %s31 = int_to_ptr.hbm [resolvable:$true] %s30
      %s32 = sshll.u32 [#allocation2], 4
      %s33 = int_to_ptr.vmem [resolvable:$true] %s32
      %38 = dma.hbm_to_vmem [thread:$0]  %s31, 256, %s33, [#allocation3], 128, 128, 8
    $region5: #{net_forward.1} parent=1 // pred_fallthru
      _
    // Predicated region
    $region6: #{net_forward.1} parent=1 // pred_check
      _
    $region7: #{net_forward.1} parent=1 // pred_check_branch
      %40 = sbr.rel (0) target = $region9
    $region8: #{net_forward.1} parent=1 // pred_region
      %42 = vsyncadd [#allocation6], 0
      %s43 = sshll.u32 %s1, 4
      %s44 = int_to_ptr.hbm [resolvable:$true] %s43
      %s45 = sshll.u32 [#allocation5], 4
      %s46 = int_to_ptr.vmem [resolvable:$true] %s45
      %51 = dma.hbm_to_vmem [thread:$0]  %s44, 4096, %s46, [#allocation6], 512, 512, 32
    $region9: #{net_forward.1} parent=1 // pred_fallthru
      _
    // Predicated region
    $region10: #{net_forward.1} parent=1 // pred_check
      _
    $region11: #{net_forward.1} parent=1 // pred_check_branch
      %53 = sbr.rel (0) target = $region13
    $region12: #{net_forward.1} parent=1 // pred_region
      %55 = vsyncadd [#allocation6], 0
      %s56 = sshll.u32 %s2, 4
      %s57 = int_to_ptr.hbm [resolvable:$true] %s56
      %s58 = sshll.u32 [#allocation7], 4
      %s59 = int_to_ptr.vmem [resolvable:$true] %s58
      %64 = dma.hbm_to_vmem [thread:$0]  %s57, 8192, %s59, [#allocation6], 512, 512, 32
    $region13: #{net_forward.1} parent=1 // pred_fallthru
      _
    // Predicated region
    $region14: #{net_forward.1} parent=1 // pred_check
      _
    $region15: #{net_forward.1} parent=1 // pred_check_branch
      %66 = sbr.rel (0) target = $region17
    $region16: #{net_forward.1} parent=1 // pred_region
      %68 = vsyncadd [#allocation9], 0
      %s70 = sshll.u32 %s3, 4
      %s71 = int_to_ptr.hbm [resolvable:$true] %s70
      %s72 = sshll.u32 [#allocation8], 4
      %s73 = int_to_ptr.vmem [resolvable:$true] %s72
      %75 = dma.hbm_to_vmem [thread:$0]  %s71, 64, %s73, [#allocation9]
    $region17: #{net_forward.1} parent=1 // pred_fallthru
      _
    // Predicated region
    $region18: #{net_forward.1} parent=1 // pred_check
      _
    $region19: #{net_forward.1} parent=1 // pred_check_branch
      %77 = sbr.rel (0) target = $region21
    $region20: #{net_forward.1} parent=1 // pred_region
      %79 = vsyncadd [#allocation9], 0
      %s80 = sshll.u32 %s4, 4
      %s81 = int_to_ptr.hbm [resolvable:$true] %s80
      %s82 = sshll.u32 [#allocation10], 4
      %s83 = int_to_ptr.vmem [resolvable:$true] %s82
      %88 = dma.hbm_to_vmem [thread:$0]  %s81, 16384, %s83, [#allocation9], 1024, 1024, 64
    $region21: #{net_forward.1} parent=1 // pred_fallthru
      _
    // Predicated region
    $region22: #{net_forward.1} parent=1 // pred_check
      _
    $region23: #{net_forward.1} parent=1 // pred_check_branch
      %90 = sbr.rel (0) target = $region25
    $region24: #{net_forward.1} parent=1 // pred_region
      %92 = vsyncadd [#allocation12], 0
      %s93 = sshll.u32 %s5, 4
      %s94 = int_to_ptr.hbm [resolvable:$true] %s93
      %s95 = sshll.u32 [#allocation11], 4
      %s96 = int_to_ptr.vmem [resolvable:$true] %s95
      %101 = dma.hbm_to_vmem [thread:$0]  %s94, 32768, %s96, [#allocation12], 1024, 1024, 64
    $region25: #{net_forward.1} parent=1 // pred_fallthru
      _
    // Predicated region
    $region26: #{net_forward.1} parent=1 // pred_check
      _
    $region27: #{net_forward.1} parent=1 // pred_check_branch
      %103 = sbr.rel (0) target = $region29
    $region28: #{net_forward.1} parent=1 // pred_region
      %105 = vsyncadd [#allocation12], 0
      %s107 = sshll.u32 %s6, 4
      %s108 = int_to_ptr.hbm [resolvable:$true] %s107
      %s109 = sshll.u32 [#allocation13], 4
      %s110 = int_to_ptr.vmem [resolvable:$true] %s109
      %112 = dma.hbm_to_vmem [thread:$0]  %s108, 128, %s110, [#allocation12]
    $region29: #{net_forward.1} parent=1 // pred_fallthru
      _
    // Predicated region
    $region30: #{net_forward.1} parent=1 // pred_check
      _
    $region31: #{net_forward.1} parent=1 // pred_check_branch
      %114 = sbr.rel (0) target = $region33
    $region32: #{net_forward.1} parent=1 // pred_region
      %116 = vsyncadd [#allocation15], 0
      %s117 = sshll.u32 %s7, 4
      %s118 = int_to_ptr.hbm [resolvable:$true] %s117
      %s119 = sshll.u32 [#allocation14], 4
      %s120 = int_to_ptr.vmem [resolvable:$true] %s119
      %125 = dma.hbm_to_vmem [thread:$0]  %s118, 16384, %s120, [#allocation15], 512, 512, 32
    $region33: #{net_forward.1} parent=1 // pred_fallthru
      _
    // Predicated region
    $region34: #{net_forward.1} parent=1 // pred_check
      _
    $region35: #{net_forward.1} parent=1 // pred_check_branch
      %127 = sbr.rel (0) target = $region37
    $region36: #{net_forward.1} parent=1 // pred_region
      %129 = vsyncadd [#allocation15], 0
      %s131 = sshll.u32 %s8, 4
      %s132 = int_to_ptr.hbm [resolvable:$true] %s131
      %s133 = sshll.u32 [#allocation16], 4
      %s134 = int_to_ptr.vmem [resolvable:$true] %s133
      %136 = dma.hbm_to_vmem [thread:$0]  %s132, 64, %s134, [#allocation15]
    $region37: #{net_forward.1} parent=1 // pred_fallthru
      _
    // Predicated region
    $region38: #{net_forward.1} parent=1 // pred_check
      _
    $region39: #{net_forward.1} parent=1 // pred_check_branch
      %138 = sbr.rel (0) target = $region41
    $region40: #{net_forward.1} parent=1 // pred_region
      %140 = vsyncadd [#allocation18], 0
      %s141 = sshll.u32 %s9, 4
      %s142 = int_to_ptr.hbm [resolvable:$true] %s141
      %s143 = sshll.u32 [#allocation17], 4
      %s144 = int_to_ptr.vmem [resolvable:$true] %s143
      %149 = dma.hbm_to_vmem [thread:$0]  %s142, 65536, %s144, [#allocation18], 1024, 1024, 64
    $region41: #{net_forward.1} parent=1 // pred_fallthru
      _
    // Predicated region
    $region42: #{net_forward.1} parent=1 // pred_check
      _
    $region43: #{net_forward.1} parent=1 // pred_check_branch
      %151 = sbr.rel (0) target = $region45
    $region44: #{net_forward.1} parent=1 // pred_region
      %153 = vsyncadd [#allocation18], 0
      %s155 = sshll.u32 %s10, 4
      %s156 = int_to_ptr.hbm [resolvable:$true] %s155
      %s157 = sshll.u32 [#allocation19], 4
      %s158 = int_to_ptr.vmem [resolvable:$true] %s157
      %160 = dma.hbm_to_vmem [thread:$0]  %s156, 128, %s158, [#allocation18]
    $region45: #{net_forward.1} parent=1 // pred_fallthru
      _
    // Predicated region
    $region46: #{net_forward.1} parent=1 // pred_check
      _
    $region47: #{net_forward.1} parent=1 // pred_check_branch
      %162 = sbr.rel (0) target = $region49
    $region48: #{net_forward.1} parent=1 // pred_region
      %164 = vsyncadd [#allocation21], 0
      %s165 = sshll.u32 %s11, 4
      %s166 = int_to_ptr.hbm [resolvable:$true] %s165
      %s167 = sshll.u32 [#allocation20], 4
      %s168 = int_to_ptr.vmem [resolvable:$true] %s167
      %173 = dma.hbm_to_vmem [thread:$0]  %s166, 16384, %s168, [#allocation21], 128, 128, 8
    $region49: #{net_forward.1} parent=1 // pred_fallthru
      _
    // Predicated region
    $region50: #{net_forward.1} parent=1 // pred_check
      _
    $region51: #{net_forward.1} parent=1 // pred_check_branch
      %175 = sbr.rel (0) target = $region53
    $region52: #{net_forward.1} parent=1 // pred_region
      %177 = vsyncadd [#allocation21], 0
      %s179 = sshll.u32 %s12, 4
      %s180 = int_to_ptr.hbm [resolvable:$true] %s179
      %s181 = sshll.u32 [#allocation22], 4
      %s182 = int_to_ptr.vmem [resolvable:$true] %s181
      %184 = dma.hbm_to_vmem [thread:$0]  %s180, 16, %s182, [#allocation21]
    $region53: #{net_forward.1} parent=1 // pred_fallthru
      _
    // Predicated region
    $region54: #{net_forward.1} parent=1 // pred_check
      _
    $region55: #{net_forward.1} parent=1 // pred_check_branch
      %186 = sbr.rel (0) target = $region57
    $region56: #{net_forward.1} parent=1 // pred_region
      %188 = dma.done [#allocation3], 256
    $region57: #{net_forward.1} parent=1 // pred_fallthru
      _
    // Predicated region
    $region58: #{net_forward.1} parent=1 // pred_check
      _
    $region59: #{net_forward.1} parent=1 // pred_check_branch
      %190 = sbr.rel (0) target = $region61
    $region60: #{net_forward.1} parent=1 // pred_region
      %192 = dma.done [#allocation6], 4096
    $region61: #{net_forward.1} parent=1 // pred_fallthru
      _
    // Predicated region
    $region62: #{net_forward.1} parent=1 // pred_check
      _
    $region63: #{net_forward.1} parent=1 // pred_check_branch
      %194 = sbr.rel (0) target = $region65
    $region64: #{net_forward.1} parent=1 // pred_region
      %196 = dma.done [#allocation6], 8192
    $region65: #{net_forward.1} parent=1 // pred_fallthru
      _
    // Predicated region
    $region66: #{net_forward.1} parent=1 // pred_check
      _
    $region67: #{net_forward.1} parent=1 // pred_check_branch
      %198 = sbr.rel (0) target = $region69
    $region68: #{net_forward.1} parent=1 // pred_region
      %200 = dma.done [#allocation9], 64
    $region69: #{net_forward.1} parent=1 // pred_fallthru
      _
    // Predicated region
    $region70: #{net_forward.1} parent=1 // pred_check
      _
    $region71: #{net_forward.1} parent=1 // pred_check_branch
      %202 = sbr.rel (0) target = $region73
    $region72: #{net_forward.1} parent=1 // pred_region
      %204 = dma.done [#allocation9], 16384
    $region73: #{net_forward.1} parent=1 // pred_fallthru
      _
    // Predicated region
    $region74: #{net_forward.1} parent=1 // pred_check
      _
    $region75: #{net_forward.1} parent=1 // pred_check_branch
      %206 = sbr.rel (0) target = $region77
    $region76: #{net_forward.1} parent=1 // pred_region
      %208 = dma.done [#allocation12], 32768
    $region77: #{net_forward.1} parent=1 // pred_fallthru
      _
    // Predicated region
    $region78: #{net_forward.1} parent=1 // pred_check
      _
    $region79: #{net_forward.1} parent=1 // pred_check_branch
      %210 = sbr.rel (0) target = $region81
    $region80: #{net_forward.1} parent=1 // pred_region
      %212 = dma.done [#allocation12], 128
    $region81: #{net_forward.1} parent=1 // pred_fallthru
      _
    // Predicated region
    $region82: #{net_forward.1} parent=1 // pred_check
      _
    $region83: #{net_forward.1} parent=1 // pred_check_branch
      %214 = sbr.rel (0) target = $region85
    $region84: #{net_forward.1} parent=1 // pred_region
      %216 = dma.done [#allocation15], 16384
    $region85: #{net_forward.1} parent=1 // pred_fallthru
      _
    // Predicated region
    $region86: #{net_forward.1} parent=1 // pred_check
      _
    $region87: #{net_forward.1} parent=1 // pred_check_branch
      %218 = sbr.rel (0) target = $region89
    $region88: #{net_forward.1} parent=1 // pred_region
      %220 = dma.done [#allocation15], 64
    $region89: #{net_forward.1} parent=1 // pred_fallthru
      _
    // Predicated region
    $region90: #{net_forward.1} parent=1 // pred_check
      _
    $region91: #{net_forward.1} parent=1 // pred_check_branch
      %222 = sbr.rel (0) target = $region93
    $region92: #{net_forward.1} parent=1 // pred_region
      %224 = dma.done [#allocation18], 65536
    $region93: #{net_forward.1} parent=1 // pred_fallthru
      _
    // Predicated region
    $region94: #{net_forward.1} parent=1 // pred_check
      _
    $region95: #{net_forward.1} parent=1 // pred_check_branch
      %226 = sbr.rel (0) target = $region97
    $region96: #{net_forward.1} parent=1 // pred_region
      %228 = dma.done [#allocation18], 128
    $region97: #{net_forward.1} parent=1 // pred_fallthru
      _
    // Predicated region
    $region98: #{net_forward.1} parent=1 // pred_check
      _
    $region99: #{net_forward.1} parent=1 // pred_check_branch
      %230 = sbr.rel (0) target = $region101
    $region100: #{net_forward.1} parent=1 // pred_region
      %232 = dma.done [#allocation21], 16384
    $region101: #{net_forward.1} parent=1 // pred_fallthru
      _
    // Predicated region
    $region102: #{net_forward.1} parent=1 // pred_check
      _
    $region103: #{net_forward.1} parent=1 // pred_check_branch
      %234 = sbr.rel (0) target = $region105
    $region104: #{net_forward.1} parent=1 // pred_region
      %236 = dma.done [#allocation21], 16
    $region105: #{net_forward.1} parent=1 // pred_fallthru
      _
    %v237 = vld [vmem:[#allocation5] sm:$0xff]
    %v238 = vld [vmem:[#allocation5 + $0x8] sm:$0xff]
    %v239 = vld [vmem:[#allocation5 + $0x10] sm:$0xff]
    %v240 = vld [vmem:[#allocation5 + $0x18] sm:$0xff]
    %v241 = vld [vmem:[#allocation5 + $0x20] sm:$0xff]
    %v242 = vld [vmem:[#allocation5 + $0x28] sm:$0xff]
    %v243 = vld [vmem:[#allocation5 + $0x30] sm:$0xff]
    %v244 = vld [vmem:[#allocation5 + $0x38] sm:$0xff]
    %v245 = vld [vmem:[#allocation5 + $0x40] sm:$0xff]
    %v246 = vld [vmem:[#allocation5 + $0x48] sm:$0xff]
    %v247 = vld [vmem:[#allocation5 + $0x50] sm:$0xff]
    %v248 = vld [vmem:[#allocation5 + $0x58] sm:$0xff]
    %v249 = vld [vmem:[#allocation5 + $0x60] sm:$0xff]
    %v250 = vld [vmem:[#allocation5 + $0x68] sm:$0xff]
    %v251 = vld [vmem:[#allocation5 + $0x70] sm:$0xff]
    %v252 = vld [vmem:[#allocation5 + $0x78] sm:$0xff]
    %v253 = vld [vmem:[#allocation5 + $0x80] sm:$0xff]
    %v254 = vld [vmem:[#allocation5 + $0x88] sm:$0xff]
    %v255 = vld [vmem:[#allocation5 + $0x90] sm:$0xff]
    %v256 = vld [vmem:[#allocation5 + $0x98] sm:$0xff]
    %v257 = vld [vmem:[#allocation5 + $0xa0] sm:$0xff]
    %v258 = vld [vmem:[#allocation5 + $0xa8] sm:$0xff]
    %v259 = vld [vmem:[#allocation5 + $0xb0] sm:$0xff]
    %v260 = vld [vmem:[#allocation5 + $0xb8] sm:$0xff]
    %v261 = vld [vmem:[#allocation5 + $0xc0] sm:$0xff]
    %v262 = vld [vmem:[#allocation5 + $0xc8] sm:$0xff]
    %v263 = vld [vmem:[#allocation5 + $0xd0] sm:$0xff]
    %v264 = vld [vmem:[#allocation5 + $0xd8] sm:$0xff]
    %v265 = vld [vmem:[#allocation5 + $0xe0] sm:$0x3f]
    %v266 = vld [vmem:[#allocation5 + $0xe8] sm:$0x3f]
    %v267 = vld [vmem:[#allocation5 + $0xf0] sm:$0x3f]
    %v268 = vld [vmem:[#allocation5 + $0xf8] sm:$0x3f]
    %v269 = vld [vmem:[#allocation7] sm:$0xff]
    %v270 = vld [vmem:[#allocation7 + $0x8] sm:$0xff]
    %v271 = vld [vmem:[#allocation7 + $0x10] sm:$0xff]
    %v272 = vld [vmem:[#allocation7 + $0x18] sm:$0xff]
    %v273 = vld [vmem:[#allocation7 + $0x20] sm:$0xff]
    %v274 = vld [vmem:[#allocation7 + $0x28] sm:$0xff]
    %v275 = vld [vmem:[#allocation7 + $0x30] sm:$0xff]
    %v276 = vld [vmem:[#allocation7 + $0x38] sm:$0xff]
    %v277 = vld [vmem:[#allocation7 + $0x40] sm:$0xff]
    %v278 = vld [vmem:[#allocation7 + $0x48] sm:$0xff]
    %v279 = vld [vmem:[#allocation7 + $0x50] sm:$0xff]
    %v280 = vld [vmem:[#allocation7 + $0x58] sm:$0xff]
    %v281 = vld [vmem:[#allocation7 + $0x60] sm:$0xff]
    %v282 = vld [vmem:[#allocation7 + $0x68] sm:$0xff]
    %v283 = vld [vmem:[#allocation7 + $0x70] sm:$0xff]
    %v284 = vld [vmem:[#allocation7 + $0x78] sm:$0xff]
    %v285 = vld [vmem:[#allocation7 + $0x80] sm:$0xff]
    %v286 = vld [vmem:[#allocation7 + $0x88] sm:$0xff]
    %v287 = vld [vmem:[#allocation7 + $0x90] sm:$0xff]
    %v288 = vld [vmem:[#allocation7 + $0x98] sm:$0xff]
    %v289 = vld [vmem:[#allocation7 + $0xa0] sm:$0xff]
    %v290 = vld [vmem:[#allocation7 + $0xa8] sm:$0xff]
    %v291 = vld [vmem:[#allocation7 + $0xb0] sm:$0xff]
    %v292 = vld [vmem:[#allocation7 + $0xb8] sm:$0xff]
    %v293 = vld [vmem:[#allocation7 + $0xc0] sm:$0xff]
    %v294 = vld [vmem:[#allocation7 + $0xc8] sm:$0xff]
    %v295 = vld [vmem:[#allocation7 + $0xd0] sm:$0xff]
    %v296 = vld [vmem:[#allocation7 + $0xd8] sm:$0xff]
    %v297 = vld [vmem:[#allocation7 + $0xe0] sm:$0xff]
    %v298 = vld [vmem:[#allocation7 + $0xe8] sm:$0xff]
    %v299 = vld [vmem:[#allocation7 + $0xf0] sm:$0xff]
    %v300 = vld [vmem:[#allocation7 + $0xf8] sm:$0xff]
    %v301 = vld [vmem:[#allocation7 + $0x100] sm:$0xff]
    %v302 = vld [vmem:[#allocation7 + $0x108] sm:$0xff]
    %v303 = vld [vmem:[#allocation7 + $0x110] sm:$0xff]
    %v304 = vld [vmem:[#allocation7 + $0x118] sm:$0xff]
    %v305 = vld [vmem:[#allocation7 + $0x120] sm:$0xff]
    %v306 = vld [vmem:[#allocation7 + $0x128] sm:$0xff]
    %v307 = vld [vmem:[#allocation7 + $0x130] sm:$0xff]
    %v308 = vld [vmem:[#allocation7 + $0x138] sm:$0xff]
    %v309 = vld [vmem:[#allocation7 + $0x140] sm:$0xff]
    %v310 = vld [vmem:[#allocation7 + $0x148] sm:$0xff]
    %v311 = vld [vmem:[#allocation7 + $0x150] sm:$0xff]
    %v312 = vld [vmem:[#allocation7 + $0x158] sm:$0xff]
    %v313 = vld [vmem:[#allocation7 + $0x160] sm:$0xff]
    %v314 = vld [vmem:[#allocation7 + $0x168] sm:$0xff]
    %v315 = vld [vmem:[#allocation7 + $0x170] sm:$0xff]
    %v316 = vld [vmem:[#allocation7 + $0x178] sm:$0xff]
    %v317 = vld [vmem:[#allocation7 + $0x180] sm:$0xff]
    %v318 = vld [vmem:[#allocation7 + $0x188] sm:$0xff]
    %v319 = vld [vmem:[#allocation7 + $0x190] sm:$0xff]
    %v320 = vld [vmem:[#allocation7 + $0x198] sm:$0xff]
    %v321 = vld [vmem:[#allocation7 + $0x1a0] sm:$0xff]
    %v322 = vld [vmem:[#allocation7 + $0x1a8] sm:$0xff]
    %v323 = vld [vmem:[#allocation7 + $0x1b0] sm:$0xff]
    %v324 = vld [vmem:[#allocation7 + $0x1b8] sm:$0xff]
    %v325 = vld [vmem:[#allocation7 + $0x1c0] sm:$0xff]
    %v326 = vld [vmem:[#allocation7 + $0x1c8] sm:$0xff]
    %v327 = vld [vmem:[#allocation7 + $0x1d0] sm:$0xff]
    %v328 = vld [vmem:[#allocation7 + $0x1d8] sm:$0xff]
    %v329 = vld [vmem:[#allocation7 + $0x1e0] sm:$0xff]
    %v330 = vld [vmem:[#allocation7 + $0x1e8] sm:$0xff]
    %v331 = vld [vmem:[#allocation7 + $0x1f0] sm:$0xff]
    %v332 = vld [vmem:[#allocation7 + $0x1f8] sm:$0xff]
    %v333 = vld [vmem:[#allocation8] sm:$0xf]
    %v334 = vld [vmem:[#allocation10] sm:$0xff]
    %v335 = vld [vmem:[#allocation10 + $0x8] sm:$0xff]
    %v336 = vld [vmem:[#allocation10 + $0x10] sm:$0xff]
    %v337 = vld [vmem:[#allocation10 + $0x18] sm:$0xff]
    %v338 = vld [vmem:[#allocation10 + $0x20] sm:$0xff]
    %v339 = vld [vmem:[#allocation10 + $0x28] sm:$0xff]
    %v340 = vld [vmem:[#allocation10 + $0x30] sm:$0xff]
    %v341 = vld [vmem:[#allocation10 + $0x38] sm:$0xff]
    %v342 = vld [vmem:[#allocation10 + $0x40] sm:$0xff]
    %v343 = vld [vmem:[#allocation10 + $0x48] sm:$0xff]
    %v344 = vld [vmem:[#allocation10 + $0x50] sm:$0xff]
    %v345 = vld [vmem:[#allocation10 + $0x58] sm:$0xff]
    %v346 = vld [vmem:[#allocation10 + $0x60] sm:$0xff]
    %v347 = vld [vmem:[#allocation10 + $0x68] sm:$0xff]
    %v348 = vld [vmem:[#allocation10 + $0x70] sm:$0xff]
    %v349 = vld [vmem:[#allocation10 + $0x78] sm:$0xff]
    %v350 = vld [vmem:[#allocation10 + $0x80] sm:$0xff]
    %v351 = vld [vmem:[#allocation10 + $0x88] sm:$0xff]
    %v352 = vld [vmem:[#allocation10 + $0x90] sm:$0xff]
    %v353 = vld [vmem:[#allocation10 + $0x98] sm:$0xff]
    %v354 = vld [vmem:[#allocation10 + $0xa0] sm:$0xff]
    %v355 = vld [vmem:[#allocation10 + $0xa8] sm:$0xff]
    %v356 = vld [vmem:[#allocation10 + $0xb0] sm:$0xff]
    %v357 = vld [vmem:[#allocation10 + $0xb8] sm:$0xff]
    %v358 = vld [vmem:[#allocation10 + $0xc0] sm:$0xff]
    %v359 = vld [vmem:[#allocation10 + $0xc8] sm:$0xff]
    %v360 = vld [vmem:[#allocation10 + $0xd0] sm:$0xff]
    %v361 = vld [vmem:[#allocation10 + $0xd8] sm:$0xff]
    %v362 = vld [vmem:[#allocation10 + $0xe0] sm:$0xff]
    %v363 = vld [vmem:[#allocation10 + $0xe8] sm:$0xff]
    %v364 = vld [vmem:[#allocation10 + $0xf0] sm:$0xff]
    %v365 = vld [vmem:[#allocation10 + $0xf8] sm:$0xff]
    %v366 = vld [vmem:[#allocation10 + $0x100] sm:$0xff]
    %v367 = vld [vmem:[#allocation10 + $0x108] sm:$0xff]
    %v368 = vld [vmem:[#allocation10 + $0x110] sm:$0xff]
    %v369 = vld [vmem:[#allocation10 + $0x118] sm:$0xff]
    %v370 = vld [vmem:[#allocation10 + $0x120] sm:$0xff]
    %v371 = vld [vmem:[#allocation10 + $0x128] sm:$0xff]
    %v372 = vld [vmem:[#allocation10 + $0x130] sm:$0xff]
    %v373 = vld [vmem:[#allocation10 + $0x138] sm:$0xff]
    %v374 = vld [vmem:[#allocation10 + $0x140] sm:$0xff]
    %v375 = vld [vmem:[#allocation10 + $0x148] sm:$0xff]
    %v376 = vld [vmem:[#allocation10 + $0x150] sm:$0xff]
    %v377 = vld [vmem:[#allocation10 + $0x158] sm:$0xff]
    %v378 = vld [vmem:[#allocation10 + $0x160] sm:$0xff]
    %v379 = vld [vmem:[#allocation10 + $0x168] sm:$0xff]
    %v380 = vld [vmem:[#allocation10 + $0x170] sm:$0xff]
    %v381 = vld [vmem:[#allocation10 + $0x178] sm:$0xff]
    %v382 = vld [vmem:[#allocation10 + $0x180] sm:$0xff]
    %v383 = vld [vmem:[#allocation10 + $0x188] sm:$0xff]
    %v384 = vld [vmem:[#allocation10 + $0x190] sm:$0xff]
    %v385 = vld [vmem:[#allocation10 + $0x198] sm:$0xff]
    %v386 = vld [vmem:[#allocation10 + $0x1a0] sm:$0xff]
    %v387 = vld [vmem:[#allocation10 + $0x1a8] sm:$0xff]
    %v388 = vld [vmem:[#allocation10 + $0x1b0] sm:$0xff]
    %v389 = vld [vmem:[#allocation10 + $0x1b8] sm:$0xff]
    %v390 = vld [vmem:[#allocation10 + $0x1c0] sm:$0xff]
    %v391 = vld [vmem:[#allocation10 + $0x1c8] sm:$0xff]
    %v392 = vld [vmem:[#allocation10 + $0x1d0] sm:$0xff]
    %v393 = vld [vmem:[#allocation10 + $0x1d8] sm:$0xff]
    %v394 = vld [vmem:[#allocation10 + $0x1e0] sm:$0xff]
    %v395 = vld [vmem:[#allocation10 + $0x1e8] sm:$0xff]
    %v396 = vld [vmem:[#allocation10 + $0x1f0] sm:$0xff]
    %v397 = vld [vmem:[#allocation10 + $0x1f8] sm:$0xff]
    %v398 = vld [vmem:[#allocation10 + $0x200] sm:$0xff]
    %v399 = vld [vmem:[#allocation10 + $0x208] sm:$0xff]
    %v400 = vld [vmem:[#allocation10 + $0x210] sm:$0xff]
    %v401 = vld [vmem:[#allocation10 + $0x218] sm:$0xff]
    %v402 = vld [vmem:[#allocation10 + $0x220] sm:$0xff]
    %v403 = vld [vmem:[#allocation10 + $0x228] sm:$0xff]
    %v404 = vld [vmem:[#allocation10 + $0x230] sm:$0xff]
    %v405 = vld [vmem:[#allocation10 + $0x238] sm:$0xff]
    %v406 = vld [vmem:[#allocation10 + $0x240] sm:$0xff]
    %v407 = vld [vmem:[#allocation10 + $0x248] sm:$0xff]
    %v408 = vld [vmem:[#allocation10 + $0x250] sm:$0xff]
    %v409 = vld [vmem:[#allocation10 + $0x258] sm:$0xff]
    %v410 = vld [vmem:[#allocation10 + $0x260] sm:$0xff]
    %v411 = vld [vmem:[#allocation10 + $0x268] sm:$0xff]
    %v412 = vld [vmem:[#allocation10 + $0x270] sm:$0xff]
    %v413 = vld [vmem:[#allocation10 + $0x278] sm:$0xff]
    %v414 = vld [vmem:[#allocation10 + $0x280] sm:$0xff]
    %v415 = vld [vmem:[#allocation10 + $0x288] sm:$0xff]
    %v416 = vld [vmem:[#allocation10 + $0x290] sm:$0xff]
    %v417 = vld [vmem:[#allocation10 + $0x298] sm:$0xff]
    %v418 = vld [vmem:[#allocation10 + $0x2a0] sm:$0xff]
    %v419 = vld [vmem:[#allocation10 + $0x2a8] sm:$0xff]
    %v420 = vld [vmem:[#allocation10 + $0x2b0] sm:$0xff]
    %v421 = vld [vmem:[#allocation10 + $0x2b8] sm:$0xff]
    %v422 = vld [vmem:[#allocation10 + $0x2c0] sm:$0xff]
    %v423 = vld [vmem:[#allocation10 + $0x2c8] sm:$0xff]
    %v424 = vld [vmem:[#allocation10 + $0x2d0] sm:$0xff]
    %v425 = vld [vmem:[#allocation10 + $0x2d8] sm:$0xff]
    %v426 = vld [vmem:[#allocation10 + $0x2e0] sm:$0xff]
    %v427 = vld [vmem:[#allocation10 + $0x2e8] sm:$0xff]
    %v428 = vld [vmem:[#allocation10 + $0x2f0] sm:$0xff]
    %v429 = vld [vmem:[#allocation10 + $0x2f8] sm:$0xff]
    %v430 = vld [vmem:[#allocation10 + $0x300] sm:$0xff]
    %v431 = vld [vmem:[#allocation10 + $0x308] sm:$0xff]
    %v432 = vld [vmem:[#allocation10 + $0x310] sm:$0xff]
    %v433 = vld [vmem:[#allocation10 + $0x318] sm:$0xff]
    %v434 = vld [vmem:[#allocation10 + $0x320] sm:$0xff]
    %v435 = vld [vmem:[#allocation10 + $0x328] sm:$0xff]
    %v436 = vld [vmem:[#allocation10 + $0x330] sm:$0xff]
    %v437 = vld [vmem:[#allocation10 + $0x338] sm:$0xff]
    %v438 = vld [vmem:[#allocation10 + $0x340] sm:$0xff]
    %v439 = vld [vmem:[#allocation10 + $0x348] sm:$0xff]
    %v440 = vld [vmem:[#allocation10 + $0x350] sm:$0xff]
    %v441 = vld [vmem:[#allocation10 + $0x358] sm:$0xff]
    %v442 = vld [vmem:[#allocation10 + $0x360] sm:$0xff]
    %v443 = vld [vmem:[#allocation10 + $0x368] sm:$0xff]
    %v444 = vld [vmem:[#allocation10 + $0x370] sm:$0xff]
    %v445 = vld [vmem:[#allocation10 + $0x378] sm:$0xff]
    %v446 = vld [vmem:[#allocation10 + $0x380] sm:$0xff]
    %v447 = vld [vmem:[#allocation10 + $0x388] sm:$0xff]
    %v448 = vld [vmem:[#allocation10 + $0x390] sm:$0xff]
    %v449 = vld [vmem:[#allocation10 + $0x398] sm:$0xff]
    %v450 = vld [vmem:[#allocation10 + $0x3a0] sm:$0xff]
    %v451 = vld [vmem:[#allocation10 + $0x3a8] sm:$0xff]
    %v452 = vld [vmem:[#allocation10 + $0x3b0] sm:$0xff]
    %v453 = vld [vmem:[#allocation10 + $0x3b8] sm:$0xff]
    %v454 = vld [vmem:[#allocation10 + $0x3c0] sm:$0xff]
    %v455 = vld [vmem:[#allocation10 + $0x3c8] sm:$0xff]
    %v456 = vld [vmem:[#allocation10 + $0x3d0] sm:$0xff]
    %v457 = vld [vmem:[#allocation10 + $0x3d8] sm:$0xff]
    %v458 = vld [vmem:[#allocation10 + $0x3e0] sm:$0xff]
    %v459 = vld [vmem:[#allocation10 + $0x3e8] sm:$0xff]
    %v460 = vld [vmem:[#allocation10 + $0x3f0] sm:$0xff]
    %v461 = vld [vmem:[#allocation10 + $0x3f8] sm:$0xff]
    %v462 = vld [vmem:[#allocation11] sm:$0xff]
    %v463 = vld [vmem:[#allocation11 + $0x8] sm:$0xff]
    %v464 = vld [vmem:[#allocation11 + $0x10] sm:$0xff]
    %v465 = vld [vmem:[#allocation11 + $0x18] sm:$0xff]
    %v466 = vld [vmem:[#allocation11 + $0x20] sm:$0xff]
    %v467 = vld [vmem:[#allocation11 + $0x28] sm:$0xff]
    %v468 = vld [vmem:[#allocation11 + $0x30] sm:$0xff]
    %v469 = vld [vmem:[#allocation11 + $0x38] sm:$0xff]
    %v470 = vld [vmem:[#allocation11 + $0x40] sm:$0xff]
    %v471 = vld [vmem:[#allocation11 + $0x48] sm:$0xff]
    %v472 = vld [vmem:[#allocation11 + $0x50] sm:$0xff]
    %v473 = vld [vmem:[#allocation11 + $0x58] sm:$0xff]
    %v474 = vld [vmem:[#allocation11 + $0x60] sm:$0xff]
    %v475 = vld [vmem:[#allocation11 + $0x68] sm:$0xff]
    %v476 = vld [vmem:[#allocation11 + $0x70] sm:$0xff]
    %v477 = vld [vmem:[#allocation11 + $0x78] sm:$0xff]
    %v478 = vld [vmem:[#allocation11 + $0x80] sm:$0xff]
    %v479 = vld [vmem:[#allocation11 + $0x88] sm:$0xff]
    %v480 = vld [vmem:[#allocation11 + $0x90] sm:$0xff]
    %v481 = vld [vmem:[#allocation11 + $0x98] sm:$0xff]
    %v482 = vld [vmem:[#allocation11 + $0xa0] sm:$0xff]
    %v483 = vld [vmem:[#allocation11 + $0xa8] sm:$0xff]
    %v484 = vld [vmem:[#allocation11 + $0xb0] sm:$0xff]
    %v485 = vld [vmem:[#allocation11 + $0xb8] sm:$0xff]
    %v486 = vld [vmem:[#allocation11 + $0xc0] sm:$0xff]
    %v487 = vld [vmem:[#allocation11 + $0xc8] sm:$0xff]
    %v488 = vld [vmem:[#allocation11 + $0xd0] sm:$0xff]
    %v489 = vld [vmem:[#allocation11 + $0xd8] sm:$0xff]
    %v490 = vld [vmem:[#allocation11 + $0xe0] sm:$0xff]
    %v491 = vld [vmem:[#allocation11 + $0xe8] sm:$0xff]
    %v492 = vld [vmem:[#allocation11 + $0xf0] sm:$0xff]
    %v493 = vld [vmem:[#allocation11 + $0xf8] sm:$0xff]
    %v494 = vld [vmem:[#allocation11 + $0x100] sm:$0xff]
    %v495 = vld [vmem:[#allocation11 + $0x108] sm:$0xff]
    %v496 = vld [vmem:[#allocation11 + $0x110] sm:$0xff]
    %v497 = vld [vmem:[#allocation11 + $0x118] sm:$0xff]
    %v498 = vld [vmem:[#allocation11 + $0x120] sm:$0xff]
    %v499 = vld [vmem:[#allocation11 + $0x128] sm:$0xff]
    %v500 = vld [vmem:[#allocation11 + $0x130] sm:$0xff]
    %v501 = vld [vmem:[#allocation11 + $0x138] sm:$0xff]
    %v502 = vld [vmem:[#allocation11 + $0x140] sm:$0xff]
    %v503 = vld [vmem:[#allocation11 + $0x148] sm:$0xff]
    %v504 = vld [vmem:[#allocation11 + $0x150] sm:$0xff]
    %v505 = vld [vmem:[#allocation11 + $0x158] sm:$0xff]
    %v506 = vld [vmem:[#allocation11 + $0x160] sm:$0xff]
    %v507 = vld [vmem:[#allocation11 + $0x168] sm:$0xff]
    %v508 = vld [vmem:[#allocation11 + $0x170] sm:$0xff]
    %v509 = vld [vmem:[#allocation11 + $0x178] sm:$0xff]
    %v510 = vld [vmem:[#allocation11 + $0x180] sm:$0xff]
    %v511 = vld [vmem:[#allocation11 + $0x188] sm:$0xff]
    %v512 = vld [vmem:[#allocation11 + $0x190] sm:$0xff]
    %v513 = vld [vmem:[#allocation11 + $0x198] sm:$0xff]
    %v514 = vld [vmem:[#allocation11 + $0x1a0] sm:$0xff]
    %v515 = vld [vmem:[#allocation11 + $0x1a8] sm:$0xff]
    %v516 = vld [vmem:[#allocation11 + $0x1b0] sm:$0xff]
    %v517 = vld [vmem:[#allocation11 + $0x1b8] sm:$0xff]
    %v518 = vld [vmem:[#allocation11 + $0x1c0] sm:$0xff]
    %v519 = vld [vmem:[#allocation11 + $0x1c8] sm:$0xff]
    %v520 = vld [vmem:[#allocation11 + $0x1d0] sm:$0xff]
    %v521 = vld [vmem:[#allocation11 + $0x1d8] sm:$0xff]
    %v522 = vld [vmem:[#allocation11 + $0x1e0] sm:$0xff]
    %v523 = vld [vmem:[#allocation11 + $0x1e8] sm:$0xff]
    %v524 = vld [vmem:[#allocation11 + $0x1f0] sm:$0xff]
    %v525 = vld [vmem:[#allocation11 + $0x1f8] sm:$0xff]
    %v526 = vld [vmem:[#allocation11 + $0x200] sm:$0xff]
    %v527 = vld [vmem:[#allocation11 + $0x208] sm:$0xff]
    %v528 = vld [vmem:[#allocation11 + $0x210] sm:$0xff]
    %v529 = vld [vmem:[#allocation11 + $0x218] sm:$0xff]
    %v530 = vld [vmem:[#allocation11 + $0x220] sm:$0xff]
    %v531 = vld [vmem:[#allocation11 + $0x228] sm:$0xff]
    %v532 = vld [vmem:[#allocation11 + $0x230] sm:$0xff]
    %v533 = vld [vmem:[#allocation11 + $0x238] sm:$0xff]
    %v534 = vld [vmem:[#allocation11 + $0x240] sm:$0xff]
    %v535 = vld [vmem:[#allocation11 + $0x248] sm:$0xff]
    %v536 = vld [vmem:[#allocation11 + $0x250] sm:$0xff]
    %v537 = vld [vmem:[#allocation11 + $0x258] sm:$0xff]
    %v538 = vld [vmem:[#allocation11 + $0x260] sm:$0xff]
    %v539 = vld [vmem:[#allocation11 + $0x268] sm:$0xff]
    %v540 = vld [vmem:[#allocation11 + $0x270] sm:$0xff]
    %v541 = vld [vmem:[#allocation11 + $0x278] sm:$0xff]
    %v542 = vld [vmem:[#allocation11 + $0x280] sm:$0xff]
    %v543 = vld [vmem:[#allocation11 + $0x288] sm:$0xff]
    %v544 = vld [vmem:[#allocation11 + $0x290] sm:$0xff]
    %v545 = vld [vmem:[#allocation11 + $0x298] sm:$0xff]
    %v546 = vld [vmem:[#allocation11 + $0x2a0] sm:$0xff]
    %v547 = vld [vmem:[#allocation11 + $0x2a8] sm:$0xff]
    %v548 = vld [vmem:[#allocation11 + $0x2b0] sm:$0xff]
    %v549 = vld [vmem:[#allocation11 + $0x2b8] sm:$0xff]
    %v550 = vld [vmem:[#allocation11 + $0x2c0] sm:$0xff]
    %v551 = vld [vmem:[#allocation11 + $0x2c8] sm:$0xff]
    %v552 = vld [vmem:[#allocation11 + $0x2d0] sm:$0xff]
    %v553 = vld [vmem:[#allocation11 + $0x2d8] sm:$0xff]
    %v554 = vld [vmem:[#allocation11 + $0x2e0] sm:$0xff]
    %v555 = vld [vmem:[#allocation11 + $0x2e8] sm:$0xff]
    %v556 = vld [vmem:[#allocation11 + $0x2f0] sm:$0xff]
    %v557 = vld [vmem:[#allocation11 + $0x2f8] sm:$0xff]
    %v558 = vld [vmem:[#allocation11 + $0x300] sm:$0xff]
    %v559 = vld [vmem:[#allocation11 + $0x308] sm:$0xff]
    %v560 = vld [vmem:[#allocation11 + $0x310] sm:$0xff]
    %v561 = vld [vmem:[#allocation11 + $0x318] sm:$0xff]
    %v562 = vld [vmem:[#allocation11 + $0x320] sm:$0xff]
    %v563 = vld [vmem:[#allocation11 + $0x328] sm:$0xff]
    %v564 = vld [vmem:[#allocation11 + $0x330] sm:$0xff]
    %v565 = vld [vmem:[#allocation11 + $0x338] sm:$0xff]
    %v566 = vld [vmem:[#allocation11 + $0x340] sm:$0xff]
    %v567 = vld [vmem:[#allocation11 + $0x348] sm:$0xff]
    %v568 = vld [vmem:[#allocation11 + $0x350] sm:$0xff]
    %v569 = vld [vmem:[#allocation11 + $0x358] sm:$0xff]
    %v570 = vld [vmem:[#allocation11 + $0x360] sm:$0xff]
    %v571 = vld [vmem:[#allocation11 + $0x368] sm:$0xff]
    %v572 = vld [vmem:[#allocation11 + $0x370] sm:$0xff]
    %v573 = vld [vmem:[#allocation11 + $0x378] sm:$0xff]
    %v574 = vld [vmem:[#allocation11 + $0x380] sm:$0xff]
    %v575 = vld [vmem:[#allocation11 + $0x388] sm:$0xff]
    %v576 = vld [vmem:[#allocation11 + $0x390] sm:$0xff]
    %v577 = vld [vmem:[#allocation11 + $0x398] sm:$0xff]
    %v578 = vld [vmem:[#allocation11 + $0x3a0] sm:$0xff]
    %v579 = vld [vmem:[#allocation11 + $0x3a8] sm:$0xff]
    %v580 = vld [vmem:[#allocation11 + $0x3b0] sm:$0xff]
    %v581 = vld [vmem:[#allocation11 + $0x3b8] sm:$0xff]
    %v582 = vld [vmem:[#allocation11 + $0x3c0] sm:$0xff]
    %v583 = vld [vmem:[#allocation11 + $0x3c8] sm:$0xff]
    %v584 = vld [vmem:[#allocation11 + $0x3d0] sm:$0xff]
    %v585 = vld [vmem:[#allocation11 + $0x3d8] sm:$0xff]
    %v586 = vld [vmem:[#allocation11 + $0x3e0] sm:$0xff]
    %v587 = vld [vmem:[#allocation11 + $0x3e8] sm:$0xff]
    %v588 = vld [vmem:[#allocation11 + $0x3f0] sm:$0xff]
    %v589 = vld [vmem:[#allocation11 + $0x3f8] sm:$0xff]
    %v590 = vld [vmem:[#allocation11 + $0x400] sm:$0xff]
    %v591 = vld [vmem:[#allocation11 + $0x408] sm:$0xff]
    %v592 = vld [vmem:[#allocation11 + $0x410] sm:$0xff]
    %v593 = vld [vmem:[#allocation11 + $0x418] sm:$0xff]
    %v594 = vld [vmem:[#allocation11 + $0x420] sm:$0xff]
    %v595 = vld [vmem:[#allocation11 + $0x428] sm:$0xff]
    %v596 = vld [vmem:[#allocation11 + $0x430] sm:$0xff]
    %v597 = vld [vmem:[#allocation11 + $0x438] sm:$0xff]
    %v598 = vld [vmem:[#allocation11 + $0x440] sm:$0xff]
    %v599 = vld [vmem:[#allocation11 + $0x448] sm:$0xff]
    %v600 = vld [vmem:[#allocation11 + $0x450] sm:$0xff]
    %v601 = vld [vmem:[#allocation11 + $0x458] sm:$0xff]
    %v602 = vld [vmem:[#allocation11 + $0x460] sm:$0xff]
    %v603 = vld [vmem:[#allocation11 + $0x468] sm:$0xff]
    %v604 = vld [vmem:[#allocation11 + $0x470] sm:$0xff]
    %v605 = vld [vmem:[#allocation11 + $0x478] sm:$0xff]
    %v606 = vld [vmem:[#allocation11 + $0x480] sm:$0xff]
    %v607 = vld [vmem:[#allocation11 + $0x488] sm:$0xff]
    %v608 = vld [vmem:[#allocation11 + $0x490] sm:$0xff]
    %v609 = vld [vmem:[#allocation11 + $0x498] sm:$0xff]
    %v610 = vld [vmem:[#allocation11 + $0x4a0] sm:$0xff]
    %v611 = vld [vmem:[#allocation11 + $0x4a8] sm:$0xff]
    %v612 = vld [vmem:[#allocation11 + $0x4b0] sm:$0xff]
    %v613 = vld [vmem:[#allocation11 + $0x4b8] sm:$0xff]
    %v614 = vld [vmem:[#allocation11 + $0x4c0] sm:$0xff]
    %v615 = vld [vmem:[#allocation11 + $0x4c8] sm:$0xff]
    %v616 = vld [vmem:[#allocation11 + $0x4d0] sm:$0xff]
    %v617 = vld [vmem:[#allocation11 + $0x4d8] sm:$0xff]
    %v618 = vld [vmem:[#allocation11 + $0x4e0] sm:$0xff]
    %v619 = vld [vmem:[#allocation11 + $0x4e8] sm:$0xff]
    %v620 = vld [vmem:[#allocation11 + $0x4f0] sm:$0xff]
    %v621 = vld [vmem:[#allocation11 + $0x4f8] sm:$0xff]
    %v622 = vld [vmem:[#allocation11 + $0x500] sm:$0xff]
    %v623 = vld [vmem:[#allocation11 + $0x508] sm:$0xff]
    %v624 = vld [vmem:[#allocation11 + $0x510] sm:$0xff]
    %v625 = vld [vmem:[#allocation11 + $0x518] sm:$0xff]
    %v626 = vld [vmem:[#allocation11 + $0x520] sm:$0xff]
    %v627 = vld [vmem:[#allocation11 + $0x528] sm:$0xff]
    %v628 = vld [vmem:[#allocation11 + $0x530] sm:$0xff]
    %v629 = vld [vmem:[#allocation11 + $0x538] sm:$0xff]
    %v630 = vld [vmem:[#allocation11 + $0x540] sm:$0xff]
    %v631 = vld [vmem:[#allocation11 + $0x548] sm:$0xff]
    %v632 = vld [vmem:[#allocation11 + $0x550] sm:$0xff]
    %v633 = vld [vmem:[#allocation11 + $0x558] sm:$0xff]
    %v634 = vld [vmem:[#allocation11 + $0x560] sm:$0xff]
    %v635 = vld [vmem:[#allocation11 + $0x568] sm:$0xff]
    %v636 = vld [vmem:[#allocation11 + $0x570] sm:$0xff]
    %v637 = vld [vmem:[#allocation11 + $0x578] sm:$0xff]
    %v638 = vld [vmem:[#allocation11 + $0x580] sm:$0xff]
    %v639 = vld [vmem:[#allocation11 + $0x588] sm:$0xff]
    %v640 = vld [vmem:[#allocation11 + $0x590] sm:$0xff]
    %v641 = vld [vmem:[#allocation11 + $0x598] sm:$0xff]
    %v642 = vld [vmem:[#allocation11 + $0x5a0] sm:$0xff]
    %v643 = vld [vmem:[#allocation11 + $0x5a8] sm:$0xff]
    %v644 = vld [vmem:[#allocation11 + $0x5b0] sm:$0xff]
    %v645 = vld [vmem:[#allocation11 + $0x5b8] sm:$0xff]
    %v646 = vld [vmem:[#allocation11 + $0x5c0] sm:$0xff]
    %v647 = vld [vmem:[#allocation11 + $0x5c8] sm:$0xff]
    %v648 = vld [vmem:[#allocation11 + $0x5d0] sm:$0xff]
    %v649 = vld [vmem:[#allocation11 + $0x5d8] sm:$0xff]
    %v650 = vld [vmem:[#allocation11 + $0x5e0] sm:$0xff]
    %v651 = vld [vmem:[#allocation11 + $0x5e8] sm:$0xff]
    %v652 = vld [vmem:[#allocation11 + $0x5f0] sm:$0xff]
    %v653 = vld [vmem:[#allocation11 + $0x5f8] sm:$0xff]
    %v654 = vld [vmem:[#allocation11 + $0x600] sm:$0xff]
    %v655 = vld [vmem:[#allocation11 + $0x608] sm:$0xff]
    %v656 = vld [vmem:[#allocation11 + $0x610] sm:$0xff]
    %v657 = vld [vmem:[#allocation11 + $0x618] sm:$0xff]
    %v658 = vld [vmem:[#allocation11 + $0x620] sm:$0xff]
    %v659 = vld [vmem:[#allocation11 + $0x628] sm:$0xff]
    %v660 = vld [vmem:[#allocation11 + $0x630] sm:$0xff]
    %v661 = vld [vmem:[#allocation11 + $0x638] sm:$0xff]
    %v662 = vld [vmem:[#allocation11 + $0x640] sm:$0xff]
    %v663 = vld [vmem:[#allocation11 + $0x648] sm:$0xff]
    %v664 = vld [vmem:[#allocation11 + $0x650] sm:$0xff]
    %v665 = vld [vmem:[#allocation11 + $0x658] sm:$0xff]
    %v666 = vld [vmem:[#allocation11 + $0x660] sm:$0xff]
    %v667 = vld [vmem:[#allocation11 + $0x668] sm:$0xff]
    %v668 = vld [vmem:[#allocation11 + $0x670] sm:$0xff]
    %v669 = vld [vmem:[#allocation11 + $0x678] sm:$0xff]
    %v670 = vld [vmem:[#allocation11 + $0x680] sm:$0xff]
    %v671 = vld [vmem:[#allocation11 + $0x688] sm:$0xff]
    %v672 = vld [vmem:[#allocation11 + $0x690] sm:$0xff]
    %v673 = vld [vmem:[#allocation11 + $0x698] sm:$0xff]
    %v674 = vld [vmem:[#allocation11 + $0x6a0] sm:$0xff]
    %v675 = vld [vmem:[#allocation11 + $0x6a8] sm:$0xff]
    %v676 = vld [vmem:[#allocation11 + $0x6b0] sm:$0xff]
    %v677 = vld [vmem:[#allocation11 + $0x6b8] sm:$0xff]
    %v678 = vld [vmem:[#allocation11 + $0x6c0] sm:$0xff]
    %v679 = vld [vmem:[#allocation11 + $0x6c8] sm:$0xff]
    %v680 = vld [vmem:[#allocation11 + $0x6d0] sm:$0xff]
    %v681 = vld [vmem:[#allocation11 + $0x6d8] sm:$0xff]
    %v682 = vld [vmem:[#allocation11 + $0x6e0] sm:$0xff]
    %v683 = vld [vmem:[#allocation11 + $0x6e8] sm:$0xff]
    %v684 = vld [vmem:[#allocation11 + $0x6f0] sm:$0xff]
    %v685 = vld [vmem:[#allocation11 + $0x6f8] sm:$0xff]
    %v686 = vld [vmem:[#allocation11 + $0x700] sm:$0xff]
    %v687 = vld [vmem:[#allocation11 + $0x708] sm:$0xff]
    %v688 = vld [vmem:[#allocation11 + $0x710] sm:$0xff]
    %v689 = vld [vmem:[#allocation11 + $0x718] sm:$0xff]
    %v690 = vld [vmem:[#allocation11 + $0x720] sm:$0xff]
    %v691 = vld [vmem:[#allocation11 + $0x728] sm:$0xff]
    %v692 = vld [vmem:[#allocation11 + $0x730] sm:$0xff]
    %v693 = vld [vmem:[#allocation11 + $0x738] sm:$0xff]
    %v694 = vld [vmem:[#allocation11 + $0x740] sm:$0xff]
    %v695 = vld [vmem:[#allocation11 + $0x748] sm:$0xff]
    %v696 = vld [vmem:[#allocation11 + $0x750] sm:$0xff]
    %v697 = vld [vmem:[#allocation11 + $0x758] sm:$0xff]
    %v698 = vld [vmem:[#allocation11 + $0x760] sm:$0xff]
    %v699 = vld [vmem:[#allocation11 + $0x768] sm:$0xff]
    %v700 = vld [vmem:[#allocation11 + $0x770] sm:$0xff]
    %v701 = vld [vmem:[#allocation11 + $0x778] sm:$0xff]
    %v702 = vld [vmem:[#allocation11 + $0x780] sm:$0xff]
    %v703 = vld [vmem:[#allocation11 + $0x788] sm:$0xff]
    %v704 = vld [vmem:[#allocation11 + $0x790] sm:$0xff]
    %v705 = vld [vmem:[#allocation11 + $0x798] sm:$0xff]
    %v706 = vld [vmem:[#allocation11 + $0x7a0] sm:$0xff]
    %v707 = vld [vmem:[#allocation11 + $0x7a8] sm:$0xff]
    %v708 = vld [vmem:[#allocation11 + $0x7b0] sm:$0xff]
    %v709 = vld [vmem:[#allocation11 + $0x7b8] sm:$0xff]
    %v710 = vld [vmem:[#allocation11 + $0x7c0] sm:$0xff]
    %v711 = vld [vmem:[#allocation11 + $0x7c8] sm:$0xff]
    %v712 = vld [vmem:[#allocation11 + $0x7d0] sm:$0xff]
    %v713 = vld [vmem:[#allocation11 + $0x7d8] sm:$0xff]
    %v714 = vld [vmem:[#allocation11 + $0x7e0] sm:$0xff]
    %v715 = vld [vmem:[#allocation11 + $0x7e8] sm:$0xff]
    %v716 = vld [vmem:[#allocation11 + $0x7f0] sm:$0xff]
    %v717 = vld [vmem:[#allocation11 + $0x7f8] sm:$0xff]
    %v718 = vld [vmem:[#allocation13] sm:$0xff]
    %v719 = vld [vmem:[#allocation2] sm:$0x1]
    %v720 = vld [vmem:[#allocation2 + $0x8] sm:$0x1]
    %721 = vmatpush.msra.mxu0 %v329
    %722 = vmatpush.msra.mxu0 %v325
    %723 = vmatpush.msra.mxu0 %v321
    %724 = vmatpush.msra.mxu0 %v317
    %725 = vmatpush.msra.mxu0 %v313
    %726 = vmatpush.msra.mxu0 %v309
    %727 = vmatpush.msra.mxu0 %v305
    %728 = vmatpush.msra.mxu0 %v301
    %729 = vmatpush.msra.mxu0 %v297
    %730 = vmatpush.msra.mxu0 %v293
    %731 = vmatpush.msra.mxu0 %v289
    %732 = vmatpush.msra.mxu0 %v285
    %733 = vmatpush.msra.mxu0 %v281
    %734 = vmatpush.msra.mxu0 %v277
    %735 = vmatpush.msra.mxu0 %v273
    %736 = vmatpush.msra.mxu0 %v269
    %737 = vmatmul.f32.gmra.mxu0 0.0
    %v738 = vpop.f32.mrf.mxu0
    %v739 = vadd.f32 0.0, %v738
    %740 = vdwg.mxu0
    %741 = vmatpush.msra.mxu0 %v330
    %742 = vmatpush.msra.mxu0 %v326
    %743 = vmatpush.msra.mxu0 %v322
    %744 = vmatpush.msra.mxu0 %v318
    %745 = vmatpush.msra.mxu0 %v314
    %746 = vmatpush.msra.mxu0 %v310
    %747 = vmatpush.msra.mxu0 %v306
    %748 = vmatpush.msra.mxu0 %v302
    %749 = vmatpush.msra.mxu0 %v298
    %750 = vmatpush.msra.mxu0 %v294
    %751 = vmatpush.msra.mxu0 %v290
    %752 = vmatpush.msra.mxu0 %v286
    %753 = vmatpush.msra.mxu0 %v282
    %754 = vmatpush.msra.mxu0 %v278
    %755 = vmatpush.msra.mxu0 %v274
    %756 = vmatpush.msra.mxu0 %v270
    %757 = vmatmul.f32.gmra.mxu0 0.0
    %v758 = vpop.f32.mrf.mxu0
    %v759 = vadd.f32 0.0, %v758
    %760 = vdwg.mxu0
    %761 = vmatpush.msra.mxu0 %v331
    %762 = vmatpush.msra.mxu0 %v327
    %763 = vmatpush.msra.mxu0 %v323
    %764 = vmatpush.msra.mxu0 %v319
    %765 = vmatpush.msra.mxu0 %v315
    %766 = vmatpush.msra.mxu0 %v311
    %767 = vmatpush.msra.mxu0 %v307
    %768 = vmatpush.msra.mxu0 %v303
    %769 = vmatpush.msra.mxu0 %v299
    %770 = vmatpush.msra.mxu0 %v295
    %771 = vmatpush.msra.mxu0 %v291
    %772 = vmatpush.msra.mxu0 %v287
    %773 = vmatpush.msra.mxu0 %v283
    %774 = vmatpush.msra.mxu0 %v279
    %775 = vmatpush.msra.mxu0 %v275
    %776 = vmatpush.msra.mxu0 %v271
    %777 = vmatmul.f32.gmra.mxu0 0.0
    %v778 = vpop.f32.mrf.mxu0
    %v779 = vadd.f32 0.0, %v778
    %780 = vdwg.mxu0
    %781 = vmatpush.msra.mxu0 %v332
    %782 = vmatpush.msra.mxu0 %v328
    %783 = vmatpush.msra.mxu0 %v324
    %784 = vmatpush.msra.mxu0 %v320
    %785 = vmatpush.msra.mxu0 %v316
    %786 = vmatpush.msra.mxu0 %v312
    %787 = vmatpush.msra.mxu0 %v308
    %788 = vmatpush.msra.mxu0 %v304
    %789 = vmatpush.msra.mxu0 %v300
    %790 = vmatpush.msra.mxu0 %v296
    %791 = vmatpush.msra.mxu0 %v292
    %792 = vmatpush.msra.mxu0 %v288
    %793 = vmatpush.msra.mxu0 %v284
    %794 = vmatpush.msra.mxu0 %v280
    %795 = vmatpush.msra.mxu0 %v276
    %796 = vmatpush.msra.mxu0 %v272
    %797 = vmatmul.f32.gmra.mxu0 0.0
    %v798 = vpop.f32.mrf.mxu0
    %v799 = vadd.f32 0.0, %v798
    %800 = vdwg.mxu0
    %v803 = vrot.slane %v720, 7
    %vm804 = vcmask 1041409
    %v805 = vsel %vm804, %v803, %v719
    %vm806 = vcmask 506880
    %v807 = vsel %vm806, %v805, 0
    %vm809 = vcmask 1045504
    %v811 = vsel %vm809, %v265, 0
    %v814 = vsel %vm809, %v266, 0
    %v817 = vsel %vm809, %v267, 0
    %v820 = vsel %vm809, %v268, 0
    %822 = vmatpush.msra.mxu0 0.0
    %823 = vmatpush.msra.mxu0 0.0
    %824 = vmatpush.msra.mxu0 0.0
    %825 = vmatpush.msra.mxu0 0.0
    %826 = vmatpush.msra.mxu0 0.0
    %827 = vmatpush.msra.mxu0 0.0
    %828 = vmatpush.msra.mxu0 0.0
    %829 = vmatpush.msra.mxu0 0.0
    %830 = vmatpush.msra.mxu0 %v811
    %831 = vmatpush.msra.mxu0 %v261
    %832 = vmatpush.msra.mxu0 %v257
    %833 = vmatpush.msra.mxu0 %v253
    %834 = vmatpush.msra.mxu0 %v249
    %835 = vmatpush.msra.mxu0 %v245
    %836 = vmatpush.msra.mxu0 %v241
    %837 = vmatpush.msra.mxu0 %v237
    %838 = vmatmul.f32.gmra.mxu0 %v807
    %v839 = vpop.f32.mrf.mxu0
    %v840 = vadd.f32 %v739, %v839
    %841 = vdwg.mxu0
    %842 = vmatpush.msra.mxu0 0.0
    %843 = vmatpush.msra.mxu0 0.0
    %844 = vmatpush.msra.mxu0 0.0
    %845 = vmatpush.msra.mxu0 0.0
    %846 = vmatpush.msra.mxu0 0.0
    %847 = vmatpush.msra.mxu0 0.0
    %848 = vmatpush.msra.mxu0 0.0
    %849 = vmatpush.msra.mxu0 0.0
    %850 = vmatpush.msra.mxu0 %v814
    %851 = vmatpush.msra.mxu0 %v262
    %852 = vmatpush.msra.mxu0 %v258
    %853 = vmatpush.msra.mxu0 %v254
    %854 = vmatpush.msra.mxu0 %v250
    %855 = vmatpush.msra.mxu0 %v246
    %856 = vmatpush.msra.mxu0 %v242
    %857 = vmatpush.msra.mxu0 %v238
    %858 = vmatmul.f32.gmra.mxu0 %v807
    %v859 = vpop.f32.mrf.mxu0
    %v860 = vadd.f32 %v759, %v859
    %861 = vdwg.mxu0
    %862 = vmatpush.msra.mxu0 0.0
    %863 = vmatpush.msra.mxu0 0.0
    %864 = vmatpush.msra.mxu0 0.0
    %865 = vmatpush.msra.mxu0 0.0
    %866 = vmatpush.msra.mxu0 0.0
    %867 = vmatpush.msra.mxu0 0.0
    %868 = vmatpush.msra.mxu0 0.0
    %869 = vmatpush.msra.mxu0 0.0
    %870 = vmatpush.msra.mxu0 %v817
    %871 = vmatpush.msra.mxu0 %v263
    %872 = vmatpush.msra.mxu0 %v259
    %873 = vmatpush.msra.mxu0 %v255
    %874 = vmatpush.msra.mxu0 %v251
    %875 = vmatpush.msra.mxu0 %v247
    %876 = vmatpush.msra.mxu0 %v243
    %877 = vmatpush.msra.mxu0 %v239
    %878 = vmatmul.f32.gmra.mxu0 %v807
    %v879 = vpop.f32.mrf.mxu0
    %v880 = vadd.f32 %v779, %v879
    %881 = vdwg.mxu0
    %882 = vmatpush.msra.mxu0 0.0
    %883 = vmatpush.msra.mxu0 0.0
    %884 = vmatpush.msra.mxu0 0.0
    %885 = vmatpush.msra.mxu0 0.0
    %886 = vmatpush.msra.mxu0 0.0
    %887 = vmatpush.msra.mxu0 0.0
    %888 = vmatpush.msra.mxu0 0.0
    %889 = vmatpush.msra.mxu0 0.0
    %890 = vmatpush.msra.mxu0 %v820
    %891 = vmatpush.msra.mxu0 %v264
    %892 = vmatpush.msra.mxu0 %v260
    %893 = vmatpush.msra.mxu0 %v256
    %894 = vmatpush.msra.mxu0 %v252
    %895 = vmatpush.msra.mxu0 %v248
    %896 = vmatpush.msra.mxu0 %v244
    %897 = vmatpush.msra.mxu0 %v240
    %898 = vmatmul.f32.gmra.mxu0 %v807
    %v899 = vpop.f32.mrf.mxu0
    %v900 = vadd.f32 %v799, %v899
    %901 = vdwg.mxu0
    %v903 = vperm.slane %v333, 0
    %v904 = vperm.slane %v333, 1
    %v905 = vperm.slane %v333, 2
    %v906 = vperm.slane %v333, 3
    %v911 = vadd.f32 %v840, %v903
    %v912 = vadd.f32 %v860, %v904
    %v913 = vadd.f32 %v880, %v905
    %v914 = vadd.f32 %v900, %v906
    %v915 = vxor.u32 %v911, 2147483648
    %v916 = vxor.u32 %v912, 2147483648
    %v917 = vxor.u32 %v913, 2147483648
    %v918 = vmul.f32 %v915, 1.442695
    %v919 = vpow.pop %v918
    %v920 = vmul.f32 %v916, 1.442695
    %v921 = vpow.pop %v920
    %v922 = vmul.f32 %v917, 1.442695
    %v923 = vpow.pop %v922
    %v924 = vadd.f32 %v919, 1.0
    %v925 = vadd.f32 %v921, 1.0
    %v926 = vadd.f32 %v923, 1.0
    %v927 = vrcp.pop %v924
    %v928 = vmul.f32 %v924, %v927
    %v929 = vsub.f32 1.0, %v928
    %v930 = vmul.f32 %v927, %v929
    %v931 = vadd.f32 %v927, %v930
    %vm932 = vweird.f32 %v924
    %vm933 = vweird.f32 %v927
    %vm934 = vmor %vm932, %vm933
    %v935 = vsel %vm934, %v927, %v931
    %v936 = vand.u32 2147483647, %v924
    %vm937 = vcmp.eq.f32.partialorder %v936, 8.507059e+37
    %v938 = vand.u32 %v924, 2147483648
    %v939 = vor.u32 1.1754944e-38, %v938
    %v940 = vsel %vm937, %v939, %v935
    %v941 = vmul.f32 1.0, %v940
    %v942 = vrcp.pop %v925
    %v943 = vmul.f32 %v925, %v942
    %v944 = vsub.f32 1.0, %v943
    %v945 = vmul.f32 %v942, %v944
    %v946 = vadd.f32 %v942, %v945
    %vm947 = vweird.f32 %v925
    %vm948 = vweird.f32 %v942
    %vm949 = vmor %vm947, %vm948
    %v950 = vsel %vm949, %v942, %v946
    %v951 = vand.u32 2147483647, %v925
    %vm952 = vcmp.eq.f32.partialorder %v951, 8.507059e+37
    %v953 = vand.u32 %v925, 2147483648
    %v954 = vor.u32 1.1754944e-38, %v953
    %v955 = vsel %vm952, %v954, %v950
    %v956 = vmul.f32 1.0, %v955
    %v957 = vrcp.pop %v926
    %v958 = vmul.f32 %v926, %v957
    %v959 = vsub.f32 1.0, %v958
    %v960 = vmul.f32 %v957, %v959
    %v961 = vadd.f32 %v957, %v960
    %vm962 = vweird.f32 %v926
    %vm963 = vweird.f32 %v957
    %vm964 = vmor %vm962, %vm963
    %v965 = vsel %vm964, %v957, %v961
    %v966 = vand.u32 2147483647, %v926
    %vm967 = vcmp.eq.f32.partialorder %v966, 8.507059e+37
    %v968 = vand.u32 %v926, 2147483648
    %v969 = vor.u32 1.1754944e-38, %v968
    %v970 = vsel %vm967, %v969, %v965
    %v971 = vmul.f32 1.0, %v970
    %v972 = vtanh.pop %v914
    %v973 = vmul.f32 %v956, 0.0
    %v974 = vmul.f32 %v941, %v972
    %v975 = vadd.f32 %v973, %v974
    %v976 = vtanh.pop %v975
    %v977 = vmul.f32 %v971, %v976
    %978 = vmatpush.msra.mxu0 %v582
    %979 = vmatpush.msra.mxu0 %v574
    %980 = vmatpush.msra.mxu0 %v566
    %981 = vmatpush.msra.mxu0 %v558
    %982 = vmatpush.msra.mxu0 %v550
    %983 = vmatpush.msra.mxu0 %v542
    %984 = vmatpush.msra.mxu0 %v534
    %985 = vmatpush.msra.mxu0 %v526
    %986 = vmatpush.msra.mxu0 %v518
    %987 = vmatpush.msra.mxu0 %v510
    %988 = vmatpush.msra.mxu0 %v502
    %989 = vmatpush.msra.mxu0 %v494
    %990 = vmatpush.msra.mxu0 %v486
    %991 = vmatpush.msra.mxu0 %v478
    %992 = vmatpush.msra.mxu0 %v470
    %993 = vmatpush.msra.mxu0 %v462
    %994 = vmatmul.f32.gmra.mxu0 0.0
    %v995 = vpop.f32.mrf.mxu0
    %v996 = vadd.f32 0.0, %v995
    %997 = vdwg.mxu0
    %998 = vmatpush.msra.mxu0 %v710
    %999 = vmatpush.msra.mxu0 %v702
    %1000 = vmatpush.msra.mxu0 %v694
    %1001 = vmatpush.msra.mxu0 %v686
    %1002 = vmatpush.msra.mxu0 %v678
    %1003 = vmatpush.msra.mxu0 %v670
    %1004 = vmatpush.msra.mxu0 %v662
    %1005 = vmatpush.msra.mxu0 %v654
    %1006 = vmatpush.msra.mxu0 %v646
    %1007 = vmatpush.msra.mxu0 %v638
    %1008 = vmatpush.msra.mxu0 %v630
    %1009 = vmatpush.msra.mxu0 %v622
    %1010 = vmatpush.msra.mxu0 %v614
    %1011 = vmatpush.msra.mxu0 %v606
    %1012 = vmatpush.msra.mxu0 %v598
    %1013 = vmatpush.msra.mxu0 %v590
    %1014 = vmatmul.f32.gmra.mxu0 0.0
    %v1015 = vpop.f32.mrf.mxu0
    %v1016 = vadd.f32 %v996, %v1015
    %1017 = vdwg.mxu0
    %1018 = vmatpush.msra.mxu0 %v583
    %1019 = vmatpush.msra.mxu0 %v575
    %1020 = vmatpush.msra.mxu0 %v567
    %1021 = vmatpush.msra.mxu0 %v559
    %1022 = vmatpush.msra.mxu0 %v551
    %1023 = vmatpush.msra.mxu0 %v543
    %1024 = vmatpush.msra.mxu0 %v535
    %1025 = vmatpush.msra.mxu0 %v527
    %1026 = vmatpush.msra.mxu0 %v519
    %1027 = vmatpush.msra.mxu0 %v511
    %1028 = vmatpush.msra.mxu0 %v503
    %1029 = vmatpush.msra.mxu0 %v495
    %1030 = vmatpush.msra.mxu0 %v487
    %1031 = vmatpush.msra.mxu0 %v479
    %1032 = vmatpush.msra.mxu0 %v471
    %1033 = vmatpush.msra.mxu0 %v463
    %1034 = vmatmul.f32.gmra.mxu0 0.0
    %v1035 = vpop.f32.mrf.mxu0
    %v1036 = vadd.f32 0.0, %v1035
    %1037 = vdwg.mxu0
    %1038 = vmatpush.msra.mxu0 %v711
    %1039 = vmatpush.msra.mxu0 %v703
    %1040 = vmatpush.msra.mxu0 %v695
    %1041 = vmatpush.msra.mxu0 %v687
    %1042 = vmatpush.msra.mxu0 %v679
    %1043 = vmatpush.msra.mxu0 %v671
    %1044 = vmatpush.msra.mxu0 %v663
    %1045 = vmatpush.msra.mxu0 %v655
    %1046 = vmatpush.msra.mxu0 %v647
    %1047 = vmatpush.msra.mxu0 %v639
    %1048 = vmatpush.msra.mxu0 %v631
    %1049 = vmatpush.msra.mxu0 %v623
    %1050 = vmatpush.msra.mxu0 %v615
    %1051 = vmatpush.msra.mxu0 %v607
    %1052 = vmatpush.msra.mxu0 %v599
    %1053 = vmatpush.msra.mxu0 %v591
    %1054 = vmatmul.f32.gmra.mxu0 0.0
    %v1055 = vpop.f32.mrf.mxu0
    %v1056 = vadd.f32 %v1036, %v1055
    %1057 = vdwg.mxu0
    %1058 = vmatpush.msra.mxu0 %v584
    %1059 = vmatpush.msra.mxu0 %v576
    %1060 = vmatpush.msra.mxu0 %v568
    %1061 = vmatpush.msra.mxu0 %v560
    %1062 = vmatpush.msra.mxu0 %v552
    %1063 = vmatpush.msra.mxu0 %v544
    %1064 = vmatpush.msra.mxu0 %v536
    %1065 = vmatpush.msra.mxu0 %v528
    %1066 = vmatpush.msra.mxu0 %v520
    %1067 = vmatpush.msra.mxu0 %v512
    %1068 = vmatpush.msra.mxu0 %v504
    %1069 = vmatpush.msra.mxu0 %v496
    %1070 = vmatpush.msra.mxu0 %v488
    %1071 = vmatpush.msra.mxu0 %v480
    %1072 = vmatpush.msra.mxu0 %v472
    %1073 = vmatpush.msra.mxu0 %v464
    %1074 = vmatmul.f32.gmra.mxu0 0.0
    %v1075 = vpop.f32.mrf.mxu0
    %v1076 = vadd.f32 0.0, %v1075
    %1077 = vdwg.mxu0
    %1078 = vmatpush.msra.mxu0 %v712
    %1079 = vmatpush.msra.mxu0 %v704
    %1080 = vmatpush.msra.mxu0 %v696
    %1081 = vmatpush.msra.mxu0 %v688
    %1082 = vmatpush.msra.mxu0 %v680
    %1083 = vmatpush.msra.mxu0 %v672
    %1084 = vmatpush.msra.mxu0 %v664
    %1085 = vmatpush.msra.mxu0 %v656
    %1086 = vmatpush.msra.mxu0 %v648
    %1087 = vmatpush.msra.mxu0 %v640
    %1088 = vmatpush.msra.mxu0 %v632
    %1089 = vmatpush.msra.mxu0 %v624
    %1090 = vmatpush.msra.mxu0 %v616
    %1091 = vmatpush.msra.mxu0 %v608
    %1092 = vmatpush.msra.mxu0 %v600
    %1093 = vmatpush.msra.mxu0 %v592
    %1094 = vmatmul.f32.gmra.mxu0 0.0
    %v1095 = vpop.f32.mrf.mxu0
    %v1096 = vadd.f32 %v1076, %v1095
    %1097 = vdwg.mxu0
    %1098 = vmatpush.msra.mxu0 %v585
    %1099 = vmatpush.msra.mxu0 %v577
    %1100 = vmatpush.msra.mxu0 %v569
    %1101 = vmatpush.msra.mxu0 %v561
    %1102 = vmatpush.msra.mxu0 %v553
    %1103 = vmatpush.msra.mxu0 %v545
    %1104 = vmatpush.msra.mxu0 %v537
    %1105 = vmatpush.msra.mxu0 %v529
    %1106 = vmatpush.msra.mxu0 %v521
    %1107 = vmatpush.msra.mxu0 %v513
    %1108 = vmatpush.msra.mxu0 %v505
    %1109 = vmatpush.msra.mxu0 %v497
    %1110 = vmatpush.msra.mxu0 %v489
    %1111 = vmatpush.msra.mxu0 %v481
    %1112 = vmatpush.msra.mxu0 %v473
    %1113 = vmatpush.msra.mxu0 %v465
    %1114 = vmatmul.f32.gmra.mxu0 0.0
    %v1115 = vpop.f32.mrf.mxu0
    %v1116 = vadd.f32 0.0, %v1115
    %1117 = vdwg.mxu0
    %1118 = vmatpush.msra.mxu0 %v713
    %1119 = vmatpush.msra.mxu0 %v705
    %1120 = vmatpush.msra.mxu0 %v697
    %1121 = vmatpush.msra.mxu0 %v689
    %1122 = vmatpush.msra.mxu0 %v681
    %1123 = vmatpush.msra.mxu0 %v673
    %1124 = vmatpush.msra.mxu0 %v665
    %1125 = vmatpush.msra.mxu0 %v657
    %1126 = vmatpush.msra.mxu0 %v649
    %1127 = vmatpush.msra.mxu0 %v641
    %1128 = vmatpush.msra.mxu0 %v633
    %1129 = vmatpush.msra.mxu0 %v625
    %1130 = vmatpush.msra.mxu0 %v617
    %1131 = vmatpush.msra.mxu0 %v609
    %1132 = vmatpush.msra.mxu0 %v601
    %1133 = vmatpush.msra.mxu0 %v593
    %1134 = vmatmul.f32.gmra.mxu0 0.0
    %v1135 = vpop.f32.mrf.mxu0
    %v1136 = vadd.f32 %v1116, %v1135
    %1137 = vdwg.mxu0
    %1138 = vmatpush.msra.mxu0 %v586
    %1139 = vmatpush.msra.mxu0 %v578
    %1140 = vmatpush.msra.mxu0 %v570
    %1141 = vmatpush.msra.mxu0 %v562
    %1142 = vmatpush.msra.mxu0 %v554
    %1143 = vmatpush.msra.mxu0 %v546
    %1144 = vmatpush.msra.mxu0 %v538
    %1145 = vmatpush.msra.mxu0 %v530
    %1146 = vmatpush.msra.mxu0 %v522
    %1147 = vmatpush.msra.mxu0 %v514
    %1148 = vmatpush.msra.mxu0 %v506
    %1149 = vmatpush.msra.mxu0 %v498
    %1150 = vmatpush.msra.mxu0 %v490
    %1151 = vmatpush.msra.mxu0 %v482
    %1152 = vmatpush.msra.mxu0 %v474
    %1153 = vmatpush.msra.mxu0 %v466
    %1154 = vmatmul.f32.gmra.mxu0 0.0
    %v1155 = vpop.f32.mrf.mxu0
    %v1156 = vadd.f32 0.0, %v1155
    %1157 = vdwg.mxu0
    %1158 = vmatpush.msra.mxu0 %v714
    %1159 = vmatpush.msra.mxu0 %v706
    %1160 = vmatpush.msra.mxu0 %v698
    %1161 = vmatpush.msra.mxu0 %v690
    %1162 = vmatpush.msra.mxu0 %v682
    %1163 = vmatpush.msra.mxu0 %v674
    %1164 = vmatpush.msra.mxu0 %v666
    %1165 = vmatpush.msra.mxu0 %v658
    %1166 = vmatpush.msra.mxu0 %v650
    %1167 = vmatpush.msra.mxu0 %v642
    %1168 = vmatpush.msra.mxu0 %v634
    %1169 = vmatpush.msra.mxu0 %v626
    %1170 = vmatpush.msra.mxu0 %v618
    %1171 = vmatpush.msra.mxu0 %v610
    %1172 = vmatpush.msra.mxu0 %v602
    %1173 = vmatpush.msra.mxu0 %v594
    %1174 = vmatmul.f32.gmra.mxu0 0.0
    %v1175 = vpop.f32.mrf.mxu0
    %v1176 = vadd.f32 %v1156, %v1175
    %1177 = vdwg.mxu0
    %1178 = vmatpush.msra.mxu0 %v587
    %1179 = vmatpush.msra.mxu0 %v579
    %1180 = vmatpush.msra.mxu0 %v571
    %1181 = vmatpush.msra.mxu0 %v563
    %1182 = vmatpush.msra.mxu0 %v555
    %1183 = vmatpush.msra.mxu0 %v547
    %1184 = vmatpush.msra.mxu0 %v539
    %1185 = vmatpush.msra.mxu0 %v531
    %1186 = vmatpush.msra.mxu0 %v523
    %1187 = vmatpush.msra.mxu0 %v515
    %1188 = vmatpush.msra.mxu0 %v507
    %1189 = vmatpush.msra.mxu0 %v499
    %1190 = vmatpush.msra.mxu0 %v491
    %1191 = vmatpush.msra.mxu0 %v483
    %1192 = vmatpush.msra.mxu0 %v475
    %1193 = vmatpush.msra.mxu0 %v467
    %1194 = vmatmul.f32.gmra.mxu0 0.0
    %v1195 = vpop.f32.mrf.mxu0
    %v1196 = vadd.f32 0.0, %v1195
    %1197 = vdwg.mxu0
    %1198 = vmatpush.msra.mxu0 %v715
    %1199 = vmatpush.msra.mxu0 %v707
    %1200 = vmatpush.msra.mxu0 %v699
    %1201 = vmatpush.msra.mxu0 %v691
    %1202 = vmatpush.msra.mxu0 %v683
    %1203 = vmatpush.msra.mxu0 %v675
    %1204 = vmatpush.msra.mxu0 %v667
    %1205 = vmatpush.msra.mxu0 %v659
    %1206 = vmatpush.msra.mxu0 %v651
    %1207 = vmatpush.msra.mxu0 %v643
    %1208 = vmatpush.msra.mxu0 %v635
    %1209 = vmatpush.msra.mxu0 %v627
    %1210 = vmatpush.msra.mxu0 %v619
    %1211 = vmatpush.msra.mxu0 %v611
    %1212 = vmatpush.msra.mxu0 %v603
    %1213 = vmatpush.msra.mxu0 %v595
    %1214 = vmatmul.f32.gmra.mxu0 0.0
    %v1215 = vpop.f32.mrf.mxu0
    %v1216 = vadd.f32 %v1196, %v1215
    %1217 = vdwg.mxu0
    %1218 = vmatpush.msra.mxu0 %v588
    %1219 = vmatpush.msra.mxu0 %v580
    %1220 = vmatpush.msra.mxu0 %v572
    %1221 = vmatpush.msra.mxu0 %v564
    %1222 = vmatpush.msra.mxu0 %v556
    %1223 = vmatpush.msra.mxu0 %v548
    %1224 = vmatpush.msra.mxu0 %v540
    %1225 = vmatpush.msra.mxu0 %v532
    %1226 = vmatpush.msra.mxu0 %v524
    %1227 = vmatpush.msra.mxu0 %v516
    %1228 = vmatpush.msra.mxu0 %v508
    %1229 = vmatpush.msra.mxu0 %v500
    %1230 = vmatpush.msra.mxu0 %v492
    %1231 = vmatpush.msra.mxu0 %v484
    %1232 = vmatpush.msra.mxu0 %v476
    %1233 = vmatpush.msra.mxu0 %v468
    %1234 = vmatmul.f32.gmra.mxu0 0.0
    %v1235 = vpop.f32.mrf.mxu0
    %v1236 = vadd.f32 0.0, %v1235
    %1237 = vdwg.mxu0
    %1238 = vmatpush.msra.mxu0 %v716
    %1239 = vmatpush.msra.mxu0 %v708
    %1240 = vmatpush.msra.mxu0 %v700
    %1241 = vmatpush.msra.mxu0 %v692
    %1242 = vmatpush.msra.mxu0 %v684
    %1243 = vmatpush.msra.mxu0 %v676
    %1244 = vmatpush.msra.mxu0 %v668
    %1245 = vmatpush.msra.mxu0 %v660
    %1246 = vmatpush.msra.mxu0 %v652
    %1247 = vmatpush.msra.mxu0 %v644
    %1248 = vmatpush.msra.mxu0 %v636
    %1249 = vmatpush.msra.mxu0 %v628
    %1250 = vmatpush.msra.mxu0 %v620
    %1251 = vmatpush.msra.mxu0 %v612
    %1252 = vmatpush.msra.mxu0 %v604
    %1253 = vmatpush.msra.mxu0 %v596
    %1254 = vmatmul.f32.gmra.mxu0 0.0
    %v1255 = vpop.f32.mrf.mxu0
    %v1256 = vadd.f32 %v1236, %v1255
    %1257 = vdwg.mxu0
    %1258 = vmatpush.msra.mxu0 %v589
    %1259 = vmatpush.msra.mxu0 %v581
    %1260 = vmatpush.msra.mxu0 %v573
    %1261 = vmatpush.msra.mxu0 %v565
    %1262 = vmatpush.msra.mxu0 %v557
    %1263 = vmatpush.msra.mxu0 %v549
    %1264 = vmatpush.msra.mxu0 %v541
    %1265 = vmatpush.msra.mxu0 %v533
    %1266 = vmatpush.msra.mxu0 %v525
    %1267 = vmatpush.msra.mxu0 %v517
    %1268 = vmatpush.msra.mxu0 %v509
    %1269 = vmatpush.msra.mxu0 %v501
    %1270 = vmatpush.msra.mxu0 %v493
    %1271 = vmatpush.msra.mxu0 %v485
    %1272 = vmatpush.msra.mxu0 %v477
    %1273 = vmatpush.msra.mxu0 %v469
    %1274 = vmatmul.f32.gmra.mxu0 0.0
    %v1275 = vpop.f32.mrf.mxu0
    %v1276 = vadd.f32 0.0, %v1275
    %1277 = vdwg.mxu0
    %1278 = vmatpush.msra.mxu0 %v717
    %1279 = vmatpush.msra.mxu0 %v709
    %1280 = vmatpush.msra.mxu0 %v701
    %1281 = vmatpush.msra.mxu0 %v693
    %1282 = vmatpush.msra.mxu0 %v685
    %1283 = vmatpush.msra.mxu0 %v677
    %1284 = vmatpush.msra.mxu0 %v669
    %1285 = vmatpush.msra.mxu0 %v661
    %1286 = vmatpush.msra.mxu0 %v653
    %1287 = vmatpush.msra.mxu0 %v645
    %1288 = vmatpush.msra.mxu0 %v637
    %1289 = vmatpush.msra.mxu0 %v629
    %1290 = vmatpush.msra.mxu0 %v621
    %1291 = vmatpush.msra.mxu0 %v613
    %1292 = vmatpush.msra.mxu0 %v605
    %1293 = vmatpush.msra.mxu0 %v597
    %1294 = vmatmul.f32.gmra.mxu0 0.0
    %v1295 = vpop.f32.mrf.mxu0
    %v1296 = vadd.f32 %v1276, %v1295
    %1297 = vdwg.mxu0
    %1298 = vmatpush.msra.mxu0 %v454
    %1299 = vmatpush.msra.mxu0 %v446
    %1300 = vmatpush.msra.mxu0 %v438
    %1301 = vmatpush.msra.mxu0 %v430
    %1302 = vmatpush.msra.mxu0 %v422
    %1303 = vmatpush.msra.mxu0 %v414
    %1304 = vmatpush.msra.mxu0 %v406
    %1305 = vmatpush.msra.mxu0 %v398
    %1306 = vmatpush.msra.mxu0 %v390
    %1307 = vmatpush.msra.mxu0 %v382
    %1308 = vmatpush.msra.mxu0 %v374
    %1309 = vmatpush.msra.mxu0 %v366
    %1310 = vmatpush.msra.mxu0 %v358
    %1311 = vmatpush.msra.mxu0 %v350
    %1312 = vmatpush.msra.mxu0 %v342
    %1313 = vmatpush.msra.mxu0 %v334
    %1314 = vmatmul.f32.gmra.mxu0 %v977
    %v1315 = vpop.f32.mrf.mxu0
    %v1316 = vadd.f32 %v1016, %v1315
    %1317 = vdwg.mxu0
    %1318 = vmatpush.msra.mxu0 %v455
    %1319 = vmatpush.msra.mxu0 %v447
    %1320 = vmatpush.msra.mxu0 %v439
    %1321 = vmatpush.msra.mxu0 %v431
    %1322 = vmatpush.msra.mxu0 %v423
    %1323 = vmatpush.msra.mxu0 %v415
    %1324 = vmatpush.msra.mxu0 %v407
    %1325 = vmatpush.msra.mxu0 %v399
    %1326 = vmatpush.msra.mxu0 %v391
    %1327 = vmatpush.msra.mxu0 %v383
    %1328 = vmatpush.msra.mxu0 %v375
    %1329 = vmatpush.msra.mxu0 %v367
    %1330 = vmatpush.msra.mxu0 %v359
    %1331 = vmatpush.msra.mxu0 %v351
    %1332 = vmatpush.msra.mxu0 %v343
    %1333 = vmatpush.msra.mxu0 %v335
    %1334 = vmatmul.f32.gmra.mxu0 %v977
    %v1335 = vpop.f32.mrf.mxu0
    %v1336 = vadd.f32 %v1056, %v1335
    %1337 = vdwg.mxu0
    %1338 = vmatpush.msra.mxu0 %v456
    %1339 = vmatpush.msra.mxu0 %v448
    %1340 = vmatpush.msra.mxu0 %v440
    %1341 = vmatpush.msra.mxu0 %v432
    %1342 = vmatpush.msra.mxu0 %v424
    %1343 = vmatpush.msra.mxu0 %v416
    %1344 = vmatpush.msra.mxu0 %v408
    %1345 = vmatpush.msra.mxu0 %v400
    %1346 = vmatpush.msra.mxu0 %v392
    %1347 = vmatpush.msra.mxu0 %v384
    %1348 = vmatpush.msra.mxu0 %v376
    %1349 = vmatpush.msra.mxu0 %v368
    %1350 = vmatpush.msra.mxu0 %v360
    %1351 = vmatpush.msra.mxu0 %v352
    %1352 = vmatpush.msra.mxu0 %v344
    %1353 = vmatpush.msra.mxu0 %v336
    %1354 = vmatmul.f32.gmra.mxu0 %v977
    %v1355 = vpop.f32.mrf.mxu0
    %v1356 = vadd.f32 %v1096, %v1355
    %1357 = vdwg.mxu0
    %1358 = vmatpush.msra.mxu0 %v457
    %1359 = vmatpush.msra.mxu0 %v449
    %1360 = vmatpush.msra.mxu0 %v441
    %1361 = vmatpush.msra.mxu0 %v433
    %1362 = vmatpush.msra.mxu0 %v425
    %1363 = vmatpush.msra.mxu0 %v417
    %1364 = vmatpush.msra.mxu0 %v409
    %1365 = vmatpush.msra.mxu0 %v401
    %1366 = vmatpush.msra.mxu0 %v393
    %1367 = vmatpush.msra.mxu0 %v385
    %1368 = vmatpush.msra.mxu0 %v377
    %1369 = vmatpush.msra.mxu0 %v369
    %1370 = vmatpush.msra.mxu0 %v361
    %1371 = vmatpush.msra.mxu0 %v353
    %1372 = vmatpush.msra.mxu0 %v345
    %1373 = vmatpush.msra.mxu0 %v337
    %1374 = vmatmul.f32.gmra.mxu0 %v977
    %v1375 = vpop.f32.mrf.mxu0
    %v1376 = vadd.f32 %v1136, %v1375
    %1377 = vdwg.mxu0
    %1378 = vmatpush.msra.mxu0 %v458
    %1379 = vmatpush.msra.mxu0 %v450
    %1380 = vmatpush.msra.mxu0 %v442
    %1381 = vmatpush.msra.mxu0 %v434
    %1382 = vmatpush.msra.mxu0 %v426
    %1383 = vmatpush.msra.mxu0 %v418
    %1384 = vmatpush.msra.mxu0 %v410
    %1385 = vmatpush.msra.mxu0 %v402
    %1386 = vmatpush.msra.mxu0 %v394
    %1387 = vmatpush.msra.mxu0 %v386
    %1388 = vmatpush.msra.mxu0 %v378
    %1389 = vmatpush.msra.mxu0 %v370
    %1390 = vmatpush.msra.mxu0 %v362
    %1391 = vmatpush.msra.mxu0 %v354
    %1392 = vmatpush.msra.mxu0 %v346
    %1393 = vmatpush.msra.mxu0 %v338
    %1394 = vmatmul.f32.gmra.mxu0 %v977
    %v1395 = vpop.f32.mrf.mxu0
    %v1396 = vadd.f32 %v1176, %v1395
    %1397 = vdwg.mxu0
    %1398 = vmatpush.msra.mxu0 %v459
    %1399 = vmatpush.msra.mxu0 %v451
    %1400 = vmatpush.msra.mxu0 %v443
    %1401 = vmatpush.msra.mxu0 %v435
    %1402 = vmatpush.msra.mxu0 %v427
    %1403 = vmatpush.msra.mxu0 %v419
    %1404 = vmatpush.msra.mxu0 %v411
    %1405 = vmatpush.msra.mxu0 %v403
    %1406 = vmatpush.msra.mxu0 %v395
    %1407 = vmatpush.msra.mxu0 %v387
    %1408 = vmatpush.msra.mxu0 %v379
    %1409 = vmatpush.msra.mxu0 %v371
    %1410 = vmatpush.msra.mxu0 %v363
    %1411 = vmatpush.msra.mxu0 %v355
    %1412 = vmatpush.msra.mxu0 %v347
    %1413 = vmatpush.msra.mxu0 %v339
    %1414 = vmatmul.f32.gmra.mxu0 %v977
    %v1415 = vpop.f32.mrf.mxu0
    %v1416 = vadd.f32 %v1216, %v1415
    %1417 = vdwg.mxu0
    %1418 = vmatpush.msra.mxu0 %v460
    %1419 = vmatpush.msra.mxu0 %v452
    %1420 = vmatpush.msra.mxu0 %v444
    %1421 = vmatpush.msra.mxu0 %v436
    %1422 = vmatpush.msra.mxu0 %v428
    %1423 = vmatpush.msra.mxu0 %v420
    %1424 = vmatpush.msra.mxu0 %v412
    %1425 = vmatpush.msra.mxu0 %v404
    %1426 = vmatpush.msra.mxu0 %v396
    %1427 = vmatpush.msra.mxu0 %v388
    %1428 = vmatpush.msra.mxu0 %v380
    %1429 = vmatpush.msra.mxu0 %v372
    %1430 = vmatpush.msra.mxu0 %v364
    %1431 = vmatpush.msra.mxu0 %v356
    %1432 = vmatpush.msra.mxu0 %v348
    %1433 = vmatpush.msra.mxu0 %v340
    %1434 = vmatmul.f32.gmra.mxu0 %v977
    %v1435 = vpop.f32.mrf.mxu0
    %v1436 = vadd.f32 %v1256, %v1435
    %1437 = vdwg.mxu0
    %1438 = vmatpush.msra.mxu0 %v461
    %1439 = vmatpush.msra.mxu0 %v453
    %1440 = vmatpush.msra.mxu0 %v445
    %1441 = vmatpush.msra.mxu0 %v437
    %1442 = vmatpush.msra.mxu0 %v429
    %1443 = vmatpush.msra.mxu0 %v421
    %1444 = vmatpush.msra.mxu0 %v413
    %1445 = vmatpush.msra.mxu0 %v405
    %1446 = vmatpush.msra.mxu0 %v397
    %1447 = vmatpush.msra.mxu0 %v389
    %1448 = vmatpush.msra.mxu0 %v381
    %1449 = vmatpush.msra.mxu0 %v373
    %1450 = vmatpush.msra.mxu0 %v365
    %1451 = vmatpush.msra.mxu0 %v357
    %1452 = vmatpush.msra.mxu0 %v349
    %1453 = vmatpush.msra.mxu0 %v341
    %1454 = vmatmul.f32.gmra.mxu0 %v977
    %v1455 = vpop.f32.mrf.mxu0
    %v1456 = vadd.f32 %v1296, %v1455
    %1457 = vdwg.mxu0
    %v1459 = vperm.slane %v718, 0
    %v1460 = vperm.slane %v718, 1
    %v1461 = vperm.slane %v718, 2
    %v1462 = vperm.slane %v718, 3
    %v1463 = vperm.slane %v718, 4
    %v1464 = vperm.slane %v718, 5
    %v1465 = vperm.slane %v718, 6
    %v1466 = vperm.slane %v718, 7
    %v1475 = vadd.f32 %v1316, %v1459
    %v1476 = vadd.f32 %v1336, %v1460
    %v1477 = vadd.f32 %v1356, %v1461
    %v1478 = vadd.f32 %v1376, %v1462
    %v1479 = vadd.f32 %v1396, %v1463
    %v1480 = vadd.f32 %v1416, %v1464
    %v1481 = vadd.f32 %v1436, %v1465
    %v1482 = vadd.f32 %v1456, %v1466
    %v1483 = vxor.u32 %v1475, 2147483648
    %v1484 = vxor.u32 %v1476, 2147483648
    %v1485 = vxor.u32 %v1477, 2147483648
    %v1486 = vxor.u32 %v1478, 2147483648
    %v1487 = vxor.u32 %v1479, 2147483648
    %v1488 = vxor.u32 %v1480, 2147483648
    %v1489 = vmul.f32 %v1483, 1.442695
    %v1490 = vpow.pop %v1489
    %v1491 = vmul.f32 %v1484, 1.442695
    %v1492 = vpow.pop %v1491
    %v1493 = vmul.f32 %v1485, 1.442695
    %v1494 = vpow.pop %v1493
    %v1495 = vmul.f32 %v1486, 1.442695
    %v1496 = vpow.pop %v1495
    %v1497 = vmul.f32 %v1487, 1.442695
    %v1498 = vpow.pop %v1497
    %v1499 = vmul.f32 %v1488, 1.442695
    %v1500 = vpow.pop %v1499
    %v1501 = vadd.f32 %v1490, 1.0
    %v1502 = vadd.f32 %v1492, 1.0
    %v1503 = vadd.f32 %v1494, 1.0
    %v1504 = vadd.f32 %v1496, 1.0
    %v1505 = vadd.f32 %v1498, 1.0
    %v1506 = vadd.f32 %v1500, 1.0
    %v1507 = vrcp.pop %v1501
    %v1508 = vmul.f32 %v1501, %v1507
    %v1509 = vsub.f32 1.0, %v1508
    %v1510 = vmul.f32 %v1507, %v1509
    %v1511 = vadd.f32 %v1507, %v1510
    %vm1512 = vweird.f32 %v1501
    %vm1513 = vweird.f32 %v1507
    %vm1514 = vmor %vm1512, %vm1513
    %v1515 = vsel %vm1514, %v1507, %v1511
    %v1516 = vand.u32 2147483647, %v1501
    %vm1517 = vcmp.eq.f32.partialorder %v1516, 8.507059e+37
    %v1518 = vand.u32 %v1501, 2147483648
    %v1519 = vor.u32 1.1754944e-38, %v1518
    %v1520 = vsel %vm1517, %v1519, %v1515
    %v1521 = vmul.f32 1.0, %v1520
    %v1522 = vrcp.pop %v1502
    %v1523 = vmul.f32 %v1502, %v1522
    %v1524 = vsub.f32 1.0, %v1523
    %v1525 = vmul.f32 %v1522, %v1524
    %v1526 = vadd.f32 %v1522, %v1525
    %vm1527 = vweird.f32 %v1502
    %vm1528 = vweird.f32 %v1522
    %vm1529 = vmor %vm1527, %vm1528
    %v1530 = vsel %vm1529, %v1522, %v1526
    %v1531 = vand.u32 2147483647, %v1502
    %vm1532 = vcmp.eq.f32.partialorder %v1531, 8.507059e+37
    %v1533 = vand.u32 %v1502, 2147483648
    %v1534 = vor.u32 1.1754944e-38, %v1533
    %v1535 = vsel %vm1532, %v1534, %v1530
    %v1536 = vmul.f32 1.0, %v1535
    %v1537 = vrcp.pop %v1503
    %v1538 = vmul.f32 %v1503, %v1537
    %v1539 = vsub.f32 1.0, %v1538
    %v1540 = vmul.f32 %v1537, %v1539
    %v1541 = vadd.f32 %v1537, %v1540
    %vm1542 = vweird.f32 %v1503
    %vm1543 = vweird.f32 %v1537
    %vm1544 = vmor %vm1542, %vm1543
    %v1545 = vsel %vm1544, %v1537, %v1541
    %v1546 = vand.u32 2147483647, %v1503
    %vm1547 = vcmp.eq.f32.partialorder %v1546, 8.507059e+37
    %v1548 = vand.u32 %v1503, 2147483648
    %v1549 = vor.u32 1.1754944e-38, %v1548
    %v1550 = vsel %vm1547, %v1549, %v1545
    %v1551 = vmul.f32 1.0, %v1550
    %v1552 = vrcp.pop %v1504
    %v1553 = vmul.f32 %v1504, %v1552
    %v1554 = vsub.f32 1.0, %v1553
    %v1555 = vmul.f32 %v1552, %v1554
    %v1556 = vadd.f32 %v1552, %v1555
    %vm1557 = vweird.f32 %v1504
    %vm1558 = vweird.f32 %v1552
    %vm1559 = vmor %vm1557, %vm1558
    %v1560 = vsel %vm1559, %v1552, %v1556
    %v1561 = vand.u32 2147483647, %v1504
    %vm1562 = vcmp.eq.f32.partialorder %v1561, 8.507059e+37
    %v1563 = vand.u32 %v1504, 2147483648
    %v1564 = vor.u32 1.1754944e-38, %v1563
    %v1565 = vsel %vm1562, %v1564, %v1560
    %v1566 = vmul.f32 1.0, %v1565
    %v1567 = vrcp.pop %v1505
    %v1568 = vmul.f32 %v1505, %v1567
    %v1569 = vsub.f32 1.0, %v1568
    %v1570 = vmul.f32 %v1567, %v1569
    %v1571 = vadd.f32 %v1567, %v1570
    %vm1572 = vweird.f32 %v1505
    %vm1573 = vweird.f32 %v1567
    %vm1574 = vmor %vm1572, %vm1573
    %v1575 = vsel %vm1574, %v1567, %v1571
    %v1576 = vand.u32 2147483647, %v1505
    %vm1577 = vcmp.eq.f32.partialorder %v1576, 8.507059e+37
    %v1578 = vand.u32 %v1505, 2147483648
    %v1579 = vor.u32 1.1754944e-38, %v1578
    %v1580 = vsel %vm1577, %v1579, %v1575
    %v1581 = vmul.f32 1.0, %v1580
    %v1582 = vrcp.pop %v1506
    %v1583 = vmul.f32 %v1506, %v1582
    %v1584 = vsub.f32 1.0, %v1583
    %v1585 = vmul.f32 %v1582, %v1584
    %v1586 = vadd.f32 %v1582, %v1585
    %vm1587 = vweird.f32 %v1506
    %vm1588 = vweird.f32 %v1582
    %vm1589 = vmor %vm1587, %vm1588
    %v1590 = vsel %vm1589, %v1582, %v1586
    %v1591 = vand.u32 2147483647, %v1506
    %vm1592 = vcmp.eq.f32.partialorder %v1591, 8.507059e+37
    %v1593 = vand.u32 %v1506, 2147483648
    %v1594 = vor.u32 1.1754944e-38, %v1593
    %v1595 = vsel %vm1592, %v1594, %v1590
    %v1596 = vmul.f32 1.0, %v1595
    %v1597 = vtanh.pop %v1481
    %v1598 = vtanh.pop %v1482
    %v1599 = vmul.f32 %v1551, 0.0
    %v1600 = vmul.f32 %v1566, 0.0
    %v1601 = vmul.f32 %v1521, %v1597
    %v1602 = vmul.f32 %v1536, %v1598
    %v1603 = vadd.f32 %v1599, %v1601
    %v1604 = vadd.f32 %v1600, %v1602
    %v1605 = vtanh.pop %v1603
    %v1606 = vtanh.pop %v1604
    %v1607 = vmul.f32 %v1581, %v1605
    %v1608 = vmul.f32 %v1596, %v1606
    %v1609 = vld [vmem:[#allocation2 + $0x1] sm:$0x1]
    %v1610 = vld [vmem:[#allocation2 + $0x9] sm:$0x1]
    %1611 = vmatpush.msra.mxu0 %v329
    %1612 = vmatpush.msra.mxu0 %v325
    %1613 = vmatpush.msra.mxu0 %v321
    %1614 = vmatpush.msra.mxu0 %v317
    %1615 = vmatpush.msra.mxu0 %v313
    %1616 = vmatpush.msra.mxu0 %v309
    %1617 = vmatpush.msra.mxu0 %v305
    %1618 = vmatpush.msra.mxu0 %v301
    %1619 = vmatpush.msra.mxu0 %v297
    %1620 = vmatpush.msra.mxu0 %v293
    %1621 = vmatpush.msra.mxu0 %v289
    %1622 = vmatpush.msra.mxu0 %v285
    %1623 = vmatpush.msra.mxu0 %v281
    %1624 = vmatpush.msra.mxu0 %v277
    %1625 = vmatpush.msra.mxu0 %v273
    %1626 = vmatpush.msra.mxu0 %v269
    %1627 = vmatmul.f32.gmra.mxu0 %v977
    %v1628 = vpop.f32.mrf.mxu0
    %v1629 = vadd.f32 0.0, %v1628
    %1630 = vdwg.mxu0
    %1631 = vmatpush.msra.mxu0 %v330
    %1632 = vmatpush.msra.mxu0 %v326
    %1633 = vmatpush.msra.mxu0 %v322
    %1634 = vmatpush.msra.mxu0 %v318
    %1635 = vmatpush.msra.mxu0 %v314
    %1636 = vmatpush.msra.mxu0 %v310
    %1637 = vmatpush.msra.mxu0 %v306
    %1638 = vmatpush.msra.mxu0 %v302
    %1639 = vmatpush.msra.mxu0 %v298
    %1640 = vmatpush.msra.mxu0 %v294
    %1641 = vmatpush.msra.mxu0 %v290
    %1642 = vmatpush.msra.mxu0 %v286
    %1643 = vmatpush.msra.mxu0 %v282
    %1644 = vmatpush.msra.mxu0 %v278
    %1645 = vmatpush.msra.mxu0 %v274
    %1646 = vmatpush.msra.mxu0 %v270
    %1647 = vmatmul.f32.gmra.mxu0 %v977
    %v1648 = vpop.f32.mrf.mxu0
    %v1649 = vadd.f32 0.0, %v1648
    %1650 = vdwg.mxu0
    %1651 = vmatpush.msra.mxu0 %v331
    %1652 = vmatpush.msra.mxu0 %v327
    %1653 = vmatpush.msra.mxu0 %v323
    %1654 = vmatpush.msra.mxu0 %v319
    %1655 = vmatpush.msra.mxu0 %v315
    %1656 = vmatpush.msra.mxu0 %v311
    %1657 = vmatpush.msra.mxu0 %v307
    %1658 = vmatpush.msra.mxu0 %v303
    %1659 = vmatpush.msra.mxu0 %v299
    %1660 = vmatpush.msra.mxu0 %v295
    %1661 = vmatpush.msra.mxu0 %v291
    %1662 = vmatpush.msra.mxu0 %v287
    %1663 = vmatpush.msra.mxu0 %v283
    %1664 = vmatpush.msra.mxu0 %v279
    %1665 = vmatpush.msra.mxu0 %v275
    %1666 = vmatpush.msra.mxu0 %v271
    %1667 = vmatmul.f32.gmra.mxu0 %v977
    %v1668 = vpop.f32.mrf.mxu0
    %v1669 = vadd.f32 0.0, %v1668
    %1670 = vdwg.mxu0
    %1671 = vmatpush.msra.mxu0 %v332
    %1672 = vmatpush.msra.mxu0 %v328
    %1673 = vmatpush.msra.mxu0 %v324
    %1674 = vmatpush.msra.mxu0 %v320
    %1675 = vmatpush.msra.mxu0 %v316
    %1676 = vmatpush.msra.mxu0 %v312
    %1677 = vmatpush.msra.mxu0 %v308
    %1678 = vmatpush.msra.mxu0 %v304
    %1679 = vmatpush.msra.mxu0 %v300
    %1680 = vmatpush.msra.mxu0 %v296
    %1681 = vmatpush.msra.mxu0 %v292
    %1682 = vmatpush.msra.mxu0 %v288
    %1683 = vmatpush.msra.mxu0 %v284
    %1684 = vmatpush.msra.mxu0 %v280
    %1685 = vmatpush.msra.mxu0 %v276
    %1686 = vmatpush.msra.mxu0 %v272
    %1687 = vmatmul.f32.gmra.mxu0 %v977
    %v1688 = vpop.f32.mrf.mxu0
    %v1689 = vadd.f32 0.0, %v1688
    %1690 = vdwg.mxu0
    %v1693 = vrot.slane %v1610, 7
    %v1694 = vsel %vm804, %v1693, %v1609
    %v1695 = vsel %vm806, %v1694, 0
    %1697 = vmatpush.msra.mxu0 0.0
    %1698 = vmatpush.msra.mxu0 0.0
    %1699 = vmatpush.msra.mxu0 0.0
    %1700 = vmatpush.msra.mxu0 0.0
    %1701 = vmatpush.msra.mxu0 0.0
    %1702 = vmatpush.msra.mxu0 0.0
    %1703 = vmatpush.msra.mxu0 0.0
    %1704 = vmatpush.msra.mxu0 0.0
    %1705 = vmatpush.msra.mxu0 %v811
    %1706 = vmatpush.msra.mxu0 %v261
    %1707 = vmatpush.msra.mxu0 %v257
    %1708 = vmatpush.msra.mxu0 %v253
    %1709 = vmatpush.msra.mxu0 %v249
    %1710 = vmatpush.msra.mxu0 %v245
    %1711 = vmatpush.msra.mxu0 %v241
    %1712 = vmatpush.msra.mxu0 %v237
    %1713 = vmatmul.f32.gmra.mxu0 %v1695
    %v1714 = vpop.f32.mrf.mxu0
    %v1715 = vadd.f32 %v1629, %v1714
    %1716 = vdwg.mxu0
    %1717 = vmatpush.msra.mxu0 0.0
    %1718 = vmatpush.msra.mxu0 0.0
    %1719 = vmatpush.msra.mxu0 0.0
    %1720 = vmatpush.msra.mxu0 0.0
    %1721 = vmatpush.msra.mxu0 0.0
    %1722 = vmatpush.msra.mxu0 0.0
    %1723 = vmatpush.msra.mxu0 0.0
    %1724 = vmatpush.msra.mxu0 0.0
    %1725 = vmatpush.msra.mxu0 %v814
    %1726 = vmatpush.msra.mxu0 %v262
    %1727 = vmatpush.msra.mxu0 %v258
    %1728 = vmatpush.msra.mxu0 %v254
    %1729 = vmatpush.msra.mxu0 %v250
    %1730 = vmatpush.msra.mxu0 %v246
    %1731 = vmatpush.msra.mxu0 %v242
    %1732 = vmatpush.msra.mxu0 %v238
    %1733 = vmatmul.f32.gmra.mxu0 %v1695
    %v1734 = vpop.f32.mrf.mxu0
    %v1735 = vadd.f32 %v1649, %v1734
    %1736 = vdwg.mxu0
    %1737 = vmatpush.msra.mxu0 0.0
    %1738 = vmatpush.msra.mxu0 0.0
    %1739 = vmatpush.msra.mxu0 0.0
    %1740 = vmatpush.msra.mxu0 0.0
    %1741 = vmatpush.msra.mxu0 0.0
    %1742 = vmatpush.msra.mxu0 0.0
    %1743 = vmatpush.msra.mxu0 0.0
    %1744 = vmatpush.msra.mxu0 0.0
    %1745 = vmatpush.msra.mxu0 %v817
    %1746 = vmatpush.msra.mxu0 %v263
    %1747 = vmatpush.msra.mxu0 %v259
    %1748 = vmatpush.msra.mxu0 %v255
    %1749 = vmatpush.msra.mxu0 %v251
    %1750 = vmatpush.msra.mxu0 %v247
    %1751 = vmatpush.msra.mxu0 %v243
    %1752 = vmatpush.msra.mxu0 %v239
    %1753 = vmatmul.f32.gmra.mxu0 %v1695
    %v1754 = vpop.f32.mrf.mxu0
    %v1755 = vadd.f32 %v1669, %v1754
    %1756 = vdwg.mxu0
    %1757 = vmatpush.msra.mxu0 0.0
    %1758 = vmatpush.msra.mxu0 0.0
    %1759 = vmatpush.msra.mxu0 0.0
    %1760 = vmatpush.msra.mxu0 0.0
    %1761 = vmatpush.msra.mxu0 0.0
    %1762 = vmatpush.msra.mxu0 0.0
    %1763 = vmatpush.msra.mxu0 0.0
    %1764 = vmatpush.msra.mxu0 0.0
    %1765 = vmatpush.msra.mxu0 %v820
    %1766 = vmatpush.msra.mxu0 %v264
    %1767 = vmatpush.msra.mxu0 %v260
    %1768 = vmatpush.msra.mxu0 %v256
    %1769 = vmatpush.msra.mxu0 %v252
    %1770 = vmatpush.msra.mxu0 %v248
    %1771 = vmatpush.msra.mxu0 %v244
    %1772 = vmatpush.msra.mxu0 %v240
    %1773 = vmatmul.f32.gmra.mxu0 %v1695
    %v1774 = vpop.f32.mrf.mxu0
    %v1775 = vadd.f32 %v1689, %v1774
    %1776 = vdwg.mxu0
    %v1777 = vadd.f32 %v1715, %v903
    %v1778 = vadd.f32 %v1735, %v904
    %v1779 = vadd.f32 %v1755, %v905
    %v1780 = vadd.f32 %v1775, %v906
    %v1781 = vxor.u32 %v1777, 2147483648
    %v1782 = vxor.u32 %v1778, 2147483648
    %v1783 = vxor.u32 %v1779, 2147483648
    %v1784 = vmul.f32 %v1781, 1.442695
    %v1785 = vpow.pop %v1784
    %v1786 = vmul.f32 %v1782, 1.442695
    %v1787 = vpow.pop %v1786
    %v1788 = vmul.f32 %v1783, 1.442695
    %v1789 = vpow.pop %v1788
    %v1790 = vadd.f32 %v1785, 1.0
    %v1791 = vadd.f32 %v1787, 1.0
    %v1792 = vadd.f32 %v1789, 1.0
    %v1793 = vrcp.pop %v1790
    %v1794 = vmul.f32 %v1790, %v1793
    %v1795 = vsub.f32 1.0, %v1794
    %v1796 = vmul.f32 %v1793, %v1795
    %v1797 = vadd.f32 %v1793, %v1796
    %vm1798 = vweird.f32 %v1790
    %vm1799 = vweird.f32 %v1793
    %vm1800 = vmor %vm1798, %vm1799
    %v1801 = vsel %vm1800, %v1793, %v1797
    %v1802 = vand.u32 2147483647, %v1790
    %vm1803 = vcmp.eq.f32.partialorder %v1802, 8.507059e+37
    %v1804 = vand.u32 %v1790, 2147483648
    %v1805 = vor.u32 1.1754944e-38, %v1804
    %v1806 = vsel %vm1803, %v1805, %v1801
    %v1807 = vmul.f32 1.0, %v1806
    %v1808 = vrcp.pop %v1791
    %v1809 = vmul.f32 %v1791, %v1808
    %v1810 = vsub.f32 1.0, %v1809
    %v1811 = vmul.f32 %v1808, %v1810
    %v1812 = vadd.f32 %v1808, %v1811
    %vm1813 = vweird.f32 %v1791
    %vm1814 = vweird.f32 %v1808
    %vm1815 = vmor %vm1813, %vm1814
    %v1816 = vsel %vm1815, %v1808, %v1812
    %v1817 = vand.u32 2147483647, %v1791
    %vm1818 = vcmp.eq.f32.partialorder %v1817, 8.507059e+37
    %v1819 = vand.u32 %v1791, 2147483648
    %v1820 = vor.u32 1.1754944e-38, %v1819
    %v1821 = vsel %vm1818, %v1820, %v1816
    %v1822 = vmul.f32 1.0, %v1821
    %v1823 = vrcp.pop %v1792
    %v1824 = vmul.f32 %v1792, %v1823
    %v1825 = vsub.f32 1.0, %v1824
    %v1826 = vmul.f32 %v1823, %v1825
    %v1827 = vadd.f32 %v1823, %v1826
    %vm1828 = vweird.f32 %v1792
    %vm1829 = vweird.f32 %v1823
    %vm1830 = vmor %vm1828, %vm1829
    %v1831 = vsel %vm1830, %v1823, %v1827
    %v1832 = vand.u32 2147483647, %v1792
    %vm1833 = vcmp.eq.f32.partialorder %v1832, 8.507059e+37
    %v1834 = vand.u32 %v1792, 2147483648
    %v1835 = vor.u32 1.1754944e-38, %v1834
    %v1836 = vsel %vm1833, %v1835, %v1831
    %v1837 = vmul.f32 1.0, %v1836
    %v1838 = vtanh.pop %v1780
    %v1839 = vmul.f32 %v1822, %v975
    %v1840 = vmul.f32 %v1807, %v1838
    %v1841 = vadd.f32 %v1839, %v1840
    %v1842 = vtanh.pop %v1841
    %v1843 = vmul.f32 %v1837, %v1842
    %1844 = vmatpush.msra.mxu0 %v582
    %1845 = vmatpush.msra.mxu0 %v574
    %1846 = vmatpush.msra.mxu0 %v566
    %1847 = vmatpush.msra.mxu0 %v558
    %1848 = vmatpush.msra.mxu0 %v550
    %1849 = vmatpush.msra.mxu0 %v542
    %1850 = vmatpush.msra.mxu0 %v534
    %1851 = vmatpush.msra.mxu0 %v526
    %1852 = vmatpush.msra.mxu0 %v518
    %1853 = vmatpush.msra.mxu0 %v510
    %1854 = vmatpush.msra.mxu0 %v502
    %1855 = vmatpush.msra.mxu0 %v494
    %1856 = vmatpush.msra.mxu0 %v486
    %1857 = vmatpush.msra.mxu0 %v478
    %1858 = vmatpush.msra.mxu0 %v470
    %1859 = vmatpush.msra.mxu0 %v462
    %1860 = vmatmul.f32.gmra.mxu0 %v1607
    %v1861 = vpop.f32.mrf.mxu0
    %v1862 = vadd.f32 0.0, %v1861
    %1863 = vdwg.mxu0
    %1864 = vmatpush.msra.mxu0 %v710
    %1865 = vmatpush.msra.mxu0 %v702
    %1866 = vmatpush.msra.mxu0 %v694
    %1867 = vmatpush.msra.mxu0 %v686
    %1868 = vmatpush.msra.mxu0 %v678
    %1869 = vmatpush.msra.mxu0 %v670
    %1870 = vmatpush.msra.mxu0 %v662
    %1871 = vmatpush.msra.mxu0 %v654
    %1872 = vmatpush.msra.mxu0 %v646
    %1873 = vmatpush.msra.mxu0 %v638
    %1874 = vmatpush.msra.mxu0 %v630
    %1875 = vmatpush.msra.mxu0 %v622
    %1876 = vmatpush.msra.mxu0 %v614
    %1877 = vmatpush.msra.mxu0 %v606
    %1878 = vmatpush.msra.mxu0 %v598
    %1879 = vmatpush.msra.mxu0 %v590
    %1880 = vmatmul.f32.gmra.mxu0 %v1608
    %v1881 = vpop.f32.mrf.mxu0
    %v1882 = vadd.f32 %v1862, %v1881
    %1883 = vdwg.mxu0
    %1884 = vmatpush.msra.mxu0 %v583
    %1885 = vmatpush.msra.mxu0 %v575
    %1886 = vmatpush.msra.mxu0 %v567
    %1887 = vmatpush.msra.mxu0 %v559
    %1888 = vmatpush.msra.mxu0 %v551
    %1889 = vmatpush.msra.mxu0 %v543
    %1890 = vmatpush.msra.mxu0 %v535
    %1891 = vmatpush.msra.mxu0 %v527
    %1892 = vmatpush.msra.mxu0 %v519
    %1893 = vmatpush.msra.mxu0 %v511
    %1894 = vmatpush.msra.mxu0 %v503
    %1895 = vmatpush.msra.mxu0 %v495
    %1896 = vmatpush.msra.mxu0 %v487
    %1897 = vmatpush.msra.mxu0 %v479
    %1898 = vmatpush.msra.mxu0 %v471
    %1899 = vmatpush.msra.mxu0 %v463
    %1900 = vmatmul.f32.gmra.mxu0 %v1607
    %v1901 = vpop.f32.mrf.mxu0
    %v1902 = vadd.f32 0.0, %v1901
    %1903 = vdwg.mxu0
    %1904 = vmatpush.msra.mxu0 %v711
    %1905 = vmatpush.msra.mxu0 %v703
    %1906 = vmatpush.msra.mxu0 %v695
    %1907 = vmatpush.msra.mxu0 %v687
    %1908 = vmatpush.msra.mxu0 %v679
    %1909 = vmatpush.msra.mxu0 %v671
    %1910 = vmatpush.msra.mxu0 %v663
    %1911 = vmatpush.msra.mxu0 %v655
    %1912 = vmatpush.msra.mxu0 %v647
    %1913 = vmatpush.msra.mxu0 %v639
    %1914 = vmatpush.msra.mxu0 %v631
    %1915 = vmatpush.msra.mxu0 %v623
    %1916 = vmatpush.msra.mxu0 %v615
    %1917 = vmatpush.msra.mxu0 %v607
    %1918 = vmatpush.msra.mxu0 %v599
    %1919 = vmatpush.msra.mxu0 %v591
    %1920 = vmatmul.f32.gmra.mxu0 %v1608
    %v1921 = vpop.f32.mrf.mxu0
    %v1922 = vadd.f32 %v1902, %v1921
    %1923 = vdwg.mxu0
    %1924 = vmatpush.msra.mxu0 %v584
    %1925 = vmatpush.msra.mxu0 %v576
    %1926 = vmatpush.msra.mxu0 %v568
    %1927 = vmatpush.msra.mxu0 %v560
    %1928 = vmatpush.msra.mxu0 %v552
    %1929 = vmatpush.msra.mxu0 %v544
    %1930 = vmatpush.msra.mxu0 %v536
    %1931 = vmatpush.msra.mxu0 %v528
    %1932 = vmatpush.msra.mxu0 %v520
    %1933 = vmatpush.msra.mxu0 %v512
    %1934 = vmatpush.msra.mxu0 %v504
    %1935 = vmatpush.msra.mxu0 %v496
    %1936 = vmatpush.msra.mxu0 %v488
    %1937 = vmatpush.msra.mxu0 %v480
    %1938 = vmatpush.msra.mxu0 %v472
    %1939 = vmatpush.msra.mxu0 %v464
    %1940 = vmatmul.f32.gmra.mxu0 %v1607
    %v1941 = vpop.f32.mrf.mxu0
    %v1942 = vadd.f32 0.0, %v1941
    %1943 = vdwg.mxu0
    %1944 = vmatpush.msra.mxu0 %v712
    %1945 = vmatpush.msra.mxu0 %v704
    %1946 = vmatpush.msra.mxu0 %v696
    %1947 = vmatpush.msra.mxu0 %v688
    %1948 = vmatpush.msra.mxu0 %v680
    %1949 = vmatpush.msra.mxu0 %v672
    %1950 = vmatpush.msra.mxu0 %v664
    %1951 = vmatpush.msra.mxu0 %v656
    %1952 = vmatpush.msra.mxu0 %v648
    %1953 = vmatpush.msra.mxu0 %v640
    %1954 = vmatpush.msra.mxu0 %v632
    %1955 = vmatpush.msra.mxu0 %v624
    %1956 = vmatpush.msra.mxu0 %v616
    %1957 = vmatpush.msra.mxu0 %v608
    %1958 = vmatpush.msra.mxu0 %v600
    %1959 = vmatpush.msra.mxu0 %v592
    %1960 = vmatmul.f32.gmra.mxu0 %v1608
    %v1961 = vpop.f32.mrf.mxu0
    %v1962 = vadd.f32 %v1942, %v1961
    %1963 = vdwg.mxu0
    %1964 = vmatpush.msra.mxu0 %v585
    %1965 = vmatpush.msra.mxu0 %v577
    %1966 = vmatpush.msra.mxu0 %v569
    %1967 = vmatpush.msra.mxu0 %v561
    %1968 = vmatpush.msra.mxu0 %v553
    %1969 = vmatpush.msra.mxu0 %v545
    %1970 = vmatpush.msra.mxu0 %v537
    %1971 = vmatpush.msra.mxu0 %v529
    %1972 = vmatpush.msra.mxu0 %v521
    %1973 = vmatpush.msra.mxu0 %v513
    %1974 = vmatpush.msra.mxu0 %v505
    %1975 = vmatpush.msra.mxu0 %v497
    %1976 = vmatpush.msra.mxu0 %v489
    %1977 = vmatpush.msra.mxu0 %v481
    %1978 = vmatpush.msra.mxu0 %v473
    %1979 = vmatpush.msra.mxu0 %v465
    %1980 = vmatmul.f32.gmra.mxu0 %v1607
    %v1981 = vpop.f32.mrf.mxu0
    %v1982 = vadd.f32 0.0, %v1981
    %1983 = vdwg.mxu0
    %1984 = vmatpush.msra.mxu0 %v713
    %1985 = vmatpush.msra.mxu0 %v705
    %1986 = vmatpush.msra.mxu0 %v697
    %1987 = vmatpush.msra.mxu0 %v689
    %1988 = vmatpush.msra.mxu0 %v681
    %1989 = vmatpush.msra.mxu0 %v673
    %1990 = vmatpush.msra.mxu0 %v665
    %1991 = vmatpush.msra.mxu0 %v657
    %1992 = vmatpush.msra.mxu0 %v649
    %1993 = vmatpush.msra.mxu0 %v641
    %1994 = vmatpush.msra.mxu0 %v633
    %1995 = vmatpush.msra.mxu0 %v625
    %1996 = vmatpush.msra.mxu0 %v617
    %1997 = vmatpush.msra.mxu0 %v609
    %1998 = vmatpush.msra.mxu0 %v601
    %1999 = vmatpush.msra.mxu0 %v593
    %2000 = vmatmul.f32.gmra.mxu0 %v1608
    %v2001 = vpop.f32.mrf.mxu0
    %v2002 = vadd.f32 %v1982, %v2001
    %2003 = vdwg.mxu0
    %2004 = vmatpush.msra.mxu0 %v586
    %2005 = vmatpush.msra.mxu0 %v578
    %2006 = vmatpush.msra.mxu0 %v570
    %2007 = vmatpush.msra.mxu0 %v562
    %2008 = vmatpush.msra.mxu0 %v554
    %2009 = vmatpush.msra.mxu0 %v546
    %2010 = vmatpush.msra.mxu0 %v538
    %2011 = vmatpush.msra.mxu0 %v530
    %2012 = vmatpush.msra.mxu0 %v522
    %2013 = vmatpush.msra.mxu0 %v514
    %2014 = vmatpush.msra.mxu0 %v506
    %2015 = vmatpush.msra.mxu0 %v498
    %2016 = vmatpush.msra.mxu0 %v490
    %2017 = vmatpush.msra.mxu0 %v482
    %2018 = vmatpush.msra.mxu0 %v474
    %2019 = vmatpush.msra.mxu0 %v466
    %2020 = vmatmul.f32.gmra.mxu0 %v1607
    %v2021 = vpop.f32.mrf.mxu0
    %v2022 = vadd.f32 0.0, %v2021
    %2023 = vdwg.mxu0
    %2024 = vmatpush.msra.mxu0 %v714
    %2025 = vmatpush.msra.mxu0 %v706
    %2026 = vmatpush.msra.mxu0 %v698
    %2027 = vmatpush.msra.mxu0 %v690
    %2028 = vmatpush.msra.mxu0 %v682
    %2029 = vmatpush.msra.mxu0 %v674
    %2030 = vmatpush.msra.mxu0 %v666
    %2031 = vmatpush.msra.mxu0 %v658
    %2032 = vmatpush.msra.mxu0 %v650
    %2033 = vmatpush.msra.mxu0 %v642
    %2034 = vmatpush.msra.mxu0 %v634
    %2035 = vmatpush.msra.mxu0 %v626
    %2036 = vmatpush.msra.mxu0 %v618
    %2037 = vmatpush.msra.mxu0 %v610
    %2038 = vmatpush.msra.mxu0 %v602
    %2039 = vmatpush.msra.mxu0 %v594
    %2040 = vmatmul.f32.gmra.mxu0 %v1608
    %v2041 = vpop.f32.mrf.mxu0
    %v2042 = vadd.f32 %v2022, %v2041
    %2043 = vdwg.mxu0
    %2044 = vmatpush.msra.mxu0 %v587
    %2045 = vmatpush.msra.mxu0 %v579
    %2046 = vmatpush.msra.mxu0 %v571
    %2047 = vmatpush.msra.mxu0 %v563
    %2048 = vmatpush.msra.mxu0 %v555
    %2049 = vmatpush.msra.mxu0 %v547
    %2050 = vmatpush.msra.mxu0 %v539
    %2051 = vmatpush.msra.mxu0 %v531
    %2052 = vmatpush.msra.mxu0 %v523
    %2053 = vmatpush.msra.mxu0 %v515
    %2054 = vmatpush.msra.mxu0 %v507
    %2055 = vmatpush.msra.mxu0 %v499
    %2056 = vmatpush.msra.mxu0 %v491
    %2057 = vmatpush.msra.mxu0 %v483
    %2058 = vmatpush.msra.mxu0 %v475
    %2059 = vmatpush.msra.mxu0 %v467
    %2060 = vmatmul.f32.gmra.mxu0 %v1607
    %v2061 = vpop.f32.mrf.mxu0
    %v2062 = vadd.f32 0.0, %v2061
    %2063 = vdwg.mxu0
    %2064 = vmatpush.msra.mxu0 %v715
    %2065 = vmatpush.msra.mxu0 %v707
    %2066 = vmatpush.msra.mxu0 %v699
    %2067 = vmatpush.msra.mxu0 %v691
    %2068 = vmatpush.msra.mxu0 %v683
    %2069 = vmatpush.msra.mxu0 %v675
    %2070 = vmatpush.msra.mxu0 %v667
    %2071 = vmatpush.msra.mxu0 %v659
    %2072 = vmatpush.msra.mxu0 %v651
    %2073 = vmatpush.msra.mxu0 %v643
    %2074 = vmatpush.msra.mxu0 %v635
    %2075 = vmatpush.msra.mxu0 %v627
    %2076 = vmatpush.msra.mxu0 %v619
    %2077 = vmatpush.msra.mxu0 %v611
    %2078 = vmatpush.msra.mxu0 %v603
    %2079 = vmatpush.msra.mxu0 %v595
    %2080 = vmatmul.f32.gmra.mxu0 %v1608
    %v2081 = vpop.f32.mrf.mxu0
    %v2082 = vadd.f32 %v2062, %v2081
    %2083 = vdwg.mxu0
    %2084 = vmatpush.msra.mxu0 %v588
    %2085 = vmatpush.msra.mxu0 %v580
    %2086 = vmatpush.msra.mxu0 %v572
    %2087 = vmatpush.msra.mxu0 %v564
    %2088 = vmatpush.msra.mxu0 %v556
    %2089 = vmatpush.msra.mxu0 %v548
    %2090 = vmatpush.msra.mxu0 %v540
    %2091 = vmatpush.msra.mxu0 %v532
    %2092 = vmatpush.msra.mxu0 %v524
    %2093 = vmatpush.msra.mxu0 %v516
    %2094 = vmatpush.msra.mxu0 %v508
    %2095 = vmatpush.msra.mxu0 %v500
    %2096 = vmatpush.msra.mxu0 %v492
    %2097 = vmatpush.msra.mxu0 %v484
    %2098 = vmatpush.msra.mxu0 %v476
    %2099 = vmatpush.msra.mxu0 %v468
    %2100 = vmatmul.f32.gmra.mxu0 %v1607
    %v2101 = vpop.f32.mrf.mxu0
    %v2102 = vadd.f32 0.0, %v2101
    %2103 = vdwg.mxu0
    %2104 = vmatpush.msra.mxu0 %v716
    %2105 = vmatpush.msra.mxu0 %v708
    %2106 = vmatpush.msra.mxu0 %v700
    %2107 = vmatpush.msra.mxu0 %v692
    %2108 = vmatpush.msra.mxu0 %v684
    %2109 = vmatpush.msra.mxu0 %v676
    %2110 = vmatpush.msra.mxu0 %v668
    %2111 = vmatpush.msra.mxu0 %v660
    %2112 = vmatpush.msra.mxu0 %v652
    %2113 = vmatpush.msra.mxu0 %v644
    %2114 = vmatpush.msra.mxu0 %v636
    %2115 = vmatpush.msra.mxu0 %v628
    %2116 = vmatpush.msra.mxu0 %v620
    %2117 = vmatpush.msra.mxu0 %v612
    %2118 = vmatpush.msra.mxu0 %v604
    %2119 = vmatpush.msra.mxu0 %v596
    %2120 = vmatmul.f32.gmra.mxu0 %v1608
    %v2121 = vpop.f32.mrf.mxu0
    %v2122 = vadd.f32 %v2102, %v2121
    %2123 = vdwg.mxu0
    %2124 = vmatpush.msra.mxu0 %v589
    %2125 = vmatpush.msra.mxu0 %v581
    %2126 = vmatpush.msra.mxu0 %v573
    %2127 = vmatpush.msra.mxu0 %v565
    %2128 = vmatpush.msra.mxu0 %v557
    %2129 = vmatpush.msra.mxu0 %v549
    %2130 = vmatpush.msra.mxu0 %v541
    %2131 = vmatpush.msra.mxu0 %v533
    %2132 = vmatpush.msra.mxu0 %v525
    %2133 = vmatpush.msra.mxu0 %v517
    %2134 = vmatpush.msra.mxu0 %v509
    %2135 = vmatpush.msra.mxu0 %v501
    %2136 = vmatpush.msra.mxu0 %v493
    %2137 = vmatpush.msra.mxu0 %v485
    %2138 = vmatpush.msra.mxu0 %v477
    %2139 = vmatpush.msra.mxu0 %v469
    %2140 = vmatmul.f32.gmra.mxu0 %v1607
    %v2141 = vpop.f32.mrf.mxu0
    %v2142 = vadd.f32 0.0, %v2141
    %2143 = vdwg.mxu0
    %2144 = vmatpush.msra.mxu0 %v717
    %2145 = vmatpush.msra.mxu0 %v709
    %2146 = vmatpush.msra.mxu0 %v701
    %2147 = vmatpush.msra.mxu0 %v693
    %2148 = vmatpush.msra.mxu0 %v685
    %2149 = vmatpush.msra.mxu0 %v677
    %2150 = vmatpush.msra.mxu0 %v669
    %2151 = vmatpush.msra.mxu0 %v661
    %2152 = vmatpush.msra.mxu0 %v653
    %2153 = vmatpush.msra.mxu0 %v645
    %2154 = vmatpush.msra.mxu0 %v637
    %2155 = vmatpush.msra.mxu0 %v629
    %2156 = vmatpush.msra.mxu0 %v621
    %2157 = vmatpush.msra.mxu0 %v613
    %2158 = vmatpush.msra.mxu0 %v605
    %2159 = vmatpush.msra.mxu0 %v597
    %2160 = vmatmul.f32.gmra.mxu0 %v1608
    %v2161 = vpop.f32.mrf.mxu0
    %v2162 = vadd.f32 %v2142, %v2161
    %2163 = vdwg.mxu0
    %2164 = vmatpush.msra.mxu0 %v454
    %2165 = vmatpush.msra.mxu0 %v446
    %2166 = vmatpush.msra.mxu0 %v438
    %2167 = vmatpush.msra.mxu0 %v430
    %2168 = vmatpush.msra.mxu0 %v422
    %2169 = vmatpush.msra.mxu0 %v414
    %2170 = vmatpush.msra.mxu0 %v406
    %2171 = vmatpush.msra.mxu0 %v398
    %2172 = vmatpush.msra.mxu0 %v390
    %2173 = vmatpush.msra.mxu0 %v382
    %2174 = vmatpush.msra.mxu0 %v374
    %2175 = vmatpush.msra.mxu0 %v366
    %2176 = vmatpush.msra.mxu0 %v358
    %2177 = vmatpush.msra.mxu0 %v350
    %2178 = vmatpush.msra.mxu0 %v342
    %2179 = vmatpush.msra.mxu0 %v334
    %2180 = vmatmul.f32.gmra.mxu0 %v1843
    %v2181 = vpop.f32.mrf.mxu0
    %v2182 = vadd.f32 %v1882, %v2181
    %2183 = vdwg.mxu0
    %2184 = vmatpush.msra.mxu0 %v455
    %2185 = vmatpush.msra.mxu0 %v447
    %2186 = vmatpush.msra.mxu0 %v439
    %2187 = vmatpush.msra.mxu0 %v431
    %2188 = vmatpush.msra.mxu0 %v423
    %2189 = vmatpush.msra.mxu0 %v415
    %2190 = vmatpush.msra.mxu0 %v407
    %2191 = vmatpush.msra.mxu0 %v399
    %2192 = vmatpush.msra.mxu0 %v391
    %2193 = vmatpush.msra.mxu0 %v383
    %2194 = vmatpush.msra.mxu0 %v375
    %2195 = vmatpush.msra.mxu0 %v367
    %2196 = vmatpush.msra.mxu0 %v359
    %2197 = vmatpush.msra.mxu0 %v351
    %2198 = vmatpush.msra.mxu0 %v343
    %2199 = vmatpush.msra.mxu0 %v335
    %2200 = vmatmul.f32.gmra.mxu0 %v1843
    %v2201 = vpop.f32.mrf.mxu0
    %v2202 = vadd.f32 %v1922, %v2201
    %2203 = vdwg.mxu0
    %2204 = vmatpush.msra.mxu0 %v456
    %2205 = vmatpush.msra.mxu0 %v448
    %2206 = vmatpush.msra.mxu0 %v440
    %2207 = vmatpush.msra.mxu0 %v432
    %2208 = vmatpush.msra.mxu0 %v424
    %2209 = vmatpush.msra.mxu0 %v416
    %2210 = vmatpush.msra.mxu0 %v408
    %2211 = vmatpush.msra.mxu0 %v400
    %2212 = vmatpush.msra.mxu0 %v392
    %2213 = vmatpush.msra.mxu0 %v384
    %2214 = vmatpush.msra.mxu0 %v376
    %2215 = vmatpush.msra.mxu0 %v368
    %2216 = vmatpush.msra.mxu0 %v360
    %2217 = vmatpush.msra.mxu0 %v352
    %2218 = vmatpush.msra.mxu0 %v344
    %2219 = vmatpush.msra.mxu0 %v336
    %2220 = vmatmul.f32.gmra.mxu0 %v1843
    %v2221 = vpop.f32.mrf.mxu0
    %v2222 = vadd.f32 %v1962, %v2221
    %2223 = vdwg.mxu0
    %2224 = vmatpush.msra.mxu0 %v457
    %2225 = vmatpush.msra.mxu0 %v449
    %2226 = vmatpush.msra.mxu0 %v441
    %2227 = vmatpush.msra.mxu0 %v433
    %2228 = vmatpush.msra.mxu0 %v425
    %2229 = vmatpush.msra.mxu0 %v417
    %2230 = vmatpush.msra.mxu0 %v409
    %2231 = vmatpush.msra.mxu0 %v401
    %2232 = vmatpush.msra.mxu0 %v393
    %2233 = vmatpush.msra.mxu0 %v385
    %2234 = vmatpush.msra.mxu0 %v377
    %2235 = vmatpush.msra.mxu0 %v369
    %2236 = vmatpush.msra.mxu0 %v361
    %2237 = vmatpush.msra.mxu0 %v353
    %2238 = vmatpush.msra.mxu0 %v345
    %2239 = vmatpush.msra.mxu0 %v337
    %2240 = vmatmul.f32.gmra.mxu0 %v1843
    %v2241 = vpop.f32.mrf.mxu0
    %v2242 = vadd.f32 %v2002, %v2241
    %2243 = vdwg.mxu0
    %2244 = vmatpush.msra.mxu0 %v458
    %2245 = vmatpush.msra.mxu0 %v450
    %2246 = vmatpush.msra.mxu0 %v442
    %2247 = vmatpush.msra.mxu0 %v434
    %2248 = vmatpush.msra.mxu0 %v426
    %2249 = vmatpush.msra.mxu0 %v418
    %2250 = vmatpush.msra.mxu0 %v410
    %2251 = vmatpush.msra.mxu0 %v402
    %2252 = vmatpush.msra.mxu0 %v394
    %2253 = vmatpush.msra.mxu0 %v386
    %2254 = vmatpush.msra.mxu0 %v378
    %2255 = vmatpush.msra.mxu0 %v370
    %2256 = vmatpush.msra.mxu0 %v362
    %2257 = vmatpush.msra.mxu0 %v354
    %2258 = vmatpush.msra.mxu0 %v346
    %2259 = vmatpush.msra.mxu0 %v338
    %2260 = vmatmul.f32.gmra.mxu0 %v1843
    %v2261 = vpop.f32.mrf.mxu0
    %v2262 = vadd.f32 %v2042, %v2261
    %2263 = vdwg.mxu0
    %2264 = vmatpush.msra.mxu0 %v459
    %2265 = vmatpush.msra.mxu0 %v451
    %2266 = vmatpush.msra.mxu0 %v443
    %2267 = vmatpush.msra.mxu0 %v435
    %2268 = vmatpush.msra.mxu0 %v427
    %2269 = vmatpush.msra.mxu0 %v419
    %2270 = vmatpush.msra.mxu0 %v411
    %2271 = vmatpush.msra.mxu0 %v403
    %2272 = vmatpush.msra.mxu0 %v395
    %2273 = vmatpush.msra.mxu0 %v387
    %2274 = vmatpush.msra.mxu0 %v379
    %2275 = vmatpush.msra.mxu0 %v371
    %2276 = vmatpush.msra.mxu0 %v363
    %2277 = vmatpush.msra.mxu0 %v355
    %2278 = vmatpush.msra.mxu0 %v347
    %2279 = vmatpush.msra.mxu0 %v339
    %2280 = vmatmul.f32.gmra.mxu0 %v1843
    %v2281 = vpop.f32.mrf.mxu0
    %v2282 = vadd.f32 %v2082, %v2281
    %2283 = vdwg.mxu0
    %2284 = vmatpush.msra.mxu0 %v460
    %2285 = vmatpush.msra.mxu0 %v452
    %2286 = vmatpush.msra.mxu0 %v444
    %2287 = vmatpush.msra.mxu0 %v436
    %2288 = vmatpush.msra.mxu0 %v428
    %2289 = vmatpush.msra.mxu0 %v420
    %2290 = vmatpush.msra.mxu0 %v412
    %2291 = vmatpush.msra.mxu0 %v404
    %2292 = vmatpush.msra.mxu0 %v396
    %2293 = vmatpush.msra.mxu0 %v388
    %2294 = vmatpush.msra.mxu0 %v380
    %2295 = vmatpush.msra.mxu0 %v372
    %2296 = vmatpush.msra.mxu0 %v364
    %2297 = vmatpush.msra.mxu0 %v356
    %2298 = vmatpush.msra.mxu0 %v348
    %2299 = vmatpush.msra.mxu0 %v340
    %2300 = vmatmul.f32.gmra.mxu0 %v1843
    %v2301 = vpop.f32.mrf.mxu0
    %v2302 = vadd.f32 %v2122, %v2301
    %2303 = vdwg.mxu0
    %2304 = vmatpush.msra.mxu0 %v461
    %2305 = vmatpush.msra.mxu0 %v453
    %2306 = vmatpush.msra.mxu0 %v445
    %2307 = vmatpush.msra.mxu0 %v437
    %2308 = vmatpush.msra.mxu0 %v429
    %2309 = vmatpush.msra.mxu0 %v421
    %2310 = vmatpush.msra.mxu0 %v413
    %2311 = vmatpush.msra.mxu0 %v405
    %2312 = vmatpush.msra.mxu0 %v397
    %2313 = vmatpush.msra.mxu0 %v389
    %2314 = vmatpush.msra.mxu0 %v381
    %2315 = vmatpush.msra.mxu0 %v373
    %2316 = vmatpush.msra.mxu0 %v365
    %2317 = vmatpush.msra.mxu0 %v357
    %2318 = vmatpush.msra.mxu0 %v349
    %2319 = vmatpush.msra.mxu0 %v341
    %2320 = vmatmul.f32.gmra.mxu0 %v1843
    %v2321 = vpop.f32.mrf.mxu0
    %v2322 = vadd.f32 %v2162, %v2321
    %2323 = vdwg.mxu0
    %v2324 = vadd.f32 %v2182, %v1459
    %v2325 = vadd.f32 %v2202, %v1460
    %v2326 = vadd.f32 %v2222, %v1461
    %v2327 = vadd.f32 %v2242, %v1462
    %v2328 = vadd.f32 %v2262, %v1463
    %v2329 = vadd.f32 %v2282, %v1464
    %v2330 = vadd.f32 %v2302, %v1465
    %v2331 = vadd.f32 %v2322, %v1466
    %v2332 = vxor.u32 %v2324, 2147483648
    %v2333 = vxor.u32 %v2325, 2147483648
    %v2334 = vxor.u32 %v2326, 2147483648
    %v2335 = vxor.u32 %v2327, 2147483648
    %v2336 = vxor.u32 %v2328, 2147483648
    %v2337 = vxor.u32 %v2329, 2147483648
    %v2338 = vmul.f32 %v2332, 1.442695
    %v2339 = vpow.pop %v2338
    %v2340 = vmul.f32 %v2333, 1.442695
    %v2341 = vpow.pop %v2340
    %v2342 = vmul.f32 %v2334, 1.442695
    %v2343 = vpow.pop %v2342
    %v2344 = vmul.f32 %v2335, 1.442695
    %v2345 = vpow.pop %v2344
    %v2346 = vmul.f32 %v2336, 1.442695
    %v2347 = vpow.pop %v2346
    %v2348 = vmul.f32 %v2337, 1.442695
    %v2349 = vpow.pop %v2348
    %v2350 = vadd.f32 %v2339, 1.0
    %v2351 = vadd.f32 %v2341, 1.0
    %v2352 = vadd.f32 %v2343, 1.0
    %v2353 = vadd.f32 %v2345, 1.0
    %v2354 = vadd.f32 %v2347, 1.0
    %v2355 = vadd.f32 %v2349, 1.0
    %v2356 = vrcp.pop %v2350
    %v2357 = vmul.f32 %v2350, %v2356
    %v2358 = vsub.f32 1.0, %v2357
    %v2359 = vmul.f32 %v2356, %v2358
    %v2360 = vadd.f32 %v2356, %v2359
    %vm2361 = vweird.f32 %v2350
    %vm2362 = vweird.f32 %v2356
    %vm2363 = vmor %vm2361, %vm2362
    %v2364 = vsel %vm2363, %v2356, %v2360
    %v2365 = vand.u32 2147483647, %v2350
    %vm2366 = vcmp.eq.f32.partialorder %v2365, 8.507059e+37
    %v2367 = vand.u32 %v2350, 2147483648
    %v2368 = vor.u32 1.1754944e-38, %v2367
    %v2369 = vsel %vm2366, %v2368, %v2364
    %v2370 = vmul.f32 1.0, %v2369
    %v2371 = vrcp.pop %v2351
    %v2372 = vmul.f32 %v2351, %v2371
    %v2373 = vsub.f32 1.0, %v2372
    %v2374 = vmul.f32 %v2371, %v2373
    %v2375 = vadd.f32 %v2371, %v2374
    %vm2376 = vweird.f32 %v2351
    %vm2377 = vweird.f32 %v2371
    %vm2378 = vmor %vm2376, %vm2377
    %v2379 = vsel %vm2378, %v2371, %v2375
    %v2380 = vand.u32 2147483647, %v2351
    %vm2381 = vcmp.eq.f32.partialorder %v2380, 8.507059e+37
    %v2382 = vand.u32 %v2351, 2147483648
    %v2383 = vor.u32 1.1754944e-38, %v2382
    %v2384 = vsel %vm2381, %v2383, %v2379
    %v2385 = vmul.f32 1.0, %v2384
    %v2386 = vrcp.pop %v2352
    %v2387 = vmul.f32 %v2352, %v2386
    %v2388 = vsub.f32 1.0, %v2387
    %v2389 = vmul.f32 %v2386, %v2388
    %v2390 = vadd.f32 %v2386, %v2389
    %vm2391 = vweird.f32 %v2352
    %vm2392 = vweird.f32 %v2386
    %vm2393 = vmor %vm2391, %vm2392
    %v2394 = vsel %vm2393, %v2386, %v2390
    %v2395 = vand.u32 2147483647, %v2352
    %vm2396 = vcmp.eq.f32.partialorder %v2395, 8.507059e+37
    %v2397 = vand.u32 %v2352, 2147483648
    %v2398 = vor.u32 1.1754944e-38, %v2397
    %v2399 = vsel %vm2396, %v2398, %v2394
    %v2400 = vmul.f32 1.0, %v2399
    %v2401 = vrcp.pop %v2353
    %v2402 = vmul.f32 %v2353, %v2401
    %v2403 = vsub.f32 1.0, %v2402
    %v2404 = vmul.f32 %v2401, %v2403
    %v2405 = vadd.f32 %v2401, %v2404
    %vm2406 = vweird.f32 %v2353
    %vm2407 = vweird.f32 %v2401
    %vm2408 = vmor %vm2406, %vm2407
    %v2409 = vsel %vm2408, %v2401, %v2405
    %v2410 = vand.u32 2147483647, %v2353
    %vm2411 = vcmp.eq.f32.partialorder %v2410, 8.507059e+37
    %v2412 = vand.u32 %v2353, 2147483648
    %v2413 = vor.u32 1.1754944e-38, %v2412
    %v2414 = vsel %vm2411, %v2413, %v2409
    %v2415 = vmul.f32 1.0, %v2414
    %v2416 = vrcp.pop %v2354
    %v2417 = vmul.f32 %v2354, %v2416
    %v2418 = vsub.f32 1.0, %v2417
    %v2419 = vmul.f32 %v2416, %v2418
    %v2420 = vadd.f32 %v2416, %v2419
    %vm2421 = vweird.f32 %v2354
    %vm2422 = vweird.f32 %v2416
    %vm2423 = vmor %vm2421, %vm2422
    %v2424 = vsel %vm2423, %v2416, %v2420
    %v2425 = vand.u32 2147483647, %v2354
    %vm2426 = vcmp.eq.f32.partialorder %v2425, 8.507059e+37
    %v2427 = vand.u32 %v2354, 2147483648
    %v2428 = vor.u32 1.1754944e-38, %v2427
    %v2429 = vsel %vm2426, %v2428, %v2424
    %v2430 = vmul.f32 1.0, %v2429
    %v2431 = vrcp.pop %v2355
    %v2432 = vmul.f32 %v2355, %v2431
    %v2433 = vsub.f32 1.0, %v2432
    %v2434 = vmul.f32 %v2431, %v2433
    %v2435 = vadd.f32 %v2431, %v2434
    %vm2436 = vweird.f32 %v2355
    %vm2437 = vweird.f32 %v2431
    %vm2438 = vmor %vm2436, %vm2437
    %v2439 = vsel %vm2438, %v2431, %v2435
    %v2440 = vand.u32 2147483647, %v2355
    %vm2441 = vcmp.eq.f32.partialorder %v2440, 8.507059e+37
    %v2442 = vand.u32 %v2355, 2147483648
    %v2443 = vor.u32 1.1754944e-38, %v2442
    %v2444 = vsel %vm2441, %v2443, %v2439
    %v2445 = vmul.f32 1.0, %v2444
    %v2446 = vtanh.pop %v2330
    %v2447 = vtanh.pop %v2331
    %v2448 = vmul.f32 %v2400, %v1603
    %v2449 = vmul.f32 %v2415, %v1604
    %v2450 = vmul.f32 %v2370, %v2446
    %v2451 = vmul.f32 %v2385, %v2447
    %v2452 = vadd.f32 %v2448, %v2450
    %v2453 = vadd.f32 %v2449, %v2451
    %v2454 = vtanh.pop %v2452
    %v2455 = vtanh.pop %v2453
    %v2456 = vmul.f32 %v2430, %v2454
    %v2457 = vmul.f32 %v2445, %v2455
    %v2458 = vld [vmem:[#allocation2 + $0x2] sm:$0x1]
    %v2459 = vld [vmem:[#allocation2 + $0xa] sm:$0x1]
    %2460 = vmatpush.msra.mxu0 %v329
    %2461 = vmatpush.msra.mxu0 %v325
    %2462 = vmatpush.msra.mxu0 %v321
    %2463 = vmatpush.msra.mxu0 %v317
    %2464 = vmatpush.msra.mxu0 %v313
    %2465 = vmatpush.msra.mxu0 %v309
    %2466 = vmatpush.msra.mxu0 %v305
    %2467 = vmatpush.msra.mxu0 %v301
    %2468 = vmatpush.msra.mxu0 %v297
    %2469 = vmatpush.msra.mxu0 %v293
    %2470 = vmatpush.msra.mxu0 %v289
    %2471 = vmatpush.msra.mxu0 %v285
    %2472 = vmatpush.msra.mxu0 %v281
    %2473 = vmatpush.msra.mxu0 %v277
    %2474 = vmatpush.msra.mxu0 %v273
    %2475 = vmatpush.msra.mxu0 %v269
    %2476 = vmatmul.f32.gmra.mxu0 %v1843
    %v2477 = vpop.f32.mrf.mxu0
    %v2478 = vadd.f32 0.0, %v2477
    %2479 = vdwg.mxu0
    %2480 = vmatpush.msra.mxu0 %v330
    %2481 = vmatpush.msra.mxu0 %v326
    %2482 = vmatpush.msra.mxu0 %v322
    %2483 = vmatpush.msra.mxu0 %v318
    %2484 = vmatpush.msra.mxu0 %v314
    %2485 = vmatpush.msra.mxu0 %v310
    %2486 = vmatpush.msra.mxu0 %v306
    %2487 = vmatpush.msra.mxu0 %v302
    %2488 = vmatpush.msra.mxu0 %v298
    %2489 = vmatpush.msra.mxu0 %v294
    %2490 = vmatpush.msra.mxu0 %v290
    %2491 = vmatpush.msra.mxu0 %v286
    %2492 = vmatpush.msra.mxu0 %v282
    %2493 = vmatpush.msra.mxu0 %v278
    %2494 = vmatpush.msra.mxu0 %v274
    %2495 = vmatpush.msra.mxu0 %v270
    %2496 = vmatmul.f32.gmra.mxu0 %v1843
    %v2497 = vpop.f32.mrf.mxu0
    %v2498 = vadd.f32 0.0, %v2497
    %2499 = vdwg.mxu0
    %2500 = vmatpush.msra.mxu0 %v331
    %2501 = vmatpush.msra.mxu0 %v327
    %2502 = vmatpush.msra.mxu0 %v323
    %2503 = vmatpush.msra.mxu0 %v319
    %2504 = vmatpush.msra.mxu0 %v315
    %2505 = vmatpush.msra.mxu0 %v311
    %2506 = vmatpush.msra.mxu0 %v307
    %2507 = vmatpush.msra.mxu0 %v303
    %2508 = vmatpush.msra.mxu0 %v299
    %2509 = vmatpush.msra.mxu0 %v295
    %2510 = vmatpush.msra.mxu0 %v291
    %2511 = vmatpush.msra.mxu0 %v287
    %2512 = vmatpush.msra.mxu0 %v283
    %2513 = vmatpush.msra.mxu0 %v279
    %2514 = vmatpush.msra.mxu0 %v275
    %2515 = vmatpush.msra.mxu0 %v271
    %2516 = vmatmul.f32.gmra.mxu0 %v1843
    %v2517 = vpop.f32.mrf.mxu0
    %v2518 = vadd.f32 0.0, %v2517
    %2519 = vdwg.mxu0
    %2520 = vmatpush.msra.mxu0 %v332
    %2521 = vmatpush.msra.mxu0 %v328
    %2522 = vmatpush.msra.mxu0 %v324
    %2523 = vmatpush.msra.mxu0 %v320
    %2524 = vmatpush.msra.mxu0 %v316
    %2525 = vmatpush.msra.mxu0 %v312
    %2526 = vmatpush.msra.mxu0 %v308
    %2527 = vmatpush.msra.mxu0 %v304
    %2528 = vmatpush.msra.mxu0 %v300
    %2529 = vmatpush.msra.mxu0 %v296
    %2530 = vmatpush.msra.mxu0 %v292
    %2531 = vmatpush.msra.mxu0 %v288
    %2532 = vmatpush.msra.mxu0 %v284
    %2533 = vmatpush.msra.mxu0 %v280
    %2534 = vmatpush.msra.mxu0 %v276
    %2535 = vmatpush.msra.mxu0 %v272
    %2536 = vmatmul.f32.gmra.mxu0 %v1843
    %v2537 = vpop.f32.mrf.mxu0
    %v2538 = vadd.f32 0.0, %v2537
    %2539 = vdwg.mxu0
    %v2542 = vrot.slane %v2459, 7
    %v2543 = vsel %vm804, %v2542, %v2458
    %v2544 = vsel %vm806, %v2543, 0
    %2546 = vmatpush.msra.mxu0 0.0
    %2547 = vmatpush.msra.mxu0 0.0
    %2548 = vmatpush.msra.mxu0 0.0
    %2549 = vmatpush.msra.mxu0 0.0
    %2550 = vmatpush.msra.mxu0 0.0
    %2551 = vmatpush.msra.mxu0 0.0
    %2552 = vmatpush.msra.mxu0 0.0
    %2553 = vmatpush.msra.mxu0 0.0
    %2554 = vmatpush.msra.mxu0 %v811
    %2555 = vmatpush.msra.mxu0 %v261
    %2556 = vmatpush.msra.mxu0 %v257
    %2557 = vmatpush.msra.mxu0 %v253
    %2558 = vmatpush.msra.mxu0 %v249
    %2559 = vmatpush.msra.mxu0 %v245
    %2560 = vmatpush.msra.mxu0 %v241
    %2561 = vmatpush.msra.mxu0 %v237
    %2562 = vmatmul.f32.gmra.mxu0 %v2544
    %v2563 = vpop.f32.mrf.mxu0
    %v2564 = vadd.f32 %v2478, %v2563
    %2565 = vdwg.mxu0
    %2566 = vmatpush.msra.mxu0 0.0
    %2567 = vmatpush.msra.mxu0 0.0
    %2568 = vmatpush.msra.mxu0 0.0
    %2569 = vmatpush.msra.mxu0 0.0
    %2570 = vmatpush.msra.mxu0 0.0
    %2571 = vmatpush.msra.mxu0 0.0
    %2572 = vmatpush.msra.mxu0 0.0
    %2573 = vmatpush.msra.mxu0 0.0
    %2574 = vmatpush.msra.mxu0 %v814
    %2575 = vmatpush.msra.mxu0 %v262
    %2576 = vmatpush.msra.mxu0 %v258
    %2577 = vmatpush.msra.mxu0 %v254
    %2578 = vmatpush.msra.mxu0 %v250
    %2579 = vmatpush.msra.mxu0 %v246
    %2580 = vmatpush.msra.mxu0 %v242
    %2581 = vmatpush.msra.mxu0 %v238
    %2582 = vmatmul.f32.gmra.mxu0 %v2544
    %v2583 = vpop.f32.mrf.mxu0
    %v2584 = vadd.f32 %v2498, %v2583
    %2585 = vdwg.mxu0
    %2586 = vmatpush.msra.mxu0 0.0
    %2587 = vmatpush.msra.mxu0 0.0
    %2588 = vmatpush.msra.mxu0 0.0
    %2589 = vmatpush.msra.mxu0 0.0
    %2590 = vmatpush.msra.mxu0 0.0
    %2591 = vmatpush.msra.mxu0 0.0
    %2592 = vmatpush.msra.mxu0 0.0
    %2593 = vmatpush.msra.mxu0 0.0
    %2594 = vmatpush.msra.mxu0 %v817
    %2595 = vmatpush.msra.mxu0 %v263
    %2596 = vmatpush.msra.mxu0 %v259
    %2597 = vmatpush.msra.mxu0 %v255
    %2598 = vmatpush.msra.mxu0 %v251
    %2599 = vmatpush.msra.mxu0 %v247
    %2600 = vmatpush.msra.mxu0 %v243
    %2601 = vmatpush.msra.mxu0 %v239
    %2602 = vmatmul.f32.gmra.mxu0 %v2544
    %v2603 = vpop.f32.mrf.mxu0
    %v2604 = vadd.f32 %v2518, %v2603
    %2605 = vdwg.mxu0
    %2606 = vmatpush.msra.mxu0 0.0
    %2607 = vmatpush.msra.mxu0 0.0
    %2608 = vmatpush.msra.mxu0 0.0
    %2609 = vmatpush.msra.mxu0 0.0
    %2610 = vmatpush.msra.mxu0 0.0
    %2611 = vmatpush.msra.mxu0 0.0
    %2612 = vmatpush.msra.mxu0 0.0
    %2613 = vmatpush.msra.mxu0 0.0
    %2614 = vmatpush.msra.mxu0 %v820
    %2615 = vmatpush.msra.mxu0 %v264
    %2616 = vmatpush.msra.mxu0 %v260
    %2617 = vmatpush.msra.mxu0 %v256
    %2618 = vmatpush.msra.mxu0 %v252
    %2619 = vmatpush.msra.mxu0 %v248
    %2620 = vmatpush.msra.mxu0 %v244
    %2621 = vmatpush.msra.mxu0 %v240
    %2622 = vmatmul.f32.gmra.mxu0 %v2544
    %v2623 = vpop.f32.mrf.mxu0
    %v2624 = vadd.f32 %v2538, %v2623
    %2625 = vdwg.mxu0
    %v2626 = vadd.f32 %v2564, %v903
    %v2627 = vadd.f32 %v2584, %v904
    %v2628 = vadd.f32 %v2604, %v905
    %v2629 = vadd.f32 %v2624, %v906
    %v2630 = vxor.u32 %v2626, 2147483648
    %v2631 = vxor.u32 %v2627, 2147483648
    %v2632 = vxor.u32 %v2628, 2147483648
    %v2633 = vmul.f32 %v2630, 1.442695
    %v2634 = vpow.pop %v2633
    %v2635 = vmul.f32 %v2631, 1.442695
    %v2636 = vpow.pop %v2635
    %v2637 = vmul.f32 %v2632, 1.442695
    %v2638 = vpow.pop %v2637
    %v2639 = vadd.f32 %v2634, 1.0
    %v2640 = vadd.f32 %v2636, 1.0
    %v2641 = vadd.f32 %v2638, 1.0
    %v2642 = vrcp.pop %v2639
    %v2643 = vmul.f32 %v2639, %v2642
    %v2644 = vsub.f32 1.0, %v2643
    %v2645 = vmul.f32 %v2642, %v2644
    %v2646 = vadd.f32 %v2642, %v2645
    %vm2647 = vweird.f32 %v2639
    %vm2648 = vweird.f32 %v2642
    %vm2649 = vmor %vm2647, %vm2648
    %v2650 = vsel %vm2649, %v2642, %v2646
    %v2651 = vand.u32 2147483647, %v2639
    %vm2652 = vcmp.eq.f32.partialorder %v2651, 8.507059e+37
    %v2653 = vand.u32 %v2639, 2147483648
    %v2654 = vor.u32 1.1754944e-38, %v2653
    %v2655 = vsel %vm2652, %v2654, %v2650
    %v2656 = vmul.f32 1.0, %v2655
    %v2657 = vrcp.pop %v2640
    %v2658 = vmul.f32 %v2640, %v2657
    %v2659 = vsub.f32 1.0, %v2658
    %v2660 = vmul.f32 %v2657, %v2659
    %v2661 = vadd.f32 %v2657, %v2660
    %vm2662 = vweird.f32 %v2640
    %vm2663 = vweird.f32 %v2657
    %vm2664 = vmor %vm2662, %vm2663
    %v2665 = vsel %vm2664, %v2657, %v2661
    %v2666 = vand.u32 2147483647, %v2640
    %vm2667 = vcmp.eq.f32.partialorder %v2666, 8.507059e+37
    %v2668 = vand.u32 %v2640, 2147483648
    %v2669 = vor.u32 1.1754944e-38, %v2668
    %v2670 = vsel %vm2667, %v2669, %v2665
    %v2671 = vmul.f32 1.0, %v2670
    %v2672 = vrcp.pop %v2641
    %v2673 = vmul.f32 %v2641, %v2672
    %v2674 = vsub.f32 1.0, %v2673
    %v2675 = vmul.f32 %v2672, %v2674
    %v2676 = vadd.f32 %v2672, %v2675
    %vm2677 = vweird.f32 %v2641
    %vm2678 = vweird.f32 %v2672
    %vm2679 = vmor %vm2677, %vm2678
    %v2680 = vsel %vm2679, %v2672, %v2676
    %v2681 = vand.u32 2147483647, %v2641
    %vm2682 = vcmp.eq.f32.partialorder %v2681, 8.507059e+37
    %v2683 = vand.u32 %v2641, 2147483648
    %v2684 = vor.u32 1.1754944e-38, %v2683
    %v2685 = vsel %vm2682, %v2684, %v2680
    %v2686 = vmul.f32 1.0, %v2685
    %v2687 = vtanh.pop %v2629
    %v2688 = vmul.f32 %v2671, %v1841
    %v2689 = vmul.f32 %v2656, %v2687
    %v2690 = vadd.f32 %v2688, %v2689
    %v2691 = vtanh.pop %v2690
    %v2692 = vmul.f32 %v2686, %v2691
    %2693 = vmatpush.msra.mxu0 %v582
    %2694 = vmatpush.msra.mxu0 %v574
    %2695 = vmatpush.msra.mxu0 %v566
    %2696 = vmatpush.msra.mxu0 %v558
    %2697 = vmatpush.msra.mxu0 %v550
    %2698 = vmatpush.msra.mxu0 %v542
    %2699 = vmatpush.msra.mxu0 %v534
    %2700 = vmatpush.msra.mxu0 %v526
    %2701 = vmatpush.msra.mxu0 %v518
    %2702 = vmatpush.msra.mxu0 %v510
    %2703 = vmatpush.msra.mxu0 %v502
    %2704 = vmatpush.msra.mxu0 %v494
    %2705 = vmatpush.msra.mxu0 %v486
    %2706 = vmatpush.msra.mxu0 %v478
    %2707 = vmatpush.msra.mxu0 %v470
    %2708 = vmatpush.msra.mxu0 %v462
    %2709 = vmatmul.f32.gmra.mxu0 %v2456
    %v2710 = vpop.f32.mrf.mxu0
    %v2711 = vadd.f32 0.0, %v2710
    %2712 = vdwg.mxu0
    %2713 = vmatpush.msra.mxu0 %v710
    %2714 = vmatpush.msra.mxu0 %v702
    %2715 = vmatpush.msra.mxu0 %v694
    %2716 = vmatpush.msra.mxu0 %v686
    %2717 = vmatpush.msra.mxu0 %v678
    %2718 = vmatpush.msra.mxu0 %v670
    %2719 = vmatpush.msra.mxu0 %v662
    %2720 = vmatpush.msra.mxu0 %v654
    %2721 = vmatpush.msra.mxu0 %v646
    %2722 = vmatpush.msra.mxu0 %v638
    %2723 = vmatpush.msra.mxu0 %v630
    %2724 = vmatpush.msra.mxu0 %v622
    %2725 = vmatpush.msra.mxu0 %v614
    %2726 = vmatpush.msra.mxu0 %v606
    %2727 = vmatpush.msra.mxu0 %v598
    %2728 = vmatpush.msra.mxu0 %v590
    %2729 = vmatmul.f32.gmra.mxu0 %v2457
    %v2730 = vpop.f32.mrf.mxu0
    %v2731 = vadd.f32 %v2711, %v2730
    %2732 = vdwg.mxu0
    %2733 = vmatpush.msra.mxu0 %v583
    %2734 = vmatpush.msra.mxu0 %v575
    %2735 = vmatpush.msra.mxu0 %v567
    %2736 = vmatpush.msra.mxu0 %v559
    %2737 = vmatpush.msra.mxu0 %v551
    %2738 = vmatpush.msra.mxu0 %v543
    %2739 = vmatpush.msra.mxu0 %v535
    %2740 = vmatpush.msra.mxu0 %v527
    %2741 = vmatpush.msra.mxu0 %v519
    %2742 = vmatpush.msra.mxu0 %v511
    %2743 = vmatpush.msra.mxu0 %v503
    %2744 = vmatpush.msra.mxu0 %v495
    %2745 = vmatpush.msra.mxu0 %v487
    %2746 = vmatpush.msra.mxu0 %v479
    %2747 = vmatpush.msra.mxu0 %v471
    %2748 = vmatpush.msra.mxu0 %v463
    %2749 = vmatmul.f32.gmra.mxu0 %v2456
    %v2750 = vpop.f32.mrf.mxu0
    %v2751 = vadd.f32 0.0, %v2750
    %2752 = vdwg.mxu0
    %2753 = vmatpush.msra.mxu0 %v711
    %2754 = vmatpush.msra.mxu0 %v703
    %2755 = vmatpush.msra.mxu0 %v695
    %2756 = vmatpush.msra.mxu0 %v687
    %2757 = vmatpush.msra.mxu0 %v679
    %2758 = vmatpush.msra.mxu0 %v671
    %2759 = vmatpush.msra.mxu0 %v663
    %2760 = vmatpush.msra.mxu0 %v655
    %2761 = vmatpush.msra.mxu0 %v647
    %2762 = vmatpush.msra.mxu0 %v639
    %2763 = vmatpush.msra.mxu0 %v631
    %2764 = vmatpush.msra.mxu0 %v623
    %2765 = vmatpush.msra.mxu0 %v615
    %2766 = vmatpush.msra.mxu0 %v607
    %2767 = vmatpush.msra.mxu0 %v599
    %2768 = vmatpush.msra.mxu0 %v591
    %2769 = vmatmul.f32.gmra.mxu0 %v2457
    %v2770 = vpop.f32.mrf.mxu0
    %v2771 = vadd.f32 %v2751, %v2770
    %2772 = vdwg.mxu0
    %2773 = vmatpush.msra.mxu0 %v584
    %2774 = vmatpush.msra.mxu0 %v576
    %2775 = vmatpush.msra.mxu0 %v568
    %2776 = vmatpush.msra.mxu0 %v560
    %2777 = vmatpush.msra.mxu0 %v552
    %2778 = vmatpush.msra.mxu0 %v544
    %2779 = vmatpush.msra.mxu0 %v536
    %2780 = vmatpush.msra.mxu0 %v528
    %2781 = vmatpush.msra.mxu0 %v520
    %2782 = vmatpush.msra.mxu0 %v512
    %2783 = vmatpush.msra.mxu0 %v504
    %2784 = vmatpush.msra.mxu0 %v496
    %2785 = vmatpush.msra.mxu0 %v488
    %2786 = vmatpush.msra.mxu0 %v480
    %2787 = vmatpush.msra.mxu0 %v472
    %2788 = vmatpush.msra.mxu0 %v464
    %2789 = vmatmul.f32.gmra.mxu0 %v2456
    %v2790 = vpop.f32.mrf.mxu0
    %v2791 = vadd.f32 0.0, %v2790
    %2792 = vdwg.mxu0
    %2793 = vmatpush.msra.mxu0 %v712
    %2794 = vmatpush.msra.mxu0 %v704
    %2795 = vmatpush.msra.mxu0 %v696
    %2796 = vmatpush.msra.mxu0 %v688
    %2797 = vmatpush.msra.mxu0 %v680
    %2798 = vmatpush.msra.mxu0 %v672
    %2799 = vmatpush.msra.mxu0 %v664
    %2800 = vmatpush.msra.mxu0 %v656
    %2801 = vmatpush.msra.mxu0 %v648
    %2802 = vmatpush.msra.mxu0 %v640
    %2803 = vmatpush.msra.mxu0 %v632
    %2804 = vmatpush.msra.mxu0 %v624
    %2805 = vmatpush.msra.mxu0 %v616
    %2806 = vmatpush.msra.mxu0 %v608
    %2807 = vmatpush.msra.mxu0 %v600
    %2808 = vmatpush.msra.mxu0 %v592
    %2809 = vmatmul.f32.gmra.mxu0 %v2457
    %v2810 = vpop.f32.mrf.mxu0
    %v2811 = vadd.f32 %v2791, %v2810
    %2812 = vdwg.mxu0
    %2813 = vmatpush.msra.mxu0 %v585
    %2814 = vmatpush.msra.mxu0 %v577
    %2815 = vmatpush.msra.mxu0 %v569
    %2816 = vmatpush.msra.mxu0 %v561
    %2817 = vmatpush.msra.mxu0 %v553
    %2818 = vmatpush.msra.mxu0 %v545
    %2819 = vmatpush.msra.mxu0 %v537
    %2820 = vmatpush.msra.mxu0 %v529
    %2821 = vmatpush.msra.mxu0 %v521
    %2822 = vmatpush.msra.mxu0 %v513
    %2823 = vmatpush.msra.mxu0 %v505
    %2824 = vmatpush.msra.mxu0 %v497
    %2825 = vmatpush.msra.mxu0 %v489
    %2826 = vmatpush.msra.mxu0 %v481
    %2827 = vmatpush.msra.mxu0 %v473
    %2828 = vmatpush.msra.mxu0 %v465
    %2829 = vmatmul.f32.gmra.mxu0 %v2456
    %v2830 = vpop.f32.mrf.mxu0
    %v2831 = vadd.f32 0.0, %v2830
    %2832 = vdwg.mxu0
    %2833 = vmatpush.msra.mxu0 %v713
    %2834 = vmatpush.msra.mxu0 %v705
    %2835 = vmatpush.msra.mxu0 %v697
    %2836 = vmatpush.msra.mxu0 %v689
    %2837 = vmatpush.msra.mxu0 %v681
    %2838 = vmatpush.msra.mxu0 %v673
    %2839 = vmatpush.msra.mxu0 %v665
    %2840 = vmatpush.msra.mxu0 %v657
    %2841 = vmatpush.msra.mxu0 %v649
    %2842 = vmatpush.msra.mxu0 %v641
    %2843 = vmatpush.msra.mxu0 %v633
    %2844 = vmatpush.msra.mxu0 %v625
    %2845 = vmatpush.msra.mxu0 %v617
    %2846 = vmatpush.msra.mxu0 %v609
    %2847 = vmatpush.msra.mxu0 %v601
    %2848 = vmatpush.msra.mxu0 %v593
    %2849 = vmatmul.f32.gmra.mxu0 %v2457
    %v2850 = vpop.f32.mrf.mxu0
    %v2851 = vadd.f32 %v2831, %v2850
    %2852 = vdwg.mxu0
    %2853 = vmatpush.msra.mxu0 %v586
    %2854 = vmatpush.msra.mxu0 %v578
    %2855 = vmatpush.msra.mxu0 %v570
    %2856 = vmatpush.msra.mxu0 %v562
    %2857 = vmatpush.msra.mxu0 %v554
    %2858 = vmatpush.msra.mxu0 %v546
    %2859 = vmatpush.msra.mxu0 %v538
    %2860 = vmatpush.msra.mxu0 %v530
    %2861 = vmatpush.msra.mxu0 %v522
    %2862 = vmatpush.msra.mxu0 %v514
    %2863 = vmatpush.msra.mxu0 %v506
    %2864 = vmatpush.msra.mxu0 %v498
    %2865 = vmatpush.msra.mxu0 %v490
    %2866 = vmatpush.msra.mxu0 %v482
    %2867 = vmatpush.msra.mxu0 %v474
    %2868 = vmatpush.msra.mxu0 %v466
    %2869 = vmatmul.f32.gmra.mxu0 %v2456
    %v2870 = vpop.f32.mrf.mxu0
    %v2871 = vadd.f32 0.0, %v2870
    %2872 = vdwg.mxu0
    %2873 = vmatpush.msra.mxu0 %v714
    %2874 = vmatpush.msra.mxu0 %v706
    %2875 = vmatpush.msra.mxu0 %v698
    %2876 = vmatpush.msra.mxu0 %v690
    %2877 = vmatpush.msra.mxu0 %v682
    %2878 = vmatpush.msra.mxu0 %v674
    %2879 = vmatpush.msra.mxu0 %v666
    %2880 = vmatpush.msra.mxu0 %v658
    %2881 = vmatpush.msra.mxu0 %v650
    %2882 = vmatpush.msra.mxu0 %v642
    %2883 = vmatpush.msra.mxu0 %v634
    %2884 = vmatpush.msra.mxu0 %v626
    %2885 = vmatpush.msra.mxu0 %v618
    %2886 = vmatpush.msra.mxu0 %v610
    %2887 = vmatpush.msra.mxu0 %v602
    %2888 = vmatpush.msra.mxu0 %v594
    %2889 = vmatmul.f32.gmra.mxu0 %v2457
    %v2890 = vpop.f32.mrf.mxu0
    %v2891 = vadd.f32 %v2871, %v2890
    %2892 = vdwg.mxu0
    %2893 = vmatpush.msra.mxu0 %v587
    %2894 = vmatpush.msra.mxu0 %v579
    %2895 = vmatpush.msra.mxu0 %v571
    %2896 = vmatpush.msra.mxu0 %v563
    %2897 = vmatpush.msra.mxu0 %v555
    %2898 = vmatpush.msra.mxu0 %v547
    %2899 = vmatpush.msra.mxu0 %v539
    %2900 = vmatpush.msra.mxu0 %v531
    %2901 = vmatpush.msra.mxu0 %v523
    %2902 = vmatpush.msra.mxu0 %v515
    %2903 = vmatpush.msra.mxu0 %v507
    %2904 = vmatpush.msra.mxu0 %v499
    %2905 = vmatpush.msra.mxu0 %v491
    %2906 = vmatpush.msra.mxu0 %v483
    %2907 = vmatpush.msra.mxu0 %v475
    %2908 = vmatpush.msra.mxu0 %v467
    %2909 = vmatmul.f32.gmra.mxu0 %v2456
    %v2910 = vpop.f32.mrf.mxu0
    %v2911 = vadd.f32 0.0, %v2910
    %2912 = vdwg.mxu0
    %2913 = vmatpush.msra.mxu0 %v715
    %2914 = vmatpush.msra.mxu0 %v707
    %2915 = vmatpush.msra.mxu0 %v699
    %2916 = vmatpush.msra.mxu0 %v691
    %2917 = vmatpush.msra.mxu0 %v683
    %2918 = vmatpush.msra.mxu0 %v675
    %2919 = vmatpush.msra.mxu0 %v667
    %2920 = vmatpush.msra.mxu0 %v659
    %2921 = vmatpush.msra.mxu0 %v651
    %2922 = vmatpush.msra.mxu0 %v643
    %2923 = vmatpush.msra.mxu0 %v635
    %2924 = vmatpush.msra.mxu0 %v627
    %2925 = vmatpush.msra.mxu0 %v619
    %2926 = vmatpush.msra.mxu0 %v611
    %2927 = vmatpush.msra.mxu0 %v603
    %2928 = vmatpush.msra.mxu0 %v595
    %2929 = vmatmul.f32.gmra.mxu0 %v2457
    %v2930 = vpop.f32.mrf.mxu0
    %v2931 = vadd.f32 %v2911, %v2930
    %2932 = vdwg.mxu0
    %2933 = vmatpush.msra.mxu0 %v588
    %2934 = vmatpush.msra.mxu0 %v580
    %2935 = vmatpush.msra.mxu0 %v572
    %2936 = vmatpush.msra.mxu0 %v564
    %2937 = vmatpush.msra.mxu0 %v556
    %2938 = vmatpush.msra.mxu0 %v548
    %2939 = vmatpush.msra.mxu0 %v540
    %2940 = vmatpush.msra.mxu0 %v532
    %2941 = vmatpush.msra.mxu0 %v524
    %2942 = vmatpush.msra.mxu0 %v516
    %2943 = vmatpush.msra.mxu0 %v508
    %2944 = vmatpush.msra.mxu0 %v500
    %2945 = vmatpush.msra.mxu0 %v492
    %2946 = vmatpush.msra.mxu0 %v484
    %2947 = vmatpush.msra.mxu0 %v476
    %2948 = vmatpush.msra.mxu0 %v468
    %2949 = vmatmul.f32.gmra.mxu0 %v2456
    %v2950 = vpop.f32.mrf.mxu0
    %v2951 = vadd.f32 0.0, %v2950
    %2952 = vdwg.mxu0
    %2953 = vmatpush.msra.mxu0 %v716
    %2954 = vmatpush.msra.mxu0 %v708
    %2955 = vmatpush.msra.mxu0 %v700
    %2956 = vmatpush.msra.mxu0 %v692
    %2957 = vmatpush.msra.mxu0 %v684
    %2958 = vmatpush.msra.mxu0 %v676
    %2959 = vmatpush.msra.mxu0 %v668
    %2960 = vmatpush.msra.mxu0 %v660
    %2961 = vmatpush.msra.mxu0 %v652
    %2962 = vmatpush.msra.mxu0 %v644
    %2963 = vmatpush.msra.mxu0 %v636
    %2964 = vmatpush.msra.mxu0 %v628
    %2965 = vmatpush.msra.mxu0 %v620
    %2966 = vmatpush.msra.mxu0 %v612
    %2967 = vmatpush.msra.mxu0 %v604
    %2968 = vmatpush.msra.mxu0 %v596
    %2969 = vmatmul.f32.gmra.mxu0 %v2457
    %v2970 = vpop.f32.mrf.mxu0
    %v2971 = vadd.f32 %v2951, %v2970
    %2972 = vdwg.mxu0
    %2973 = vmatpush.msra.mxu0 %v589
    %2974 = vmatpush.msra.mxu0 %v581
    %2975 = vmatpush.msra.mxu0 %v573
    %2976 = vmatpush.msra.mxu0 %v565
    %2977 = vmatpush.msra.mxu0 %v557
    %2978 = vmatpush.msra.mxu0 %v549
    %2979 = vmatpush.msra.mxu0 %v541
    %2980 = vmatpush.msra.mxu0 %v533
    %2981 = vmatpush.msra.mxu0 %v525
    %2982 = vmatpush.msra.mxu0 %v517
    %2983 = vmatpush.msra.mxu0 %v509
    %2984 = vmatpush.msra.mxu0 %v501
    %2985 = vmatpush.msra.mxu0 %v493
    %2986 = vmatpush.msra.mxu0 %v485
    %2987 = vmatpush.msra.mxu0 %v477
    %2988 = vmatpush.msra.mxu0 %v469
    %2989 = vmatmul.f32.gmra.mxu0 %v2456
    %v2990 = vpop.f32.mrf.mxu0
    %v2991 = vadd.f32 0.0, %v2990
    %2992 = vdwg.mxu0
    %2993 = vmatpush.msra.mxu0 %v717
    %2994 = vmatpush.msra.mxu0 %v709
    %2995 = vmatpush.msra.mxu0 %v701
    %2996 = vmatpush.msra.mxu0 %v693
    %2997 = vmatpush.msra.mxu0 %v685
    %2998 = vmatpush.msra.mxu0 %v677
    %2999 = vmatpush.msra.mxu0 %v669
    %3000 = vmatpush.msra.mxu0 %v661
    %3001 = vmatpush.msra.mxu0 %v653
    %3002 = vmatpush.msra.mxu0 %v645
    %3003 = vmatpush.msra.mxu0 %v637
    %3004 = vmatpush.msra.mxu0 %v629
    %3005 = vmatpush.msra.mxu0 %v621
    %3006 = vmatpush.msra.mxu0 %v613
    %3007 = vmatpush.msra.mxu0 %v605
    %3008 = vmatpush.msra.mxu0 %v597
    %3009 = vmatmul.f32.gmra.mxu0 %v2457
    %v3010 = vpop.f32.mrf.mxu0
    %v3011 = vadd.f32 %v2991, %v3010
    %3012 = vdwg.mxu0
    %3013 = vmatpush.msra.mxu0 %v454
    %3014 = vmatpush.msra.mxu0 %v446
    %3015 = vmatpush.msra.mxu0 %v438
    %3016 = vmatpush.msra.mxu0 %v430
    %3017 = vmatpush.msra.mxu0 %v422
    %3018 = vmatpush.msra.mxu0 %v414
    %3019 = vmatpush.msra.mxu0 %v406
    %3020 = vmatpush.msra.mxu0 %v398
    %3021 = vmatpush.msra.mxu0 %v390
    %3022 = vmatpush.msra.mxu0 %v382
    %3023 = vmatpush.msra.mxu0 %v374
    %3024 = vmatpush.msra.mxu0 %v366
    %3025 = vmatpush.msra.mxu0 %v358
    %3026 = vmatpush.msra.mxu0 %v350
    %3027 = vmatpush.msra.mxu0 %v342
    %3028 = vmatpush.msra.mxu0 %v334
    %3029 = vmatmul.f32.gmra.mxu0 %v2692
    %v3030 = vpop.f32.mrf.mxu0
    %v3031 = vadd.f32 %v2731, %v3030
    %3032 = vdwg.mxu0
    %3033 = vmatpush.msra.mxu0 %v455
    %3034 = vmatpush.msra.mxu0 %v447
    %3035 = vmatpush.msra.mxu0 %v439
    %3036 = vmatpush.msra.mxu0 %v431
    %3037 = vmatpush.msra.mxu0 %v423
    %3038 = vmatpush.msra.mxu0 %v415
    %3039 = vmatpush.msra.mxu0 %v407
    %3040 = vmatpush.msra.mxu0 %v399
    %3041 = vmatpush.msra.mxu0 %v391
    %3042 = vmatpush.msra.mxu0 %v383
    %3043 = vmatpush.msra.mxu0 %v375
    %3044 = vmatpush.msra.mxu0 %v367
    %3045 = vmatpush.msra.mxu0 %v359
    %3046 = vmatpush.msra.mxu0 %v351
    %3047 = vmatpush.msra.mxu0 %v343
    %3048 = vmatpush.msra.mxu0 %v335
    %3049 = vmatmul.f32.gmra.mxu0 %v2692
    %v3050 = vpop.f32.mrf.mxu0
    %v3051 = vadd.f32 %v2771, %v3050
    %3052 = vdwg.mxu0
    %3053 = vmatpush.msra.mxu0 %v456
    %3054 = vmatpush.msra.mxu0 %v448
    %3055 = vmatpush.msra.mxu0 %v440
    %3056 = vmatpush.msra.mxu0 %v432
    %3057 = vmatpush.msra.mxu0 %v424
    %3058 = vmatpush.msra.mxu0 %v416
    %3059 = vmatpush.msra.mxu0 %v408
    %3060 = vmatpush.msra.mxu0 %v400
    %3061 = vmatpush.msra.mxu0 %v392
    %3062 = vmatpush.msra.mxu0 %v384
    %3063 = vmatpush.msra.mxu0 %v376
    %3064 = vmatpush.msra.mxu0 %v368
    %3065 = vmatpush.msra.mxu0 %v360
    %3066 = vmatpush.msra.mxu0 %v352
    %3067 = vmatpush.msra.mxu0 %v344
    %3068 = vmatpush.msra.mxu0 %v336
    %3069 = vmatmul.f32.gmra.mxu0 %v2692
    %v3070 = vpop.f32.mrf.mxu0
    %v3071 = vadd.f32 %v2811, %v3070
    %3072 = vdwg.mxu0
    %3073 = vmatpush.msra.mxu0 %v457
    %3074 = vmatpush.msra.mxu0 %v449
    %3075 = vmatpush.msra.mxu0 %v441
    %3076 = vmatpush.msra.mxu0 %v433
    %3077 = vmatpush.msra.mxu0 %v425
    %3078 = vmatpush.msra.mxu0 %v417
    %3079 = vmatpush.msra.mxu0 %v409
    %3080 = vmatpush.msra.mxu0 %v401
    %3081 = vmatpush.msra.mxu0 %v393
    %3082 = vmatpush.msra.mxu0 %v385
    %3083 = vmatpush.msra.mxu0 %v377
    %3084 = vmatpush.msra.mxu0 %v369
    %3085 = vmatpush.msra.mxu0 %v361
    %3086 = vmatpush.msra.mxu0 %v353
    %3087 = vmatpush.msra.mxu0 %v345
    %3088 = vmatpush.msra.mxu0 %v337
    %3089 = vmatmul.f32.gmra.mxu0 %v2692
    %v3090 = vpop.f32.mrf.mxu0
    %v3091 = vadd.f32 %v2851, %v3090
    %3092 = vdwg.mxu0
    %3093 = vmatpush.msra.mxu0 %v458
    %3094 = vmatpush.msra.mxu0 %v450
    %3095 = vmatpush.msra.mxu0 %v442
    %3096 = vmatpush.msra.mxu0 %v434
    %3097 = vmatpush.msra.mxu0 %v426
    %3098 = vmatpush.msra.mxu0 %v418
    %3099 = vmatpush.msra.mxu0 %v410
    %3100 = vmatpush.msra.mxu0 %v402
    %3101 = vmatpush.msra.mxu0 %v394
    %3102 = vmatpush.msra.mxu0 %v386
    %3103 = vmatpush.msra.mxu0 %v378
    %3104 = vmatpush.msra.mxu0 %v370
    %3105 = vmatpush.msra.mxu0 %v362
    %3106 = vmatpush.msra.mxu0 %v354
    %3107 = vmatpush.msra.mxu0 %v346
    %3108 = vmatpush.msra.mxu0 %v338
    %3109 = vmatmul.f32.gmra.mxu0 %v2692
    %v3110 = vpop.f32.mrf.mxu0
    %v3111 = vadd.f32 %v2891, %v3110
    %3112 = vdwg.mxu0
    %3113 = vmatpush.msra.mxu0 %v459
    %3114 = vmatpush.msra.mxu0 %v451
    %3115 = vmatpush.msra.mxu0 %v443
    %3116 = vmatpush.msra.mxu0 %v435
    %3117 = vmatpush.msra.mxu0 %v427
    %3118 = vmatpush.msra.mxu0 %v419
    %3119 = vmatpush.msra.mxu0 %v411
    %3120 = vmatpush.msra.mxu0 %v403
    %3121 = vmatpush.msra.mxu0 %v395
    %3122 = vmatpush.msra.mxu0 %v387
    %3123 = vmatpush.msra.mxu0 %v379
    %3124 = vmatpush.msra.mxu0 %v371
    %3125 = vmatpush.msra.mxu0 %v363
    %3126 = vmatpush.msra.mxu0 %v355
    %3127 = vmatpush.msra.mxu0 %v347
    %3128 = vmatpush.msra.mxu0 %v339
    %3129 = vmatmul.f32.gmra.mxu0 %v2692
    %v3130 = vpop.f32.mrf.mxu0
    %v3131 = vadd.f32 %v2931, %v3130
    %3132 = vdwg.mxu0
    %3133 = vmatpush.msra.mxu0 %v460
    %3134 = vmatpush.msra.mxu0 %v452
    %3135 = vmatpush.msra.mxu0 %v444
    %3136 = vmatpush.msra.mxu0 %v436
    %3137 = vmatpush.msra.mxu0 %v428
    %3138 = vmatpush.msra.mxu0 %v420
    %3139 = vmatpush.msra.mxu0 %v412
    %3140 = vmatpush.msra.mxu0 %v404
    %3141 = vmatpush.msra.mxu0 %v396
    %3142 = vmatpush.msra.mxu0 %v388
    %3143 = vmatpush.msra.mxu0 %v380
    %3144 = vmatpush.msra.mxu0 %v372
    %3145 = vmatpush.msra.mxu0 %v364
    %3146 = vmatpush.msra.mxu0 %v356
    %3147 = vmatpush.msra.mxu0 %v348
    %3148 = vmatpush.msra.mxu0 %v340
    %3149 = vmatmul.f32.gmra.mxu0 %v2692
    %v3150 = vpop.f32.mrf.mxu0
    %v3151 = vadd.f32 %v2971, %v3150
    %3152 = vdwg.mxu0
    %3153 = vmatpush.msra.mxu0 %v461
    %3154 = vmatpush.msra.mxu0 %v453
    %3155 = vmatpush.msra.mxu0 %v445
    %3156 = vmatpush.msra.mxu0 %v437
    %3157 = vmatpush.msra.mxu0 %v429
    %3158 = vmatpush.msra.mxu0 %v421
    %3159 = vmatpush.msra.mxu0 %v413
    %3160 = vmatpush.msra.mxu0 %v405
    %3161 = vmatpush.msra.mxu0 %v397
    %3162 = vmatpush.msra.mxu0 %v389
    %3163 = vmatpush.msra.mxu0 %v381
    %3164 = vmatpush.msra.mxu0 %v373
    %3165 = vmatpush.msra.mxu0 %v365
    %3166 = vmatpush.msra.mxu0 %v357
    %3167 = vmatpush.msra.mxu0 %v349
    %3168 = vmatpush.msra.mxu0 %v341
    %3169 = vmatmul.f32.gmra.mxu0 %v2692
    %v3170 = vpop.f32.mrf.mxu0
    %v3171 = vadd.f32 %v3011, %v3170
    %3172 = vdwg.mxu0
    %v3173 = vadd.f32 %v3031, %v1459
    %v3174 = vadd.f32 %v3051, %v1460
    %v3175 = vadd.f32 %v3071, %v1461
    %v3176 = vadd.f32 %v3091, %v1462
    %v3177 = vadd.f32 %v3111, %v1463
    %v3178 = vadd.f32 %v3131, %v1464
    %v3179 = vadd.f32 %v3151, %v1465
    %v3180 = vadd.f32 %v3171, %v1466
    %v3181 = vxor.u32 %v3173, 2147483648
    %v3182 = vxor.u32 %v3174, 2147483648
    %v3183 = vxor.u32 %v3175, 2147483648
    %v3184 = vxor.u32 %v3176, 2147483648
    %v3185 = vxor.u32 %v3177, 2147483648
    %v3186 = vxor.u32 %v3178, 2147483648
    %v3187 = vmul.f32 %v3181, 1.442695
    %v3188 = vpow.pop %v3187
    %v3189 = vmul.f32 %v3182, 1.442695
    %v3190 = vpow.pop %v3189
    %v3191 = vmul.f32 %v3183, 1.442695
    %v3192 = vpow.pop %v3191
    %v3193 = vmul.f32 %v3184, 1.442695
    %v3194 = vpow.pop %v3193
    %v3195 = vmul.f32 %v3185, 1.442695
    %v3196 = vpow.pop %v3195
    %v3197 = vmul.f32 %v3186, 1.442695
    %v3198 = vpow.pop %v3197
    %v3199 = vadd.f32 %v3188, 1.0
    %v3200 = vadd.f32 %v3190, 1.0
    %v3201 = vadd.f32 %v3192, 1.0
    %v3202 = vadd.f32 %v3194, 1.0
    %v3203 = vadd.f32 %v3196, 1.0
    %v3204 = vadd.f32 %v3198, 1.0
    %v3205 = vrcp.pop %v3199
    %v3206 = vmul.f32 %v3199, %v3205
    %v3207 = vsub.f32 1.0, %v3206
    %v3208 = vmul.f32 %v3205, %v3207
    %v3209 = vadd.f32 %v3205, %v3208
    %vm3210 = vweird.f32 %v3199
    %vm3211 = vweird.f32 %v3205
    %vm3212 = vmor %vm3210, %vm3211
    %v3213 = vsel %vm3212, %v3205, %v3209
    %v3214 = vand.u32 2147483647, %v3199
    %vm3215 = vcmp.eq.f32.partialorder %v3214, 8.507059e+37
    %v3216 = vand.u32 %v3199, 2147483648
    %v3217 = vor.u32 1.1754944e-38, %v3216
    %v3218 = vsel %vm3215, %v3217, %v3213
    %v3219 = vmul.f32 1.0, %v3218
    %v3220 = vrcp.pop %v3200
    %v3221 = vmul.f32 %v3200, %v3220
    %v3222 = vsub.f32 1.0, %v3221
    %v3223 = vmul.f32 %v3220, %v3222
    %v3224 = vadd.f32 %v3220, %v3223
    %vm3225 = vweird.f32 %v3200
    %vm3226 = vweird.f32 %v3220
    %vm3227 = vmor %vm3225, %vm3226
    %v3228 = vsel %vm3227, %v3220, %v3224
    %v3229 = vand.u32 2147483647, %v3200
    %vm3230 = vcmp.eq.f32.partialorder %v3229, 8.507059e+37
    %v3231 = vand.u32 %v3200, 2147483648
    %v3232 = vor.u32 1.1754944e-38, %v3231
    %v3233 = vsel %vm3230, %v3232, %v3228
    %v3234 = vmul.f32 1.0, %v3233
    %v3235 = vrcp.pop %v3201
    %v3236 = vmul.f32 %v3201, %v3235
    %v3237 = vsub.f32 1.0, %v3236
    %v3238 = vmul.f32 %v3235, %v3237
    %v3239 = vadd.f32 %v3235, %v3238
    %vm3240 = vweird.f32 %v3201
    %vm3241 = vweird.f32 %v3235
    %vm3242 = vmor %vm3240, %vm3241
    %v3243 = vsel %vm3242, %v3235, %v3239
    %v3244 = vand.u32 2147483647, %v3201
    %vm3245 = vcmp.eq.f32.partialorder %v3244, 8.507059e+37
    %v3246 = vand.u32 %v3201, 2147483648
    %v3247 = vor.u32 1.1754944e-38, %v3246
    %v3248 = vsel %vm3245, %v3247, %v3243
    %v3249 = vmul.f32 1.0, %v3248
    %v3250 = vrcp.pop %v3202
    %v3251 = vmul.f32 %v3202, %v3250
    %v3252 = vsub.f32 1.0, %v3251
    %v3253 = vmul.f32 %v3250, %v3252
    %v3254 = vadd.f32 %v3250, %v3253
    %vm3255 = vweird.f32 %v3202
    %vm3256 = vweird.f32 %v3250
    %vm3257 = vmor %vm3255, %vm3256
    %v3258 = vsel %vm3257, %v3250, %v3254
    %v3259 = vand.u32 2147483647, %v3202
    %vm3260 = vcmp.eq.f32.partialorder %v3259, 8.507059e+37
    %v3261 = vand.u32 %v3202, 2147483648
    %v3262 = vor.u32 1.1754944e-38, %v3261
    %v3263 = vsel %vm3260, %v3262, %v3258
    %v3264 = vmul.f32 1.0, %v3263
    %v3265 = vrcp.pop %v3203
    %v3266 = vmul.f32 %v3203, %v3265
    %v3267 = vsub.f32 1.0, %v3266
    %v3268 = vmul.f32 %v3265, %v3267
    %v3269 = vadd.f32 %v3265, %v3268
    %vm3270 = vweird.f32 %v3203
    %vm3271 = vweird.f32 %v3265
    %vm3272 = vmor %vm3270, %vm3271
    %v3273 = vsel %vm3272, %v3265, %v3269
    %v3274 = vand.u32 2147483647, %v3203
    %vm3275 = vcmp.eq.f32.partialorder %v3274, 8.507059e+37
    %v3276 = vand.u32 %v3203, 2147483648
    %v3277 = vor.u32 1.1754944e-38, %v3276
    %v3278 = vsel %vm3275, %v3277, %v3273
    %v3279 = vmul.f32 1.0, %v3278
    %v3280 = vrcp.pop %v3204
    %v3281 = vmul.f32 %v3204, %v3280
    %v3282 = vsub.f32 1.0, %v3281
    %v3283 = vmul.f32 %v3280, %v3282
    %v3284 = vadd.f32 %v3280, %v3283
    %vm3285 = vweird.f32 %v3204
    %vm3286 = vweird.f32 %v3280
    %vm3287 = vmor %vm3285, %vm3286
    %v3288 = vsel %vm3287, %v3280, %v3284
    %v3289 = vand.u32 2147483647, %v3204
    %vm3290 = vcmp.eq.f32.partialorder %v3289, 8.507059e+37
    %v3291 = vand.u32 %v3204, 2147483648
    %v3292 = vor.u32 1.1754944e-38, %v3291
    %v3293 = vsel %vm3290, %v3292, %v3288
    %v3294 = vmul.f32 1.0, %v3293
    %v3295 = vtanh.pop %v3179
    %v3296 = vtanh.pop %v3180
    %v3297 = vmul.f32 %v3249, %v2452
    %v3298 = vmul.f32 %v3264, %v2453
    %v3299 = vmul.f32 %v3219, %v3295
    %v3300 = vmul.f32 %v3234, %v3296
    %v3301 = vadd.f32 %v3297, %v3299
    %v3302 = vadd.f32 %v3298, %v3300
    %v3303 = vtanh.pop %v3301
    %v3304 = vtanh.pop %v3302
    %v3305 = vmul.f32 %v3279, %v3303
    %v3306 = vmul.f32 %v3294, %v3304
    %v3307 = vld [vmem:[#allocation2 + $0x3] sm:$0x1]
    %v3308 = vld [vmem:[#allocation2 + $0xb] sm:$0x1]
    %3309 = vmatpush.msra.mxu0 %v329
    %3310 = vmatpush.msra.mxu0 %v325
    %3311 = vmatpush.msra.mxu0 %v321
    %3312 = vmatpush.msra.mxu0 %v317
    %3313 = vmatpush.msra.mxu0 %v313
    %3314 = vmatpush.msra.mxu0 %v309
    %3315 = vmatpush.msra.mxu0 %v305
    %3316 = vmatpush.msra.mxu0 %v301
    %3317 = vmatpush.msra.mxu0 %v297
    %3318 = vmatpush.msra.mxu0 %v293
    %3319 = vmatpush.msra.mxu0 %v289
    %3320 = vmatpush.msra.mxu0 %v285
    %3321 = vmatpush.msra.mxu0 %v281
    %3322 = vmatpush.msra.mxu0 %v277
    %3323 = vmatpush.msra.mxu0 %v273
    %3324 = vmatpush.msra.mxu0 %v269
    %3325 = vmatmul.f32.gmra.mxu0 %v2692
    %v3326 = vpop.f32.mrf.mxu0
    %v3327 = vadd.f32 0.0, %v3326
    %3328 = vdwg.mxu0
    %3329 = vmatpush.msra.mxu0 %v330
    %3330 = vmatpush.msra.mxu0 %v326
    %3331 = vmatpush.msra.mxu0 %v322
    %3332 = vmatpush.msra.mxu0 %v318
    %3333 = vmatpush.msra.mxu0 %v314
    %3334 = vmatpush.msra.mxu0 %v310
    %3335 = vmatpush.msra.mxu0 %v306
    %3336 = vmatpush.msra.mxu0 %v302
    %3337 = vmatpush.msra.mxu0 %v298
    %3338 = vmatpush.msra.mxu0 %v294
    %3339 = vmatpush.msra.mxu0 %v290
    %3340 = vmatpush.msra.mxu0 %v286
    %3341 = vmatpush.msra.mxu0 %v282
    %3342 = vmatpush.msra.mxu0 %v278
    %3343 = vmatpush.msra.mxu0 %v274
    %3344 = vmatpush.msra.mxu0 %v270
    %3345 = vmatmul.f32.gmra.mxu0 %v2692
    %v3346 = vpop.f32.mrf.mxu0
    %v3347 = vadd.f32 0.0, %v3346
    %3348 = vdwg.mxu0
    %3349 = vmatpush.msra.mxu0 %v331
    %3350 = vmatpush.msra.mxu0 %v327
    %3351 = vmatpush.msra.mxu0 %v323
    %3352 = vmatpush.msra.mxu0 %v319
    %3353 = vmatpush.msra.mxu0 %v315
    %3354 = vmatpush.msra.mxu0 %v311
    %3355 = vmatpush.msra.mxu0 %v307
    %3356 = vmatpush.msra.mxu0 %v303
    %3357 = vmatpush.msra.mxu0 %v299
    %3358 = vmatpush.msra.mxu0 %v295
    %3359 = vmatpush.msra.mxu0 %v291
    %3360 = vmatpush.msra.mxu0 %v287
    %3361 = vmatpush.msra.mxu0 %v283
    %3362 = vmatpush.msra.mxu0 %v279
    %3363 = vmatpush.msra.mxu0 %v275
    %3364 = vmatpush.msra.mxu0 %v271
    %3365 = vmatmul.f32.gmra.mxu0 %v2692
    %v3366 = vpop.f32.mrf.mxu0
    %v3367 = vadd.f32 0.0, %v3366
    %3368 = vdwg.mxu0
    %3369 = vmatpush.msra.mxu0 %v332
    %3370 = vmatpush.msra.mxu0 %v328
    %3371 = vmatpush.msra.mxu0 %v324
    %3372 = vmatpush.msra.mxu0 %v320
    %3373 = vmatpush.msra.mxu0 %v316
    %3374 = vmatpush.msra.mxu0 %v312
    %3375 = vmatpush.msra.mxu0 %v308
    %3376 = vmatpush.msra.mxu0 %v304
    %3377 = vmatpush.msra.mxu0 %v300
    %3378 = vmatpush.msra.mxu0 %v296
    %3379 = vmatpush.msra.mxu0 %v292
    %3380 = vmatpush.msra.mxu0 %v288
    %3381 = vmatpush.msra.mxu0 %v284
    %3382 = vmatpush.msra.mxu0 %v280
    %3383 = vmatpush.msra.mxu0 %v276
    %3384 = vmatpush.msra.mxu0 %v272
    %3385 = vmatmul.f32.gmra.mxu0 %v2692
    %v3386 = vpop.f32.mrf.mxu0
    %v3387 = vadd.f32 0.0, %v3386
    %3388 = vdwg.mxu0
    %v3391 = vrot.slane %v3308, 7
    %v3392 = vsel %vm804, %v3391, %v3307
    %v3393 = vsel %vm806, %v3392, 0
    %3395 = vmatpush.msra.mxu0 0.0
    %3396 = vmatpush.msra.mxu0 0.0
    %3397 = vmatpush.msra.mxu0 0.0
    %3398 = vmatpush.msra.mxu0 0.0
    %3399 = vmatpush.msra.mxu0 0.0
    %3400 = vmatpush.msra.mxu0 0.0
    %3401 = vmatpush.msra.mxu0 0.0
    %3402 = vmatpush.msra.mxu0 0.0
    %3403 = vmatpush.msra.mxu0 %v811
    %3404 = vmatpush.msra.mxu0 %v261
    %3405 = vmatpush.msra.mxu0 %v257
    %3406 = vmatpush.msra.mxu0 %v253
    %3407 = vmatpush.msra.mxu0 %v249
    %3408 = vmatpush.msra.mxu0 %v245
    %3409 = vmatpush.msra.mxu0 %v241
    %3410 = vmatpush.msra.mxu0 %v237
    %3411 = vmatmul.f32.gmra.mxu0 %v3393
    %v3412 = vpop.f32.mrf.mxu0
    %v3413 = vadd.f32 %v3327, %v3412
    %3414 = vdwg.mxu0
    %3415 = vmatpush.msra.mxu0 0.0
    %3416 = vmatpush.msra.mxu0 0.0
    %3417 = vmatpush.msra.mxu0 0.0
    %3418 = vmatpush.msra.mxu0 0.0
    %3419 = vmatpush.msra.mxu0 0.0
    %3420 = vmatpush.msra.mxu0 0.0
    %3421 = vmatpush.msra.mxu0 0.0
    %3422 = vmatpush.msra.mxu0 0.0
    %3423 = vmatpush.msra.mxu0 %v814
    %3424 = vmatpush.msra.mxu0 %v262
    %3425 = vmatpush.msra.mxu0 %v258
    %3426 = vmatpush.msra.mxu0 %v254
    %3427 = vmatpush.msra.mxu0 %v250
    %3428 = vmatpush.msra.mxu0 %v246
    %3429 = vmatpush.msra.mxu0 %v242
    %3430 = vmatpush.msra.mxu0 %v238
    %3431 = vmatmul.f32.gmra.mxu0 %v3393
    %v3432 = vpop.f32.mrf.mxu0
    %v3433 = vadd.f32 %v3347, %v3432
    %3434 = vdwg.mxu0
    %3435 = vmatpush.msra.mxu0 0.0
    %3436 = vmatpush.msra.mxu0 0.0
    %3437 = vmatpush.msra.mxu0 0.0
    %3438 = vmatpush.msra.mxu0 0.0
    %3439 = vmatpush.msra.mxu0 0.0
    %3440 = vmatpush.msra.mxu0 0.0
    %3441 = vmatpush.msra.mxu0 0.0
    %3442 = vmatpush.msra.mxu0 0.0
    %3443 = vmatpush.msra.mxu0 %v817
    %3444 = vmatpush.msra.mxu0 %v263
    %3445 = vmatpush.msra.mxu0 %v259
    %3446 = vmatpush.msra.mxu0 %v255
    %3447 = vmatpush.msra.mxu0 %v251
    %3448 = vmatpush.msra.mxu0 %v247
    %3449 = vmatpush.msra.mxu0 %v243
    %3450 = vmatpush.msra.mxu0 %v239
    %3451 = vmatmul.f32.gmra.mxu0 %v3393
    %v3452 = vpop.f32.mrf.mxu0
    %v3453 = vadd.f32 %v3367, %v3452
    %3454 = vdwg.mxu0
    %3455 = vmatpush.msra.mxu0 0.0
    %3456 = vmatpush.msra.mxu0 0.0
    %3457 = vmatpush.msra.mxu0 0.0
    %3458 = vmatpush.msra.mxu0 0.0
    %3459 = vmatpush.msra.mxu0 0.0
    %3460 = vmatpush.msra.mxu0 0.0
    %3461 = vmatpush.msra.mxu0 0.0
    %3462 = vmatpush.msra.mxu0 0.0
    %3463 = vmatpush.msra.mxu0 %v820
    %3464 = vmatpush.msra.mxu0 %v264
    %3465 = vmatpush.msra.mxu0 %v260
    %3466 = vmatpush.msra.mxu0 %v256
    %3467 = vmatpush.msra.mxu0 %v252
    %3468 = vmatpush.msra.mxu0 %v248
    %3469 = vmatpush.msra.mxu0 %v244
    %3470 = vmatpush.msra.mxu0 %v240
    %3471 = vmatmul.f32.gmra.mxu0 %v3393
    %v3472 = vpop.f32.mrf.mxu0
    %v3473 = vadd.f32 %v3387, %v3472
    %3474 = vdwg.mxu0
    %v3475 = vadd.f32 %v3413, %v903
    %v3476 = vadd.f32 %v3433, %v904
    %v3477 = vadd.f32 %v3453, %v905
    %v3478 = vadd.f32 %v3473, %v906
    %v3479 = vxor.u32 %v3475, 2147483648
    %v3480 = vxor.u32 %v3476, 2147483648
    %v3481 = vxor.u32 %v3477, 2147483648
    %v3482 = vmul.f32 %v3479, 1.442695
    %v3483 = vpow.pop %v3482
    %v3484 = vmul.f32 %v3480, 1.442695
    %v3485 = vpow.pop %v3484
    %v3486 = vmul.f32 %v3481, 1.442695
    %v3487 = vpow.pop %v3486
    %v3488 = vadd.f32 %v3483, 1.0
    %v3489 = vadd.f32 %v3485, 1.0
    %v3490 = vadd.f32 %v3487, 1.0
    %v3491 = vrcp.pop %v3488
    %v3492 = vmul.f32 %v3488, %v3491
    %v3493 = vsub.f32 1.0, %v3492
    %v3494 = vmul.f32 %v3491, %v3493
    %v3495 = vadd.f32 %v3491, %v3494
    %vm3496 = vweird.f32 %v3488
    %vm3497 = vweird.f32 %v3491
    %vm3498 = vmor %vm3496, %vm3497
    %v3499 = vsel %vm3498, %v3491, %v3495
    %v3500 = vand.u32 2147483647, %v3488
    %vm3501 = vcmp.eq.f32.partialorder %v3500, 8.507059e+37
    %v3502 = vand.u32 %v3488, 2147483648
    %v3503 = vor.u32 1.1754944e-38, %v3502
    %v3504 = vsel %vm3501, %v3503, %v3499
    %v3505 = vmul.f32 1.0, %v3504
    %v3506 = vrcp.pop %v3489
    %v3507 = vmul.f32 %v3489, %v3506
    %v3508 = vsub.f32 1.0, %v3507
    %v3509 = vmul.f32 %v3506, %v3508
    %v3510 = vadd.f32 %v3506, %v3509
    %vm3511 = vweird.f32 %v3489
    %vm3512 = vweird.f32 %v3506
    %vm3513 = vmor %vm3511, %vm3512
    %v3514 = vsel %vm3513, %v3506, %v3510
    %v3515 = vand.u32 2147483647, %v3489
    %vm3516 = vcmp.eq.f32.partialorder %v3515, 8.507059e+37
    %v3517 = vand.u32 %v3489, 2147483648
    %v3518 = vor.u32 1.1754944e-38, %v3517
    %v3519 = vsel %vm3516, %v3518, %v3514
    %v3520 = vmul.f32 1.0, %v3519
    %v3521 = vrcp.pop %v3490
    %v3522 = vmul.f32 %v3490, %v3521
    %v3523 = vsub.f32 1.0, %v3522
    %v3524 = vmul.f32 %v3521, %v3523
    %v3525 = vadd.f32 %v3521, %v3524
    %vm3526 = vweird.f32 %v3490
    %vm3527 = vweird.f32 %v3521
    %vm3528 = vmor %vm3526, %vm3527
    %v3529 = vsel %vm3528, %v3521, %v3525
    %v3530 = vand.u32 2147483647, %v3490
    %vm3531 = vcmp.eq.f32.partialorder %v3530, 8.507059e+37
    %v3532 = vand.u32 %v3490, 2147483648
    %v3533 = vor.u32 1.1754944e-38, %v3532
    %v3534 = vsel %vm3531, %v3533, %v3529
    %v3535 = vmul.f32 1.0, %v3534
    %v3536 = vtanh.pop %v3478
    %v3537 = vmul.f32 %v3520, %v2690
    %v3538 = vmul.f32 %v3505, %v3536
    %v3539 = vadd.f32 %v3537, %v3538
    %v3540 = vtanh.pop %v3539
    %v3541 = vmul.f32 %v3535, %v3540
    %3542 = vmatpush.msra.mxu0 %v582
    %3543 = vmatpush.msra.mxu0 %v574
    %3544 = vmatpush.msra.mxu0 %v566
    %3545 = vmatpush.msra.mxu0 %v558
    %3546 = vmatpush.msra.mxu0 %v550
    %3547 = vmatpush.msra.mxu0 %v542
    %3548 = vmatpush.msra.mxu0 %v534
    %3549 = vmatpush.msra.mxu0 %v526
    %3550 = vmatpush.msra.mxu0 %v518
    %3551 = vmatpush.msra.mxu0 %v510
    %3552 = vmatpush.msra.mxu0 %v502
    %3553 = vmatpush.msra.mxu0 %v494
    %3554 = vmatpush.msra.mxu0 %v486
    %3555 = vmatpush.msra.mxu0 %v478
    %3556 = vmatpush.msra.mxu0 %v470
    %3557 = vmatpush.msra.mxu0 %v462
    %3558 = vmatmul.f32.gmra.mxu0 %v3305
    %v3559 = vpop.f32.mrf.mxu0
    %v3560 = vadd.f32 0.0, %v3559
    %3561 = vdwg.mxu0
    %3562 = vmatpush.msra.mxu0 %v710
    %3563 = vmatpush.msra.mxu0 %v702
    %3564 = vmatpush.msra.mxu0 %v694
    %3565 = vmatpush.msra.mxu0 %v686
    %3566 = vmatpush.msra.mxu0 %v678
    %3567 = vmatpush.msra.mxu0 %v670
    %3568 = vmatpush.msra.mxu0 %v662
    %3569 = vmatpush.msra.mxu0 %v654
    %3570 = vmatpush.msra.mxu0 %v646
    %3571 = vmatpush.msra.mxu0 %v638
    %3572 = vmatpush.msra.mxu0 %v630
    %3573 = vmatpush.msra.mxu0 %v622
    %3574 = vmatpush.msra.mxu0 %v614
    %3575 = vmatpush.msra.mxu0 %v606
    %3576 = vmatpush.msra.mxu0 %v598
    %3577 = vmatpush.msra.mxu0 %v590
    %3578 = vmatmul.f32.gmra.mxu0 %v3306
    %v3579 = vpop.f32.mrf.mxu0
    %v3580 = vadd.f32 %v3560, %v3579
    %3581 = vdwg.mxu0
    %3582 = vmatpush.msra.mxu0 %v583
    %3583 = vmatpush.msra.mxu0 %v575
    %3584 = vmatpush.msra.mxu0 %v567
    %3585 = vmatpush.msra.mxu0 %v559
    %3586 = vmatpush.msra.mxu0 %v551
    %3587 = vmatpush.msra.mxu0 %v543
    %3588 = vmatpush.msra.mxu0 %v535
    %3589 = vmatpush.msra.mxu0 %v527
    %3590 = vmatpush.msra.mxu0 %v519
    %3591 = vmatpush.msra.mxu0 %v511
    %3592 = vmatpush.msra.mxu0 %v503
    %3593 = vmatpush.msra.mxu0 %v495
    %3594 = vmatpush.msra.mxu0 %v487
    %3595 = vmatpush.msra.mxu0 %v479
    %3596 = vmatpush.msra.mxu0 %v471
    %3597 = vmatpush.msra.mxu0 %v463
    %3598 = vmatmul.f32.gmra.mxu0 %v3305
    %v3599 = vpop.f32.mrf.mxu0
    %v3600 = vadd.f32 0.0, %v3599
    %3601 = vdwg.mxu0
    %3602 = vmatpush.msra.mxu0 %v711
    %3603 = vmatpush.msra.mxu0 %v703
    %3604 = vmatpush.msra.mxu0 %v695
    %3605 = vmatpush.msra.mxu0 %v687
    %3606 = vmatpush.msra.mxu0 %v679
    %3607 = vmatpush.msra.mxu0 %v671
    %3608 = vmatpush.msra.mxu0 %v663
    %3609 = vmatpush.msra.mxu0 %v655
    %3610 = vmatpush.msra.mxu0 %v647
    %3611 = vmatpush.msra.mxu0 %v639
    %3612 = vmatpush.msra.mxu0 %v631
    %3613 = vmatpush.msra.mxu0 %v623
    %3614 = vmatpush.msra.mxu0 %v615
    %3615 = vmatpush.msra.mxu0 %v607
    %3616 = vmatpush.msra.mxu0 %v599
    %3617 = vmatpush.msra.mxu0 %v591
    %3618 = vmatmul.f32.gmra.mxu0 %v3306
    %v3619 = vpop.f32.mrf.mxu0
    %v3620 = vadd.f32 %v3600, %v3619
    %3621 = vdwg.mxu0
    %3622 = vmatpush.msra.mxu0 %v584
    %3623 = vmatpush.msra.mxu0 %v576
    %3624 = vmatpush.msra.mxu0 %v568
    %3625 = vmatpush.msra.mxu0 %v560
    %3626 = vmatpush.msra.mxu0 %v552
    %3627 = vmatpush.msra.mxu0 %v544
    %3628 = vmatpush.msra.mxu0 %v536
    %3629 = vmatpush.msra.mxu0 %v528
    %3630 = vmatpush.msra.mxu0 %v520
    %3631 = vmatpush.msra.mxu0 %v512
    %3632 = vmatpush.msra.mxu0 %v504
    %3633 = vmatpush.msra.mxu0 %v496
    %3634 = vmatpush.msra.mxu0 %v488
    %3635 = vmatpush.msra.mxu0 %v480
    %3636 = vmatpush.msra.mxu0 %v472
    %3637 = vmatpush.msra.mxu0 %v464
    %3638 = vmatmul.f32.gmra.mxu0 %v3305
    %v3639 = vpop.f32.mrf.mxu0
    %v3640 = vadd.f32 0.0, %v3639
    %3641 = vdwg.mxu0
    %3642 = vmatpush.msra.mxu0 %v712
    %3643 = vmatpush.msra.mxu0 %v704
    %3644 = vmatpush.msra.mxu0 %v696
    %3645 = vmatpush.msra.mxu0 %v688
    %3646 = vmatpush.msra.mxu0 %v680
    %3647 = vmatpush.msra.mxu0 %v672
    %3648 = vmatpush.msra.mxu0 %v664
    %3649 = vmatpush.msra.mxu0 %v656
    %3650 = vmatpush.msra.mxu0 %v648
    %3651 = vmatpush.msra.mxu0 %v640
    %3652 = vmatpush.msra.mxu0 %v632
    %3653 = vmatpush.msra.mxu0 %v624
    %3654 = vmatpush.msra.mxu0 %v616
    %3655 = vmatpush.msra.mxu0 %v608
    %3656 = vmatpush.msra.mxu0 %v600
    %3657 = vmatpush.msra.mxu0 %v592
    %3658 = vmatmul.f32.gmra.mxu0 %v3306
    %v3659 = vpop.f32.mrf.mxu0
    %v3660 = vadd.f32 %v3640, %v3659
    %3661 = vdwg.mxu0
    %3662 = vmatpush.msra.mxu0 %v585
    %3663 = vmatpush.msra.mxu0 %v577
    %3664 = vmatpush.msra.mxu0 %v569
    %3665 = vmatpush.msra.mxu0 %v561
    %3666 = vmatpush.msra.mxu0 %v553
    %3667 = vmatpush.msra.mxu0 %v545
    %3668 = vmatpush.msra.mxu0 %v537
    %3669 = vmatpush.msra.mxu0 %v529
    %3670 = vmatpush.msra.mxu0 %v521
    %3671 = vmatpush.msra.mxu0 %v513
    %3672 = vmatpush.msra.mxu0 %v505
    %3673 = vmatpush.msra.mxu0 %v497
    %3674 = vmatpush.msra.mxu0 %v489
    %3675 = vmatpush.msra.mxu0 %v481
    %3676 = vmatpush.msra.mxu0 %v473
    %3677 = vmatpush.msra.mxu0 %v465
    %3678 = vmatmul.f32.gmra.mxu0 %v3305
    %v3679 = vpop.f32.mrf.mxu0
    %v3680 = vadd.f32 0.0, %v3679
    %3681 = vdwg.mxu0
    %3682 = vmatpush.msra.mxu0 %v713
    %3683 = vmatpush.msra.mxu0 %v705
    %3684 = vmatpush.msra.mxu0 %v697
    %3685 = vmatpush.msra.mxu0 %v689
    %3686 = vmatpush.msra.mxu0 %v681
    %3687 = vmatpush.msra.mxu0 %v673
    %3688 = vmatpush.msra.mxu0 %v665
    %3689 = vmatpush.msra.mxu0 %v657
    %3690 = vmatpush.msra.mxu0 %v649
    %3691 = vmatpush.msra.mxu0 %v641
    %3692 = vmatpush.msra.mxu0 %v633
    %3693 = vmatpush.msra.mxu0 %v625
    %3694 = vmatpush.msra.mxu0 %v617
    %3695 = vmatpush.msra.mxu0 %v609
    %3696 = vmatpush.msra.mxu0 %v601
    %3697 = vmatpush.msra.mxu0 %v593
    %3698 = vmatmul.f32.gmra.mxu0 %v3306
    %v3699 = vpop.f32.mrf.mxu0
    %v3700 = vadd.f32 %v3680, %v3699
    %3701 = vdwg.mxu0
    %3702 = vmatpush.msra.mxu0 %v586
    %3703 = vmatpush.msra.mxu0 %v578
    %3704 = vmatpush.msra.mxu0 %v570
    %3705 = vmatpush.msra.mxu0 %v562
    %3706 = vmatpush.msra.mxu0 %v554
    %3707 = vmatpush.msra.mxu0 %v546
    %3708 = vmatpush.msra.mxu0 %v538
    %3709 = vmatpush.msra.mxu0 %v530
    %3710 = vmatpush.msra.mxu0 %v522
    %3711 = vmatpush.msra.mxu0 %v514
    %3712 = vmatpush.msra.mxu0 %v506
    %3713 = vmatpush.msra.mxu0 %v498
    %3714 = vmatpush.msra.mxu0 %v490
    %3715 = vmatpush.msra.mxu0 %v482
    %3716 = vmatpush.msra.mxu0 %v474
    %3717 = vmatpush.msra.mxu0 %v466
    %3718 = vmatmul.f32.gmra.mxu0 %v3305
    %v3719 = vpop.f32.mrf.mxu0
    %v3720 = vadd.f32 0.0, %v3719
    %3721 = vdwg.mxu0
    %3722 = vmatpush.msra.mxu0 %v714
    %3723 = vmatpush.msra.mxu0 %v706
    %3724 = vmatpush.msra.mxu0 %v698
    %3725 = vmatpush.msra.mxu0 %v690
    %3726 = vmatpush.msra.mxu0 %v682
    %3727 = vmatpush.msra.mxu0 %v674
    %3728 = vmatpush.msra.mxu0 %v666
    %3729 = vmatpush.msra.mxu0 %v658
    %3730 = vmatpush.msra.mxu0 %v650
    %3731 = vmatpush.msra.mxu0 %v642
    %3732 = vmatpush.msra.mxu0 %v634
    %3733 = vmatpush.msra.mxu0 %v626
    %3734 = vmatpush.msra.mxu0 %v618
    %3735 = vmatpush.msra.mxu0 %v610
    %3736 = vmatpush.msra.mxu0 %v602
    %3737 = vmatpush.msra.mxu0 %v594
    %3738 = vmatmul.f32.gmra.mxu0 %v3306
    %v3739 = vpop.f32.mrf.mxu0
    %v3740 = vadd.f32 %v3720, %v3739
    %3741 = vdwg.mxu0
    %3742 = vmatpush.msra.mxu0 %v587
    %3743 = vmatpush.msra.mxu0 %v579
    %3744 = vmatpush.msra.mxu0 %v571
    %3745 = vmatpush.msra.mxu0 %v563
    %3746 = vmatpush.msra.mxu0 %v555
    %3747 = vmatpush.msra.mxu0 %v547
    %3748 = vmatpush.msra.mxu0 %v539
    %3749 = vmatpush.msra.mxu0 %v531
    %3750 = vmatpush.msra.mxu0 %v523
    %3751 = vmatpush.msra.mxu0 %v515
    %3752 = vmatpush.msra.mxu0 %v507
    %3753 = vmatpush.msra.mxu0 %v499
    %3754 = vmatpush.msra.mxu0 %v491
    %3755 = vmatpush.msra.mxu0 %v483
    %3756 = vmatpush.msra.mxu0 %v475
    %3757 = vmatpush.msra.mxu0 %v467
    %3758 = vmatmul.f32.gmra.mxu0 %v3305
    %v3759 = vpop.f32.mrf.mxu0
    %v3760 = vadd.f32 0.0, %v3759
    %3761 = vdwg.mxu0
    %3762 = vmatpush.msra.mxu0 %v715
    %3763 = vmatpush.msra.mxu0 %v707
    %3764 = vmatpush.msra.mxu0 %v699
    %3765 = vmatpush.msra.mxu0 %v691
    %3766 = vmatpush.msra.mxu0 %v683
    %3767 = vmatpush.msra.mxu0 %v675
    %3768 = vmatpush.msra.mxu0 %v667
    %3769 = vmatpush.msra.mxu0 %v659
    %3770 = vmatpush.msra.mxu0 %v651
    %3771 = vmatpush.msra.mxu0 %v643
    %3772 = vmatpush.msra.mxu0 %v635
    %3773 = vmatpush.msra.mxu0 %v627
    %3774 = vmatpush.msra.mxu0 %v619
    %3775 = vmatpush.msra.mxu0 %v611
    %3776 = vmatpush.msra.mxu0 %v603
    %3777 = vmatpush.msra.mxu0 %v595
    %3778 = vmatmul.f32.gmra.mxu0 %v3306
    %v3779 = vpop.f32.mrf.mxu0
    %v3780 = vadd.f32 %v3760, %v3779
    %3781 = vdwg.mxu0
    %3782 = vmatpush.msra.mxu0 %v588
    %3783 = vmatpush.msra.mxu0 %v580
    %3784 = vmatpush.msra.mxu0 %v572
    %3785 = vmatpush.msra.mxu0 %v564
    %3786 = vmatpush.msra.mxu0 %v556
    %3787 = vmatpush.msra.mxu0 %v548
    %3788 = vmatpush.msra.mxu0 %v540
    %3789 = vmatpush.msra.mxu0 %v532
    %3790 = vmatpush.msra.mxu0 %v524
    %3791 = vmatpush.msra.mxu0 %v516
    %3792 = vmatpush.msra.mxu0 %v508
    %3793 = vmatpush.msra.mxu0 %v500
    %3794 = vmatpush.msra.mxu0 %v492
    %3795 = vmatpush.msra.mxu0 %v484
    %3796 = vmatpush.msra.mxu0 %v476
    %3797 = vmatpush.msra.mxu0 %v468
    %3798 = vmatmul.f32.gmra.mxu0 %v3305
    %v3799 = vpop.f32.mrf.mxu0
    %v3800 = vadd.f32 0.0, %v3799
    %3801 = vdwg.mxu0
    %3802 = vmatpush.msra.mxu0 %v716
    %3803 = vmatpush.msra.mxu0 %v708
    %3804 = vmatpush.msra.mxu0 %v700
    %3805 = vmatpush.msra.mxu0 %v692
    %3806 = vmatpush.msra.mxu0 %v684
    %3807 = vmatpush.msra.mxu0 %v676
    %3808 = vmatpush.msra.mxu0 %v668
    %3809 = vmatpush.msra.mxu0 %v660
    %3810 = vmatpush.msra.mxu0 %v652
    %3811 = vmatpush.msra.mxu0 %v644
    %3812 = vmatpush.msra.mxu0 %v636
    %3813 = vmatpush.msra.mxu0 %v628
    %3814 = vmatpush.msra.mxu0 %v620
    %3815 = vmatpush.msra.mxu0 %v612
    %3816 = vmatpush.msra.mxu0 %v604
    %3817 = vmatpush.msra.mxu0 %v596
    %3818 = vmatmul.f32.gmra.mxu0 %v3306
    %v3819 = vpop.f32.mrf.mxu0
    %v3820 = vadd.f32 %v3800, %v3819
    %3821 = vdwg.mxu0
    %3822 = vmatpush.msra.mxu0 %v589
    %3823 = vmatpush.msra.mxu0 %v581
    %3824 = vmatpush.msra.mxu0 %v573
    %3825 = vmatpush.msra.mxu0 %v565
    %3826 = vmatpush.msra.mxu0 %v557
    %3827 = vmatpush.msra.mxu0 %v549
    %3828 = vmatpush.msra.mxu0 %v541
    %3829 = vmatpush.msra.mxu0 %v533
    %3830 = vmatpush.msra.mxu0 %v525
    %3831 = vmatpush.msra.mxu0 %v517
    %3832 = vmatpush.msra.mxu0 %v509
    %3833 = vmatpush.msra.mxu0 %v501
    %3834 = vmatpush.msra.mxu0 %v493
    %3835 = vmatpush.msra.mxu0 %v485
    %3836 = vmatpush.msra.mxu0 %v477
    %3837 = vmatpush.msra.mxu0 %v469
    %3838 = vmatmul.f32.gmra.mxu0 %v3305
    %v3839 = vpop.f32.mrf.mxu0
    %v3840 = vadd.f32 0.0, %v3839
    %3841 = vdwg.mxu0
    %3842 = vmatpush.msra.mxu0 %v717
    %3843 = vmatpush.msra.mxu0 %v709
    %3844 = vmatpush.msra.mxu0 %v701
    %3845 = vmatpush.msra.mxu0 %v693
    %3846 = vmatpush.msra.mxu0 %v685
    %3847 = vmatpush.msra.mxu0 %v677
    %3848 = vmatpush.msra.mxu0 %v669
    %3849 = vmatpush.msra.mxu0 %v661
    %3850 = vmatpush.msra.mxu0 %v653
    %3851 = vmatpush.msra.mxu0 %v645
    %3852 = vmatpush.msra.mxu0 %v637
    %3853 = vmatpush.msra.mxu0 %v629
    %3854 = vmatpush.msra.mxu0 %v621
    %3855 = vmatpush.msra.mxu0 %v613
    %3856 = vmatpush.msra.mxu0 %v605
    %3857 = vmatpush.msra.mxu0 %v597
    %3858 = vmatmul.f32.gmra.mxu0 %v3306
    %v3859 = vpop.f32.mrf.mxu0
    %v3860 = vadd.f32 %v3840, %v3859
    %3861 = vdwg.mxu0
    %3862 = vmatpush.msra.mxu0 %v454
    %3863 = vmatpush.msra.mxu0 %v446
    %3864 = vmatpush.msra.mxu0 %v438
    %3865 = vmatpush.msra.mxu0 %v430
    %3866 = vmatpush.msra.mxu0 %v422
    %3867 = vmatpush.msra.mxu0 %v414
    %3868 = vmatpush.msra.mxu0 %v406
    %3869 = vmatpush.msra.mxu0 %v398
    %3870 = vmatpush.msra.mxu0 %v390
    %3871 = vmatpush.msra.mxu0 %v382
    %3872 = vmatpush.msra.mxu0 %v374
    %3873 = vmatpush.msra.mxu0 %v366
    %3874 = vmatpush.msra.mxu0 %v358
    %3875 = vmatpush.msra.mxu0 %v350
    %3876 = vmatpush.msra.mxu0 %v342
    %3877 = vmatpush.msra.mxu0 %v334
    %3878 = vmatmul.f32.gmra.mxu0 %v3541
    %v3879 = vpop.f32.mrf.mxu0
    %v3880 = vadd.f32 %v3580, %v3879
    %3881 = vdwg.mxu0
    %3882 = vmatpush.msra.mxu0 %v455
    %3883 = vmatpush.msra.mxu0 %v447
    %3884 = vmatpush.msra.mxu0 %v439
    %3885 = vmatpush.msra.mxu0 %v431
    %3886 = vmatpush.msra.mxu0 %v423
    %3887 = vmatpush.msra.mxu0 %v415
    %3888 = vmatpush.msra.mxu0 %v407
    %3889 = vmatpush.msra.mxu0 %v399
    %3890 = vmatpush.msra.mxu0 %v391
    %3891 = vmatpush.msra.mxu0 %v383
    %3892 = vmatpush.msra.mxu0 %v375
    %3893 = vmatpush.msra.mxu0 %v367
    %3894 = vmatpush.msra.mxu0 %v359
    %3895 = vmatpush.msra.mxu0 %v351
    %3896 = vmatpush.msra.mxu0 %v343
    %3897 = vmatpush.msra.mxu0 %v335
    %3898 = vmatmul.f32.gmra.mxu0 %v3541
    %v3899 = vpop.f32.mrf.mxu0
    %v3900 = vadd.f32 %v3620, %v3899
    %3901 = vdwg.mxu0
    %3902 = vmatpush.msra.mxu0 %v456
    %3903 = vmatpush.msra.mxu0 %v448
    %3904 = vmatpush.msra.mxu0 %v440
    %3905 = vmatpush.msra.mxu0 %v432
    %3906 = vmatpush.msra.mxu0 %v424
    %3907 = vmatpush.msra.mxu0 %v416
    %3908 = vmatpush.msra.mxu0 %v408
    %3909 = vmatpush.msra.mxu0 %v400
    %3910 = vmatpush.msra.mxu0 %v392
    %3911 = vmatpush.msra.mxu0 %v384
    %3912 = vmatpush.msra.mxu0 %v376
    %3913 = vmatpush.msra.mxu0 %v368
    %3914 = vmatpush.msra.mxu0 %v360
    %3915 = vmatpush.msra.mxu0 %v352
    %3916 = vmatpush.msra.mxu0 %v344
    %3917 = vmatpush.msra.mxu0 %v336
    %3918 = vmatmul.f32.gmra.mxu0 %v3541
    %v3919 = vpop.f32.mrf.mxu0
    %v3920 = vadd.f32 %v3660, %v3919
    %3921 = vdwg.mxu0
    %3922 = vmatpush.msra.mxu0 %v457
    %3923 = vmatpush.msra.mxu0 %v449
    %3924 = vmatpush.msra.mxu0 %v441
    %3925 = vmatpush.msra.mxu0 %v433
    %3926 = vmatpush.msra.mxu0 %v425
    %3927 = vmatpush.msra.mxu0 %v417
    %3928 = vmatpush.msra.mxu0 %v409
    %3929 = vmatpush.msra.mxu0 %v401
    %3930 = vmatpush.msra.mxu0 %v393
    %3931 = vmatpush.msra.mxu0 %v385
    %3932 = vmatpush.msra.mxu0 %v377
    %3933 = vmatpush.msra.mxu0 %v369
    %3934 = vmatpush.msra.mxu0 %v361
    %3935 = vmatpush.msra.mxu0 %v353
    %3936 = vmatpush.msra.mxu0 %v345
    %3937 = vmatpush.msra.mxu0 %v337
    %3938 = vmatmul.f32.gmra.mxu0 %v3541
    %v3939 = vpop.f32.mrf.mxu0
    %v3940 = vadd.f32 %v3700, %v3939
    %3941 = vdwg.mxu0
    %3942 = vmatpush.msra.mxu0 %v458
    %3943 = vmatpush.msra.mxu0 %v450
    %3944 = vmatpush.msra.mxu0 %v442
    %3945 = vmatpush.msra.mxu0 %v434
    %3946 = vmatpush.msra.mxu0 %v426
    %3947 = vmatpush.msra.mxu0 %v418
    %3948 = vmatpush.msra.mxu0 %v410
    %3949 = vmatpush.msra.mxu0 %v402
    %3950 = vmatpush.msra.mxu0 %v394
    %3951 = vmatpush.msra.mxu0 %v386
    %3952 = vmatpush.msra.mxu0 %v378
    %3953 = vmatpush.msra.mxu0 %v370
    %3954 = vmatpush.msra.mxu0 %v362
    %3955 = vmatpush.msra.mxu0 %v354
    %3956 = vmatpush.msra.mxu0 %v346
    %3957 = vmatpush.msra.mxu0 %v338
    %3958 = vmatmul.f32.gmra.mxu0 %v3541
    %v3959 = vpop.f32.mrf.mxu0
    %v3960 = vadd.f32 %v3740, %v3959
    %3961 = vdwg.mxu0
    %3962 = vmatpush.msra.mxu0 %v459
    %3963 = vmatpush.msra.mxu0 %v451
    %3964 = vmatpush.msra.mxu0 %v443
    %3965 = vmatpush.msra.mxu0 %v435
    %3966 = vmatpush.msra.mxu0 %v427
    %3967 = vmatpush.msra.mxu0 %v419
    %3968 = vmatpush.msra.mxu0 %v411
    %3969 = vmatpush.msra.mxu0 %v403
    %3970 = vmatpush.msra.mxu0 %v395
    %3971 = vmatpush.msra.mxu0 %v387
    %3972 = vmatpush.msra.mxu0 %v379
    %3973 = vmatpush.msra.mxu0 %v371
    %3974 = vmatpush.msra.mxu0 %v363
    %3975 = vmatpush.msra.mxu0 %v355
    %3976 = vmatpush.msra.mxu0 %v347
    %3977 = vmatpush.msra.mxu0 %v339
    %3978 = vmatmul.f32.gmra.mxu0 %v3541
    %v3979 = vpop.f32.mrf.mxu0
    %v3980 = vadd.f32 %v3780, %v3979
    %3981 = vdwg.mxu0
    %3982 = vmatpush.msra.mxu0 %v460
    %3983 = vmatpush.msra.mxu0 %v452
    %3984 = vmatpush.msra.mxu0 %v444
    %3985 = vmatpush.msra.mxu0 %v436
    %3986 = vmatpush.msra.mxu0 %v428
    %3987 = vmatpush.msra.mxu0 %v420
    %3988 = vmatpush.msra.mxu0 %v412
    %3989 = vmatpush.msra.mxu0 %v404
    %3990 = vmatpush.msra.mxu0 %v396
    %3991 = vmatpush.msra.mxu0 %v388
    %3992 = vmatpush.msra.mxu0 %v380
    %3993 = vmatpush.msra.mxu0 %v372
    %3994 = vmatpush.msra.mxu0 %v364
    %3995 = vmatpush.msra.mxu0 %v356
    %3996 = vmatpush.msra.mxu0 %v348
    %3997 = vmatpush.msra.mxu0 %v340
    %3998 = vmatmul.f32.gmra.mxu0 %v3541
    %v3999 = vpop.f32.mrf.mxu0
    %v4000 = vadd.f32 %v3820, %v3999
    %4001 = vdwg.mxu0
    %4002 = vmatpush.msra.mxu0 %v461
    %4003 = vmatpush.msra.mxu0 %v453
    %4004 = vmatpush.msra.mxu0 %v445
    %4005 = vmatpush.msra.mxu0 %v437
    %4006 = vmatpush.msra.mxu0 %v429
    %4007 = vmatpush.msra.mxu0 %v421
    %4008 = vmatpush.msra.mxu0 %v413
    %4009 = vmatpush.msra.mxu0 %v405
    %4010 = vmatpush.msra.mxu0 %v397
    %4011 = vmatpush.msra.mxu0 %v389
    %4012 = vmatpush.msra.mxu0 %v381
    %4013 = vmatpush.msra.mxu0 %v373
    %4014 = vmatpush.msra.mxu0 %v365
    %4015 = vmatpush.msra.mxu0 %v357
    %4016 = vmatpush.msra.mxu0 %v349
    %4017 = vmatpush.msra.mxu0 %v341
    %4018 = vmatmul.f32.gmra.mxu0 %v3541
    %v4019 = vpop.f32.mrf.mxu0
    %v4020 = vadd.f32 %v3860, %v4019
    %4021 = vdwg.mxu0
    %v4022 = vadd.f32 %v3880, %v1459
    %v4023 = vadd.f32 %v3900, %v1460
    %v4024 = vadd.f32 %v3920, %v1461
    %v4025 = vadd.f32 %v3940, %v1462
    %v4026 = vadd.f32 %v3960, %v1463
    %v4027 = vadd.f32 %v3980, %v1464
    %v4028 = vadd.f32 %v4000, %v1465
    %v4029 = vadd.f32 %v4020, %v1466
    %v4030 = vxor.u32 %v4022, 2147483648
    %v4031 = vxor.u32 %v4023, 2147483648
    %v4032 = vxor.u32 %v4024, 2147483648
    %v4033 = vxor.u32 %v4025, 2147483648
    %v4034 = vxor.u32 %v4026, 2147483648
    %v4035 = vxor.u32 %v4027, 2147483648
    %v4036 = vmul.f32 %v4030, 1.442695
    %v4037 = vpow.pop %v4036
    %v4038 = vmul.f32 %v4031, 1.442695
    %v4039 = vpow.pop %v4038
    %v4040 = vmul.f32 %v4032, 1.442695
    %v4041 = vpow.pop %v4040
    %v4042 = vmul.f32 %v4033, 1.442695
    %v4043 = vpow.pop %v4042
    %v4044 = vmul.f32 %v4034, 1.442695
    %v4045 = vpow.pop %v4044
    %v4046 = vmul.f32 %v4035, 1.442695
    %v4047 = vpow.pop %v4046
    %v4048 = vadd.f32 %v4037, 1.0
    %v4049 = vadd.f32 %v4039, 1.0
    %v4050 = vadd.f32 %v4041, 1.0
    %v4051 = vadd.f32 %v4043, 1.0
    %v4052 = vadd.f32 %v4045, 1.0
    %v4053 = vadd.f32 %v4047, 1.0
    %v4054 = vrcp.pop %v4048
    %v4055 = vmul.f32 %v4048, %v4054
    %v4056 = vsub.f32 1.0, %v4055
    %v4057 = vmul.f32 %v4054, %v4056
    %v4058 = vadd.f32 %v4054, %v4057
    %vm4059 = vweird.f32 %v4048
    %vm4060 = vweird.f32 %v4054
    %vm4061 = vmor %vm4059, %vm4060
    %v4062 = vsel %vm4061, %v4054, %v4058
    %v4063 = vand.u32 2147483647, %v4048
    %vm4064 = vcmp.eq.f32.partialorder %v4063, 8.507059e+37
    %v4065 = vand.u32 %v4048, 2147483648
    %v4066 = vor.u32 1.1754944e-38, %v4065
    %v4067 = vsel %vm4064, %v4066, %v4062
    %v4068 = vmul.f32 1.0, %v4067
    %v4069 = vrcp.pop %v4049
    %v4070 = vmul.f32 %v4049, %v4069
    %v4071 = vsub.f32 1.0, %v4070
    %v4072 = vmul.f32 %v4069, %v4071
    %v4073 = vadd.f32 %v4069, %v4072
    %vm4074 = vweird.f32 %v4049
    %vm4075 = vweird.f32 %v4069
    %vm4076 = vmor %vm4074, %vm4075
    %v4077 = vsel %vm4076, %v4069, %v4073
    %v4078 = vand.u32 2147483647, %v4049
    %vm4079 = vcmp.eq.f32.partialorder %v4078, 8.507059e+37
    %v4080 = vand.u32 %v4049, 2147483648
    %v4081 = vor.u32 1.1754944e-38, %v4080
    %v4082 = vsel %vm4079, %v4081, %v4077
    %v4083 = vmul.f32 1.0, %v4082
    %v4084 = vrcp.pop %v4050
    %v4085 = vmul.f32 %v4050, %v4084
    %v4086 = vsub.f32 1.0, %v4085
    %v4087 = vmul.f32 %v4084, %v4086
    %v4088 = vadd.f32 %v4084, %v4087
    %vm4089 = vweird.f32 %v4050
    %vm4090 = vweird.f32 %v4084
    %vm4091 = vmor %vm4089, %vm4090
    %v4092 = vsel %vm4091, %v4084, %v4088
    %v4093 = vand.u32 2147483647, %v4050
    %vm4094 = vcmp.eq.f32.partialorder %v4093, 8.507059e+37
    %v4095 = vand.u32 %v4050, 2147483648
    %v4096 = vor.u32 1.1754944e-38, %v4095
    %v4097 = vsel %vm4094, %v4096, %v4092
    %v4098 = vmul.f32 1.0, %v4097
    %v4099 = vrcp.pop %v4051
    %v4100 = vmul.f32 %v4051, %v4099
    %v4101 = vsub.f32 1.0, %v4100
    %v4102 = vmul.f32 %v4099, %v4101
    %v4103 = vadd.f32 %v4099, %v4102
    %vm4104 = vweird.f32 %v4051
    %vm4105 = vweird.f32 %v4099
    %vm4106 = vmor %vm4104, %vm4105
    %v4107 = vsel %vm4106, %v4099, %v4103
    %v4108 = vand.u32 2147483647, %v4051
    %vm4109 = vcmp.eq.f32.partialorder %v4108, 8.507059e+37
    %v4110 = vand.u32 %v4051, 2147483648
    %v4111 = vor.u32 1.1754944e-38, %v4110
    %v4112 = vsel %vm4109, %v4111, %v4107
    %v4113 = vmul.f32 1.0, %v4112
    %v4114 = vrcp.pop %v4052
    %v4115 = vmul.f32 %v4052, %v4114
    %v4116 = vsub.f32 1.0, %v4115
    %v4117 = vmul.f32 %v4114, %v4116
    %v4118 = vadd.f32 %v4114, %v4117
    %vm4119 = vweird.f32 %v4052
    %vm4120 = vweird.f32 %v4114
    %vm4121 = vmor %vm4119, %vm4120
    %v4122 = vsel %vm4121, %v4114, %v4118
    %v4123 = vand.u32 2147483647, %v4052
    %vm4124 = vcmp.eq.f32.partialorder %v4123, 8.507059e+37
    %v4125 = vand.u32 %v4052, 2147483648
    %v4126 = vor.u32 1.1754944e-38, %v4125
    %v4127 = vsel %vm4124, %v4126, %v4122
    %v4128 = vmul.f32 1.0, %v4127
    %v4129 = vrcp.pop %v4053
    %v4130 = vmul.f32 %v4053, %v4129
    %v4131 = vsub.f32 1.0, %v4130
    %v4132 = vmul.f32 %v4129, %v4131
    %v4133 = vadd.f32 %v4129, %v4132
    %vm4134 = vweird.f32 %v4053
    %vm4135 = vweird.f32 %v4129
    %vm4136 = vmor %vm4134, %vm4135
    %v4137 = vsel %vm4136, %v4129, %v4133
    %v4138 = vand.u32 2147483647, %v4053
    %vm4139 = vcmp.eq.f32.partialorder %v4138, 8.507059e+37
    %v4140 = vand.u32 %v4053, 2147483648
    %v4141 = vor.u32 1.1754944e-38, %v4140
    %v4142 = vsel %vm4139, %v4141, %v4137
    %v4143 = vmul.f32 1.0, %v4142
    %v4144 = vtanh.pop %v4028
    %v4145 = vtanh.pop %v4029
    %v4146 = vmul.f32 %v4098, %v3301
    %v4147 = vmul.f32 %v4113, %v3302
    %v4148 = vmul.f32 %v4068, %v4144
    %v4149 = vmul.f32 %v4083, %v4145
    %v4150 = vadd.f32 %v4146, %v4148
    %v4151 = vadd.f32 %v4147, %v4149
    %v4152 = vtanh.pop %v4150
    %v4153 = vtanh.pop %v4151
    %v4154 = vmul.f32 %v4128, %v4152
    %v4155 = vmul.f32 %v4143, %v4153
    %v4156 = vld [vmem:[#allocation2 + $0x4] sm:$0x1]
    %v4157 = vld [vmem:[#allocation2 + $0xc] sm:$0x1]
    %4158 = vmatpush.msra.mxu0 %v329
    %4159 = vmatpush.msra.mxu0 %v325
    %4160 = vmatpush.msra.mxu0 %v321
    %4161 = vmatpush.msra.mxu0 %v317
    %4162 = vmatpush.msra.mxu0 %v313
    %4163 = vmatpush.msra.mxu0 %v309
    %4164 = vmatpush.msra.mxu0 %v305
    %4165 = vmatpush.msra.mxu0 %v301
    %4166 = vmatpush.msra.mxu0 %v297
    %4167 = vmatpush.msra.mxu0 %v293
    %4168 = vmatpush.msra.mxu0 %v289
    %4169 = vmatpush.msra.mxu0 %v285
    %4170 = vmatpush.msra.mxu0 %v281
    %4171 = vmatpush.msra.mxu0 %v277
    %4172 = vmatpush.msra.mxu0 %v273
    %4173 = vmatpush.msra.mxu0 %v269
    %4174 = vmatmul.f32.gmra.mxu0 %v3541
    %v4175 = vpop.f32.mrf.mxu0
    %v4176 = vadd.f32 0.0, %v4175
    %4177 = vdwg.mxu0
    %4178 = vmatpush.msra.mxu0 %v330
    %4179 = vmatpush.msra.mxu0 %v326
    %4180 = vmatpush.msra.mxu0 %v322
    %4181 = vmatpush.msra.mxu0 %v318
    %4182 = vmatpush.msra.mxu0 %v314
    %4183 = vmatpush.msra.mxu0 %v310
    %4184 = vmatpush.msra.mxu0 %v306
    %4185 = vmatpush.msra.mxu0 %v302
    %4186 = vmatpush.msra.mxu0 %v298
    %4187 = vmatpush.msra.mxu0 %v294
    %4188 = vmatpush.msra.mxu0 %v290
    %4189 = vmatpush.msra.mxu0 %v286
    %4190 = vmatpush.msra.mxu0 %v282
    %4191 = vmatpush.msra.mxu0 %v278
    %4192 = vmatpush.msra.mxu0 %v274
    %4193 = vmatpush.msra.mxu0 %v270
    %4194 = vmatmul.f32.gmra.mxu0 %v3541
    %v4195 = vpop.f32.mrf.mxu0
    %v4196 = vadd.f32 0.0, %v4195
    %4197 = vdwg.mxu0
    %4198 = vmatpush.msra.mxu0 %v331
    %4199 = vmatpush.msra.mxu0 %v327
    %4200 = vmatpush.msra.mxu0 %v323
    %4201 = vmatpush.msra.mxu0 %v319
    %4202 = vmatpush.msra.mxu0 %v315
    %4203 = vmatpush.msra.mxu0 %v311
    %4204 = vmatpush.msra.mxu0 %v307
    %4205 = vmatpush.msra.mxu0 %v303
    %4206 = vmatpush.msra.mxu0 %v299
    %4207 = vmatpush.msra.mxu0 %v295
    %4208 = vmatpush.msra.mxu0 %v291
    %4209 = vmatpush.msra.mxu0 %v287
    %4210 = vmatpush.msra.mxu0 %v283
    %4211 = vmatpush.msra.mxu0 %v279
    %4212 = vmatpush.msra.mxu0 %v275
    %4213 = vmatpush.msra.mxu0 %v271
    %4214 = vmatmul.f32.gmra.mxu0 %v3541
    %v4215 = vpop.f32.mrf.mxu0
    %v4216 = vadd.f32 0.0, %v4215
    %4217 = vdwg.mxu0
    %4218 = vmatpush.msra.mxu0 %v332
    %4219 = vmatpush.msra.mxu0 %v328
    %4220 = vmatpush.msra.mxu0 %v324
    %4221 = vmatpush.msra.mxu0 %v320
    %4222 = vmatpush.msra.mxu0 %v316
    %4223 = vmatpush.msra.mxu0 %v312
    %4224 = vmatpush.msra.mxu0 %v308
    %4225 = vmatpush.msra.mxu0 %v304
    %4226 = vmatpush.msra.mxu0 %v300
    %4227 = vmatpush.msra.mxu0 %v296
    %4228 = vmatpush.msra.mxu0 %v292
    %4229 = vmatpush.msra.mxu0 %v288
    %4230 = vmatpush.msra.mxu0 %v284
    %4231 = vmatpush.msra.mxu0 %v280
    %4232 = vmatpush.msra.mxu0 %v276
    %4233 = vmatpush.msra.mxu0 %v272
    %4234 = vmatmul.f32.gmra.mxu0 %v3541
    %v4235 = vpop.f32.mrf.mxu0
    %v4236 = vadd.f32 0.0, %v4235
    %4237 = vdwg.mxu0
    %v4240 = vrot.slane %v4157, 7
    %v4241 = vsel %vm804, %v4240, %v4156
    %v4242 = vsel %vm806, %v4241, 0
    %4244 = vmatpush.msra.mxu0 0.0
    %4245 = vmatpush.msra.mxu0 0.0
    %4246 = vmatpush.msra.mxu0 0.0
    %4247 = vmatpush.msra.mxu0 0.0
    %4248 = vmatpush.msra.mxu0 0.0
    %4249 = vmatpush.msra.mxu0 0.0
    %4250 = vmatpush.msra.mxu0 0.0
    %4251 = vmatpush.msra.mxu0 0.0
    %4252 = vmatpush.msra.mxu0 %v811
    %4253 = vmatpush.msra.mxu0 %v261
    %4254 = vmatpush.msra.mxu0 %v257
    %4255 = vmatpush.msra.mxu0 %v253
    %4256 = vmatpush.msra.mxu0 %v249
    %4257 = vmatpush.msra.mxu0 %v245
    %4258 = vmatpush.msra.mxu0 %v241
    %4259 = vmatpush.msra.mxu0 %v237
    %4260 = vmatmul.f32.gmra.mxu0 %v4242
    %v4261 = vpop.f32.mrf.mxu0
    %v4262 = vadd.f32 %v4176, %v4261
    %4263 = vdwg.mxu0
    %4264 = vmatpush.msra.mxu0 0.0
    %4265 = vmatpush.msra.mxu0 0.0
    %4266 = vmatpush.msra.mxu0 0.0
    %4267 = vmatpush.msra.mxu0 0.0
    %4268 = vmatpush.msra.mxu0 0.0
    %4269 = vmatpush.msra.mxu0 0.0
    %4270 = vmatpush.msra.mxu0 0.0
    %4271 = vmatpush.msra.mxu0 0.0
    %4272 = vmatpush.msra.mxu0 %v814
    %4273 = vmatpush.msra.mxu0 %v262
    %4274 = vmatpush.msra.mxu0 %v258
    %4275 = vmatpush.msra.mxu0 %v254
    %4276 = vmatpush.msra.mxu0 %v250
    %4277 = vmatpush.msra.mxu0 %v246
    %4278 = vmatpush.msra.mxu0 %v242
    %4279 = vmatpush.msra.mxu0 %v238
    %4280 = vmatmul.f32.gmra.mxu0 %v4242
    %v4281 = vpop.f32.mrf.mxu0
    %v4282 = vadd.f32 %v4196, %v4281
    %4283 = vdwg.mxu0
    %4284 = vmatpush.msra.mxu0 0.0
    %4285 = vmatpush.msra.mxu0 0.0
    %4286 = vmatpush.msra.mxu0 0.0
    %4287 = vmatpush.msra.mxu0 0.0
    %4288 = vmatpush.msra.mxu0 0.0
    %4289 = vmatpush.msra.mxu0 0.0
    %4290 = vmatpush.msra.mxu0 0.0
    %4291 = vmatpush.msra.mxu0 0.0
    %4292 = vmatpush.msra.mxu0 %v817
    %4293 = vmatpush.msra.mxu0 %v263
    %4294 = vmatpush.msra.mxu0 %v259
    %4295 = vmatpush.msra.mxu0 %v255
    %4296 = vmatpush.msra.mxu0 %v251
    %4297 = vmatpush.msra.mxu0 %v247
    %4298 = vmatpush.msra.mxu0 %v243
    %4299 = vmatpush.msra.mxu0 %v239
    %4300 = vmatmul.f32.gmra.mxu0 %v4242
    %v4301 = vpop.f32.mrf.mxu0
    %v4302 = vadd.f32 %v4216, %v4301
    %4303 = vdwg.mxu0
    %4304 = vmatpush.msra.mxu0 0.0
    %4305 = vmatpush.msra.mxu0 0.0
    %4306 = vmatpush.msra.mxu0 0.0
    %4307 = vmatpush.msra.mxu0 0.0
    %4308 = vmatpush.msra.mxu0 0.0
    %4309 = vmatpush.msra.mxu0 0.0
    %4310 = vmatpush.msra.mxu0 0.0
    %4311 = vmatpush.msra.mxu0 0.0
    %4312 = vmatpush.msra.mxu0 %v820
    %4313 = vmatpush.msra.mxu0 %v264
    %4314 = vmatpush.msra.mxu0 %v260
    %4315 = vmatpush.msra.mxu0 %v256
    %4316 = vmatpush.msra.mxu0 %v252
    %4317 = vmatpush.msra.mxu0 %v248
    %4318 = vmatpush.msra.mxu0 %v244
    %4319 = vmatpush.msra.mxu0 %v240
    %4320 = vmatmul.f32.gmra.mxu0 %v4242
    %v4321 = vpop.f32.mrf.mxu0
    %v4322 = vadd.f32 %v4236, %v4321
    %4323 = vdwg.mxu0
    %v4324 = vadd.f32 %v4262, %v903
    %v4325 = vadd.f32 %v4282, %v904
    %v4326 = vadd.f32 %v4302, %v905
    %v4327 = vadd.f32 %v4322, %v906
    %v4328 = vxor.u32 %v4324, 2147483648
    %v4329 = vxor.u32 %v4325, 2147483648
    %v4330 = vxor.u32 %v4326, 2147483648
    %v4331 = vmul.f32 %v4328, 1.442695
    %v4332 = vpow.pop %v4331
    %v4333 = vmul.f32 %v4329, 1.442695
    %v4334 = vpow.pop %v4333
    %v4335 = vmul.f32 %v4330, 1.442695
    %v4336 = vpow.pop %v4335
    %v4337 = vadd.f32 %v4332, 1.0
    %v4338 = vadd.f32 %v4334, 1.0
    %v4339 = vadd.f32 %v4336, 1.0
    %v4340 = vrcp.pop %v4337
    %v4341 = vmul.f32 %v4337, %v4340
    %v4342 = vsub.f32 1.0, %v4341
    %v4343 = vmul.f32 %v4340, %v4342
    %v4344 = vadd.f32 %v4340, %v4343
    %vm4345 = vweird.f32 %v4337
    %vm4346 = vweird.f32 %v4340
    %vm4347 = vmor %vm4345, %vm4346
    %v4348 = vsel %vm4347, %v4340, %v4344
    %v4349 = vand.u32 2147483647, %v4337
    %vm4350 = vcmp.eq.f32.partialorder %v4349, 8.507059e+37
    %v4351 = vand.u32 %v4337, 2147483648
    %v4352 = vor.u32 1.1754944e-38, %v4351
    %v4353 = vsel %vm4350, %v4352, %v4348
    %v4354 = vmul.f32 1.0, %v4353
    %v4355 = vrcp.pop %v4338
    %v4356 = vmul.f32 %v4338, %v4355
    %v4357 = vsub.f32 1.0, %v4356
    %v4358 = vmul.f32 %v4355, %v4357
    %v4359 = vadd.f32 %v4355, %v4358
    %vm4360 = vweird.f32 %v4338
    %vm4361 = vweird.f32 %v4355
    %vm4362 = vmor %vm4360, %vm4361
    %v4363 = vsel %vm4362, %v4355, %v4359
    %v4364 = vand.u32 2147483647, %v4338
    %vm4365 = vcmp.eq.f32.partialorder %v4364, 8.507059e+37
    %v4366 = vand.u32 %v4338, 2147483648
    %v4367 = vor.u32 1.1754944e-38, %v4366
    %v4368 = vsel %vm4365, %v4367, %v4363
    %v4369 = vmul.f32 1.0, %v4368
    %v4370 = vrcp.pop %v4339
    %v4371 = vmul.f32 %v4339, %v4370
    %v4372 = vsub.f32 1.0, %v4371
    %v4373 = vmul.f32 %v4370, %v4372
    %v4374 = vadd.f32 %v4370, %v4373
    %vm4375 = vweird.f32 %v4339
    %vm4376 = vweird.f32 %v4370
    %vm4377 = vmor %vm4375, %vm4376
    %v4378 = vsel %vm4377, %v4370, %v4374
    %v4379 = vand.u32 2147483647, %v4339
    %vm4380 = vcmp.eq.f32.partialorder %v4379, 8.507059e+37
    %v4381 = vand.u32 %v4339, 2147483648
    %v4382 = vor.u32 1.1754944e-38, %v4381
    %v4383 = vsel %vm4380, %v4382, %v4378
    %v4384 = vmul.f32 1.0, %v4383
    %v4385 = vtanh.pop %v4327
    %v4386 = vmul.f32 %v4369, %v3539
    %v4387 = vmul.f32 %v4354, %v4385
    %v4388 = vadd.f32 %v4386, %v4387
    %v4389 = vtanh.pop %v4388
    %v4390 = vmul.f32 %v4384, %v4389
    %4391 = vmatpush.msra.mxu0 %v582
    %4392 = vmatpush.msra.mxu0 %v574
    %4393 = vmatpush.msra.mxu0 %v566
    %4394 = vmatpush.msra.mxu0 %v558
    %4395 = vmatpush.msra.mxu0 %v550
    %4396 = vmatpush.msra.mxu0 %v542
    %4397 = vmatpush.msra.mxu0 %v534
    %4398 = vmatpush.msra.mxu0 %v526
    %4399 = vmatpush.msra.mxu0 %v518
    %4400 = vmatpush.msra.mxu0 %v510
    %4401 = vmatpush.msra.mxu0 %v502
    %4402 = vmatpush.msra.mxu0 %v494
    %4403 = vmatpush.msra.mxu0 %v486
    %4404 = vmatpush.msra.mxu0 %v478
    %4405 = vmatpush.msra.mxu0 %v470
    %4406 = vmatpush.msra.mxu0 %v462
    %4407 = vmatmul.f32.gmra.mxu0 %v4154
    %v4408 = vpop.f32.mrf.mxu0
    %v4409 = vadd.f32 0.0, %v4408
    %4410 = vdwg.mxu0
    %4411 = vmatpush.msra.mxu0 %v710
    %4412 = vmatpush.msra.mxu0 %v702
    %4413 = vmatpush.msra.mxu0 %v694
    %4414 = vmatpush.msra.mxu0 %v686
    %4415 = vmatpush.msra.mxu0 %v678
    %4416 = vmatpush.msra.mxu0 %v670
    %4417 = vmatpush.msra.mxu0 %v662
    %4418 = vmatpush.msra.mxu0 %v654
    %4419 = vmatpush.msra.mxu0 %v646
    %4420 = vmatpush.msra.mxu0 %v638
    %4421 = vmatpush.msra.mxu0 %v630
    %4422 = vmatpush.msra.mxu0 %v622
    %4423 = vmatpush.msra.mxu0 %v614
    %4424 = vmatpush.msra.mxu0 %v606
    %4425 = vmatpush.msra.mxu0 %v598
    %4426 = vmatpush.msra.mxu0 %v590
    %4427 = vmatmul.f32.gmra.mxu0 %v4155
    %v4428 = vpop.f32.mrf.mxu0
    %v4429 = vadd.f32 %v4409, %v4428
    %4430 = vdwg.mxu0
    %4431 = vmatpush.msra.mxu0 %v583
    %4432 = vmatpush.msra.mxu0 %v575
    %4433 = vmatpush.msra.mxu0 %v567
    %4434 = vmatpush.msra.mxu0 %v559
    %4435 = vmatpush.msra.mxu0 %v551
    %4436 = vmatpush.msra.mxu0 %v543
    %4437 = vmatpush.msra.mxu0 %v535
    %4438 = vmatpush.msra.mxu0 %v527
    %4439 = vmatpush.msra.mxu0 %v519
    %4440 = vmatpush.msra.mxu0 %v511
    %4441 = vmatpush.msra.mxu0 %v503
    %4442 = vmatpush.msra.mxu0 %v495
    %4443 = vmatpush.msra.mxu0 %v487
    %4444 = vmatpush.msra.mxu0 %v479
    %4445 = vmatpush.msra.mxu0 %v471
    %4446 = vmatpush.msra.mxu0 %v463
    %4447 = vmatmul.f32.gmra.mxu0 %v4154
    %v4448 = vpop.f32.mrf.mxu0
    %v4449 = vadd.f32 0.0, %v4448
    %4450 = vdwg.mxu0
    %4451 = vmatpush.msra.mxu0 %v711
    %4452 = vmatpush.msra.mxu0 %v703
    %4453 = vmatpush.msra.mxu0 %v695
    %4454 = vmatpush.msra.mxu0 %v687
    %4455 = vmatpush.msra.mxu0 %v679
    %4456 = vmatpush.msra.mxu0 %v671
    %4457 = vmatpush.msra.mxu0 %v663
    %4458 = vmatpush.msra.mxu0 %v655
    %4459 = vmatpush.msra.mxu0 %v647
    %4460 = vmatpush.msra.mxu0 %v639
    %4461 = vmatpush.msra.mxu0 %v631
    %4462 = vmatpush.msra.mxu0 %v623
    %4463 = vmatpush.msra.mxu0 %v615
    %4464 = vmatpush.msra.mxu0 %v607
    %4465 = vmatpush.msra.mxu0 %v599
    %4466 = vmatpush.msra.mxu0 %v591
    %4467 = vmatmul.f32.gmra.mxu0 %v4155
    %v4468 = vpop.f32.mrf.mxu0
    %v4469 = vadd.f32 %v4449, %v4468
    %4470 = vdwg.mxu0
    %4471 = vmatpush.msra.mxu0 %v584
    %4472 = vmatpush.msra.mxu0 %v576
    %4473 = vmatpush.msra.mxu0 %v568
    %4474 = vmatpush.msra.mxu0 %v560
    %4475 = vmatpush.msra.mxu0 %v552
    %4476 = vmatpush.msra.mxu0 %v544
    %4477 = vmatpush.msra.mxu0 %v536
    %4478 = vmatpush.msra.mxu0 %v528
    %4479 = vmatpush.msra.mxu0 %v520
    %4480 = vmatpush.msra.mxu0 %v512
    %4481 = vmatpush.msra.mxu0 %v504
    %4482 = vmatpush.msra.mxu0 %v496
    %4483 = vmatpush.msra.mxu0 %v488
    %4484 = vmatpush.msra.mxu0 %v480
    %4485 = vmatpush.msra.mxu0 %v472
    %4486 = vmatpush.msra.mxu0 %v464
    %4487 = vmatmul.f32.gmra.mxu0 %v4154
    %v4488 = vpop.f32.mrf.mxu0
    %v4489 = vadd.f32 0.0, %v4488
    %4490 = vdwg.mxu0
    %4491 = vmatpush.msra.mxu0 %v712
    %4492 = vmatpush.msra.mxu0 %v704
    %4493 = vmatpush.msra.mxu0 %v696
    %4494 = vmatpush.msra.mxu0 %v688
    %4495 = vmatpush.msra.mxu0 %v680
    %4496 = vmatpush.msra.mxu0 %v672
    %4497 = vmatpush.msra.mxu0 %v664
    %4498 = vmatpush.msra.mxu0 %v656
    %4499 = vmatpush.msra.mxu0 %v648
    %4500 = vmatpush.msra.mxu0 %v640
    %4501 = vmatpush.msra.mxu0 %v632
    %4502 = vmatpush.msra.mxu0 %v624
    %4503 = vmatpush.msra.mxu0 %v616
    %4504 = vmatpush.msra.mxu0 %v608
    %4505 = vmatpush.msra.mxu0 %v600
    %4506 = vmatpush.msra.mxu0 %v592
    %4507 = vmatmul.f32.gmra.mxu0 %v4155
    %v4508 = vpop.f32.mrf.mxu0
    %v4509 = vadd.f32 %v4489, %v4508
    %4510 = vdwg.mxu0
    %4511 = vmatpush.msra.mxu0 %v585
    %4512 = vmatpush.msra.mxu0 %v577
    %4513 = vmatpush.msra.mxu0 %v569
    %4514 = vmatpush.msra.mxu0 %v561
    %4515 = vmatpush.msra.mxu0 %v553
    %4516 = vmatpush.msra.mxu0 %v545
    %4517 = vmatpush.msra.mxu0 %v537
    %4518 = vmatpush.msra.mxu0 %v529
    %4519 = vmatpush.msra.mxu0 %v521
    %4520 = vmatpush.msra.mxu0 %v513
    %4521 = vmatpush.msra.mxu0 %v505
    %4522 = vmatpush.msra.mxu0 %v497
    %4523 = vmatpush.msra.mxu0 %v489
    %4524 = vmatpush.msra.mxu0 %v481
    %4525 = vmatpush.msra.mxu0 %v473
    %4526 = vmatpush.msra.mxu0 %v465
    %4527 = vmatmul.f32.gmra.mxu0 %v4154
    %v4528 = vpop.f32.mrf.mxu0
    %v4529 = vadd.f32 0.0, %v4528
    %4530 = vdwg.mxu0
    %4531 = vmatpush.msra.mxu0 %v713
    %4532 = vmatpush.msra.mxu0 %v705
    %4533 = vmatpush.msra.mxu0 %v697
    %4534 = vmatpush.msra.mxu0 %v689
    %4535 = vmatpush.msra.mxu0 %v681
    %4536 = vmatpush.msra.mxu0 %v673
    %4537 = vmatpush.msra.mxu0 %v665
    %4538 = vmatpush.msra.mxu0 %v657
    %4539 = vmatpush.msra.mxu0 %v649
    %4540 = vmatpush.msra.mxu0 %v641
    %4541 = vmatpush.msra.mxu0 %v633
    %4542 = vmatpush.msra.mxu0 %v625
    %4543 = vmatpush.msra.mxu0 %v617
    %4544 = vmatpush.msra.mxu0 %v609
    %4545 = vmatpush.msra.mxu0 %v601
    %4546 = vmatpush.msra.mxu0 %v593
    %4547 = vmatmul.f32.gmra.mxu0 %v4155
    %v4548 = vpop.f32.mrf.mxu0
    %v4549 = vadd.f32 %v4529, %v4548
    %4550 = vdwg.mxu0
    %4551 = vmatpush.msra.mxu0 %v586
    %4552 = vmatpush.msra.mxu0 %v578
    %4553 = vmatpush.msra.mxu0 %v570
    %4554 = vmatpush.msra.mxu0 %v562
    %4555 = vmatpush.msra.mxu0 %v554
    %4556 = vmatpush.msra.mxu0 %v546
    %4557 = vmatpush.msra.mxu0 %v538
    %4558 = vmatpush.msra.mxu0 %v530
    %4559 = vmatpush.msra.mxu0 %v522
    %4560 = vmatpush.msra.mxu0 %v514
    %4561 = vmatpush.msra.mxu0 %v506
    %4562 = vmatpush.msra.mxu0 %v498
    %4563 = vmatpush.msra.mxu0 %v490
    %4564 = vmatpush.msra.mxu0 %v482
    %4565 = vmatpush.msra.mxu0 %v474
    %4566 = vmatpush.msra.mxu0 %v466
    %4567 = vmatmul.f32.gmra.mxu0 %v4154
    %v4568 = vpop.f32.mrf.mxu0
    %v4569 = vadd.f32 0.0, %v4568
    %4570 = vdwg.mxu0
    %4571 = vmatpush.msra.mxu0 %v714
    %4572 = vmatpush.msra.mxu0 %v706
    %4573 = vmatpush.msra.mxu0 %v698
    %4574 = vmatpush.msra.mxu0 %v690
    %4575 = vmatpush.msra.mxu0 %v682
    %4576 = vmatpush.msra.mxu0 %v674
    %4577 = vmatpush.msra.mxu0 %v666
    %4578 = vmatpush.msra.mxu0 %v658
    %4579 = vmatpush.msra.mxu0 %v650
    %4580 = vmatpush.msra.mxu0 %v642
    %4581 = vmatpush.msra.mxu0 %v634
    %4582 = vmatpush.msra.mxu0 %v626
    %4583 = vmatpush.msra.mxu0 %v618
    %4584 = vmatpush.msra.mxu0 %v610
    %4585 = vmatpush.msra.mxu0 %v602
    %4586 = vmatpush.msra.mxu0 %v594
    %4587 = vmatmul.f32.gmra.mxu0 %v4155
    %v4588 = vpop.f32.mrf.mxu0
    %v4589 = vadd.f32 %v4569, %v4588
    %4590 = vdwg.mxu0
    %4591 = vmatpush.msra.mxu0 %v587
    %4592 = vmatpush.msra.mxu0 %v579
    %4593 = vmatpush.msra.mxu0 %v571
    %4594 = vmatpush.msra.mxu0 %v563
    %4595 = vmatpush.msra.mxu0 %v555
    %4596 = vmatpush.msra.mxu0 %v547
    %4597 = vmatpush.msra.mxu0 %v539
    %4598 = vmatpush.msra.mxu0 %v531
    %4599 = vmatpush.msra.mxu0 %v523
    %4600 = vmatpush.msra.mxu0 %v515
    %4601 = vmatpush.msra.mxu0 %v507
    %4602 = vmatpush.msra.mxu0 %v499
    %4603 = vmatpush.msra.mxu0 %v491
    %4604 = vmatpush.msra.mxu0 %v483
    %4605 = vmatpush.msra.mxu0 %v475
    %4606 = vmatpush.msra.mxu0 %v467
    %4607 = vmatmul.f32.gmra.mxu0 %v4154
    %v4608 = vpop.f32.mrf.mxu0
    %v4609 = vadd.f32 0.0, %v4608
    %4610 = vdwg.mxu0
    %4611 = vmatpush.msra.mxu0 %v715
    %4612 = vmatpush.msra.mxu0 %v707
    %4613 = vmatpush.msra.mxu0 %v699
    %4614 = vmatpush.msra.mxu0 %v691
    %4615 = vmatpush.msra.mxu0 %v683
    %4616 = vmatpush.msra.mxu0 %v675
    %4617 = vmatpush.msra.mxu0 %v667
    %4618 = vmatpush.msra.mxu0 %v659
    %4619 = vmatpush.msra.mxu0 %v651
    %4620 = vmatpush.msra.mxu0 %v643
    %4621 = vmatpush.msra.mxu0 %v635
    %4622 = vmatpush.msra.mxu0 %v627
    %4623 = vmatpush.msra.mxu0 %v619
    %4624 = vmatpush.msra.mxu0 %v611
    %4625 = vmatpush.msra.mxu0 %v603
    %4626 = vmatpush.msra.mxu0 %v595
    %4627 = vmatmul.f32.gmra.mxu0 %v4155
    %v4628 = vpop.f32.mrf.mxu0
    %v4629 = vadd.f32 %v4609, %v4628
    %4630 = vdwg.mxu0
    %4631 = vmatpush.msra.mxu0 %v588
    %4632 = vmatpush.msra.mxu0 %v580
    %4633 = vmatpush.msra.mxu0 %v572
    %4634 = vmatpush.msra.mxu0 %v564
    %4635 = vmatpush.msra.mxu0 %v556
    %4636 = vmatpush.msra.mxu0 %v548
    %4637 = vmatpush.msra.mxu0 %v540
    %4638 = vmatpush.msra.mxu0 %v532
    %4639 = vmatpush.msra.mxu0 %v524
    %4640 = vmatpush.msra.mxu0 %v516
    %4641 = vmatpush.msra.mxu0 %v508
    %4642 = vmatpush.msra.mxu0 %v500
    %4643 = vmatpush.msra.mxu0 %v492
    %4644 = vmatpush.msra.mxu0 %v484
    %4645 = vmatpush.msra.mxu0 %v476
    %4646 = vmatpush.msra.mxu0 %v468
    %4647 = vmatmul.f32.gmra.mxu0 %v4154
    %v4648 = vpop.f32.mrf.mxu0
    %v4649 = vadd.f32 0.0, %v4648
    %4650 = vdwg.mxu0
    %4651 = vmatpush.msra.mxu0 %v716
    %4652 = vmatpush.msra.mxu0 %v708
    %4653 = vmatpush.msra.mxu0 %v700
    %4654 = vmatpush.msra.mxu0 %v692
    %4655 = vmatpush.msra.mxu0 %v684
    %4656 = vmatpush.msra.mxu0 %v676
    %4657 = vmatpush.msra.mxu0 %v668
    %4658 = vmatpush.msra.mxu0 %v660
    %4659 = vmatpush.msra.mxu0 %v652
    %4660 = vmatpush.msra.mxu0 %v644
    %4661 = vmatpush.msra.mxu0 %v636
    %4662 = vmatpush.msra.mxu0 %v628
    %4663 = vmatpush.msra.mxu0 %v620
    %4664 = vmatpush.msra.mxu0 %v612
    %4665 = vmatpush.msra.mxu0 %v604
    %4666 = vmatpush.msra.mxu0 %v596
    %4667 = vmatmul.f32.gmra.mxu0 %v4155
    %v4668 = vpop.f32.mrf.mxu0
    %v4669 = vadd.f32 %v4649, %v4668
    %4670 = vdwg.mxu0
    %4671 = vmatpush.msra.mxu0 %v589
    %4672 = vmatpush.msra.mxu0 %v581
    %4673 = vmatpush.msra.mxu0 %v573
    %4674 = vmatpush.msra.mxu0 %v565
    %4675 = vmatpush.msra.mxu0 %v557
    %4676 = vmatpush.msra.mxu0 %v549
    %4677 = vmatpush.msra.mxu0 %v541
    %4678 = vmatpush.msra.mxu0 %v533
    %4679 = vmatpush.msra.mxu0 %v525
    %4680 = vmatpush.msra.mxu0 %v517
    %4681 = vmatpush.msra.mxu0 %v509
    %4682 = vmatpush.msra.mxu0 %v501
    %4683 = vmatpush.msra.mxu0 %v493
    %4684 = vmatpush.msra.mxu0 %v485
    %4685 = vmatpush.msra.mxu0 %v477
    %4686 = vmatpush.msra.mxu0 %v469
    %4687 = vmatmul.f32.gmra.mxu0 %v4154
    %v4688 = vpop.f32.mrf.mxu0
    %v4689 = vadd.f32 0.0, %v4688
    %4690 = vdwg.mxu0
    %4691 = vmatpush.msra.mxu0 %v717
    %4692 = vmatpush.msra.mxu0 %v709
    %4693 = vmatpush.msra.mxu0 %v701
    %4694 = vmatpush.msra.mxu0 %v693
    %4695 = vmatpush.msra.mxu0 %v685
    %4696 = vmatpush.msra.mxu0 %v677
    %4697 = vmatpush.msra.mxu0 %v669
    %4698 = vmatpush.msra.mxu0 %v661
    %4699 = vmatpush.msra.mxu0 %v653
    %4700 = vmatpush.msra.mxu0 %v645
    %4701 = vmatpush.msra.mxu0 %v637
    %4702 = vmatpush.msra.mxu0 %v629
    %4703 = vmatpush.msra.mxu0 %v621
    %4704 = vmatpush.msra.mxu0 %v613
    %4705 = vmatpush.msra.mxu0 %v605
    %4706 = vmatpush.msra.mxu0 %v597
    %4707 = vmatmul.f32.gmra.mxu0 %v4155
    %v4708 = vpop.f32.mrf.mxu0
    %v4709 = vadd.f32 %v4689, %v4708
    %4710 = vdwg.mxu0
    %4711 = vmatpush.msra.mxu0 %v454
    %4712 = vmatpush.msra.mxu0 %v446
    %4713 = vmatpush.msra.mxu0 %v438
    %4714 = vmatpush.msra.mxu0 %v430
    %4715 = vmatpush.msra.mxu0 %v422
    %4716 = vmatpush.msra.mxu0 %v414
    %4717 = vmatpush.msra.mxu0 %v406
    %4718 = vmatpush.msra.mxu0 %v398
    %4719 = vmatpush.msra.mxu0 %v390
    %4720 = vmatpush.msra.mxu0 %v382
    %4721 = vmatpush.msra.mxu0 %v374
    %4722 = vmatpush.msra.mxu0 %v366
    %4723 = vmatpush.msra.mxu0 %v358
    %4724 = vmatpush.msra.mxu0 %v350
    %4725 = vmatpush.msra.mxu0 %v342
    %4726 = vmatpush.msra.mxu0 %v334
    %4727 = vmatmul.f32.gmra.mxu0 %v4390
    %v4728 = vpop.f32.mrf.mxu0
    %v4729 = vadd.f32 %v4429, %v4728
    %4730 = vdwg.mxu0
    %4731 = vmatpush.msra.mxu0 %v455
    %4732 = vmatpush.msra.mxu0 %v447
    %4733 = vmatpush.msra.mxu0 %v439
    %4734 = vmatpush.msra.mxu0 %v431
    %4735 = vmatpush.msra.mxu0 %v423
    %4736 = vmatpush.msra.mxu0 %v415
    %4737 = vmatpush.msra.mxu0 %v407
    %4738 = vmatpush.msra.mxu0 %v399
    %4739 = vmatpush.msra.mxu0 %v391
    %4740 = vmatpush.msra.mxu0 %v383
    %4741 = vmatpush.msra.mxu0 %v375
    %4742 = vmatpush.msra.mxu0 %v367
    %4743 = vmatpush.msra.mxu0 %v359
    %4744 = vmatpush.msra.mxu0 %v351
    %4745 = vmatpush.msra.mxu0 %v343
    %4746 = vmatpush.msra.mxu0 %v335
    %4747 = vmatmul.f32.gmra.mxu0 %v4390
    %v4748 = vpop.f32.mrf.mxu0
    %v4749 = vadd.f32 %v4469, %v4748
    %4750 = vdwg.mxu0
    %4751 = vmatpush.msra.mxu0 %v456
    %4752 = vmatpush.msra.mxu0 %v448
    %4753 = vmatpush.msra.mxu0 %v440
    %4754 = vmatpush.msra.mxu0 %v432
    %4755 = vmatpush.msra.mxu0 %v424
    %4756 = vmatpush.msra.mxu0 %v416
    %4757 = vmatpush.msra.mxu0 %v408
    %4758 = vmatpush.msra.mxu0 %v400
    %4759 = vmatpush.msra.mxu0 %v392
    %4760 = vmatpush.msra.mxu0 %v384
    %4761 = vmatpush.msra.mxu0 %v376
    %4762 = vmatpush.msra.mxu0 %v368
    %4763 = vmatpush.msra.mxu0 %v360
    %4764 = vmatpush.msra.mxu0 %v352
    %4765 = vmatpush.msra.mxu0 %v344
    %4766 = vmatpush.msra.mxu0 %v336
    %4767 = vmatmul.f32.gmra.mxu0 %v4390
    %v4768 = vpop.f32.mrf.mxu0
    %v4769 = vadd.f32 %v4509, %v4768
    %4770 = vdwg.mxu0
    %4771 = vmatpush.msra.mxu0 %v457
    %4772 = vmatpush.msra.mxu0 %v449
    %4773 = vmatpush.msra.mxu0 %v441
    %4774 = vmatpush.msra.mxu0 %v433
    %4775 = vmatpush.msra.mxu0 %v425
    %4776 = vmatpush.msra.mxu0 %v417
    %4777 = vmatpush.msra.mxu0 %v409
    %4778 = vmatpush.msra.mxu0 %v401
    %4779 = vmatpush.msra.mxu0 %v393
    %4780 = vmatpush.msra.mxu0 %v385
    %4781 = vmatpush.msra.mxu0 %v377
    %4782 = vmatpush.msra.mxu0 %v369
    %4783 = vmatpush.msra.mxu0 %v361
    %4784 = vmatpush.msra.mxu0 %v353
    %4785 = vmatpush.msra.mxu0 %v345
    %4786 = vmatpush.msra.mxu0 %v337
    %4787 = vmatmul.f32.gmra.mxu0 %v4390
    %v4788 = vpop.f32.mrf.mxu0
    %v4789 = vadd.f32 %v4549, %v4788
    %4790 = vdwg.mxu0
    %4791 = vmatpush.msra.mxu0 %v458
    %4792 = vmatpush.msra.mxu0 %v450
    %4793 = vmatpush.msra.mxu0 %v442
    %4794 = vmatpush.msra.mxu0 %v434
    %4795 = vmatpush.msra.mxu0 %v426
    %4796 = vmatpush.msra.mxu0 %v418
    %4797 = vmatpush.msra.mxu0 %v410
    %4798 = vmatpush.msra.mxu0 %v402
    %4799 = vmatpush.msra.mxu0 %v394
    %4800 = vmatpush.msra.mxu0 %v386
    %4801 = vmatpush.msra.mxu0 %v378
    %4802 = vmatpush.msra.mxu0 %v370
    %4803 = vmatpush.msra.mxu0 %v362
    %4804 = vmatpush.msra.mxu0 %v354
    %4805 = vmatpush.msra.mxu0 %v346
    %4806 = vmatpush.msra.mxu0 %v338
    %4807 = vmatmul.f32.gmra.mxu0 %v4390
    %v4808 = vpop.f32.mrf.mxu0
    %v4809 = vadd.f32 %v4589, %v4808
    %4810 = vdwg.mxu0
    %4811 = vmatpush.msra.mxu0 %v459
    %4812 = vmatpush.msra.mxu0 %v451
    %4813 = vmatpush.msra.mxu0 %v443
    %4814 = vmatpush.msra.mxu0 %v435
    %4815 = vmatpush.msra.mxu0 %v427
    %4816 = vmatpush.msra.mxu0 %v419
    %4817 = vmatpush.msra.mxu0 %v411
    %4818 = vmatpush.msra.mxu0 %v403
    %4819 = vmatpush.msra.mxu0 %v395
    %4820 = vmatpush.msra.mxu0 %v387
    %4821 = vmatpush.msra.mxu0 %v379
    %4822 = vmatpush.msra.mxu0 %v371
    %4823 = vmatpush.msra.mxu0 %v363
    %4824 = vmatpush.msra.mxu0 %v355
    %4825 = vmatpush.msra.mxu0 %v347
    %4826 = vmatpush.msra.mxu0 %v339
    %4827 = vmatmul.f32.gmra.mxu0 %v4390
    %v4828 = vpop.f32.mrf.mxu0
    %v4829 = vadd.f32 %v4629, %v4828
    %4830 = vdwg.mxu0
    %4831 = vmatpush.msra.mxu0 %v460
    %4832 = vmatpush.msra.mxu0 %v452
    %4833 = vmatpush.msra.mxu0 %v444
    %4834 = vmatpush.msra.mxu0 %v436
    %4835 = vmatpush.msra.mxu0 %v428
    %4836 = vmatpush.msra.mxu0 %v420
    %4837 = vmatpush.msra.mxu0 %v412
    %4838 = vmatpush.msra.mxu0 %v404
    %4839 = vmatpush.msra.mxu0 %v396
    %4840 = vmatpush.msra.mxu0 %v388
    %4841 = vmatpush.msra.mxu0 %v380
    %4842 = vmatpush.msra.mxu0 %v372
    %4843 = vmatpush.msra.mxu0 %v364
    %4844 = vmatpush.msra.mxu0 %v356
    %4845 = vmatpush.msra.mxu0 %v348
    %4846 = vmatpush.msra.mxu0 %v340
    %4847 = vmatmul.f32.gmra.mxu0 %v4390
    %v4848 = vpop.f32.mrf.mxu0
    %v4849 = vadd.f32 %v4669, %v4848
    %4850 = vdwg.mxu0
    %4851 = vmatpush.msra.mxu0 %v461
    %4852 = vmatpush.msra.mxu0 %v453
    %4853 = vmatpush.msra.mxu0 %v445
    %4854 = vmatpush.msra.mxu0 %v437
    %4855 = vmatpush.msra.mxu0 %v429
    %4856 = vmatpush.msra.mxu0 %v421
    %4857 = vmatpush.msra.mxu0 %v413
    %4858 = vmatpush.msra.mxu0 %v405
    %4859 = vmatpush.msra.mxu0 %v397
    %4860 = vmatpush.msra.mxu0 %v389
    %4861 = vmatpush.msra.mxu0 %v381
    %4862 = vmatpush.msra.mxu0 %v373
    %4863 = vmatpush.msra.mxu0 %v365
    %4864 = vmatpush.msra.mxu0 %v357
    %4865 = vmatpush.msra.mxu0 %v349
    %4866 = vmatpush.msra.mxu0 %v341
    %4867 = vmatmul.f32.gmra.mxu0 %v4390
    %v4868 = vpop.f32.mrf.mxu0
    %v4869 = vadd.f32 %v4709, %v4868
    %4870 = vdwg.mxu0
    %v4871 = vadd.f32 %v4729, %v1459
    %v4872 = vadd.f32 %v4749, %v1460
    %v4873 = vadd.f32 %v4769, %v1461
    %v4874 = vadd.f32 %v4789, %v1462
    %v4875 = vadd.f32 %v4809, %v1463
    %v4876 = vadd.f32 %v4829, %v1464
    %v4877 = vadd.f32 %v4849, %v1465
    %v4878 = vadd.f32 %v4869, %v1466
    %v4879 = vxor.u32 %v4871, 2147483648
    %v4880 = vxor.u32 %v4872, 2147483648
    %v4881 = vxor.u32 %v4873, 2147483648
    %v4882 = vxor.u32 %v4874, 2147483648
    %v4883 = vxor.u32 %v4875, 2147483648
    %v4884 = vxor.u32 %v4876, 2147483648
    %v4885 = vmul.f32 %v4879, 1.442695
    %v4886 = vpow.pop %v4885
    %v4887 = vmul.f32 %v4880, 1.442695
    %v4888 = vpow.pop %v4887
    %v4889 = vmul.f32 %v4881, 1.442695
    %v4890 = vpow.pop %v4889
    %v4891 = vmul.f32 %v4882, 1.442695
    %v4892 = vpow.pop %v4891
    %v4893 = vmul.f32 %v4883, 1.442695
    %v4894 = vpow.pop %v4893
    %v4895 = vmul.f32 %v4884, 1.442695
    %v4896 = vpow.pop %v4895
    %v4897 = vadd.f32 %v4886, 1.0
    %v4898 = vadd.f32 %v4888, 1.0
    %v4899 = vadd.f32 %v4890, 1.0
    %v4900 = vadd.f32 %v4892, 1.0
    %v4901 = vadd.f32 %v4894, 1.0
    %v4902 = vadd.f32 %v4896, 1.0
    %v4903 = vrcp.pop %v4897
    %v4904 = vmul.f32 %v4897, %v4903
    %v4905 = vsub.f32 1.0, %v4904
    %v4906 = vmul.f32 %v4903, %v4905
    %v4907 = vadd.f32 %v4903, %v4906
    %vm4908 = vweird.f32 %v4897
    %vm4909 = vweird.f32 %v4903
    %vm4910 = vmor %vm4908, %vm4909
    %v4911 = vsel %vm4910, %v4903, %v4907
    %v4912 = vand.u32 2147483647, %v4897
    %vm4913 = vcmp.eq.f32.partialorder %v4912, 8.507059e+37
    %v4914 = vand.u32 %v4897, 2147483648
    %v4915 = vor.u32 1.1754944e-38, %v4914
    %v4916 = vsel %vm4913, %v4915, %v4911
    %v4917 = vmul.f32 1.0, %v4916
    %v4918 = vrcp.pop %v4898
    %v4919 = vmul.f32 %v4898, %v4918
    %v4920 = vsub.f32 1.0, %v4919
    %v4921 = vmul.f32 %v4918, %v4920
    %v4922 = vadd.f32 %v4918, %v4921
    %vm4923 = vweird.f32 %v4898
    %vm4924 = vweird.f32 %v4918
    %vm4925 = vmor %vm4923, %vm4924
    %v4926 = vsel %vm4925, %v4918, %v4922
    %v4927 = vand.u32 2147483647, %v4898
    %vm4928 = vcmp.eq.f32.partialorder %v4927, 8.507059e+37
    %v4929 = vand.u32 %v4898, 2147483648
    %v4930 = vor.u32 1.1754944e-38, %v4929
    %v4931 = vsel %vm4928, %v4930, %v4926
    %v4932 = vmul.f32 1.0, %v4931
    %v4933 = vrcp.pop %v4899
    %v4934 = vmul.f32 %v4899, %v4933
    %v4935 = vsub.f32 1.0, %v4934
    %v4936 = vmul.f32 %v4933, %v4935
    %v4937 = vadd.f32 %v4933, %v4936
    %vm4938 = vweird.f32 %v4899
    %vm4939 = vweird.f32 %v4933
    %vm4940 = vmor %vm4938, %vm4939
    %v4941 = vsel %vm4940, %v4933, %v4937
    %v4942 = vand.u32 2147483647, %v4899
    %vm4943 = vcmp.eq.f32.partialorder %v4942, 8.507059e+37
    %v4944 = vand.u32 %v4899, 2147483648
    %v4945 = vor.u32 1.1754944e-38, %v4944
    %v4946 = vsel %vm4943, %v4945, %v4941
    %v4947 = vmul.f32 1.0, %v4946
    %v4948 = vrcp.pop %v4900
    %v4949 = vmul.f32 %v4900, %v4948
    %v4950 = vsub.f32 1.0, %v4949
    %v4951 = vmul.f32 %v4948, %v4950
    %v4952 = vadd.f32 %v4948, %v4951
    %vm4953 = vweird.f32 %v4900
    %vm4954 = vweird.f32 %v4948
    %vm4955 = vmor %vm4953, %vm4954
    %v4956 = vsel %vm4955, %v4948, %v4952
    %v4957 = vand.u32 2147483647, %v4900
    %vm4958 = vcmp.eq.f32.partialorder %v4957, 8.507059e+37
    %v4959 = vand.u32 %v4900, 2147483648
    %v4960 = vor.u32 1.1754944e-38, %v4959
    %v4961 = vsel %vm4958, %v4960, %v4956
    %v4962 = vmul.f32 1.0, %v4961
    %v4963 = vrcp.pop %v4901
    %v4964 = vmul.f32 %v4901, %v4963
    %v4965 = vsub.f32 1.0, %v4964
    %v4966 = vmul.f32 %v4963, %v4965
    %v4967 = vadd.f32 %v4963, %v4966
    %vm4968 = vweird.f32 %v4901
    %vm4969 = vweird.f32 %v4963
    %vm4970 = vmor %vm4968, %vm4969
    %v4971 = vsel %vm4970, %v4963, %v4967
    %v4972 = vand.u32 2147483647, %v4901
    %vm4973 = vcmp.eq.f32.partialorder %v4972, 8.507059e+37
    %v4974 = vand.u32 %v4901, 2147483648
    %v4975 = vor.u32 1.1754944e-38, %v4974
    %v4976 = vsel %vm4973, %v4975, %v4971
    %v4977 = vmul.f32 1.0, %v4976
    %v4978 = vrcp.pop %v4902
    %v4979 = vmul.f32 %v4902, %v4978
    %v4980 = vsub.f32 1.0, %v4979
    %v4981 = vmul.f32 %v4978, %v4980
    %v4982 = vadd.f32 %v4978, %v4981
    %vm4983 = vweird.f32 %v4902
    %vm4984 = vweird.f32 %v4978
    %vm4985 = vmor %vm4983, %vm4984
    %v4986 = vsel %vm4985, %v4978, %v4982
    %v4987 = vand.u32 2147483647, %v4902
    %vm4988 = vcmp.eq.f32.partialorder %v4987, 8.507059e+37
    %v4989 = vand.u32 %v4902, 2147483648
    %v4990 = vor.u32 1.1754944e-38, %v4989
    %v4991 = vsel %vm4988, %v4990, %v4986
    %v4992 = vmul.f32 1.0, %v4991
    %v4993 = vtanh.pop %v4877
    %v4994 = vtanh.pop %v4878
    %v4995 = vmul.f32 %v4947, %v4150
    %v4996 = vmul.f32 %v4962, %v4151
    %v4997 = vmul.f32 %v4917, %v4993
    %v4998 = vmul.f32 %v4932, %v4994
    %v4999 = vadd.f32 %v4995, %v4997
    %v5000 = vadd.f32 %v4996, %v4998
    %v5001 = vtanh.pop %v4999
    %v5002 = vtanh.pop %v5000
    %v5003 = vmul.f32 %v4977, %v5001
    %v5004 = vmul.f32 %v4992, %v5002
    %v5005 = vld [vmem:[#allocation2 + $0x5] sm:$0x1]
    %v5006 = vld [vmem:[#allocation2 + $0xd] sm:$0x1]
    %5007 = vmatpush.msra.mxu0 %v329
    %5008 = vmatpush.msra.mxu0 %v325
    %5009 = vmatpush.msra.mxu0 %v321
    %5010 = vmatpush.msra.mxu0 %v317
    %5011 = vmatpush.msra.mxu0 %v313
    %5012 = vmatpush.msra.mxu0 %v309
    %5013 = vmatpush.msra.mxu0 %v305
    %5014 = vmatpush.msra.mxu0 %v301
    %5015 = vmatpush.msra.mxu0 %v297
    %5016 = vmatpush.msra.mxu0 %v293
    %5017 = vmatpush.msra.mxu0 %v289
    %5018 = vmatpush.msra.mxu0 %v285
    %5019 = vmatpush.msra.mxu0 %v281
    %5020 = vmatpush.msra.mxu0 %v277
    %5021 = vmatpush.msra.mxu0 %v273
    %5022 = vmatpush.msra.mxu0 %v269
    %5023 = vmatmul.f32.gmra.mxu0 %v4390
    %v5024 = vpop.f32.mrf.mxu0
    %v5025 = vadd.f32 0.0, %v5024
    %5026 = vdwg.mxu0
    %5027 = vmatpush.msra.mxu0 %v330
    %5028 = vmatpush.msra.mxu0 %v326
    %5029 = vmatpush.msra.mxu0 %v322
    %5030 = vmatpush.msra.mxu0 %v318
    %5031 = vmatpush.msra.mxu0 %v314
    %5032 = vmatpush.msra.mxu0 %v310
    %5033 = vmatpush.msra.mxu0 %v306
    %5034 = vmatpush.msra.mxu0 %v302
    %5035 = vmatpush.msra.mxu0 %v298
    %5036 = vmatpush.msra.mxu0 %v294
    %5037 = vmatpush.msra.mxu0 %v290
    %5038 = vmatpush.msra.mxu0 %v286
    %5039 = vmatpush.msra.mxu0 %v282
    %5040 = vmatpush.msra.mxu0 %v278
    %5041 = vmatpush.msra.mxu0 %v274
    %5042 = vmatpush.msra.mxu0 %v270
    %5043 = vmatmul.f32.gmra.mxu0 %v4390
    %v5044 = vpop.f32.mrf.mxu0
    %v5045 = vadd.f32 0.0, %v5044
    %5046 = vdwg.mxu0
    %5047 = vmatpush.msra.mxu0 %v331
    %5048 = vmatpush.msra.mxu0 %v327
    %5049 = vmatpush.msra.mxu0 %v323
    %5050 = vmatpush.msra.mxu0 %v319
    %5051 = vmatpush.msra.mxu0 %v315
    %5052 = vmatpush.msra.mxu0 %v311
    %5053 = vmatpush.msra.mxu0 %v307
    %5054 = vmatpush.msra.mxu0 %v303
    %5055 = vmatpush.msra.mxu0 %v299
    %5056 = vmatpush.msra.mxu0 %v295
    %5057 = vmatpush.msra.mxu0 %v291
    %5058 = vmatpush.msra.mxu0 %v287
    %5059 = vmatpush.msra.mxu0 %v283
    %5060 = vmatpush.msra.mxu0 %v279
    %5061 = vmatpush.msra.mxu0 %v275
    %5062 = vmatpush.msra.mxu0 %v271
    %5063 = vmatmul.f32.gmra.mxu0 %v4390
    %v5064 = vpop.f32.mrf.mxu0
    %v5065 = vadd.f32 0.0, %v5064
    %5066 = vdwg.mxu0
    %5067 = vmatpush.msra.mxu0 %v332
    %5068 = vmatpush.msra.mxu0 %v328
    %5069 = vmatpush.msra.mxu0 %v324
    %5070 = vmatpush.msra.mxu0 %v320
    %5071 = vmatpush.msra.mxu0 %v316
    %5072 = vmatpush.msra.mxu0 %v312
    %5073 = vmatpush.msra.mxu0 %v308
    %5074 = vmatpush.msra.mxu0 %v304
    %5075 = vmatpush.msra.mxu0 %v300
    %5076 = vmatpush.msra.mxu0 %v296
    %5077 = vmatpush.msra.mxu0 %v292
    %5078 = vmatpush.msra.mxu0 %v288
    %5079 = vmatpush.msra.mxu0 %v284
    %5080 = vmatpush.msra.mxu0 %v280
    %5081 = vmatpush.msra.mxu0 %v276
    %5082 = vmatpush.msra.mxu0 %v272
    %5083 = vmatmul.f32.gmra.mxu0 %v4390
    %v5084 = vpop.f32.mrf.mxu0
    %v5085 = vadd.f32 0.0, %v5084
    %5086 = vdwg.mxu0
    %v5089 = vrot.slane %v5006, 7
    %v5090 = vsel %vm804, %v5089, %v5005
    %v5091 = vsel %vm806, %v5090, 0
    %5093 = vmatpush.msra.mxu0 0.0
    %5094 = vmatpush.msra.mxu0 0.0
    %5095 = vmatpush.msra.mxu0 0.0
    %5096 = vmatpush.msra.mxu0 0.0
    %5097 = vmatpush.msra.mxu0 0.0
    %5098 = vmatpush.msra.mxu0 0.0
    %5099 = vmatpush.msra.mxu0 0.0
    %5100 = vmatpush.msra.mxu0 0.0
    %5101 = vmatpush.msra.mxu0 %v811
    %5102 = vmatpush.msra.mxu0 %v261
    %5103 = vmatpush.msra.mxu0 %v257
    %5104 = vmatpush.msra.mxu0 %v253
    %5105 = vmatpush.msra.mxu0 %v249
    %5106 = vmatpush.msra.mxu0 %v245
    %5107 = vmatpush.msra.mxu0 %v241
    %5108 = vmatpush.msra.mxu0 %v237
    %5109 = vmatmul.f32.gmra.mxu0 %v5091
    %v5110 = vpop.f32.mrf.mxu0
    %v5111 = vadd.f32 %v5025, %v5110
    %5112 = vdwg.mxu0
    %5113 = vmatpush.msra.mxu0 0.0
    %5114 = vmatpush.msra.mxu0 0.0
    %5115 = vmatpush.msra.mxu0 0.0
    %5116 = vmatpush.msra.mxu0 0.0
    %5117 = vmatpush.msra.mxu0 0.0
    %5118 = vmatpush.msra.mxu0 0.0
    %5119 = vmatpush.msra.mxu0 0.0
    %5120 = vmatpush.msra.mxu0 0.0
    %5121 = vmatpush.msra.mxu0 %v814
    %5122 = vmatpush.msra.mxu0 %v262
    %5123 = vmatpush.msra.mxu0 %v258
    %5124 = vmatpush.msra.mxu0 %v254
    %5125 = vmatpush.msra.mxu0 %v250
    %5126 = vmatpush.msra.mxu0 %v246
    %5127 = vmatpush.msra.mxu0 %v242
    %5128 = vmatpush.msra.mxu0 %v238
    %5129 = vmatmul.f32.gmra.mxu0 %v5091
    %v5130 = vpop.f32.mrf.mxu0
    %v5131 = vadd.f32 %v5045, %v5130
    %5132 = vdwg.mxu0
    %5133 = vmatpush.msra.mxu0 0.0
    %5134 = vmatpush.msra.mxu0 0.0
    %5135 = vmatpush.msra.mxu0 0.0
    %5136 = vmatpush.msra.mxu0 0.0
    %5137 = vmatpush.msra.mxu0 0.0
    %5138 = vmatpush.msra.mxu0 0.0
    %5139 = vmatpush.msra.mxu0 0.0
    %5140 = vmatpush.msra.mxu0 0.0
    %5141 = vmatpush.msra.mxu0 %v817
    %5142 = vmatpush.msra.mxu0 %v263
    %5143 = vmatpush.msra.mxu0 %v259
    %5144 = vmatpush.msra.mxu0 %v255
    %5145 = vmatpush.msra.mxu0 %v251
    %5146 = vmatpush.msra.mxu0 %v247
    %5147 = vmatpush.msra.mxu0 %v243
    %5148 = vmatpush.msra.mxu0 %v239
    %5149 = vmatmul.f32.gmra.mxu0 %v5091
    %v5150 = vpop.f32.mrf.mxu0
    %v5151 = vadd.f32 %v5065, %v5150
    %5152 = vdwg.mxu0
    %5153 = vmatpush.msra.mxu0 0.0
    %5154 = vmatpush.msra.mxu0 0.0
    %5155 = vmatpush.msra.mxu0 0.0
    %5156 = vmatpush.msra.mxu0 0.0
    %5157 = vmatpush.msra.mxu0 0.0
    %5158 = vmatpush.msra.mxu0 0.0
    %5159 = vmatpush.msra.mxu0 0.0
    %5160 = vmatpush.msra.mxu0 0.0
    %5161 = vmatpush.msra.mxu0 %v820
    %5162 = vmatpush.msra.mxu0 %v264
    %5163 = vmatpush.msra.mxu0 %v260
    %5164 = vmatpush.msra.mxu0 %v256
    %5165 = vmatpush.msra.mxu0 %v252
    %5166 = vmatpush.msra.mxu0 %v248
    %5167 = vmatpush.msra.mxu0 %v244
    %5168 = vmatpush.msra.mxu0 %v240
    %5169 = vmatmul.f32.gmra.mxu0 %v5091
    %v5170 = vpop.f32.mrf.mxu0
    %v5171 = vadd.f32 %v5085, %v5170
    %5172 = vdwg.mxu0
    %v5173 = vadd.f32 %v5111, %v903
    %v5174 = vadd.f32 %v5131, %v904
    %v5175 = vadd.f32 %v5151, %v905
    %v5176 = vadd.f32 %v5171, %v906
    %v5177 = vxor.u32 %v5173, 2147483648
    %v5178 = vxor.u32 %v5174, 2147483648
    %v5179 = vxor.u32 %v5175, 2147483648
    %v5180 = vmul.f32 %v5177, 1.442695
    %v5181 = vpow.pop %v5180
    %v5182 = vmul.f32 %v5178, 1.442695
    %v5183 = vpow.pop %v5182
    %v5184 = vmul.f32 %v5179, 1.442695
    %v5185 = vpow.pop %v5184
    %v5186 = vadd.f32 %v5181, 1.0
    %v5187 = vadd.f32 %v5183, 1.0
    %v5188 = vadd.f32 %v5185, 1.0
    %v5189 = vrcp.pop %v5186
    %v5190 = vmul.f32 %v5186, %v5189
    %v5191 = vsub.f32 1.0, %v5190
    %v5192 = vmul.f32 %v5189, %v5191
    %v5193 = vadd.f32 %v5189, %v5192
    %vm5194 = vweird.f32 %v5186
    %vm5195 = vweird.f32 %v5189
    %vm5196 = vmor %vm5194, %vm5195
    %v5197 = vsel %vm5196, %v5189, %v5193
    %v5198 = vand.u32 2147483647, %v5186
    %vm5199 = vcmp.eq.f32.partialorder %v5198, 8.507059e+37
    %v5200 = vand.u32 %v5186, 2147483648
    %v5201 = vor.u32 1.1754944e-38, %v5200
    %v5202 = vsel %vm5199, %v5201, %v5197
    %v5203 = vmul.f32 1.0, %v5202
    %v5204 = vrcp.pop %v5187
    %v5205 = vmul.f32 %v5187, %v5204
    %v5206 = vsub.f32 1.0, %v5205
    %v5207 = vmul.f32 %v5204, %v5206
    %v5208 = vadd.f32 %v5204, %v5207
    %vm5209 = vweird.f32 %v5187
    %vm5210 = vweird.f32 %v5204
    %vm5211 = vmor %vm5209, %vm5210
    %v5212 = vsel %vm5211, %v5204, %v5208
    %v5213 = vand.u32 2147483647, %v5187
    %vm5214 = vcmp.eq.f32.partialorder %v5213, 8.507059e+37
    %v5215 = vand.u32 %v5187, 2147483648
    %v5216 = vor.u32 1.1754944e-38, %v5215
    %v5217 = vsel %vm5214, %v5216, %v5212
    %v5218 = vmul.f32 1.0, %v5217
    %v5219 = vrcp.pop %v5188
    %v5220 = vmul.f32 %v5188, %v5219
    %v5221 = vsub.f32 1.0, %v5220
    %v5222 = vmul.f32 %v5219, %v5221
    %v5223 = vadd.f32 %v5219, %v5222
    %vm5224 = vweird.f32 %v5188
    %vm5225 = vweird.f32 %v5219
    %vm5226 = vmor %vm5224, %vm5225
    %v5227 = vsel %vm5226, %v5219, %v5223
    %v5228 = vand.u32 2147483647, %v5188
    %vm5229 = vcmp.eq.f32.partialorder %v5228, 8.507059e+37
    %v5230 = vand.u32 %v5188, 2147483648
    %v5231 = vor.u32 1.1754944e-38, %v5230
    %v5232 = vsel %vm5229, %v5231, %v5227
    %v5233 = vmul.f32 1.0, %v5232
    %v5234 = vtanh.pop %v5176
    %v5235 = vmul.f32 %v5218, %v4388
    %v5236 = vmul.f32 %v5203, %v5234
    %v5237 = vadd.f32 %v5235, %v5236
    %v5238 = vtanh.pop %v5237
    %v5239 = vmul.f32 %v5233, %v5238
    %5240 = vmatpush.msra.mxu0 %v582
    %5241 = vmatpush.msra.mxu0 %v574
    %5242 = vmatpush.msra.mxu0 %v566
    %5243 = vmatpush.msra.mxu0 %v558
    %5244 = vmatpush.msra.mxu0 %v550
    %5245 = vmatpush.msra.mxu0 %v542
    %5246 = vmatpush.msra.mxu0 %v534
    %5247 = vmatpush.msra.mxu0 %v526
    %5248 = vmatpush.msra.mxu0 %v518
    %5249 = vmatpush.msra.mxu0 %v510
    %5250 = vmatpush.msra.mxu0 %v502
    %5251 = vmatpush.msra.mxu0 %v494
    %5252 = vmatpush.msra.mxu0 %v486
    %5253 = vmatpush.msra.mxu0 %v478
    %5254 = vmatpush.msra.mxu0 %v470
    %5255 = vmatpush.msra.mxu0 %v462
    %5256 = vmatmul.f32.gmra.mxu0 %v5003
    %v5257 = vpop.f32.mrf.mxu0
    %v5258 = vadd.f32 0.0, %v5257
    %5259 = vdwg.mxu0
    %5260 = vmatpush.msra.mxu0 %v710
    %5261 = vmatpush.msra.mxu0 %v702
    %5262 = vmatpush.msra.mxu0 %v694
    %5263 = vmatpush.msra.mxu0 %v686
    %5264 = vmatpush.msra.mxu0 %v678
    %5265 = vmatpush.msra.mxu0 %v670
    %5266 = vmatpush.msra.mxu0 %v662
    %5267 = vmatpush.msra.mxu0 %v654
    %5268 = vmatpush.msra.mxu0 %v646
    %5269 = vmatpush.msra.mxu0 %v638
    %5270 = vmatpush.msra.mxu0 %v630
    %5271 = vmatpush.msra.mxu0 %v622
    %5272 = vmatpush.msra.mxu0 %v614
    %5273 = vmatpush.msra.mxu0 %v606
    %5274 = vmatpush.msra.mxu0 %v598
    %5275 = vmatpush.msra.mxu0 %v590
    %5276 = vmatmul.f32.gmra.mxu0 %v5004
    %v5277 = vpop.f32.mrf.mxu0
    %v5278 = vadd.f32 %v5258, %v5277
    %5279 = vdwg.mxu0
    %5280 = vmatpush.msra.mxu0 %v583
    %5281 = vmatpush.msra.mxu0 %v575
    %5282 = vmatpush.msra.mxu0 %v567
    %5283 = vmatpush.msra.mxu0 %v559
    %5284 = vmatpush.msra.mxu0 %v551
    %5285 = vmatpush.msra.mxu0 %v543
    %5286 = vmatpush.msra.mxu0 %v535
    %5287 = vmatpush.msra.mxu0 %v527
    %5288 = vmatpush.msra.mxu0 %v519
    %5289 = vmatpush.msra.mxu0 %v511
    %5290 = vmatpush.msra.mxu0 %v503
    %5291 = vmatpush.msra.mxu0 %v495
    %5292 = vmatpush.msra.mxu0 %v487
    %5293 = vmatpush.msra.mxu0 %v479
    %5294 = vmatpush.msra.mxu0 %v471
    %5295 = vmatpush.msra.mxu0 %v463
    %5296 = vmatmul.f32.gmra.mxu0 %v5003
    %v5297 = vpop.f32.mrf.mxu0
    %v5298 = vadd.f32 0.0, %v5297
    %5299 = vdwg.mxu0
    %5300 = vmatpush.msra.mxu0 %v711
    %5301 = vmatpush.msra.mxu0 %v703
    %5302 = vmatpush.msra.mxu0 %v695
    %5303 = vmatpush.msra.mxu0 %v687
    %5304 = vmatpush.msra.mxu0 %v679
    %5305 = vmatpush.msra.mxu0 %v671
    %5306 = vmatpush.msra.mxu0 %v663
    %5307 = vmatpush.msra.mxu0 %v655
    %5308 = vmatpush.msra.mxu0 %v647
    %5309 = vmatpush.msra.mxu0 %v639
    %5310 = vmatpush.msra.mxu0 %v631
    %5311 = vmatpush.msra.mxu0 %v623
    %5312 = vmatpush.msra.mxu0 %v615
    %5313 = vmatpush.msra.mxu0 %v607
    %5314 = vmatpush.msra.mxu0 %v599
    %5315 = vmatpush.msra.mxu0 %v591
    %5316 = vmatmul.f32.gmra.mxu0 %v5004
    %v5317 = vpop.f32.mrf.mxu0
    %v5318 = vadd.f32 %v5298, %v5317
    %5319 = vdwg.mxu0
    %5320 = vmatpush.msra.mxu0 %v584
    %5321 = vmatpush.msra.mxu0 %v576
    %5322 = vmatpush.msra.mxu0 %v568
    %5323 = vmatpush.msra.mxu0 %v560
    %5324 = vmatpush.msra.mxu0 %v552
    %5325 = vmatpush.msra.mxu0 %v544
    %5326 = vmatpush.msra.mxu0 %v536
    %5327 = vmatpush.msra.mxu0 %v528
    %5328 = vmatpush.msra.mxu0 %v520
    %5329 = vmatpush.msra.mxu0 %v512
    %5330 = vmatpush.msra.mxu0 %v504
    %5331 = vmatpush.msra.mxu0 %v496
    %5332 = vmatpush.msra.mxu0 %v488
    %5333 = vmatpush.msra.mxu0 %v480
    %5334 = vmatpush.msra.mxu0 %v472
    %5335 = vmatpush.msra.mxu0 %v464
    %5336 = vmatmul.f32.gmra.mxu0 %v5003
    %v5337 = vpop.f32.mrf.mxu0
    %v5338 = vadd.f32 0.0, %v5337
    %5339 = vdwg.mxu0
    %5340 = vmatpush.msra.mxu0 %v712
    %5341 = vmatpush.msra.mxu0 %v704
    %5342 = vmatpush.msra.mxu0 %v696
    %5343 = vmatpush.msra.mxu0 %v688
    %5344 = vmatpush.msra.mxu0 %v680
    %5345 = vmatpush.msra.mxu0 %v672
    %5346 = vmatpush.msra.mxu0 %v664
    %5347 = vmatpush.msra.mxu0 %v656
    %5348 = vmatpush.msra.mxu0 %v648
    %5349 = vmatpush.msra.mxu0 %v640
    %5350 = vmatpush.msra.mxu0 %v632
    %5351 = vmatpush.msra.mxu0 %v624
    %5352 = vmatpush.msra.mxu0 %v616
    %5353 = vmatpush.msra.mxu0 %v608
    %5354 = vmatpush.msra.mxu0 %v600
    %5355 = vmatpush.msra.mxu0 %v592
    %5356 = vmatmul.f32.gmra.mxu0 %v5004
    %v5357 = vpop.f32.mrf.mxu0
    %v5358 = vadd.f32 %v5338, %v5357
    %5359 = vdwg.mxu0
    %5360 = vmatpush.msra.mxu0 %v585
    %5361 = vmatpush.msra.mxu0 %v577
    %5362 = vmatpush.msra.mxu0 %v569
    %5363 = vmatpush.msra.mxu0 %v561
    %5364 = vmatpush.msra.mxu0 %v553
    %5365 = vmatpush.msra.mxu0 %v545
    %5366 = vmatpush.msra.mxu0 %v537
    %5367 = vmatpush.msra.mxu0 %v529
    %5368 = vmatpush.msra.mxu0 %v521
    %5369 = vmatpush.msra.mxu0 %v513
    %5370 = vmatpush.msra.mxu0 %v505
    %5371 = vmatpush.msra.mxu0 %v497
    %5372 = vmatpush.msra.mxu0 %v489
    %5373 = vmatpush.msra.mxu0 %v481
    %5374 = vmatpush.msra.mxu0 %v473
    %5375 = vmatpush.msra.mxu0 %v465
    %5376 = vmatmul.f32.gmra.mxu0 %v5003
    %v5377 = vpop.f32.mrf.mxu0
    %v5378 = vadd.f32 0.0, %v5377
    %5379 = vdwg.mxu0
    %5380 = vmatpush.msra.mxu0 %v713
    %5381 = vmatpush.msra.mxu0 %v705
    %5382 = vmatpush.msra.mxu0 %v697
    %5383 = vmatpush.msra.mxu0 %v689
    %5384 = vmatpush.msra.mxu0 %v681
    %5385 = vmatpush.msra.mxu0 %v673
    %5386 = vmatpush.msra.mxu0 %v665
    %5387 = vmatpush.msra.mxu0 %v657
    %5388 = vmatpush.msra.mxu0 %v649
    %5389 = vmatpush.msra.mxu0 %v641
    %5390 = vmatpush.msra.mxu0 %v633
    %5391 = vmatpush.msra.mxu0 %v625
    %5392 = vmatpush.msra.mxu0 %v617
    %5393 = vmatpush.msra.mxu0 %v609
    %5394 = vmatpush.msra.mxu0 %v601
    %5395 = vmatpush.msra.mxu0 %v593
    %5396 = vmatmul.f32.gmra.mxu0 %v5004
    %v5397 = vpop.f32.mrf.mxu0
    %v5398 = vadd.f32 %v5378, %v5397
    %5399 = vdwg.mxu0
    %5400 = vmatpush.msra.mxu0 %v586
    %5401 = vmatpush.msra.mxu0 %v578
    %5402 = vmatpush.msra.mxu0 %v570
    %5403 = vmatpush.msra.mxu0 %v562
    %5404 = vmatpush.msra.mxu0 %v554
    %5405 = vmatpush.msra.mxu0 %v546
    %5406 = vmatpush.msra.mxu0 %v538
    %5407 = vmatpush.msra.mxu0 %v530
    %5408 = vmatpush.msra.mxu0 %v522
    %5409 = vmatpush.msra.mxu0 %v514
    %5410 = vmatpush.msra.mxu0 %v506
    %5411 = vmatpush.msra.mxu0 %v498
    %5412 = vmatpush.msra.mxu0 %v490
    %5413 = vmatpush.msra.mxu0 %v482
    %5414 = vmatpush.msra.mxu0 %v474
    %5415 = vmatpush.msra.mxu0 %v466
    %5416 = vmatmul.f32.gmra.mxu0 %v5003
    %v5417 = vpop.f32.mrf.mxu0
    %v5418 = vadd.f32 0.0, %v5417
    %5419 = vdwg.mxu0
    %5420 = vmatpush.msra.mxu0 %v714
    %5421 = vmatpush.msra.mxu0 %v706
    %5422 = vmatpush.msra.mxu0 %v698
    %5423 = vmatpush.msra.mxu0 %v690
    %5424 = vmatpush.msra.mxu0 %v682
    %5425 = vmatpush.msra.mxu0 %v674
    %5426 = vmatpush.msra.mxu0 %v666
    %5427 = vmatpush.msra.mxu0 %v658
    %5428 = vmatpush.msra.mxu0 %v650
    %5429 = vmatpush.msra.mxu0 %v642
    %5430 = vmatpush.msra.mxu0 %v634
    %5431 = vmatpush.msra.mxu0 %v626
    %5432 = vmatpush.msra.mxu0 %v618
    %5433 = vmatpush.msra.mxu0 %v610
    %5434 = vmatpush.msra.mxu0 %v602
    %5435 = vmatpush.msra.mxu0 %v594
    %5436 = vmatmul.f32.gmra.mxu0 %v5004
    %v5437 = vpop.f32.mrf.mxu0
    %v5438 = vadd.f32 %v5418, %v5437
    %5439 = vdwg.mxu0
    %5440 = vmatpush.msra.mxu0 %v587
    %5441 = vmatpush.msra.mxu0 %v579
    %5442 = vmatpush.msra.mxu0 %v571
    %5443 = vmatpush.msra.mxu0 %v563
    %5444 = vmatpush.msra.mxu0 %v555
    %5445 = vmatpush.msra.mxu0 %v547
    %5446 = vmatpush.msra.mxu0 %v539
    %5447 = vmatpush.msra.mxu0 %v531
    %5448 = vmatpush.msra.mxu0 %v523
    %5449 = vmatpush.msra.mxu0 %v515
    %5450 = vmatpush.msra.mxu0 %v507
    %5451 = vmatpush.msra.mxu0 %v499
    %5452 = vmatpush.msra.mxu0 %v491
    %5453 = vmatpush.msra.mxu0 %v483
    %5454 = vmatpush.msra.mxu0 %v475
    %5455 = vmatpush.msra.mxu0 %v467
    %5456 = vmatmul.f32.gmra.mxu0 %v5003
    %v5457 = vpop.f32.mrf.mxu0
    %v5458 = vadd.f32 0.0, %v5457
    %5459 = vdwg.mxu0
    %5460 = vmatpush.msra.mxu0 %v715
    %5461 = vmatpush.msra.mxu0 %v707
    %5462 = vmatpush.msra.mxu0 %v699
    %5463 = vmatpush.msra.mxu0 %v691
    %5464 = vmatpush.msra.mxu0 %v683
    %5465 = vmatpush.msra.mxu0 %v675
    %5466 = vmatpush.msra.mxu0 %v667
    %5467 = vmatpush.msra.mxu0 %v659
    %5468 = vmatpush.msra.mxu0 %v651
    %5469 = vmatpush.msra.mxu0 %v643
    %5470 = vmatpush.msra.mxu0 %v635
    %5471 = vmatpush.msra.mxu0 %v627
    %5472 = vmatpush.msra.mxu0 %v619
    %5473 = vmatpush.msra.mxu0 %v611
    %5474 = vmatpush.msra.mxu0 %v603
    %5475 = vmatpush.msra.mxu0 %v595
    %5476 = vmatmul.f32.gmra.mxu0 %v5004
    %v5477 = vpop.f32.mrf.mxu0
    %v5478 = vadd.f32 %v5458, %v5477
    %5479 = vdwg.mxu0
    %5480 = vmatpush.msra.mxu0 %v588
    %5481 = vmatpush.msra.mxu0 %v580
    %5482 = vmatpush.msra.mxu0 %v572
    %5483 = vmatpush.msra.mxu0 %v564
    %5484 = vmatpush.msra.mxu0 %v556
    %5485 = vmatpush.msra.mxu0 %v548
    %5486 = vmatpush.msra.mxu0 %v540
    %5487 = vmatpush.msra.mxu0 %v532
    %5488 = vmatpush.msra.mxu0 %v524
    %5489 = vmatpush.msra.mxu0 %v516
    %5490 = vmatpush.msra.mxu0 %v508
    %5491 = vmatpush.msra.mxu0 %v500
    %5492 = vmatpush.msra.mxu0 %v492
    %5493 = vmatpush.msra.mxu0 %v484
    %5494 = vmatpush.msra.mxu0 %v476
    %5495 = vmatpush.msra.mxu0 %v468
    %5496 = vmatmul.f32.gmra.mxu0 %v5003
    %v5497 = vpop.f32.mrf.mxu0
    %v5498 = vadd.f32 0.0, %v5497
    %5499 = vdwg.mxu0
    %5500 = vmatpush.msra.mxu0 %v716
    %5501 = vmatpush.msra.mxu0 %v708
    %5502 = vmatpush.msra.mxu0 %v700
    %5503 = vmatpush.msra.mxu0 %v692
    %5504 = vmatpush.msra.mxu0 %v684
    %5505 = vmatpush.msra.mxu0 %v676
    %5506 = vmatpush.msra.mxu0 %v668
    %5507 = vmatpush.msra.mxu0 %v660
    %5508 = vmatpush.msra.mxu0 %v652
    %5509 = vmatpush.msra.mxu0 %v644
    %5510 = vmatpush.msra.mxu0 %v636
    %5511 = vmatpush.msra.mxu0 %v628
    %5512 = vmatpush.msra.mxu0 %v620
    %5513 = vmatpush.msra.mxu0 %v612
    %5514 = vmatpush.msra.mxu0 %v604
    %5515 = vmatpush.msra.mxu0 %v596
    %5516 = vmatmul.f32.gmra.mxu0 %v5004
    %v5517 = vpop.f32.mrf.mxu0
    %v5518 = vadd.f32 %v5498, %v5517
    %5519 = vdwg.mxu0
    %5520 = vmatpush.msra.mxu0 %v589
    %5521 = vmatpush.msra.mxu0 %v581
    %5522 = vmatpush.msra.mxu0 %v573
    %5523 = vmatpush.msra.mxu0 %v565
    %5524 = vmatpush.msra.mxu0 %v557
    %5525 = vmatpush.msra.mxu0 %v549
    %5526 = vmatpush.msra.mxu0 %v541
    %5527 = vmatpush.msra.mxu0 %v533
    %5528 = vmatpush.msra.mxu0 %v525
    %5529 = vmatpush.msra.mxu0 %v517
    %5530 = vmatpush.msra.mxu0 %v509
    %5531 = vmatpush.msra.mxu0 %v501
    %5532 = vmatpush.msra.mxu0 %v493
    %5533 = vmatpush.msra.mxu0 %v485
    %5534 = vmatpush.msra.mxu0 %v477
    %5535 = vmatpush.msra.mxu0 %v469
    %5536 = vmatmul.f32.gmra.mxu0 %v5003
    %v5537 = vpop.f32.mrf.mxu0
    %v5538 = vadd.f32 0.0, %v5537
    %5539 = vdwg.mxu0
    %5540 = vmatpush.msra.mxu0 %v717
    %5541 = vmatpush.msra.mxu0 %v709
    %5542 = vmatpush.msra.mxu0 %v701
    %5543 = vmatpush.msra.mxu0 %v693
    %5544 = vmatpush.msra.mxu0 %v685
    %5545 = vmatpush.msra.mxu0 %v677
    %5546 = vmatpush.msra.mxu0 %v669
    %5547 = vmatpush.msra.mxu0 %v661
    %5548 = vmatpush.msra.mxu0 %v653
    %5549 = vmatpush.msra.mxu0 %v645
    %5550 = vmatpush.msra.mxu0 %v637
    %5551 = vmatpush.msra.mxu0 %v629
    %5552 = vmatpush.msra.mxu0 %v621
    %5553 = vmatpush.msra.mxu0 %v613
    %5554 = vmatpush.msra.mxu0 %v605
    %5555 = vmatpush.msra.mxu0 %v597
    %5556 = vmatmul.f32.gmra.mxu0 %v5004
    %v5557 = vpop.f32.mrf.mxu0
    %v5558 = vadd.f32 %v5538, %v5557
    %5559 = vdwg.mxu0
    %5560 = vmatpush.msra.mxu0 %v454
    %5561 = vmatpush.msra.mxu0 %v446
    %5562 = vmatpush.msra.mxu0 %v438
    %5563 = vmatpush.msra.mxu0 %v430
    %5564 = vmatpush.msra.mxu0 %v422
    %5565 = vmatpush.msra.mxu0 %v414
    %5566 = vmatpush.msra.mxu0 %v406
    %5567 = vmatpush.msra.mxu0 %v398
    %5568 = vmatpush.msra.mxu0 %v390
    %5569 = vmatpush.msra.mxu0 %v382
    %5570 = vmatpush.msra.mxu0 %v374
    %5571 = vmatpush.msra.mxu0 %v366
    %5572 = vmatpush.msra.mxu0 %v358
    %5573 = vmatpush.msra.mxu0 %v350
    %5574 = vmatpush.msra.mxu0 %v342
    %5575 = vmatpush.msra.mxu0 %v334
    %5576 = vmatmul.f32.gmra.mxu0 %v5239
    %v5577 = vpop.f32.mrf.mxu0
    %v5578 = vadd.f32 %v5278, %v5577
    %5579 = vdwg.mxu0
    %5580 = vmatpush.msra.mxu0 %v455
    %5581 = vmatpush.msra.mxu0 %v447
    %5582 = vmatpush.msra.mxu0 %v439
    %5583 = vmatpush.msra.mxu0 %v431
    %5584 = vmatpush.msra.mxu0 %v423
    %5585 = vmatpush.msra.mxu0 %v415
    %5586 = vmatpush.msra.mxu0 %v407
    %5587 = vmatpush.msra.mxu0 %v399
    %5588 = vmatpush.msra.mxu0 %v391
    %5589 = vmatpush.msra.mxu0 %v383
    %5590 = vmatpush.msra.mxu0 %v375
    %5591 = vmatpush.msra.mxu0 %v367
    %5592 = vmatpush.msra.mxu0 %v359
    %5593 = vmatpush.msra.mxu0 %v351
    %5594 = vmatpush.msra.mxu0 %v343
    %5595 = vmatpush.msra.mxu0 %v335
    %5596 = vmatmul.f32.gmra.mxu0 %v5239
    %v5597 = vpop.f32.mrf.mxu0
    %v5598 = vadd.f32 %v5318, %v5597
    %5599 = vdwg.mxu0
    %5600 = vmatpush.msra.mxu0 %v456
    %5601 = vmatpush.msra.mxu0 %v448
    %5602 = vmatpush.msra.mxu0 %v440
    %5603 = vmatpush.msra.mxu0 %v432
    %5604 = vmatpush.msra.mxu0 %v424
    %5605 = vmatpush.msra.mxu0 %v416
    %5606 = vmatpush.msra.mxu0 %v408
    %5607 = vmatpush.msra.mxu0 %v400
    %5608 = vmatpush.msra.mxu0 %v392
    %5609 = vmatpush.msra.mxu0 %v384
    %5610 = vmatpush.msra.mxu0 %v376
    %5611 = vmatpush.msra.mxu0 %v368
    %5612 = vmatpush.msra.mxu0 %v360
    %5613 = vmatpush.msra.mxu0 %v352
    %5614 = vmatpush.msra.mxu0 %v344
    %5615 = vmatpush.msra.mxu0 %v336
    %5616 = vmatmul.f32.gmra.mxu0 %v5239
    %v5617 = vpop.f32.mrf.mxu0
    %v5618 = vadd.f32 %v5358, %v5617
    %5619 = vdwg.mxu0
    %5620 = vmatpush.msra.mxu0 %v457
    %5621 = vmatpush.msra.mxu0 %v449
    %5622 = vmatpush.msra.mxu0 %v441
    %5623 = vmatpush.msra.mxu0 %v433
    %5624 = vmatpush.msra.mxu0 %v425
    %5625 = vmatpush.msra.mxu0 %v417
    %5626 = vmatpush.msra.mxu0 %v409
    %5627 = vmatpush.msra.mxu0 %v401
    %5628 = vmatpush.msra.mxu0 %v393
    %5629 = vmatpush.msra.mxu0 %v385
    %5630 = vmatpush.msra.mxu0 %v377
    %5631 = vmatpush.msra.mxu0 %v369
    %5632 = vmatpush.msra.mxu0 %v361
    %5633 = vmatpush.msra.mxu0 %v353
    %5634 = vmatpush.msra.mxu0 %v345
    %5635 = vmatpush.msra.mxu0 %v337
    %5636 = vmatmul.f32.gmra.mxu0 %v5239
    %v5637 = vpop.f32.mrf.mxu0
    %v5638 = vadd.f32 %v5398, %v5637
    %5639 = vdwg.mxu0
    %5640 = vmatpush.msra.mxu0 %v458
    %5641 = vmatpush.msra.mxu0 %v450
    %5642 = vmatpush.msra.mxu0 %v442
    %5643 = vmatpush.msra.mxu0 %v434
    %5644 = vmatpush.msra.mxu0 %v426
    %5645 = vmatpush.msra.mxu0 %v418
    %5646 = vmatpush.msra.mxu0 %v410
    %5647 = vmatpush.msra.mxu0 %v402
    %5648 = vmatpush.msra.mxu0 %v394
    %5649 = vmatpush.msra.mxu0 %v386
    %5650 = vmatpush.msra.mxu0 %v378
    %5651 = vmatpush.msra.mxu0 %v370
    %5652 = vmatpush.msra.mxu0 %v362
    %5653 = vmatpush.msra.mxu0 %v354
    %5654 = vmatpush.msra.mxu0 %v346
    %5655 = vmatpush.msra.mxu0 %v338
    %5656 = vmatmul.f32.gmra.mxu0 %v5239
    %v5657 = vpop.f32.mrf.mxu0
    %v5658 = vadd.f32 %v5438, %v5657
    %5659 = vdwg.mxu0
    %5660 = vmatpush.msra.mxu0 %v459
    %5661 = vmatpush.msra.mxu0 %v451
    %5662 = vmatpush.msra.mxu0 %v443
    %5663 = vmatpush.msra.mxu0 %v435
    %5664 = vmatpush.msra.mxu0 %v427
    %5665 = vmatpush.msra.mxu0 %v419
    %5666 = vmatpush.msra.mxu0 %v411
    %5667 = vmatpush.msra.mxu0 %v403
    %5668 = vmatpush.msra.mxu0 %v395
    %5669 = vmatpush.msra.mxu0 %v387
    %5670 = vmatpush.msra.mxu0 %v379
    %5671 = vmatpush.msra.mxu0 %v371
    %5672 = vmatpush.msra.mxu0 %v363
    %5673 = vmatpush.msra.mxu0 %v355
    %5674 = vmatpush.msra.mxu0 %v347
    %5675 = vmatpush.msra.mxu0 %v339
    %5676 = vmatmul.f32.gmra.mxu0 %v5239
    %v5677 = vpop.f32.mrf.mxu0
    %v5678 = vadd.f32 %v5478, %v5677
    %5679 = vdwg.mxu0
    %5680 = vmatpush.msra.mxu0 %v460
    %5681 = vmatpush.msra.mxu0 %v452
    %5682 = vmatpush.msra.mxu0 %v444
    %5683 = vmatpush.msra.mxu0 %v436
    %5684 = vmatpush.msra.mxu0 %v428
    %5685 = vmatpush.msra.mxu0 %v420
    %5686 = vmatpush.msra.mxu0 %v412
    %5687 = vmatpush.msra.mxu0 %v404
    %5688 = vmatpush.msra.mxu0 %v396
    %5689 = vmatpush.msra.mxu0 %v388
    %5690 = vmatpush.msra.mxu0 %v380
    %5691 = vmatpush.msra.mxu0 %v372
    %5692 = vmatpush.msra.mxu0 %v364
    %5693 = vmatpush.msra.mxu0 %v356
    %5694 = vmatpush.msra.mxu0 %v348
    %5695 = vmatpush.msra.mxu0 %v340
    %5696 = vmatmul.f32.gmra.mxu0 %v5239
    %v5697 = vpop.f32.mrf.mxu0
    %v5698 = vadd.f32 %v5518, %v5697
    %5699 = vdwg.mxu0
    %5700 = vmatpush.msra.mxu0 %v461
    %5701 = vmatpush.msra.mxu0 %v453
    %5702 = vmatpush.msra.mxu0 %v445
    %5703 = vmatpush.msra.mxu0 %v437
    %5704 = vmatpush.msra.mxu0 %v429
    %5705 = vmatpush.msra.mxu0 %v421
    %5706 = vmatpush.msra.mxu0 %v413
    %5707 = vmatpush.msra.mxu0 %v405
    %5708 = vmatpush.msra.mxu0 %v397
    %5709 = vmatpush.msra.mxu0 %v389
    %5710 = vmatpush.msra.mxu0 %v381
    %5711 = vmatpush.msra.mxu0 %v373
    %5712 = vmatpush.msra.mxu0 %v365
    %5713 = vmatpush.msra.mxu0 %v357
    %5714 = vmatpush.msra.mxu0 %v349
    %5715 = vmatpush.msra.mxu0 %v341
    %5716 = vmatmul.f32.gmra.mxu0 %v5239
    %v5717 = vpop.f32.mrf.mxu0
    %v5718 = vadd.f32 %v5558, %v5717
    %5719 = vdwg.mxu0
    %v5720 = vadd.f32 %v5578, %v1459
    %v5721 = vadd.f32 %v5598, %v1460
    %v5722 = vadd.f32 %v5618, %v1461
    %v5723 = vadd.f32 %v5638, %v1462
    %v5724 = vadd.f32 %v5658, %v1463
    %v5725 = vadd.f32 %v5678, %v1464
    %v5726 = vadd.f32 %v5698, %v1465
    %v5727 = vadd.f32 %v5718, %v1466
    %v5728 = vxor.u32 %v5720, 2147483648
    %v5729 = vxor.u32 %v5721, 2147483648
    %v5730 = vxor.u32 %v5722, 2147483648
    %v5731 = vxor.u32 %v5723, 2147483648
    %v5732 = vxor.u32 %v5724, 2147483648
    %v5733 = vxor.u32 %v5725, 2147483648
    %v5734 = vmul.f32 %v5728, 1.442695
    %v5735 = vpow.pop %v5734
    %v5736 = vmul.f32 %v5729, 1.442695
    %v5737 = vpow.pop %v5736
    %v5738 = vmul.f32 %v5730, 1.442695
    %v5739 = vpow.pop %v5738
    %v5740 = vmul.f32 %v5731, 1.442695
    %v5741 = vpow.pop %v5740
    %v5742 = vmul.f32 %v5732, 1.442695
    %v5743 = vpow.pop %v5742
    %v5744 = vmul.f32 %v5733, 1.442695
    %v5745 = vpow.pop %v5744
    %v5746 = vadd.f32 %v5735, 1.0
    %v5747 = vadd.f32 %v5737, 1.0
    %v5748 = vadd.f32 %v5739, 1.0
    %v5749 = vadd.f32 %v5741, 1.0
    %v5750 = vadd.f32 %v5743, 1.0
    %v5751 = vadd.f32 %v5745, 1.0
    %v5752 = vrcp.pop %v5746
    %v5753 = vmul.f32 %v5746, %v5752
    %v5754 = vsub.f32 1.0, %v5753
    %v5755 = vmul.f32 %v5752, %v5754
    %v5756 = vadd.f32 %v5752, %v5755
    %vm5757 = vweird.f32 %v5746
    %vm5758 = vweird.f32 %v5752
    %vm5759 = vmor %vm5757, %vm5758
    %v5760 = vsel %vm5759, %v5752, %v5756
    %v5761 = vand.u32 2147483647, %v5746
    %vm5762 = vcmp.eq.f32.partialorder %v5761, 8.507059e+37
    %v5763 = vand.u32 %v5746, 2147483648
    %v5764 = vor.u32 1.1754944e-38, %v5763
    %v5765 = vsel %vm5762, %v5764, %v5760
    %v5766 = vmul.f32 1.0, %v5765
    %v5767 = vrcp.pop %v5747
    %v5768 = vmul.f32 %v5747, %v5767
    %v5769 = vsub.f32 1.0, %v5768
    %v5770 = vmul.f32 %v5767, %v5769
    %v5771 = vadd.f32 %v5767, %v5770
    %vm5772 = vweird.f32 %v5747
    %vm5773 = vweird.f32 %v5767
    %vm5774 = vmor %vm5772, %vm5773
    %v5775 = vsel %vm5774, %v5767, %v5771
    %v5776 = vand.u32 2147483647, %v5747
    %vm5777 = vcmp.eq.f32.partialorder %v5776, 8.507059e+37
    %v5778 = vand.u32 %v5747, 2147483648
    %v5779 = vor.u32 1.1754944e-38, %v5778
    %v5780 = vsel %vm5777, %v5779, %v5775
    %v5781 = vmul.f32 1.0, %v5780
    %v5782 = vrcp.pop %v5748
    %v5783 = vmul.f32 %v5748, %v5782
    %v5784 = vsub.f32 1.0, %v5783
    %v5785 = vmul.f32 %v5782, %v5784
    %v5786 = vadd.f32 %v5782, %v5785
    %vm5787 = vweird.f32 %v5748
    %vm5788 = vweird.f32 %v5782
    %vm5789 = vmor %vm5787, %vm5788
    %v5790 = vsel %vm5789, %v5782, %v5786
    %v5791 = vand.u32 2147483647, %v5748
    %vm5792 = vcmp.eq.f32.partialorder %v5791, 8.507059e+37
    %v5793 = vand.u32 %v5748, 2147483648
    %v5794 = vor.u32 1.1754944e-38, %v5793
    %v5795 = vsel %vm5792, %v5794, %v5790
    %v5796 = vmul.f32 1.0, %v5795
    %v5797 = vrcp.pop %v5749
    %v5798 = vmul.f32 %v5749, %v5797
    %v5799 = vsub.f32 1.0, %v5798
    %v5800 = vmul.f32 %v5797, %v5799
    %v5801 = vadd.f32 %v5797, %v5800
    %vm5802 = vweird.f32 %v5749
    %vm5803 = vweird.f32 %v5797
    %vm5804 = vmor %vm5802, %vm5803
    %v5805 = vsel %vm5804, %v5797, %v5801
    %v5806 = vand.u32 2147483647, %v5749
    %vm5807 = vcmp.eq.f32.partialorder %v5806, 8.507059e+37
    %v5808 = vand.u32 %v5749, 2147483648
    %v5809 = vor.u32 1.1754944e-38, %v5808
    %v5810 = vsel %vm5807, %v5809, %v5805
    %v5811 = vmul.f32 1.0, %v5810
    %v5812 = vrcp.pop %v5750
    %v5813 = vmul.f32 %v5750, %v5812
    %v5814 = vsub.f32 1.0, %v5813
    %v5815 = vmul.f32 %v5812, %v5814
    %v5816 = vadd.f32 %v5812, %v5815
    %vm5817 = vweird.f32 %v5750
    %vm5818 = vweird.f32 %v5812
    %vm5819 = vmor %vm5817, %vm5818
    %v5820 = vsel %vm5819, %v5812, %v5816
    %v5821 = vand.u32 2147483647, %v5750
    %vm5822 = vcmp.eq.f32.partialorder %v5821, 8.507059e+37
    %v5823 = vand.u32 %v5750, 2147483648
    %v5824 = vor.u32 1.1754944e-38, %v5823
    %v5825 = vsel %vm5822, %v5824, %v5820
    %v5826 = vmul.f32 1.0, %v5825
    %v5827 = vrcp.pop %v5751
    %v5828 = vmul.f32 %v5751, %v5827
    %v5829 = vsub.f32 1.0, %v5828
    %v5830 = vmul.f32 %v5827, %v5829
    %v5831 = vadd.f32 %v5827, %v5830
    %vm5832 = vweird.f32 %v5751
    %vm5833 = vweird.f32 %v5827
    %vm5834 = vmor %vm5832, %vm5833
    %v5835 = vsel %vm5834, %v5827, %v5831
    %v5836 = vand.u32 2147483647, %v5751
    %vm5837 = vcmp.eq.f32.partialorder %v5836, 8.507059e+37
    %v5838 = vand.u32 %v5751, 2147483648
    %v5839 = vor.u32 1.1754944e-38, %v5838
    %v5840 = vsel %vm5837, %v5839, %v5835
    %v5841 = vmul.f32 1.0, %v5840
    %v5842 = vtanh.pop %v5726
    %v5843 = vtanh.pop %v5727
    %v5844 = vmul.f32 %v5796, %v4999
    %v5845 = vmul.f32 %v5811, %v5000
    %v5846 = vmul.f32 %v5766, %v5842
    %v5847 = vmul.f32 %v5781, %v5843
    %v5848 = vadd.f32 %v5844, %v5846
    %v5849 = vadd.f32 %v5845, %v5847
    %v5850 = vtanh.pop %v5848
    %v5851 = vtanh.pop %v5849
    %v5852 = vmul.f32 %v5826, %v5850
    %v5853 = vmul.f32 %v5841, %v5851
    %v5854 = vld [vmem:[#allocation2 + $0x6] sm:$0x1]
    %v5855 = vld [vmem:[#allocation2 + $0xe] sm:$0x1]
    %5856 = vmatpush.msra.mxu0 %v329
    %5857 = vmatpush.msra.mxu0 %v325
    %5858 = vmatpush.msra.mxu0 %v321
    %5859 = vmatpush.msra.mxu0 %v317
    %5860 = vmatpush.msra.mxu0 %v313
    %5861 = vmatpush.msra.mxu0 %v309
    %5862 = vmatpush.msra.mxu0 %v305
    %5863 = vmatpush.msra.mxu0 %v301
    %5864 = vmatpush.msra.mxu0 %v297
    %5865 = vmatpush.msra.mxu0 %v293
    %5866 = vmatpush.msra.mxu0 %v289
    %5867 = vmatpush.msra.mxu0 %v285
    %5868 = vmatpush.msra.mxu0 %v281
    %5869 = vmatpush.msra.mxu0 %v277
    %5870 = vmatpush.msra.mxu0 %v273
    %5871 = vmatpush.msra.mxu0 %v269
    %5872 = vmatmul.f32.gmra.mxu0 %v5239
    %v5873 = vpop.f32.mrf.mxu0
    %v5874 = vadd.f32 0.0, %v5873
    %5875 = vdwg.mxu0
    %5876 = vmatpush.msra.mxu0 %v330
    %5877 = vmatpush.msra.mxu0 %v326
    %5878 = vmatpush.msra.mxu0 %v322
    %5879 = vmatpush.msra.mxu0 %v318
    %5880 = vmatpush.msra.mxu0 %v314
    %5881 = vmatpush.msra.mxu0 %v310
    %5882 = vmatpush.msra.mxu0 %v306
    %5883 = vmatpush.msra.mxu0 %v302
    %5884 = vmatpush.msra.mxu0 %v298
    %5885 = vmatpush.msra.mxu0 %v294
    %5886 = vmatpush.msra.mxu0 %v290
    %5887 = vmatpush.msra.mxu0 %v286
    %5888 = vmatpush.msra.mxu0 %v282
    %5889 = vmatpush.msra.mxu0 %v278
    %5890 = vmatpush.msra.mxu0 %v274
    %5891 = vmatpush.msra.mxu0 %v270
    %5892 = vmatmul.f32.gmra.mxu0 %v5239
    %v5893 = vpop.f32.mrf.mxu0
    %v5894 = vadd.f32 0.0, %v5893
    %5895 = vdwg.mxu0
    %5896 = vmatpush.msra.mxu0 %v331
    %5897 = vmatpush.msra.mxu0 %v327
    %5898 = vmatpush.msra.mxu0 %v323
    %5899 = vmatpush.msra.mxu0 %v319
    %5900 = vmatpush.msra.mxu0 %v315
    %5901 = vmatpush.msra.mxu0 %v311
    %5902 = vmatpush.msra.mxu0 %v307
    %5903 = vmatpush.msra.mxu0 %v303
    %5904 = vmatpush.msra.mxu0 %v299
    %5905 = vmatpush.msra.mxu0 %v295
    %5906 = vmatpush.msra.mxu0 %v291
    %5907 = vmatpush.msra.mxu0 %v287
    %5908 = vmatpush.msra.mxu0 %v283
    %5909 = vmatpush.msra.mxu0 %v279
    %5910 = vmatpush.msra.mxu0 %v275
    %5911 = vmatpush.msra.mxu0 %v271
    %5912 = vmatmul.f32.gmra.mxu0 %v5239
    %v5913 = vpop.f32.mrf.mxu0
    %v5914 = vadd.f32 0.0, %v5913
    %5915 = vdwg.mxu0
    %5916 = vmatpush.msra.mxu0 %v332
    %5917 = vmatpush.msra.mxu0 %v328
    %5918 = vmatpush.msra.mxu0 %v324
    %5919 = vmatpush.msra.mxu0 %v320
    %5920 = vmatpush.msra.mxu0 %v316
    %5921 = vmatpush.msra.mxu0 %v312
    %5922 = vmatpush.msra.mxu0 %v308
    %5923 = vmatpush.msra.mxu0 %v304
    %5924 = vmatpush.msra.mxu0 %v300
    %5925 = vmatpush.msra.mxu0 %v296
    %5926 = vmatpush.msra.mxu0 %v292
    %5927 = vmatpush.msra.mxu0 %v288
    %5928 = vmatpush.msra.mxu0 %v284
    %5929 = vmatpush.msra.mxu0 %v280
    %5930 = vmatpush.msra.mxu0 %v276
    %5931 = vmatpush.msra.mxu0 %v272
    %5932 = vmatmul.f32.gmra.mxu0 %v5239
    %v5933 = vpop.f32.mrf.mxu0
    %v5934 = vadd.f32 0.0, %v5933
    %5935 = vdwg.mxu0
    %v5938 = vrot.slane %v5855, 7
    %v5939 = vsel %vm804, %v5938, %v5854
    %v5940 = vsel %vm806, %v5939, 0
    %5942 = vmatpush.msra.mxu0 0.0
    %5943 = vmatpush.msra.mxu0 0.0
    %5944 = vmatpush.msra.mxu0 0.0
    %5945 = vmatpush.msra.mxu0 0.0
    %5946 = vmatpush.msra.mxu0 0.0
    %5947 = vmatpush.msra.mxu0 0.0
    %5948 = vmatpush.msra.mxu0 0.0
    %5949 = vmatpush.msra.mxu0 0.0
    %5950 = vmatpush.msra.mxu0 %v811
    %5951 = vmatpush.msra.mxu0 %v261
    %5952 = vmatpush.msra.mxu0 %v257
    %5953 = vmatpush.msra.mxu0 %v253
    %5954 = vmatpush.msra.mxu0 %v249
    %5955 = vmatpush.msra.mxu0 %v245
    %5956 = vmatpush.msra.mxu0 %v241
    %5957 = vmatpush.msra.mxu0 %v237
    %5958 = vmatmul.f32.gmra.mxu0 %v5940
    %v5959 = vpop.f32.mrf.mxu0
    %v5960 = vadd.f32 %v5874, %v5959
    %5961 = vdwg.mxu0
    %5962 = vmatpush.msra.mxu0 0.0
    %5963 = vmatpush.msra.mxu0 0.0
    %5964 = vmatpush.msra.mxu0 0.0
    %5965 = vmatpush.msra.mxu0 0.0
    %5966 = vmatpush.msra.mxu0 0.0
    %5967 = vmatpush.msra.mxu0 0.0
    %5968 = vmatpush.msra.mxu0 0.0
    %5969 = vmatpush.msra.mxu0 0.0
    %5970 = vmatpush.msra.mxu0 %v814
    %5971 = vmatpush.msra.mxu0 %v262
    %5972 = vmatpush.msra.mxu0 %v258
    %5973 = vmatpush.msra.mxu0 %v254
    %5974 = vmatpush.msra.mxu0 %v250
    %5975 = vmatpush.msra.mxu0 %v246
    %5976 = vmatpush.msra.mxu0 %v242
    %5977 = vmatpush.msra.mxu0 %v238
    %5978 = vmatmul.f32.gmra.mxu0 %v5940
    %v5979 = vpop.f32.mrf.mxu0
    %v5980 = vadd.f32 %v5894, %v5979
    %5981 = vdwg.mxu0
    %5982 = vmatpush.msra.mxu0 0.0
    %5983 = vmatpush.msra.mxu0 0.0
    %5984 = vmatpush.msra.mxu0 0.0
    %5985 = vmatpush.msra.mxu0 0.0
    %5986 = vmatpush.msra.mxu0 0.0
    %5987 = vmatpush.msra.mxu0 0.0
    %5988 = vmatpush.msra.mxu0 0.0
    %5989 = vmatpush.msra.mxu0 0.0
    %5990 = vmatpush.msra.mxu0 %v817
    %5991 = vmatpush.msra.mxu0 %v263
    %5992 = vmatpush.msra.mxu0 %v259
    %5993 = vmatpush.msra.mxu0 %v255
    %5994 = vmatpush.msra.mxu0 %v251
    %5995 = vmatpush.msra.mxu0 %v247
    %5996 = vmatpush.msra.mxu0 %v243
    %5997 = vmatpush.msra.mxu0 %v239
    %5998 = vmatmul.f32.gmra.mxu0 %v5940
    %v5999 = vpop.f32.mrf.mxu0
    %v6000 = vadd.f32 %v5914, %v5999
    %6001 = vdwg.mxu0
    %6002 = vmatpush.msra.mxu0 0.0
    %6003 = vmatpush.msra.mxu0 0.0
    %6004 = vmatpush.msra.mxu0 0.0
    %6005 = vmatpush.msra.mxu0 0.0
    %6006 = vmatpush.msra.mxu0 0.0
    %6007 = vmatpush.msra.mxu0 0.0
    %6008 = vmatpush.msra.mxu0 0.0
    %6009 = vmatpush.msra.mxu0 0.0
    %6010 = vmatpush.msra.mxu0 %v820
    %6011 = vmatpush.msra.mxu0 %v264
    %6012 = vmatpush.msra.mxu0 %v260
    %6013 = vmatpush.msra.mxu0 %v256
    %6014 = vmatpush.msra.mxu0 %v252
    %6015 = vmatpush.msra.mxu0 %v248
    %6016 = vmatpush.msra.mxu0 %v244
    %6017 = vmatpush.msra.mxu0 %v240
    %6018 = vmatmul.f32.gmra.mxu0 %v5940
    %v6019 = vpop.f32.mrf.mxu0
    %v6020 = vadd.f32 %v5934, %v6019
    %6021 = vdwg.mxu0
    %v6022 = vadd.f32 %v5960, %v903
    %v6023 = vadd.f32 %v5980, %v904
    %v6024 = vadd.f32 %v6000, %v905
    %v6025 = vadd.f32 %v6020, %v906
    %v6026 = vxor.u32 %v6022, 2147483648
    %v6027 = vxor.u32 %v6023, 2147483648
    %v6028 = vxor.u32 %v6024, 2147483648
    %v6029 = vmul.f32 %v6026, 1.442695
    %v6030 = vpow.pop %v6029
    %v6031 = vmul.f32 %v6027, 1.442695
    %v6032 = vpow.pop %v6031
    %v6033 = vmul.f32 %v6028, 1.442695
    %v6034 = vpow.pop %v6033
    %v6035 = vadd.f32 %v6030, 1.0
    %v6036 = vadd.f32 %v6032, 1.0
    %v6037 = vadd.f32 %v6034, 1.0
    %v6038 = vrcp.pop %v6035
    %v6039 = vmul.f32 %v6035, %v6038
    %v6040 = vsub.f32 1.0, %v6039
    %v6041 = vmul.f32 %v6038, %v6040
    %v6042 = vadd.f32 %v6038, %v6041
    %vm6043 = vweird.f32 %v6035
    %vm6044 = vweird.f32 %v6038
    %vm6045 = vmor %vm6043, %vm6044
    %v6046 = vsel %vm6045, %v6038, %v6042
    %v6047 = vand.u32 2147483647, %v6035
    %vm6048 = vcmp.eq.f32.partialorder %v6047, 8.507059e+37
    %v6049 = vand.u32 %v6035, 2147483648
    %v6050 = vor.u32 1.1754944e-38, %v6049
    %v6051 = vsel %vm6048, %v6050, %v6046
    %v6052 = vmul.f32 1.0, %v6051
    %v6053 = vrcp.pop %v6036
    %v6054 = vmul.f32 %v6036, %v6053
    %v6055 = vsub.f32 1.0, %v6054
    %v6056 = vmul.f32 %v6053, %v6055
    %v6057 = vadd.f32 %v6053, %v6056
    %vm6058 = vweird.f32 %v6036
    %vm6059 = vweird.f32 %v6053
    %vm6060 = vmor %vm6058, %vm6059
    %v6061 = vsel %vm6060, %v6053, %v6057
    %v6062 = vand.u32 2147483647, %v6036
    %vm6063 = vcmp.eq.f32.partialorder %v6062, 8.507059e+37
    %v6064 = vand.u32 %v6036, 2147483648
    %v6065 = vor.u32 1.1754944e-38, %v6064
    %v6066 = vsel %vm6063, %v6065, %v6061
    %v6067 = vmul.f32 1.0, %v6066
    %v6068 = vrcp.pop %v6037
    %v6069 = vmul.f32 %v6037, %v6068
    %v6070 = vsub.f32 1.0, %v6069
    %v6071 = vmul.f32 %v6068, %v6070
    %v6072 = vadd.f32 %v6068, %v6071
    %vm6073 = vweird.f32 %v6037
    %vm6074 = vweird.f32 %v6068
    %vm6075 = vmor %vm6073, %vm6074
    %v6076 = vsel %vm6075, %v6068, %v6072
    %v6077 = vand.u32 2147483647, %v6037
    %vm6078 = vcmp.eq.f32.partialorder %v6077, 8.507059e+37
    %v6079 = vand.u32 %v6037, 2147483648
    %v6080 = vor.u32 1.1754944e-38, %v6079
    %v6081 = vsel %vm6078, %v6080, %v6076
    %v6082 = vmul.f32 1.0, %v6081
    %v6083 = vtanh.pop %v6025
    %v6084 = vmul.f32 %v6067, %v5237
    %v6085 = vmul.f32 %v6052, %v6083
    %v6086 = vadd.f32 %v6084, %v6085
    %v6087 = vtanh.pop %v6086
    %v6088 = vmul.f32 %v6082, %v6087
    %6089 = vmatpush.msra.mxu0 %v582
    %6090 = vmatpush.msra.mxu0 %v574
    %6091 = vmatpush.msra.mxu0 %v566
    %6092 = vmatpush.msra.mxu0 %v558
    %6093 = vmatpush.msra.mxu0 %v550
    %6094 = vmatpush.msra.mxu0 %v542
    %6095 = vmatpush.msra.mxu0 %v534
    %6096 = vmatpush.msra.mxu0 %v526
    %6097 = vmatpush.msra.mxu0 %v518
    %6098 = vmatpush.msra.mxu0 %v510
    %6099 = vmatpush.msra.mxu0 %v502
    %6100 = vmatpush.msra.mxu0 %v494
    %6101 = vmatpush.msra.mxu0 %v486
    %6102 = vmatpush.msra.mxu0 %v478
    %6103 = vmatpush.msra.mxu0 %v470
    %6104 = vmatpush.msra.mxu0 %v462
    %6105 = vmatmul.f32.gmra.mxu0 %v5852
    %v6106 = vpop.f32.mrf.mxu0
    %v6107 = vadd.f32 0.0, %v6106
    %6108 = vdwg.mxu0
    %6109 = vmatpush.msra.mxu0 %v710
    %6110 = vmatpush.msra.mxu0 %v702
    %6111 = vmatpush.msra.mxu0 %v694
    %6112 = vmatpush.msra.mxu0 %v686
    %6113 = vmatpush.msra.mxu0 %v678
    %6114 = vmatpush.msra.mxu0 %v670
    %6115 = vmatpush.msra.mxu0 %v662
    %6116 = vmatpush.msra.mxu0 %v654
    %6117 = vmatpush.msra.mxu0 %v646
    %6118 = vmatpush.msra.mxu0 %v638
    %6119 = vmatpush.msra.mxu0 %v630
    %6120 = vmatpush.msra.mxu0 %v622
    %6121 = vmatpush.msra.mxu0 %v614
    %6122 = vmatpush.msra.mxu0 %v606
    %6123 = vmatpush.msra.mxu0 %v598
    %6124 = vmatpush.msra.mxu0 %v590
    %6125 = vmatmul.f32.gmra.mxu0 %v5853
    %v6126 = vpop.f32.mrf.mxu0
    %v6127 = vadd.f32 %v6107, %v6126
    %6128 = vdwg.mxu0
    %6129 = vmatpush.msra.mxu0 %v583
    %6130 = vmatpush.msra.mxu0 %v575
    %6131 = vmatpush.msra.mxu0 %v567
    %6132 = vmatpush.msra.mxu0 %v559
    %6133 = vmatpush.msra.mxu0 %v551
    %6134 = vmatpush.msra.mxu0 %v543
    %6135 = vmatpush.msra.mxu0 %v535
    %6136 = vmatpush.msra.mxu0 %v527
    %6137 = vmatpush.msra.mxu0 %v519
    %6138 = vmatpush.msra.mxu0 %v511
    %6139 = vmatpush.msra.mxu0 %v503
    %6140 = vmatpush.msra.mxu0 %v495
    %6141 = vmatpush.msra.mxu0 %v487
    %6142 = vmatpush.msra.mxu0 %v479
    %6143 = vmatpush.msra.mxu0 %v471
    %6144 = vmatpush.msra.mxu0 %v463
    %6145 = vmatmul.f32.gmra.mxu0 %v5852
    %v6146 = vpop.f32.mrf.mxu0
    %v6147 = vadd.f32 0.0, %v6146
    %6148 = vdwg.mxu0
    %6149 = vmatpush.msra.mxu0 %v711
    %6150 = vmatpush.msra.mxu0 %v703
    %6151 = vmatpush.msra.mxu0 %v695
    %6152 = vmatpush.msra.mxu0 %v687
    %6153 = vmatpush.msra.mxu0 %v679
    %6154 = vmatpush.msra.mxu0 %v671
    %6155 = vmatpush.msra.mxu0 %v663
    %6156 = vmatpush.msra.mxu0 %v655
    %6157 = vmatpush.msra.mxu0 %v647
    %6158 = vmatpush.msra.mxu0 %v639
    %6159 = vmatpush.msra.mxu0 %v631
    %6160 = vmatpush.msra.mxu0 %v623
    %6161 = vmatpush.msra.mxu0 %v615
    %6162 = vmatpush.msra.mxu0 %v607
    %6163 = vmatpush.msra.mxu0 %v599
    %6164 = vmatpush.msra.mxu0 %v591
    %6165 = vmatmul.f32.gmra.mxu0 %v5853
    %v6166 = vpop.f32.mrf.mxu0
    %v6167 = vadd.f32 %v6147, %v6166
    %6168 = vdwg.mxu0
    %6169 = vmatpush.msra.mxu0 %v584
    %6170 = vmatpush.msra.mxu0 %v576
    %6171 = vmatpush.msra.mxu0 %v568
    %6172 = vmatpush.msra.mxu0 %v560
    %6173 = vmatpush.msra.mxu0 %v552
    %6174 = vmatpush.msra.mxu0 %v544
    %6175 = vmatpush.msra.mxu0 %v536
    %6176 = vmatpush.msra.mxu0 %v528
    %6177 = vmatpush.msra.mxu0 %v520
    %6178 = vmatpush.msra.mxu0 %v512
    %6179 = vmatpush.msra.mxu0 %v504
    %6180 = vmatpush.msra.mxu0 %v496
    %6181 = vmatpush.msra.mxu0 %v488
    %6182 = vmatpush.msra.mxu0 %v480
    %6183 = vmatpush.msra.mxu0 %v472
    %6184 = vmatpush.msra.mxu0 %v464
    %6185 = vmatmul.f32.gmra.mxu0 %v5852
    %v6186 = vpop.f32.mrf.mxu0
    %v6187 = vadd.f32 0.0, %v6186
    %6188 = vdwg.mxu0
    %6189 = vmatpush.msra.mxu0 %v712
    %6190 = vmatpush.msra.mxu0 %v704
    %6191 = vmatpush.msra.mxu0 %v696
    %6192 = vmatpush.msra.mxu0 %v688
    %6193 = vmatpush.msra.mxu0 %v680
    %6194 = vmatpush.msra.mxu0 %v672
    %6195 = vmatpush.msra.mxu0 %v664
    %6196 = vmatpush.msra.mxu0 %v656
    %6197 = vmatpush.msra.mxu0 %v648
    %6198 = vmatpush.msra.mxu0 %v640
    %6199 = vmatpush.msra.mxu0 %v632
    %6200 = vmatpush.msra.mxu0 %v624
    %6201 = vmatpush.msra.mxu0 %v616
    %6202 = vmatpush.msra.mxu0 %v608
    %6203 = vmatpush.msra.mxu0 %v600
    %6204 = vmatpush.msra.mxu0 %v592
    %6205 = vmatmul.f32.gmra.mxu0 %v5853
    %v6206 = vpop.f32.mrf.mxu0
    %v6207 = vadd.f32 %v6187, %v6206
    %6208 = vdwg.mxu0
    %6209 = vmatpush.msra.mxu0 %v585
    %6210 = vmatpush.msra.mxu0 %v577
    %6211 = vmatpush.msra.mxu0 %v569
    %6212 = vmatpush.msra.mxu0 %v561
    %6213 = vmatpush.msra.mxu0 %v553
    %6214 = vmatpush.msra.mxu0 %v545
    %6215 = vmatpush.msra.mxu0 %v537
    %6216 = vmatpush.msra.mxu0 %v529
    %6217 = vmatpush.msra.mxu0 %v521
    %6218 = vmatpush.msra.mxu0 %v513
    %6219 = vmatpush.msra.mxu0 %v505
    %6220 = vmatpush.msra.mxu0 %v497
    %6221 = vmatpush.msra.mxu0 %v489
    %6222 = vmatpush.msra.mxu0 %v481
    %6223 = vmatpush.msra.mxu0 %v473
    %6224 = vmatpush.msra.mxu0 %v465
    %6225 = vmatmul.f32.gmra.mxu0 %v5852
    %v6226 = vpop.f32.mrf.mxu0
    %v6227 = vadd.f32 0.0, %v6226
    %6228 = vdwg.mxu0
    %6229 = vmatpush.msra.mxu0 %v713
    %6230 = vmatpush.msra.mxu0 %v705
    %6231 = vmatpush.msra.mxu0 %v697
    %6232 = vmatpush.msra.mxu0 %v689
    %6233 = vmatpush.msra.mxu0 %v681
    %6234 = vmatpush.msra.mxu0 %v673
    %6235 = vmatpush.msra.mxu0 %v665
    %6236 = vmatpush.msra.mxu0 %v657
    %6237 = vmatpush.msra.mxu0 %v649
    %6238 = vmatpush.msra.mxu0 %v641
    %6239 = vmatpush.msra.mxu0 %v633
    %6240 = vmatpush.msra.mxu0 %v625
    %6241 = vmatpush.msra.mxu0 %v617
    %6242 = vmatpush.msra.mxu0 %v609
    %6243 = vmatpush.msra.mxu0 %v601
    %6244 = vmatpush.msra.mxu0 %v593
    %6245 = vmatmul.f32.gmra.mxu0 %v5853
    %v6246 = vpop.f32.mrf.mxu0
    %v6247 = vadd.f32 %v6227, %v6246
    %6248 = vdwg.mxu0
    %6249 = vmatpush.msra.mxu0 %v586
    %6250 = vmatpush.msra.mxu0 %v578
    %6251 = vmatpush.msra.mxu0 %v570
    %6252 = vmatpush.msra.mxu0 %v562
    %6253 = vmatpush.msra.mxu0 %v554
    %6254 = vmatpush.msra.mxu0 %v546
    %6255 = vmatpush.msra.mxu0 %v538
    %6256 = vmatpush.msra.mxu0 %v530
    %6257 = vmatpush.msra.mxu0 %v522
    %6258 = vmatpush.msra.mxu0 %v514
    %6259 = vmatpush.msra.mxu0 %v506
    %6260 = vmatpush.msra.mxu0 %v498
    %6261 = vmatpush.msra.mxu0 %v490
    %6262 = vmatpush.msra.mxu0 %v482
    %6263 = vmatpush.msra.mxu0 %v474
    %6264 = vmatpush.msra.mxu0 %v466
    %6265 = vmatmul.f32.gmra.mxu0 %v5852
    %v6266 = vpop.f32.mrf.mxu0
    %v6267 = vadd.f32 0.0, %v6266
    %6268 = vdwg.mxu0
    %6269 = vmatpush.msra.mxu0 %v714
    %6270 = vmatpush.msra.mxu0 %v706
    %6271 = vmatpush.msra.mxu0 %v698
    %6272 = vmatpush.msra.mxu0 %v690
    %6273 = vmatpush.msra.mxu0 %v682
    %6274 = vmatpush.msra.mxu0 %v674
    %6275 = vmatpush.msra.mxu0 %v666
    %6276 = vmatpush.msra.mxu0 %v658
    %6277 = vmatpush.msra.mxu0 %v650
    %6278 = vmatpush.msra.mxu0 %v642
    %6279 = vmatpush.msra.mxu0 %v634
    %6280 = vmatpush.msra.mxu0 %v626
    %6281 = vmatpush.msra.mxu0 %v618
    %6282 = vmatpush.msra.mxu0 %v610
    %6283 = vmatpush.msra.mxu0 %v602
    %6284 = vmatpush.msra.mxu0 %v594
    %6285 = vmatmul.f32.gmra.mxu0 %v5853
    %v6286 = vpop.f32.mrf.mxu0
    %v6287 = vadd.f32 %v6267, %v6286
    %6288 = vdwg.mxu0
    %6289 = vmatpush.msra.mxu0 %v587
    %6290 = vmatpush.msra.mxu0 %v579
    %6291 = vmatpush.msra.mxu0 %v571
    %6292 = vmatpush.msra.mxu0 %v563
    %6293 = vmatpush.msra.mxu0 %v555
    %6294 = vmatpush.msra.mxu0 %v547
    %6295 = vmatpush.msra.mxu0 %v539
    %6296 = vmatpush.msra.mxu0 %v531
    %6297 = vmatpush.msra.mxu0 %v523
    %6298 = vmatpush.msra.mxu0 %v515
    %6299 = vmatpush.msra.mxu0 %v507
    %6300 = vmatpush.msra.mxu0 %v499
    %6301 = vmatpush.msra.mxu0 %v491
    %6302 = vmatpush.msra.mxu0 %v483
    %6303 = vmatpush.msra.mxu0 %v475
    %6304 = vmatpush.msra.mxu0 %v467
    %6305 = vmatmul.f32.gmra.mxu0 %v5852
    %v6306 = vpop.f32.mrf.mxu0
    %v6307 = vadd.f32 0.0, %v6306
    %6308 = vdwg.mxu0
    %6309 = vmatpush.msra.mxu0 %v715
    %6310 = vmatpush.msra.mxu0 %v707
    %6311 = vmatpush.msra.mxu0 %v699
    %6312 = vmatpush.msra.mxu0 %v691
    %6313 = vmatpush.msra.mxu0 %v683
    %6314 = vmatpush.msra.mxu0 %v675
    %6315 = vmatpush.msra.mxu0 %v667
    %6316 = vmatpush.msra.mxu0 %v659
    %6317 = vmatpush.msra.mxu0 %v651
    %6318 = vmatpush.msra.mxu0 %v643
    %6319 = vmatpush.msra.mxu0 %v635
    %6320 = vmatpush.msra.mxu0 %v627
    %6321 = vmatpush.msra.mxu0 %v619
    %6322 = vmatpush.msra.mxu0 %v611
    %6323 = vmatpush.msra.mxu0 %v603
    %6324 = vmatpush.msra.mxu0 %v595
    %6325 = vmatmul.f32.gmra.mxu0 %v5853
    %v6326 = vpop.f32.mrf.mxu0
    %v6327 = vadd.f32 %v6307, %v6326
    %6328 = vdwg.mxu0
    %6329 = vmatpush.msra.mxu0 %v588
    %6330 = vmatpush.msra.mxu0 %v580
    %6331 = vmatpush.msra.mxu0 %v572
    %6332 = vmatpush.msra.mxu0 %v564
    %6333 = vmatpush.msra.mxu0 %v556
    %6334 = vmatpush.msra.mxu0 %v548
    %6335 = vmatpush.msra.mxu0 %v540
    %6336 = vmatpush.msra.mxu0 %v532
    %6337 = vmatpush.msra.mxu0 %v524
    %6338 = vmatpush.msra.mxu0 %v516
    %6339 = vmatpush.msra.mxu0 %v508
    %6340 = vmatpush.msra.mxu0 %v500
    %6341 = vmatpush.msra.mxu0 %v492
    %6342 = vmatpush.msra.mxu0 %v484
    %6343 = vmatpush.msra.mxu0 %v476
    %6344 = vmatpush.msra.mxu0 %v468
    %6345 = vmatmul.f32.gmra.mxu0 %v5852
    %v6346 = vpop.f32.mrf.mxu0
    %v6347 = vadd.f32 0.0, %v6346
    %6348 = vdwg.mxu0
    %6349 = vmatpush.msra.mxu0 %v716
    %6350 = vmatpush.msra.mxu0 %v708
    %6351 = vmatpush.msra.mxu0 %v700
    %6352 = vmatpush.msra.mxu0 %v692
    %6353 = vmatpush.msra.mxu0 %v684
    %6354 = vmatpush.msra.mxu0 %v676
    %6355 = vmatpush.msra.mxu0 %v668
    %6356 = vmatpush.msra.mxu0 %v660
    %6357 = vmatpush.msra.mxu0 %v652
    %6358 = vmatpush.msra.mxu0 %v644
    %6359 = vmatpush.msra.mxu0 %v636
    %6360 = vmatpush.msra.mxu0 %v628
    %6361 = vmatpush.msra.mxu0 %v620
    %6362 = vmatpush.msra.mxu0 %v612
    %6363 = vmatpush.msra.mxu0 %v604
    %6364 = vmatpush.msra.mxu0 %v596
    %6365 = vmatmul.f32.gmra.mxu0 %v5853
    %v6366 = vpop.f32.mrf.mxu0
    %v6367 = vadd.f32 %v6347, %v6366
    %6368 = vdwg.mxu0
    %6369 = vmatpush.msra.mxu0 %v589
    %6370 = vmatpush.msra.mxu0 %v581
    %6371 = vmatpush.msra.mxu0 %v573
    %6372 = vmatpush.msra.mxu0 %v565
    %6373 = vmatpush.msra.mxu0 %v557
    %6374 = vmatpush.msra.mxu0 %v549
    %6375 = vmatpush.msra.mxu0 %v541
    %6376 = vmatpush.msra.mxu0 %v533
    %6377 = vmatpush.msra.mxu0 %v525
    %6378 = vmatpush.msra.mxu0 %v517
    %6379 = vmatpush.msra.mxu0 %v509
    %6380 = vmatpush.msra.mxu0 %v501
    %6381 = vmatpush.msra.mxu0 %v493
    %6382 = vmatpush.msra.mxu0 %v485
    %6383 = vmatpush.msra.mxu0 %v477
    %6384 = vmatpush.msra.mxu0 %v469
    %6385 = vmatmul.f32.gmra.mxu0 %v5852
    %v6386 = vpop.f32.mrf.mxu0
    %v6387 = vadd.f32 0.0, %v6386
    %6388 = vdwg.mxu0
    %6389 = vmatpush.msra.mxu0 %v717
    %6390 = vmatpush.msra.mxu0 %v709
    %6391 = vmatpush.msra.mxu0 %v701
    %6392 = vmatpush.msra.mxu0 %v693
    %6393 = vmatpush.msra.mxu0 %v685
    %6394 = vmatpush.msra.mxu0 %v677
    %6395 = vmatpush.msra.mxu0 %v669
    %6396 = vmatpush.msra.mxu0 %v661
    %6397 = vmatpush.msra.mxu0 %v653
    %6398 = vmatpush.msra.mxu0 %v645
    %6399 = vmatpush.msra.mxu0 %v637
    %6400 = vmatpush.msra.mxu0 %v629
    %6401 = vmatpush.msra.mxu0 %v621
    %6402 = vmatpush.msra.mxu0 %v613
    %6403 = vmatpush.msra.mxu0 %v605
    %6404 = vmatpush.msra.mxu0 %v597
    %6405 = vmatmul.f32.gmra.mxu0 %v5853
    %v6406 = vpop.f32.mrf.mxu0
    %v6407 = vadd.f32 %v6387, %v6406
    %6408 = vdwg.mxu0
    %6409 = vmatpush.msra.mxu0 %v454
    %6410 = vmatpush.msra.mxu0 %v446
    %6411 = vmatpush.msra.mxu0 %v438
    %6412 = vmatpush.msra.mxu0 %v430
    %6413 = vmatpush.msra.mxu0 %v422
    %6414 = vmatpush.msra.mxu0 %v414
    %6415 = vmatpush.msra.mxu0 %v406
    %6416 = vmatpush.msra.mxu0 %v398
    %6417 = vmatpush.msra.mxu0 %v390
    %6418 = vmatpush.msra.mxu0 %v382
    %6419 = vmatpush.msra.mxu0 %v374
    %6420 = vmatpush.msra.mxu0 %v366
    %6421 = vmatpush.msra.mxu0 %v358
    %6422 = vmatpush.msra.mxu0 %v350
    %6423 = vmatpush.msra.mxu0 %v342
    %6424 = vmatpush.msra.mxu0 %v334
    %6425 = vmatmul.f32.gmra.mxu0 %v6088
    %v6426 = vpop.f32.mrf.mxu0
    %v6427 = vadd.f32 %v6127, %v6426
    %6428 = vdwg.mxu0
    %6429 = vmatpush.msra.mxu0 %v455
    %6430 = vmatpush.msra.mxu0 %v447
    %6431 = vmatpush.msra.mxu0 %v439
    %6432 = vmatpush.msra.mxu0 %v431
    %6433 = vmatpush.msra.mxu0 %v423
    %6434 = vmatpush.msra.mxu0 %v415
    %6435 = vmatpush.msra.mxu0 %v407
    %6436 = vmatpush.msra.mxu0 %v399
    %6437 = vmatpush.msra.mxu0 %v391
    %6438 = vmatpush.msra.mxu0 %v383
    %6439 = vmatpush.msra.mxu0 %v375
    %6440 = vmatpush.msra.mxu0 %v367
    %6441 = vmatpush.msra.mxu0 %v359
    %6442 = vmatpush.msra.mxu0 %v351
    %6443 = vmatpush.msra.mxu0 %v343
    %6444 = vmatpush.msra.mxu0 %v335
    %6445 = vmatmul.f32.gmra.mxu0 %v6088
    %v6446 = vpop.f32.mrf.mxu0
    %v6447 = vadd.f32 %v6167, %v6446
    %6448 = vdwg.mxu0
    %6449 = vmatpush.msra.mxu0 %v456
    %6450 = vmatpush.msra.mxu0 %v448
    %6451 = vmatpush.msra.mxu0 %v440
    %6452 = vmatpush.msra.mxu0 %v432
    %6453 = vmatpush.msra.mxu0 %v424
    %6454 = vmatpush.msra.mxu0 %v416
    %6455 = vmatpush.msra.mxu0 %v408
    %6456 = vmatpush.msra.mxu0 %v400
    %6457 = vmatpush.msra.mxu0 %v392
    %6458 = vmatpush.msra.mxu0 %v384
    %6459 = vmatpush.msra.mxu0 %v376
    %6460 = vmatpush.msra.mxu0 %v368
    %6461 = vmatpush.msra.mxu0 %v360
    %6462 = vmatpush.msra.mxu0 %v352
    %6463 = vmatpush.msra.mxu0 %v344
    %6464 = vmatpush.msra.mxu0 %v336
    %6465 = vmatmul.f32.gmra.mxu0 %v6088
    %v6466 = vpop.f32.mrf.mxu0
    %v6467 = vadd.f32 %v6207, %v6466
    %6468 = vdwg.mxu0
    %6469 = vmatpush.msra.mxu0 %v457
    %6470 = vmatpush.msra.mxu0 %v449
    %6471 = vmatpush.msra.mxu0 %v441
    %6472 = vmatpush.msra.mxu0 %v433
    %6473 = vmatpush.msra.mxu0 %v425
    %6474 = vmatpush.msra.mxu0 %v417
    %6475 = vmatpush.msra.mxu0 %v409
    %6476 = vmatpush.msra.mxu0 %v401
    %6477 = vmatpush.msra.mxu0 %v393
    %6478 = vmatpush.msra.mxu0 %v385
    %6479 = vmatpush.msra.mxu0 %v377
    %6480 = vmatpush.msra.mxu0 %v369
    %6481 = vmatpush.msra.mxu0 %v361
    %6482 = vmatpush.msra.mxu0 %v353
    %6483 = vmatpush.msra.mxu0 %v345
    %6484 = vmatpush.msra.mxu0 %v337
    %6485 = vmatmul.f32.gmra.mxu0 %v6088
    %v6486 = vpop.f32.mrf.mxu0
    %v6487 = vadd.f32 %v6247, %v6486
    %6488 = vdwg.mxu0
    %6489 = vmatpush.msra.mxu0 %v458
    %6490 = vmatpush.msra.mxu0 %v450
    %6491 = vmatpush.msra.mxu0 %v442
    %6492 = vmatpush.msra.mxu0 %v434
    %6493 = vmatpush.msra.mxu0 %v426
    %6494 = vmatpush.msra.mxu0 %v418
    %6495 = vmatpush.msra.mxu0 %v410
    %6496 = vmatpush.msra.mxu0 %v402
    %6497 = vmatpush.msra.mxu0 %v394
    %6498 = vmatpush.msra.mxu0 %v386
    %6499 = vmatpush.msra.mxu0 %v378
    %6500 = vmatpush.msra.mxu0 %v370
    %6501 = vmatpush.msra.mxu0 %v362
    %6502 = vmatpush.msra.mxu0 %v354
    %6503 = vmatpush.msra.mxu0 %v346
    %6504 = vmatpush.msra.mxu0 %v338
    %6505 = vmatmul.f32.gmra.mxu0 %v6088
    %v6506 = vpop.f32.mrf.mxu0
    %v6507 = vadd.f32 %v6287, %v6506
    %6508 = vdwg.mxu0
    %6509 = vmatpush.msra.mxu0 %v459
    %6510 = vmatpush.msra.mxu0 %v451
    %6511 = vmatpush.msra.mxu0 %v443
    %6512 = vmatpush.msra.mxu0 %v435
    %6513 = vmatpush.msra.mxu0 %v427
    %6514 = vmatpush.msra.mxu0 %v419
    %6515 = vmatpush.msra.mxu0 %v411
    %6516 = vmatpush.msra.mxu0 %v403
    %6517 = vmatpush.msra.mxu0 %v395
    %6518 = vmatpush.msra.mxu0 %v387
    %6519 = vmatpush.msra.mxu0 %v379
    %6520 = vmatpush.msra.mxu0 %v371
    %6521 = vmatpush.msra.mxu0 %v363
    %6522 = vmatpush.msra.mxu0 %v355
    %6523 = vmatpush.msra.mxu0 %v347
    %6524 = vmatpush.msra.mxu0 %v339
    %6525 = vmatmul.f32.gmra.mxu0 %v6088
    %v6526 = vpop.f32.mrf.mxu0
    %v6527 = vadd.f32 %v6327, %v6526
    %6528 = vdwg.mxu0
    %6529 = vmatpush.msra.mxu0 %v460
    %6530 = vmatpush.msra.mxu0 %v452
    %6531 = vmatpush.msra.mxu0 %v444
    %6532 = vmatpush.msra.mxu0 %v436
    %6533 = vmatpush.msra.mxu0 %v428
    %6534 = vmatpush.msra.mxu0 %v420
    %6535 = vmatpush.msra.mxu0 %v412
    %6536 = vmatpush.msra.mxu0 %v404
    %6537 = vmatpush.msra.mxu0 %v396
    %6538 = vmatpush.msra.mxu0 %v388
    %6539 = vmatpush.msra.mxu0 %v380
    %6540 = vmatpush.msra.mxu0 %v372
    %6541 = vmatpush.msra.mxu0 %v364
    %6542 = vmatpush.msra.mxu0 %v356
    %6543 = vmatpush.msra.mxu0 %v348
    %6544 = vmatpush.msra.mxu0 %v340
    %6545 = vmatmul.f32.gmra.mxu0 %v6088
    %v6546 = vpop.f32.mrf.mxu0
    %v6547 = vadd.f32 %v6367, %v6546
    %6548 = vdwg.mxu0
    %6549 = vmatpush.msra.mxu0 %v461
    %6550 = vmatpush.msra.mxu0 %v453
    %6551 = vmatpush.msra.mxu0 %v445
    %6552 = vmatpush.msra.mxu0 %v437
    %6553 = vmatpush.msra.mxu0 %v429
    %6554 = vmatpush.msra.mxu0 %v421
    %6555 = vmatpush.msra.mxu0 %v413
    %6556 = vmatpush.msra.mxu0 %v405
    %6557 = vmatpush.msra.mxu0 %v397
    %6558 = vmatpush.msra.mxu0 %v389
    %6559 = vmatpush.msra.mxu0 %v381
    %6560 = vmatpush.msra.mxu0 %v373
    %6561 = vmatpush.msra.mxu0 %v365
    %6562 = vmatpush.msra.mxu0 %v357
    %6563 = vmatpush.msra.mxu0 %v349
    %6564 = vmatpush.msra.mxu0 %v341
    %6565 = vmatmul.f32.gmra.mxu0 %v6088
    %v6566 = vpop.f32.mrf.mxu0
    %v6567 = vadd.f32 %v6407, %v6566
    %6568 = vdwg.mxu0
    %v6569 = vadd.f32 %v6427, %v1459
    %v6570 = vadd.f32 %v6447, %v1460
    %v6571 = vadd.f32 %v6467, %v1461
    %v6572 = vadd.f32 %v6487, %v1462
    %v6573 = vadd.f32 %v6507, %v1463
    %v6574 = vadd.f32 %v6527, %v1464
    %v6575 = vadd.f32 %v6547, %v1465
    %v6576 = vadd.f32 %v6567, %v1466
    %v6577 = vxor.u32 %v6569, 2147483648
    %v6578 = vxor.u32 %v6570, 2147483648
    %v6579 = vxor.u32 %v6571, 2147483648
    %v6580 = vxor.u32 %v6572, 2147483648
    %v6581 = vxor.u32 %v6573, 2147483648
    %v6582 = vxor.u32 %v6574, 2147483648
    %v6583 = vmul.f32 %v6577, 1.442695
    %v6584 = vpow.pop %v6583
    %v6585 = vmul.f32 %v6578, 1.442695
    %v6586 = vpow.pop %v6585
    %v6587 = vmul.f32 %v6579, 1.442695
    %v6588 = vpow.pop %v6587
    %v6589 = vmul.f32 %v6580, 1.442695
    %v6590 = vpow.pop %v6589
    %v6591 = vmul.f32 %v6581, 1.442695
    %v6592 = vpow.pop %v6591
    %v6593 = vmul.f32 %v6582, 1.442695
    %v6594 = vpow.pop %v6593
    %v6595 = vadd.f32 %v6584, 1.0
    %v6596 = vadd.f32 %v6586, 1.0
    %v6597 = vadd.f32 %v6588, 1.0
    %v6598 = vadd.f32 %v6590, 1.0
    %v6599 = vadd.f32 %v6592, 1.0
    %v6600 = vadd.f32 %v6594, 1.0
    %v6601 = vrcp.pop %v6595
    %v6602 = vmul.f32 %v6595, %v6601
    %v6603 = vsub.f32 1.0, %v6602
    %v6604 = vmul.f32 %v6601, %v6603
    %v6605 = vadd.f32 %v6601, %v6604
    %vm6606 = vweird.f32 %v6595
    %vm6607 = vweird.f32 %v6601
    %vm6608 = vmor %vm6606, %vm6607
    %v6609 = vsel %vm6608, %v6601, %v6605
    %v6610 = vand.u32 2147483647, %v6595
    %vm6611 = vcmp.eq.f32.partialorder %v6610, 8.507059e+37
    %v6612 = vand.u32 %v6595, 2147483648
    %v6613 = vor.u32 1.1754944e-38, %v6612
    %v6614 = vsel %vm6611, %v6613, %v6609
    %v6615 = vmul.f32 1.0, %v6614
    %v6616 = vrcp.pop %v6596
    %v6617 = vmul.f32 %v6596, %v6616
    %v6618 = vsub.f32 1.0, %v6617
    %v6619 = vmul.f32 %v6616, %v6618
    %v6620 = vadd.f32 %v6616, %v6619
    %vm6621 = vweird.f32 %v6596
    %vm6622 = vweird.f32 %v6616
    %vm6623 = vmor %vm6621, %vm6622
    %v6624 = vsel %vm6623, %v6616, %v6620
    %v6625 = vand.u32 2147483647, %v6596
    %vm6626 = vcmp.eq.f32.partialorder %v6625, 8.507059e+37
    %v6627 = vand.u32 %v6596, 2147483648
    %v6628 = vor.u32 1.1754944e-38, %v6627
    %v6629 = vsel %vm6626, %v6628, %v6624
    %v6630 = vmul.f32 1.0, %v6629
    %v6631 = vrcp.pop %v6597
    %v6632 = vmul.f32 %v6597, %v6631
    %v6633 = vsub.f32 1.0, %v6632
    %v6634 = vmul.f32 %v6631, %v6633
    %v6635 = vadd.f32 %v6631, %v6634
    %vm6636 = vweird.f32 %v6597
    %vm6637 = vweird.f32 %v6631
    %vm6638 = vmor %vm6636, %vm6637
    %v6639 = vsel %vm6638, %v6631, %v6635
    %v6640 = vand.u32 2147483647, %v6597
    %vm6641 = vcmp.eq.f32.partialorder %v6640, 8.507059e+37
    %v6642 = vand.u32 %v6597, 2147483648
    %v6643 = vor.u32 1.1754944e-38, %v6642
    %v6644 = vsel %vm6641, %v6643, %v6639
    %v6645 = vmul.f32 1.0, %v6644
    %v6646 = vrcp.pop %v6598
    %v6647 = vmul.f32 %v6598, %v6646
    %v6648 = vsub.f32 1.0, %v6647
    %v6649 = vmul.f32 %v6646, %v6648
    %v6650 = vadd.f32 %v6646, %v6649
    %vm6651 = vweird.f32 %v6598
    %vm6652 = vweird.f32 %v6646
    %vm6653 = vmor %vm6651, %vm6652
    %v6654 = vsel %vm6653, %v6646, %v6650
    %v6655 = vand.u32 2147483647, %v6598
    %vm6656 = vcmp.eq.f32.partialorder %v6655, 8.507059e+37
    %v6657 = vand.u32 %v6598, 2147483648
    %v6658 = vor.u32 1.1754944e-38, %v6657
    %v6659 = vsel %vm6656, %v6658, %v6654
    %v6660 = vmul.f32 1.0, %v6659
    %v6661 = vrcp.pop %v6599
    %v6662 = vmul.f32 %v6599, %v6661
    %v6663 = vsub.f32 1.0, %v6662
    %v6664 = vmul.f32 %v6661, %v6663
    %v6665 = vadd.f32 %v6661, %v6664
    %vm6666 = vweird.f32 %v6599
    %vm6667 = vweird.f32 %v6661
    %vm6668 = vmor %vm6666, %vm6667
    %v6669 = vsel %vm6668, %v6661, %v6665
    %v6670 = vand.u32 2147483647, %v6599
    %vm6671 = vcmp.eq.f32.partialorder %v6670, 8.507059e+37
    %v6672 = vand.u32 %v6599, 2147483648
    %v6673 = vor.u32 1.1754944e-38, %v6672
    %v6674 = vsel %vm6671, %v6673, %v6669
    %v6675 = vmul.f32 1.0, %v6674
    %v6676 = vrcp.pop %v6600
    %v6677 = vmul.f32 %v6600, %v6676
    %v6678 = vsub.f32 1.0, %v6677
    %v6679 = vmul.f32 %v6676, %v6678
    %v6680 = vadd.f32 %v6676, %v6679
    %vm6681 = vweird.f32 %v6600
    %vm6682 = vweird.f32 %v6676
    %vm6683 = vmor %vm6681, %vm6682
    %v6684 = vsel %vm6683, %v6676, %v6680
    %v6685 = vand.u32 2147483647, %v6600
    %vm6686 = vcmp.eq.f32.partialorder %v6685, 8.507059e+37
    %v6687 = vand.u32 %v6600, 2147483648
    %v6688 = vor.u32 1.1754944e-38, %v6687
    %v6689 = vsel %vm6686, %v6688, %v6684
    %v6690 = vmul.f32 1.0, %v6689
    %v6691 = vtanh.pop %v6575
    %v6692 = vtanh.pop %v6576
    %v6693 = vmul.f32 %v6645, %v5848
    %v6694 = vmul.f32 %v6660, %v5849
    %v6695 = vmul.f32 %v6615, %v6691
    %v6696 = vmul.f32 %v6630, %v6692
    %v6697 = vadd.f32 %v6693, %v6695
    %v6698 = vadd.f32 %v6694, %v6696
    %v6699 = vtanh.pop %v6697
    %v6700 = vtanh.pop %v6698
    %v6701 = vmul.f32 %v6675, %v6699
    %v6702 = vmul.f32 %v6690, %v6700
    %v6703 = vld [vmem:[#allocation2 + $0x7] sm:$0x1]
    %v6704 = vld [vmem:[#allocation2 + $0xf] sm:$0x1]
    %6705 = vmatpush.msra.mxu0 %v329
    %6706 = vmatpush.msra.mxu0 %v325
    %6707 = vmatpush.msra.mxu0 %v321
    %6708 = vmatpush.msra.mxu0 %v317
    %6709 = vmatpush.msra.mxu0 %v313
    %6710 = vmatpush.msra.mxu0 %v309
    %6711 = vmatpush.msra.mxu0 %v305
    %6712 = vmatpush.msra.mxu0 %v301
    %6713 = vmatpush.msra.mxu0 %v297
    %6714 = vmatpush.msra.mxu0 %v293
    %6715 = vmatpush.msra.mxu0 %v289
    %6716 = vmatpush.msra.mxu0 %v285
    %6717 = vmatpush.msra.mxu0 %v281
    %6718 = vmatpush.msra.mxu0 %v277
    %6719 = vmatpush.msra.mxu0 %v273
    %6720 = vmatpush.msra.mxu0 %v269
    %6721 = vmatmul.f32.gmra.mxu0 %v6088
    %v6722 = vpop.f32.mrf.mxu0
    %v6723 = vadd.f32 0.0, %v6722
    %6724 = vdwg.mxu0
    %6725 = vmatpush.msra.mxu0 %v330
    %6726 = vmatpush.msra.mxu0 %v326
    %6727 = vmatpush.msra.mxu0 %v322
    %6728 = vmatpush.msra.mxu0 %v318
    %6729 = vmatpush.msra.mxu0 %v314
    %6730 = vmatpush.msra.mxu0 %v310
    %6731 = vmatpush.msra.mxu0 %v306
    %6732 = vmatpush.msra.mxu0 %v302
    %6733 = vmatpush.msra.mxu0 %v298
    %6734 = vmatpush.msra.mxu0 %v294
    %6735 = vmatpush.msra.mxu0 %v290
    %6736 = vmatpush.msra.mxu0 %v286
    %6737 = vmatpush.msra.mxu0 %v282
    %6738 = vmatpush.msra.mxu0 %v278
    %6739 = vmatpush.msra.mxu0 %v274
    %6740 = vmatpush.msra.mxu0 %v270
    %6741 = vmatmul.f32.gmra.mxu0 %v6088
    %v6742 = vpop.f32.mrf.mxu0
    %v6743 = vadd.f32 0.0, %v6742
    %6744 = vdwg.mxu0
    %6745 = vmatpush.msra.mxu0 %v331
    %6746 = vmatpush.msra.mxu0 %v327
    %6747 = vmatpush.msra.mxu0 %v323
    %6748 = vmatpush.msra.mxu0 %v319
    %6749 = vmatpush.msra.mxu0 %v315
    %6750 = vmatpush.msra.mxu0 %v311
    %6751 = vmatpush.msra.mxu0 %v307
    %6752 = vmatpush.msra.mxu0 %v303
    %6753 = vmatpush.msra.mxu0 %v299
    %6754 = vmatpush.msra.mxu0 %v295
    %6755 = vmatpush.msra.mxu0 %v291
    %6756 = vmatpush.msra.mxu0 %v287
    %6757 = vmatpush.msra.mxu0 %v283
    %6758 = vmatpush.msra.mxu0 %v279
    %6759 = vmatpush.msra.mxu0 %v275
    %6760 = vmatpush.msra.mxu0 %v271
    %6761 = vmatmul.f32.gmra.mxu0 %v6088
    %v6762 = vpop.f32.mrf.mxu0
    %v6763 = vadd.f32 0.0, %v6762
    %6764 = vdwg.mxu0
    %6765 = vmatpush.msra.mxu0 %v332
    %6766 = vmatpush.msra.mxu0 %v328
    %6767 = vmatpush.msra.mxu0 %v324
    %6768 = vmatpush.msra.mxu0 %v320
    %6769 = vmatpush.msra.mxu0 %v316
    %6770 = vmatpush.msra.mxu0 %v312
    %6771 = vmatpush.msra.mxu0 %v308
    %6772 = vmatpush.msra.mxu0 %v304
    %6773 = vmatpush.msra.mxu0 %v300
    %6774 = vmatpush.msra.mxu0 %v296
    %6775 = vmatpush.msra.mxu0 %v292
    %6776 = vmatpush.msra.mxu0 %v288
    %6777 = vmatpush.msra.mxu0 %v284
    %6778 = vmatpush.msra.mxu0 %v280
    %6779 = vmatpush.msra.mxu0 %v276
    %6780 = vmatpush.msra.mxu0 %v272
    %6781 = vmatmul.f32.gmra.mxu0 %v6088
    %v6782 = vpop.f32.mrf.mxu0
    %v6783 = vadd.f32 0.0, %v6782
    %6784 = vdwg.mxu0
    %v6787 = vrot.slane %v6704, 7
    %v6788 = vsel %vm804, %v6787, %v6703
    %v6789 = vsel %vm806, %v6788, 0
    %6791 = vmatpush.msra.mxu0 0.0
    %6792 = vmatpush.msra.mxu0 0.0
    %6793 = vmatpush.msra.mxu0 0.0
    %6794 = vmatpush.msra.mxu0 0.0
    %6795 = vmatpush.msra.mxu0 0.0
    %6796 = vmatpush.msra.mxu0 0.0
    %6797 = vmatpush.msra.mxu0 0.0
    %6798 = vmatpush.msra.mxu0 0.0
    %6799 = vmatpush.msra.mxu0 %v811
    %6800 = vmatpush.msra.mxu0 %v261
    %6801 = vmatpush.msra.mxu0 %v257
    %6802 = vmatpush.msra.mxu0 %v253
    %6803 = vmatpush.msra.mxu0 %v249
    %6804 = vmatpush.msra.mxu0 %v245
    %6805 = vmatpush.msra.mxu0 %v241
    %6806 = vmatpush.msra.mxu0 %v237
    %6807 = vmatmul.f32.gmra.mxu0 %v6789
    %v6808 = vpop.f32.mrf.mxu0
    %v6809 = vadd.f32 %v6723, %v6808
    %6810 = vdwg.mxu0
    %6811 = vmatpush.msra.mxu0 0.0
    %6812 = vmatpush.msra.mxu0 0.0
    %6813 = vmatpush.msra.mxu0 0.0
    %6814 = vmatpush.msra.mxu0 0.0
    %6815 = vmatpush.msra.mxu0 0.0
    %6816 = vmatpush.msra.mxu0 0.0
    %6817 = vmatpush.msra.mxu0 0.0
    %6818 = vmatpush.msra.mxu0 0.0
    %6819 = vmatpush.msra.mxu0 %v814
    %6820 = vmatpush.msra.mxu0 %v262
    %6821 = vmatpush.msra.mxu0 %v258
    %6822 = vmatpush.msra.mxu0 %v254
    %6823 = vmatpush.msra.mxu0 %v250
    %6824 = vmatpush.msra.mxu0 %v246
    %6825 = vmatpush.msra.mxu0 %v242
    %6826 = vmatpush.msra.mxu0 %v238
    %6827 = vmatmul.f32.gmra.mxu0 %v6789
    %v6828 = vpop.f32.mrf.mxu0
    %v6829 = vadd.f32 %v6743, %v6828
    %6830 = vdwg.mxu0
    %6831 = vmatpush.msra.mxu0 0.0
    %6832 = vmatpush.msra.mxu0 0.0
    %6833 = vmatpush.msra.mxu0 0.0
    %6834 = vmatpush.msra.mxu0 0.0
    %6835 = vmatpush.msra.mxu0 0.0
    %6836 = vmatpush.msra.mxu0 0.0
    %6837 = vmatpush.msra.mxu0 0.0
    %6838 = vmatpush.msra.mxu0 0.0
    %6839 = vmatpush.msra.mxu0 %v817
    %6840 = vmatpush.msra.mxu0 %v263
    %6841 = vmatpush.msra.mxu0 %v259
    %6842 = vmatpush.msra.mxu0 %v255
    %6843 = vmatpush.msra.mxu0 %v251
    %6844 = vmatpush.msra.mxu0 %v247
    %6845 = vmatpush.msra.mxu0 %v243
    %6846 = vmatpush.msra.mxu0 %v239
    %6847 = vmatmul.f32.gmra.mxu0 %v6789
    %v6848 = vpop.f32.mrf.mxu0
    %v6849 = vadd.f32 %v6763, %v6848
    %6850 = vdwg.mxu0
    %6851 = vmatpush.msra.mxu0 0.0
    %6852 = vmatpush.msra.mxu0 0.0
    %6853 = vmatpush.msra.mxu0 0.0
    %6854 = vmatpush.msra.mxu0 0.0
    %6855 = vmatpush.msra.mxu0 0.0
    %6856 = vmatpush.msra.mxu0 0.0
    %6857 = vmatpush.msra.mxu0 0.0
    %6858 = vmatpush.msra.mxu0 0.0
    %6859 = vmatpush.msra.mxu0 %v820
    %6860 = vmatpush.msra.mxu0 %v264
    %6861 = vmatpush.msra.mxu0 %v260
    %6862 = vmatpush.msra.mxu0 %v256
    %6863 = vmatpush.msra.mxu0 %v252
    %6864 = vmatpush.msra.mxu0 %v248
    %6865 = vmatpush.msra.mxu0 %v244
    %6866 = vmatpush.msra.mxu0 %v240
    %6867 = vmatmul.f32.gmra.mxu0 %v6789
    %v6868 = vpop.f32.mrf.mxu0
    %v6869 = vadd.f32 %v6783, %v6868
    %6870 = vdwg.mxu0
    %v6871 = vadd.f32 %v6809, %v903
    %v6872 = vadd.f32 %v6829, %v904
    %v6873 = vadd.f32 %v6849, %v905
    %v6874 = vadd.f32 %v6869, %v906
    %v6875 = vxor.u32 %v6871, 2147483648
    %v6876 = vxor.u32 %v6872, 2147483648
    %v6877 = vxor.u32 %v6873, 2147483648
    %v6878 = vmul.f32 %v6875, 1.442695
    %v6879 = vpow.pop %v6878
    %v6880 = vmul.f32 %v6876, 1.442695
    %v6881 = vpow.pop %v6880
    %v6882 = vmul.f32 %v6877, 1.442695
    %v6883 = vpow.pop %v6882
    %v6884 = vadd.f32 %v6879, 1.0
    %v6885 = vadd.f32 %v6881, 1.0
    %v6886 = vadd.f32 %v6883, 1.0
    %v6887 = vrcp.pop %v6884
    %v6888 = vmul.f32 %v6884, %v6887
    %v6889 = vsub.f32 1.0, %v6888
    %v6890 = vmul.f32 %v6887, %v6889
    %v6891 = vadd.f32 %v6887, %v6890
    %vm6892 = vweird.f32 %v6884
    %vm6893 = vweird.f32 %v6887
    %vm6894 = vmor %vm6892, %vm6893
    %v6895 = vsel %vm6894, %v6887, %v6891
    %v6896 = vand.u32 2147483647, %v6884
    %vm6897 = vcmp.eq.f32.partialorder %v6896, 8.507059e+37
    %v6898 = vand.u32 %v6884, 2147483648
    %v6899 = vor.u32 1.1754944e-38, %v6898
    %v6900 = vsel %vm6897, %v6899, %v6895
    %v6901 = vmul.f32 1.0, %v6900
    %v6902 = vrcp.pop %v6885
    %v6903 = vmul.f32 %v6885, %v6902
    %v6904 = vsub.f32 1.0, %v6903
    %v6905 = vmul.f32 %v6902, %v6904
    %v6906 = vadd.f32 %v6902, %v6905
    %vm6907 = vweird.f32 %v6885
    %vm6908 = vweird.f32 %v6902
    %vm6909 = vmor %vm6907, %vm6908
    %v6910 = vsel %vm6909, %v6902, %v6906
    %v6911 = vand.u32 2147483647, %v6885
    %vm6912 = vcmp.eq.f32.partialorder %v6911, 8.507059e+37
    %v6913 = vand.u32 %v6885, 2147483648
    %v6914 = vor.u32 1.1754944e-38, %v6913
    %v6915 = vsel %vm6912, %v6914, %v6910
    %v6916 = vmul.f32 1.0, %v6915
    %v6917 = vrcp.pop %v6886
    %v6918 = vmul.f32 %v6886, %v6917
    %v6919 = vsub.f32 1.0, %v6918
    %v6920 = vmul.f32 %v6917, %v6919
    %v6921 = vadd.f32 %v6917, %v6920
    %vm6922 = vweird.f32 %v6886
    %vm6923 = vweird.f32 %v6917
    %vm6924 = vmor %vm6922, %vm6923
    %v6925 = vsel %vm6924, %v6917, %v6921
    %v6926 = vand.u32 2147483647, %v6886
    %vm6927 = vcmp.eq.f32.partialorder %v6926, 8.507059e+37
    %v6928 = vand.u32 %v6886, 2147483648
    %v6929 = vor.u32 1.1754944e-38, %v6928
    %v6930 = vsel %vm6927, %v6929, %v6925
    %v6931 = vmul.f32 1.0, %v6930
    %v6932 = vtanh.pop %v6874
    %v6933 = vmul.f32 %v6916, %v6086
    %v6934 = vmul.f32 %v6901, %v6932
    %v6935 = vadd.f32 %v6933, %v6934
    %v6936 = vtanh.pop %v6935
    %v6937 = vmul.f32 %v6931, %v6936
    %6938 = vmatpush.msra.mxu0 %v582
    %6939 = vmatpush.msra.mxu0 %v574
    %6940 = vmatpush.msra.mxu0 %v566
    %6941 = vmatpush.msra.mxu0 %v558
    %6942 = vmatpush.msra.mxu0 %v550
    %6943 = vmatpush.msra.mxu0 %v542
    %6944 = vmatpush.msra.mxu0 %v534
    %6945 = vmatpush.msra.mxu0 %v526
    %6946 = vmatpush.msra.mxu0 %v518
    %6947 = vmatpush.msra.mxu0 %v510
    %6948 = vmatpush.msra.mxu0 %v502
    %6949 = vmatpush.msra.mxu0 %v494
    %6950 = vmatpush.msra.mxu0 %v486
    %6951 = vmatpush.msra.mxu0 %v478
    %6952 = vmatpush.msra.mxu0 %v470
    %6953 = vmatpush.msra.mxu0 %v462
    %6954 = vmatmul.f32.gmra.mxu0 %v6701
    %v6955 = vpop.f32.mrf.mxu0
    %v6956 = vadd.f32 0.0, %v6955
    %6957 = vdwg.mxu0
    %6958 = vmatpush.msra.mxu0 %v710
    %6959 = vmatpush.msra.mxu0 %v702
    %6960 = vmatpush.msra.mxu0 %v694
    %6961 = vmatpush.msra.mxu0 %v686
    %6962 = vmatpush.msra.mxu0 %v678
    %6963 = vmatpush.msra.mxu0 %v670
    %6964 = vmatpush.msra.mxu0 %v662
    %6965 = vmatpush.msra.mxu0 %v654
    %6966 = vmatpush.msra.mxu0 %v646
    %6967 = vmatpush.msra.mxu0 %v638
    %6968 = vmatpush.msra.mxu0 %v630
    %6969 = vmatpush.msra.mxu0 %v622
    %6970 = vmatpush.msra.mxu0 %v614
    %6971 = vmatpush.msra.mxu0 %v606
    %6972 = vmatpush.msra.mxu0 %v598
    %6973 = vmatpush.msra.mxu0 %v590
    %6974 = vmatmul.f32.gmra.mxu0 %v6702
    %v6975 = vpop.f32.mrf.mxu0
    %v6976 = vadd.f32 %v6956, %v6975
    %6977 = vdwg.mxu0
    %6978 = vmatpush.msra.mxu0 %v583
    %6979 = vmatpush.msra.mxu0 %v575
    %6980 = vmatpush.msra.mxu0 %v567
    %6981 = vmatpush.msra.mxu0 %v559
    %6982 = vmatpush.msra.mxu0 %v551
    %6983 = vmatpush.msra.mxu0 %v543
    %6984 = vmatpush.msra.mxu0 %v535
    %6985 = vmatpush.msra.mxu0 %v527
    %6986 = vmatpush.msra.mxu0 %v519
    %6987 = vmatpush.msra.mxu0 %v511
    %6988 = vmatpush.msra.mxu0 %v503
    %6989 = vmatpush.msra.mxu0 %v495
    %6990 = vmatpush.msra.mxu0 %v487
    %6991 = vmatpush.msra.mxu0 %v479
    %6992 = vmatpush.msra.mxu0 %v471
    %6993 = vmatpush.msra.mxu0 %v463
    %6994 = vmatmul.f32.gmra.mxu0 %v6701
    %v6995 = vpop.f32.mrf.mxu0
    %v6996 = vadd.f32 0.0, %v6995
    %6997 = vdwg.mxu0
    %6998 = vmatpush.msra.mxu0 %v711
    %6999 = vmatpush.msra.mxu0 %v703
    %7000 = vmatpush.msra.mxu0 %v695
    %7001 = vmatpush.msra.mxu0 %v687
    %7002 = vmatpush.msra.mxu0 %v679
    %7003 = vmatpush.msra.mxu0 %v671
    %7004 = vmatpush.msra.mxu0 %v663
    %7005 = vmatpush.msra.mxu0 %v655
    %7006 = vmatpush.msra.mxu0 %v647
    %7007 = vmatpush.msra.mxu0 %v639
    %7008 = vmatpush.msra.mxu0 %v631
    %7009 = vmatpush.msra.mxu0 %v623
    %7010 = vmatpush.msra.mxu0 %v615
    %7011 = vmatpush.msra.mxu0 %v607
    %7012 = vmatpush.msra.mxu0 %v599
    %7013 = vmatpush.msra.mxu0 %v591
    %7014 = vmatmul.f32.gmra.mxu0 %v6702
    %v7015 = vpop.f32.mrf.mxu0
    %v7016 = vadd.f32 %v6996, %v7015
    %7017 = vdwg.mxu0
    %7018 = vmatpush.msra.mxu0 %v584
    %7019 = vmatpush.msra.mxu0 %v576
    %7020 = vmatpush.msra.mxu0 %v568
    %7021 = vmatpush.msra.mxu0 %v560
    %7022 = vmatpush.msra.mxu0 %v552
    %7023 = vmatpush.msra.mxu0 %v544
    %7024 = vmatpush.msra.mxu0 %v536
    %7025 = vmatpush.msra.mxu0 %v528
    %7026 = vmatpush.msra.mxu0 %v520
    %7027 = vmatpush.msra.mxu0 %v512
    %7028 = vmatpush.msra.mxu0 %v504
    %7029 = vmatpush.msra.mxu0 %v496
    %7030 = vmatpush.msra.mxu0 %v488
    %7031 = vmatpush.msra.mxu0 %v480
    %7032 = vmatpush.msra.mxu0 %v472
    %7033 = vmatpush.msra.mxu0 %v464
    %7034 = vmatmul.f32.gmra.mxu0 %v6701
    %v7035 = vpop.f32.mrf.mxu0
    %v7036 = vadd.f32 0.0, %v7035
    %7037 = vdwg.mxu0
    %7038 = vmatpush.msra.mxu0 %v712
    %7039 = vmatpush.msra.mxu0 %v704
    %7040 = vmatpush.msra.mxu0 %v696
    %7041 = vmatpush.msra.mxu0 %v688
    %7042 = vmatpush.msra.mxu0 %v680
    %7043 = vmatpush.msra.mxu0 %v672
    %7044 = vmatpush.msra.mxu0 %v664
    %7045 = vmatpush.msra.mxu0 %v656
    %7046 = vmatpush.msra.mxu0 %v648
    %7047 = vmatpush.msra.mxu0 %v640
    %7048 = vmatpush.msra.mxu0 %v632
    %7049 = vmatpush.msra.mxu0 %v624
    %7050 = vmatpush.msra.mxu0 %v616
    %7051 = vmatpush.msra.mxu0 %v608
    %7052 = vmatpush.msra.mxu0 %v600
    %7053 = vmatpush.msra.mxu0 %v592
    %7054 = vmatmul.f32.gmra.mxu0 %v6702
    %v7055 = vpop.f32.mrf.mxu0
    %v7056 = vadd.f32 %v7036, %v7055
    %7057 = vdwg.mxu0
    %7058 = vmatpush.msra.mxu0 %v585
    %7059 = vmatpush.msra.mxu0 %v577
    %7060 = vmatpush.msra.mxu0 %v569
    %7061 = vmatpush.msra.mxu0 %v561
    %7062 = vmatpush.msra.mxu0 %v553
    %7063 = vmatpush.msra.mxu0 %v545
    %7064 = vmatpush.msra.mxu0 %v537
    %7065 = vmatpush.msra.mxu0 %v529
    %7066 = vmatpush.msra.mxu0 %v521
    %7067 = vmatpush.msra.mxu0 %v513
    %7068 = vmatpush.msra.mxu0 %v505
    %7069 = vmatpush.msra.mxu0 %v497
    %7070 = vmatpush.msra.mxu0 %v489
    %7071 = vmatpush.msra.mxu0 %v481
    %7072 = vmatpush.msra.mxu0 %v473
    %7073 = vmatpush.msra.mxu0 %v465
    %7074 = vmatmul.f32.gmra.mxu0 %v6701
    %v7075 = vpop.f32.mrf.mxu0
    %v7076 = vadd.f32 0.0, %v7075
    %7077 = vdwg.mxu0
    %7078 = vmatpush.msra.mxu0 %v713
    %7079 = vmatpush.msra.mxu0 %v705
    %7080 = vmatpush.msra.mxu0 %v697
    %7081 = vmatpush.msra.mxu0 %v689
    %7082 = vmatpush.msra.mxu0 %v681
    %7083 = vmatpush.msra.mxu0 %v673
    %7084 = vmatpush.msra.mxu0 %v665
    %7085 = vmatpush.msra.mxu0 %v657
    %7086 = vmatpush.msra.mxu0 %v649
    %7087 = vmatpush.msra.mxu0 %v641
    %7088 = vmatpush.msra.mxu0 %v633
    %7089 = vmatpush.msra.mxu0 %v625
    %7090 = vmatpush.msra.mxu0 %v617
    %7091 = vmatpush.msra.mxu0 %v609
    %7092 = vmatpush.msra.mxu0 %v601
    %7093 = vmatpush.msra.mxu0 %v593
    %7094 = vmatmul.f32.gmra.mxu0 %v6702
    %v7095 = vpop.f32.mrf.mxu0
    %v7096 = vadd.f32 %v7076, %v7095
    %7097 = vdwg.mxu0
    %7098 = vmatpush.msra.mxu0 %v586
    %7099 = vmatpush.msra.mxu0 %v578
    %7100 = vmatpush.msra.mxu0 %v570
    %7101 = vmatpush.msra.mxu0 %v562
    %7102 = vmatpush.msra.mxu0 %v554
    %7103 = vmatpush.msra.mxu0 %v546
    %7104 = vmatpush.msra.mxu0 %v538
    %7105 = vmatpush.msra.mxu0 %v530
    %7106 = vmatpush.msra.mxu0 %v522
    %7107 = vmatpush.msra.mxu0 %v514
    %7108 = vmatpush.msra.mxu0 %v506
    %7109 = vmatpush.msra.mxu0 %v498
    %7110 = vmatpush.msra.mxu0 %v490
    %7111 = vmatpush.msra.mxu0 %v482
    %7112 = vmatpush.msra.mxu0 %v474
    %7113 = vmatpush.msra.mxu0 %v466
    %7114 = vmatmul.f32.gmra.mxu0 %v6701
    %v7115 = vpop.f32.mrf.mxu0
    %v7116 = vadd.f32 0.0, %v7115
    %7117 = vdwg.mxu0
    %7118 = vmatpush.msra.mxu0 %v714
    %7119 = vmatpush.msra.mxu0 %v706
    %7120 = vmatpush.msra.mxu0 %v698
    %7121 = vmatpush.msra.mxu0 %v690
    %7122 = vmatpush.msra.mxu0 %v682
    %7123 = vmatpush.msra.mxu0 %v674
    %7124 = vmatpush.msra.mxu0 %v666
    %7125 = vmatpush.msra.mxu0 %v658
    %7126 = vmatpush.msra.mxu0 %v650
    %7127 = vmatpush.msra.mxu0 %v642
    %7128 = vmatpush.msra.mxu0 %v634
    %7129 = vmatpush.msra.mxu0 %v626
    %7130 = vmatpush.msra.mxu0 %v618
    %7131 = vmatpush.msra.mxu0 %v610
    %7132 = vmatpush.msra.mxu0 %v602
    %7133 = vmatpush.msra.mxu0 %v594
    %7134 = vmatmul.f32.gmra.mxu0 %v6702
    %v7135 = vpop.f32.mrf.mxu0
    %v7136 = vadd.f32 %v7116, %v7135
    %7137 = vdwg.mxu0
    %7138 = vmatpush.msra.mxu0 %v587
    %7139 = vmatpush.msra.mxu0 %v579
    %7140 = vmatpush.msra.mxu0 %v571
    %7141 = vmatpush.msra.mxu0 %v563
    %7142 = vmatpush.msra.mxu0 %v555
    %7143 = vmatpush.msra.mxu0 %v547
    %7144 = vmatpush.msra.mxu0 %v539
    %7145 = vmatpush.msra.mxu0 %v531
    %7146 = vmatpush.msra.mxu0 %v523
    %7147 = vmatpush.msra.mxu0 %v515
    %7148 = vmatpush.msra.mxu0 %v507
    %7149 = vmatpush.msra.mxu0 %v499
    %7150 = vmatpush.msra.mxu0 %v491
    %7151 = vmatpush.msra.mxu0 %v483
    %7152 = vmatpush.msra.mxu0 %v475
    %7153 = vmatpush.msra.mxu0 %v467
    %7154 = vmatmul.f32.gmra.mxu0 %v6701
    %v7155 = vpop.f32.mrf.mxu0
    %v7156 = vadd.f32 0.0, %v7155
    %7157 = vdwg.mxu0
    %7158 = vmatpush.msra.mxu0 %v715
    %7159 = vmatpush.msra.mxu0 %v707
    %7160 = vmatpush.msra.mxu0 %v699
    %7161 = vmatpush.msra.mxu0 %v691
    %7162 = vmatpush.msra.mxu0 %v683
    %7163 = vmatpush.msra.mxu0 %v675
    %7164 = vmatpush.msra.mxu0 %v667
    %7165 = vmatpush.msra.mxu0 %v659
    %7166 = vmatpush.msra.mxu0 %v651
    %7167 = vmatpush.msra.mxu0 %v643
    %7168 = vmatpush.msra.mxu0 %v635
    %7169 = vmatpush.msra.mxu0 %v627
    %7170 = vmatpush.msra.mxu0 %v619
    %7171 = vmatpush.msra.mxu0 %v611
    %7172 = vmatpush.msra.mxu0 %v603
    %7173 = vmatpush.msra.mxu0 %v595
    %7174 = vmatmul.f32.gmra.mxu0 %v6702
    %v7175 = vpop.f32.mrf.mxu0
    %v7176 = vadd.f32 %v7156, %v7175
    %7177 = vdwg.mxu0
    %7178 = vmatpush.msra.mxu0 %v588
    %7179 = vmatpush.msra.mxu0 %v580
    %7180 = vmatpush.msra.mxu0 %v572
    %7181 = vmatpush.msra.mxu0 %v564
    %7182 = vmatpush.msra.mxu0 %v556
    %7183 = vmatpush.msra.mxu0 %v548
    %7184 = vmatpush.msra.mxu0 %v540
    %7185 = vmatpush.msra.mxu0 %v532
    %7186 = vmatpush.msra.mxu0 %v524
    %7187 = vmatpush.msra.mxu0 %v516
    %7188 = vmatpush.msra.mxu0 %v508
    %7189 = vmatpush.msra.mxu0 %v500
    %7190 = vmatpush.msra.mxu0 %v492
    %7191 = vmatpush.msra.mxu0 %v484
    %7192 = vmatpush.msra.mxu0 %v476
    %7193 = vmatpush.msra.mxu0 %v468
    %7194 = vmatmul.f32.gmra.mxu0 %v6701
    %v7195 = vpop.f32.mrf.mxu0
    %v7196 = vadd.f32 0.0, %v7195
    %7197 = vdwg.mxu0
    %7198 = vmatpush.msra.mxu0 %v716
    %7199 = vmatpush.msra.mxu0 %v708
    %7200 = vmatpush.msra.mxu0 %v700
    %7201 = vmatpush.msra.mxu0 %v692
    %7202 = vmatpush.msra.mxu0 %v684
    %7203 = vmatpush.msra.mxu0 %v676
    %7204 = vmatpush.msra.mxu0 %v668
    %7205 = vmatpush.msra.mxu0 %v660
    %7206 = vmatpush.msra.mxu0 %v652
    %7207 = vmatpush.msra.mxu0 %v644
    %7208 = vmatpush.msra.mxu0 %v636
    %7209 = vmatpush.msra.mxu0 %v628
    %7210 = vmatpush.msra.mxu0 %v620
    %7211 = vmatpush.msra.mxu0 %v612
    %7212 = vmatpush.msra.mxu0 %v604
    %7213 = vmatpush.msra.mxu0 %v596
    %7214 = vmatmul.f32.gmra.mxu0 %v6702
    %v7215 = vpop.f32.mrf.mxu0
    %v7216 = vadd.f32 %v7196, %v7215
    %7217 = vdwg.mxu0
    %7218 = vmatpush.msra.mxu0 %v589
    %7219 = vmatpush.msra.mxu0 %v581
    %7220 = vmatpush.msra.mxu0 %v573
    %7221 = vmatpush.msra.mxu0 %v565
    %7222 = vmatpush.msra.mxu0 %v557
    %7223 = vmatpush.msra.mxu0 %v549
    %7224 = vmatpush.msra.mxu0 %v541
    %7225 = vmatpush.msra.mxu0 %v533
    %7226 = vmatpush.msra.mxu0 %v525
    %7227 = vmatpush.msra.mxu0 %v517
    %7228 = vmatpush.msra.mxu0 %v509
    %7229 = vmatpush.msra.mxu0 %v501
    %7230 = vmatpush.msra.mxu0 %v493
    %7231 = vmatpush.msra.mxu0 %v485
    %7232 = vmatpush.msra.mxu0 %v477
    %7233 = vmatpush.msra.mxu0 %v469
    %7234 = vmatmul.f32.gmra.mxu0 %v6701
    %v7235 = vpop.f32.mrf.mxu0
    %v7236 = vadd.f32 0.0, %v7235
    %7237 = vdwg.mxu0
    %7238 = vmatpush.msra.mxu0 %v717
    %7239 = vmatpush.msra.mxu0 %v709
    %7240 = vmatpush.msra.mxu0 %v701
    %7241 = vmatpush.msra.mxu0 %v693
    %7242 = vmatpush.msra.mxu0 %v685
    %7243 = vmatpush.msra.mxu0 %v677
    %7244 = vmatpush.msra.mxu0 %v669
    %7245 = vmatpush.msra.mxu0 %v661
    %7246 = vmatpush.msra.mxu0 %v653
    %7247 = vmatpush.msra.mxu0 %v645
    %7248 = vmatpush.msra.mxu0 %v637
    %7249 = vmatpush.msra.mxu0 %v629
    %7250 = vmatpush.msra.mxu0 %v621
    %7251 = vmatpush.msra.mxu0 %v613
    %7252 = vmatpush.msra.mxu0 %v605
    %7253 = vmatpush.msra.mxu0 %v597
    %7254 = vmatmul.f32.gmra.mxu0 %v6702
    %v7255 = vpop.f32.mrf.mxu0
    %v7256 = vadd.f32 %v7236, %v7255
    %7257 = vdwg.mxu0
    %7258 = vmatpush.msra.mxu0 %v454
    %7259 = vmatpush.msra.mxu0 %v446
    %7260 = vmatpush.msra.mxu0 %v438
    %7261 = vmatpush.msra.mxu0 %v430
    %7262 = vmatpush.msra.mxu0 %v422
    %7263 = vmatpush.msra.mxu0 %v414
    %7264 = vmatpush.msra.mxu0 %v406
    %7265 = vmatpush.msra.mxu0 %v398
    %7266 = vmatpush.msra.mxu0 %v390
    %7267 = vmatpush.msra.mxu0 %v382
    %7268 = vmatpush.msra.mxu0 %v374
    %7269 = vmatpush.msra.mxu0 %v366
    %7270 = vmatpush.msra.mxu0 %v358
    %7271 = vmatpush.msra.mxu0 %v350
    %7272 = vmatpush.msra.mxu0 %v342
    %7273 = vmatpush.msra.mxu0 %v334
    %7274 = vmatmul.f32.gmra.mxu0 %v6937
    %v7275 = vpop.f32.mrf.mxu0
    %v7276 = vadd.f32 %v6976, %v7275
    %7277 = vdwg.mxu0
    %7278 = vmatpush.msra.mxu0 %v455
    %7279 = vmatpush.msra.mxu0 %v447
    %7280 = vmatpush.msra.mxu0 %v439
    %7281 = vmatpush.msra.mxu0 %v431
    %7282 = vmatpush.msra.mxu0 %v423
    %7283 = vmatpush.msra.mxu0 %v415
    %7284 = vmatpush.msra.mxu0 %v407
    %7285 = vmatpush.msra.mxu0 %v399
    %7286 = vmatpush.msra.mxu0 %v391
    %7287 = vmatpush.msra.mxu0 %v383
    %7288 = vmatpush.msra.mxu0 %v375
    %7289 = vmatpush.msra.mxu0 %v367
    %7290 = vmatpush.msra.mxu0 %v359
    %7291 = vmatpush.msra.mxu0 %v351
    %7292 = vmatpush.msra.mxu0 %v343
    %7293 = vmatpush.msra.mxu0 %v335
    %7294 = vmatmul.f32.gmra.mxu0 %v6937
    %v7295 = vpop.f32.mrf.mxu0
    %v7296 = vadd.f32 %v7016, %v7295
    %7297 = vdwg.mxu0
    %7298 = vmatpush.msra.mxu0 %v456
    %7299 = vmatpush.msra.mxu0 %v448
    %7300 = vmatpush.msra.mxu0 %v440
    %7301 = vmatpush.msra.mxu0 %v432
    %7302 = vmatpush.msra.mxu0 %v424
    %7303 = vmatpush.msra.mxu0 %v416
    %7304 = vmatpush.msra.mxu0 %v408
    %7305 = vmatpush.msra.mxu0 %v400
    %7306 = vmatpush.msra.mxu0 %v392
    %7307 = vmatpush.msra.mxu0 %v384
    %7308 = vmatpush.msra.mxu0 %v376
    %7309 = vmatpush.msra.mxu0 %v368
    %7310 = vmatpush.msra.mxu0 %v360
    %7311 = vmatpush.msra.mxu0 %v352
    %7312 = vmatpush.msra.mxu0 %v344
    %7313 = vmatpush.msra.mxu0 %v336
    %7314 = vmatmul.f32.gmra.mxu0 %v6937
    %v7315 = vpop.f32.mrf.mxu0
    %v7316 = vadd.f32 %v7056, %v7315
    %7317 = vdwg.mxu0
    %7318 = vmatpush.msra.mxu0 %v457
    %7319 = vmatpush.msra.mxu0 %v449
    %7320 = vmatpush.msra.mxu0 %v441
    %7321 = vmatpush.msra.mxu0 %v433
    %7322 = vmatpush.msra.mxu0 %v425
    %7323 = vmatpush.msra.mxu0 %v417
    %7324 = vmatpush.msra.mxu0 %v409
    %7325 = vmatpush.msra.mxu0 %v401
    %7326 = vmatpush.msra.mxu0 %v393
    %7327 = vmatpush.msra.mxu0 %v385
    %7328 = vmatpush.msra.mxu0 %v377
    %7329 = vmatpush.msra.mxu0 %v369
    %7330 = vmatpush.msra.mxu0 %v361
    %7331 = vmatpush.msra.mxu0 %v353
    %7332 = vmatpush.msra.mxu0 %v345
    %7333 = vmatpush.msra.mxu0 %v337
    %7334 = vmatmul.f32.gmra.mxu0 %v6937
    %v7335 = vpop.f32.mrf.mxu0
    %v7336 = vadd.f32 %v7096, %v7335
    %7337 = vdwg.mxu0
    %7338 = vmatpush.msra.mxu0 %v458
    %7339 = vmatpush.msra.mxu0 %v450
    %7340 = vmatpush.msra.mxu0 %v442
    %7341 = vmatpush.msra.mxu0 %v434
    %7342 = vmatpush.msra.mxu0 %v426
    %7343 = vmatpush.msra.mxu0 %v418
    %7344 = vmatpush.msra.mxu0 %v410
    %7345 = vmatpush.msra.mxu0 %v402
    %7346 = vmatpush.msra.mxu0 %v394
    %7347 = vmatpush.msra.mxu0 %v386
    %7348 = vmatpush.msra.mxu0 %v378
    %7349 = vmatpush.msra.mxu0 %v370
    %7350 = vmatpush.msra.mxu0 %v362
    %7351 = vmatpush.msra.mxu0 %v354
    %7352 = vmatpush.msra.mxu0 %v346
    %7353 = vmatpush.msra.mxu0 %v338
    %7354 = vmatmul.f32.gmra.mxu0 %v6937
    %v7355 = vpop.f32.mrf.mxu0
    %v7356 = vadd.f32 %v7136, %v7355
    %7357 = vdwg.mxu0
    %7358 = vmatpush.msra.mxu0 %v459
    %7359 = vmatpush.msra.mxu0 %v451
    %7360 = vmatpush.msra.mxu0 %v443
    %7361 = vmatpush.msra.mxu0 %v435
    %7362 = vmatpush.msra.mxu0 %v427
    %7363 = vmatpush.msra.mxu0 %v419
    %7364 = vmatpush.msra.mxu0 %v411
    %7365 = vmatpush.msra.mxu0 %v403
    %7366 = vmatpush.msra.mxu0 %v395
    %7367 = vmatpush.msra.mxu0 %v387
    %7368 = vmatpush.msra.mxu0 %v379
    %7369 = vmatpush.msra.mxu0 %v371
    %7370 = vmatpush.msra.mxu0 %v363
    %7371 = vmatpush.msra.mxu0 %v355
    %7372 = vmatpush.msra.mxu0 %v347
    %7373 = vmatpush.msra.mxu0 %v339
    %7374 = vmatmul.f32.gmra.mxu0 %v6937
    %v7375 = vpop.f32.mrf.mxu0
    %v7376 = vadd.f32 %v7176, %v7375
    %7377 = vdwg.mxu0
    %7378 = vmatpush.msra.mxu0 %v460
    %7379 = vmatpush.msra.mxu0 %v452
    %7380 = vmatpush.msra.mxu0 %v444
    %7381 = vmatpush.msra.mxu0 %v436
    %7382 = vmatpush.msra.mxu0 %v428
    %7383 = vmatpush.msra.mxu0 %v420
    %7384 = vmatpush.msra.mxu0 %v412
    %7385 = vmatpush.msra.mxu0 %v404
    %7386 = vmatpush.msra.mxu0 %v396
    %7387 = vmatpush.msra.mxu0 %v388
    %7388 = vmatpush.msra.mxu0 %v380
    %7389 = vmatpush.msra.mxu0 %v372
    %7390 = vmatpush.msra.mxu0 %v364
    %7391 = vmatpush.msra.mxu0 %v356
    %7392 = vmatpush.msra.mxu0 %v348
    %7393 = vmatpush.msra.mxu0 %v340
    %7394 = vmatmul.f32.gmra.mxu0 %v6937
    %v7395 = vpop.f32.mrf.mxu0
    %v7396 = vadd.f32 %v7216, %v7395
    %7397 = vdwg.mxu0
    %7398 = vmatpush.msra.mxu0 %v461
    %7399 = vmatpush.msra.mxu0 %v453
    %7400 = vmatpush.msra.mxu0 %v445
    %7401 = vmatpush.msra.mxu0 %v437
    %7402 = vmatpush.msra.mxu0 %v429
    %7403 = vmatpush.msra.mxu0 %v421
    %7404 = vmatpush.msra.mxu0 %v413
    %7405 = vmatpush.msra.mxu0 %v405
    %7406 = vmatpush.msra.mxu0 %v397
    %7407 = vmatpush.msra.mxu0 %v389
    %7408 = vmatpush.msra.mxu0 %v381
    %7409 = vmatpush.msra.mxu0 %v373
    %7410 = vmatpush.msra.mxu0 %v365
    %7411 = vmatpush.msra.mxu0 %v357
    %7412 = vmatpush.msra.mxu0 %v349
    %7413 = vmatpush.msra.mxu0 %v341
    %7414 = vmatmul.f32.gmra.mxu0 %v6937
    %v7415 = vpop.f32.mrf.mxu0
    %v7416 = vadd.f32 %v7256, %v7415
    %7417 = vdwg.mxu0
    %v7418 = vadd.f32 %v7276, %v1459
    %v7419 = vadd.f32 %v7296, %v1460
    %v7420 = vadd.f32 %v7316, %v1461
    %v7421 = vadd.f32 %v7336, %v1462
    %v7422 = vadd.f32 %v7356, %v1463
    %v7423 = vadd.f32 %v7376, %v1464
    %v7424 = vadd.f32 %v7396, %v1465
    %v7425 = vadd.f32 %v7416, %v1466
    %v7426 = vxor.u32 %v7418, 2147483648
    %v7427 = vxor.u32 %v7419, 2147483648
    %v7428 = vxor.u32 %v7420, 2147483648
    %v7429 = vxor.u32 %v7421, 2147483648
    %v7430 = vxor.u32 %v7422, 2147483648
    %v7431 = vxor.u32 %v7423, 2147483648
    %v7432 = vmul.f32 %v7426, 1.442695
    %v7433 = vpow.pop %v7432
    %v7434 = vmul.f32 %v7427, 1.442695
    %v7435 = vpow.pop %v7434
    %v7436 = vmul.f32 %v7428, 1.442695
    %v7437 = vpow.pop %v7436
    %v7438 = vmul.f32 %v7429, 1.442695
    %v7439 = vpow.pop %v7438
    %v7440 = vmul.f32 %v7430, 1.442695
    %v7441 = vpow.pop %v7440
    %v7442 = vmul.f32 %v7431, 1.442695
    %v7443 = vpow.pop %v7442
    %v7444 = vadd.f32 %v7433, 1.0
    %v7445 = vadd.f32 %v7435, 1.0
    %v7446 = vadd.f32 %v7437, 1.0
    %v7447 = vadd.f32 %v7439, 1.0
    %v7448 = vadd.f32 %v7441, 1.0
    %v7449 = vadd.f32 %v7443, 1.0
    %v7450 = vrcp.pop %v7444
    %v7451 = vmul.f32 %v7444, %v7450
    %v7452 = vsub.f32 1.0, %v7451
    %v7453 = vmul.f32 %v7450, %v7452
    %v7454 = vadd.f32 %v7450, %v7453
    %vm7455 = vweird.f32 %v7444
    %vm7456 = vweird.f32 %v7450
    %vm7457 = vmor %vm7455, %vm7456
    %v7458 = vsel %vm7457, %v7450, %v7454
    %v7459 = vand.u32 2147483647, %v7444
    %vm7460 = vcmp.eq.f32.partialorder %v7459, 8.507059e+37
    %v7461 = vand.u32 %v7444, 2147483648
    %v7462 = vor.u32 1.1754944e-38, %v7461
    %v7463 = vsel %vm7460, %v7462, %v7458
    %v7464 = vmul.f32 1.0, %v7463
    %v7465 = vrcp.pop %v7445
    %v7466 = vmul.f32 %v7445, %v7465
    %v7467 = vsub.f32 1.0, %v7466
    %v7468 = vmul.f32 %v7465, %v7467
    %v7469 = vadd.f32 %v7465, %v7468
    %vm7470 = vweird.f32 %v7445
    %vm7471 = vweird.f32 %v7465
    %vm7472 = vmor %vm7470, %vm7471
    %v7473 = vsel %vm7472, %v7465, %v7469
    %v7474 = vand.u32 2147483647, %v7445
    %vm7475 = vcmp.eq.f32.partialorder %v7474, 8.507059e+37
    %v7476 = vand.u32 %v7445, 2147483648
    %v7477 = vor.u32 1.1754944e-38, %v7476
    %v7478 = vsel %vm7475, %v7477, %v7473
    %v7479 = vmul.f32 1.0, %v7478
    %v7480 = vrcp.pop %v7446
    %v7481 = vmul.f32 %v7446, %v7480
    %v7482 = vsub.f32 1.0, %v7481
    %v7483 = vmul.f32 %v7480, %v7482
    %v7484 = vadd.f32 %v7480, %v7483
    %vm7485 = vweird.f32 %v7446
    %vm7486 = vweird.f32 %v7480
    %vm7487 = vmor %vm7485, %vm7486
    %v7488 = vsel %vm7487, %v7480, %v7484
    %v7489 = vand.u32 2147483647, %v7446
    %vm7490 = vcmp.eq.f32.partialorder %v7489, 8.507059e+37
    %v7491 = vand.u32 %v7446, 2147483648
    %v7492 = vor.u32 1.1754944e-38, %v7491
    %v7493 = vsel %vm7490, %v7492, %v7488
    %v7494 = vmul.f32 1.0, %v7493
    %v7495 = vrcp.pop %v7447
    %v7496 = vmul.f32 %v7447, %v7495
    %v7497 = vsub.f32 1.0, %v7496
    %v7498 = vmul.f32 %v7495, %v7497
    %v7499 = vadd.f32 %v7495, %v7498
    %vm7500 = vweird.f32 %v7447
    %vm7501 = vweird.f32 %v7495
    %vm7502 = vmor %vm7500, %vm7501
    %v7503 = vsel %vm7502, %v7495, %v7499
    %v7504 = vand.u32 2147483647, %v7447
    %vm7505 = vcmp.eq.f32.partialorder %v7504, 8.507059e+37
    %v7506 = vand.u32 %v7447, 2147483648
    %v7507 = vor.u32 1.1754944e-38, %v7506
    %v7508 = vsel %vm7505, %v7507, %v7503
    %v7509 = vmul.f32 1.0, %v7508
    %v7510 = vrcp.pop %v7448
    %v7511 = vmul.f32 %v7448, %v7510
    %v7512 = vsub.f32 1.0, %v7511
    %v7513 = vmul.f32 %v7510, %v7512
    %v7514 = vadd.f32 %v7510, %v7513
    %vm7515 = vweird.f32 %v7448
    %vm7516 = vweird.f32 %v7510
    %vm7517 = vmor %vm7515, %vm7516
    %v7518 = vsel %vm7517, %v7510, %v7514
    %v7519 = vand.u32 2147483647, %v7448
    %vm7520 = vcmp.eq.f32.partialorder %v7519, 8.507059e+37
    %v7521 = vand.u32 %v7448, 2147483648
    %v7522 = vor.u32 1.1754944e-38, %v7521
    %v7523 = vsel %vm7520, %v7522, %v7518
    %v7524 = vmul.f32 1.0, %v7523
    %v7525 = vrcp.pop %v7449
    %v7526 = vmul.f32 %v7449, %v7525
    %v7527 = vsub.f32 1.0, %v7526
    %v7528 = vmul.f32 %v7525, %v7527
    %v7529 = vadd.f32 %v7525, %v7528
    %vm7530 = vweird.f32 %v7449
    %vm7531 = vweird.f32 %v7525
    %vm7532 = vmor %vm7530, %vm7531
    %v7533 = vsel %vm7532, %v7525, %v7529
    %v7534 = vand.u32 2147483647, %v7449
    %vm7535 = vcmp.eq.f32.partialorder %v7534, 8.507059e+37
    %v7536 = vand.u32 %v7449, 2147483648
    %v7537 = vor.u32 1.1754944e-38, %v7536
    %v7538 = vsel %vm7535, %v7537, %v7533
    %v7539 = vmul.f32 1.0, %v7538
    %v7540 = vtanh.pop %v7424
    %v7541 = vtanh.pop %v7425
    %v7542 = vmul.f32 %v7494, %v6697
    %v7543 = vmul.f32 %v7509, %v6698
    %v7544 = vmul.f32 %v7464, %v7540
    %v7545 = vmul.f32 %v7479, %v7541
    %v7546 = vadd.f32 %v7542, %v7544
    %v7547 = vadd.f32 %v7543, %v7545
    %v7548 = vtanh.pop %v7546
    %v7549 = vtanh.pop %v7547
    %v7550 = vmul.f32 %v7524, %v7548
    %v7551 = vmul.f32 %v7539, %v7549
    %v7552 = vld [vmem:[#allocation14] sm:$0xff]
    %v7553 = vld [vmem:[#allocation14 + $0x8] sm:$0xff]
    %v7554 = vld [vmem:[#allocation14 + $0x10] sm:$0xff]
    %v7555 = vld [vmem:[#allocation14 + $0x18] sm:$0xff]
    %v7556 = vld [vmem:[#allocation14 + $0x20] sm:$0xff]
    %v7557 = vld [vmem:[#allocation14 + $0x28] sm:$0xff]
    %v7558 = vld [vmem:[#allocation14 + $0x30] sm:$0xff]
    %v7559 = vld [vmem:[#allocation14 + $0x38] sm:$0xff]
    %v7560 = vld [vmem:[#allocation14 + $0x40] sm:$0xff]
    %v7561 = vld [vmem:[#allocation14 + $0x48] sm:$0xff]
    %v7562 = vld [vmem:[#allocation14 + $0x50] sm:$0xff]
    %v7563 = vld [vmem:[#allocation14 + $0x58] sm:$0xff]
    %v7564 = vld [vmem:[#allocation14 + $0x60] sm:$0xff]
    %v7565 = vld [vmem:[#allocation14 + $0x68] sm:$0xff]
    %v7566 = vld [vmem:[#allocation14 + $0x70] sm:$0xff]
    %v7567 = vld [vmem:[#allocation14 + $0x78] sm:$0xff]
    %v7568 = vld [vmem:[#allocation14 + $0x80] sm:$0xff]
    %v7569 = vld [vmem:[#allocation14 + $0x88] sm:$0xff]
    %v7570 = vld [vmem:[#allocation14 + $0x90] sm:$0xff]
    %v7571 = vld [vmem:[#allocation14 + $0x98] sm:$0xff]
    %v7572 = vld [vmem:[#allocation14 + $0xa0] sm:$0xff]
    %v7573 = vld [vmem:[#allocation14 + $0xa8] sm:$0xff]
    %v7574 = vld [vmem:[#allocation14 + $0xb0] sm:$0xff]
    %v7575 = vld [vmem:[#allocation14 + $0xb8] sm:$0xff]
    %v7576 = vld [vmem:[#allocation14 + $0xc0] sm:$0xff]
    %v7577 = vld [vmem:[#allocation14 + $0xc8] sm:$0xff]
    %v7578 = vld [vmem:[#allocation14 + $0xd0] sm:$0xff]
    %v7579 = vld [vmem:[#allocation14 + $0xd8] sm:$0xff]
    %v7580 = vld [vmem:[#allocation14 + $0xe0] sm:$0xff]
    %v7581 = vld [vmem:[#allocation14 + $0xe8] sm:$0xff]
    %v7582 = vld [vmem:[#allocation14 + $0xf0] sm:$0xff]
    %v7583 = vld [vmem:[#allocation14 + $0xf8] sm:$0xff]
    %v7584 = vld [vmem:[#allocation14 + $0x100] sm:$0xff]
    %v7585 = vld [vmem:[#allocation14 + $0x108] sm:$0xff]
    %v7586 = vld [vmem:[#allocation14 + $0x110] sm:$0xff]
    %v7587 = vld [vmem:[#allocation14 + $0x118] sm:$0xff]
    %v7588 = vld [vmem:[#allocation14 + $0x120] sm:$0xff]
    %v7589 = vld [vmem:[#allocation14 + $0x128] sm:$0xff]
    %v7590 = vld [vmem:[#allocation14 + $0x130] sm:$0xff]
    %v7591 = vld [vmem:[#allocation14 + $0x138] sm:$0xff]
    %v7592 = vld [vmem:[#allocation14 + $0x140] sm:$0xff]
    %v7593 = vld [vmem:[#allocation14 + $0x148] sm:$0xff]
    %v7594 = vld [vmem:[#allocation14 + $0x150] sm:$0xff]
    %v7595 = vld [vmem:[#allocation14 + $0x158] sm:$0xff]
    %v7596 = vld [vmem:[#allocation14 + $0x160] sm:$0xff]
    %v7597 = vld [vmem:[#allocation14 + $0x168] sm:$0xff]
    %v7598 = vld [vmem:[#allocation14 + $0x170] sm:$0xff]
    %v7599 = vld [vmem:[#allocation14 + $0x178] sm:$0xff]
    %v7600 = vld [vmem:[#allocation14 + $0x180] sm:$0xff]
    %v7601 = vld [vmem:[#allocation14 + $0x188] sm:$0xff]
    %v7602 = vld [vmem:[#allocation14 + $0x190] sm:$0xff]
    %v7603 = vld [vmem:[#allocation14 + $0x198] sm:$0xff]
    %v7604 = vld [vmem:[#allocation14 + $0x1a0] sm:$0xff]
    %v7605 = vld [vmem:[#allocation14 + $0x1a8] sm:$0xff]
    %v7606 = vld [vmem:[#allocation14 + $0x1b0] sm:$0xff]
    %v7607 = vld [vmem:[#allocation14 + $0x1b8] sm:$0xff]
    %v7608 = vld [vmem:[#allocation14 + $0x1c0] sm:$0xff]
    %v7609 = vld [vmem:[#allocation14 + $0x1c8] sm:$0xff]
    %v7610 = vld [vmem:[#allocation14 + $0x1d0] sm:$0xff]
    %v7611 = vld [vmem:[#allocation14 + $0x1d8] sm:$0xff]
    %v7612 = vld [vmem:[#allocation14 + $0x1e0] sm:$0xff]
    %v7613 = vld [vmem:[#allocation14 + $0x1e8] sm:$0xff]
    %v7614 = vld [vmem:[#allocation14 + $0x1f0] sm:$0xff]
    %v7615 = vld [vmem:[#allocation14 + $0x1f8] sm:$0xff]
    %v7616 = vld [vmem:[#allocation14 + $0x200] sm:$0xff]
    %v7617 = vld [vmem:[#allocation14 + $0x208] sm:$0xff]
    %v7618 = vld [vmem:[#allocation14 + $0x210] sm:$0xff]
    %v7619 = vld [vmem:[#allocation14 + $0x218] sm:$0xff]
    %v7620 = vld [vmem:[#allocation14 + $0x220] sm:$0xff]
    %v7621 = vld [vmem:[#allocation14 + $0x228] sm:$0xff]
    %v7622 = vld [vmem:[#allocation14 + $0x230] sm:$0xff]
    %v7623 = vld [vmem:[#allocation14 + $0x238] sm:$0xff]
    %v7624 = vld [vmem:[#allocation14 + $0x240] sm:$0xff]
    %v7625 = vld [vmem:[#allocation14 + $0x248] sm:$0xff]
    %v7626 = vld [vmem:[#allocation14 + $0x250] sm:$0xff]
    %v7627 = vld [vmem:[#allocation14 + $0x258] sm:$0xff]
    %v7628 = vld [vmem:[#allocation14 + $0x260] sm:$0xff]
    %v7629 = vld [vmem:[#allocation14 + $0x268] sm:$0xff]
    %v7630 = vld [vmem:[#allocation14 + $0x270] sm:$0xff]
    %v7631 = vld [vmem:[#allocation14 + $0x278] sm:$0xff]
    %v7632 = vld [vmem:[#allocation14 + $0x280] sm:$0xff]
    %v7633 = vld [vmem:[#allocation14 + $0x288] sm:$0xff]
    %v7634 = vld [vmem:[#allocation14 + $0x290] sm:$0xff]
    %v7635 = vld [vmem:[#allocation14 + $0x298] sm:$0xff]
    %v7636 = vld [vmem:[#allocation14 + $0x2a0] sm:$0xff]
    %v7637 = vld [vmem:[#allocation14 + $0x2a8] sm:$0xff]
    %v7638 = vld [vmem:[#allocation14 + $0x2b0] sm:$0xff]
    %v7639 = vld [vmem:[#allocation14 + $0x2b8] sm:$0xff]
    %v7640 = vld [vmem:[#allocation14 + $0x2c0] sm:$0xff]
    %v7641 = vld [vmem:[#allocation14 + $0x2c8] sm:$0xff]
    %v7642 = vld [vmem:[#allocation14 + $0x2d0] sm:$0xff]
    %v7643 = vld [vmem:[#allocation14 + $0x2d8] sm:$0xff]
    %v7644 = vld [vmem:[#allocation14 + $0x2e0] sm:$0xff]
    %v7645 = vld [vmem:[#allocation14 + $0x2e8] sm:$0xff]
    %v7646 = vld [vmem:[#allocation14 + $0x2f0] sm:$0xff]
    %v7647 = vld [vmem:[#allocation14 + $0x2f8] sm:$0xff]
    %v7648 = vld [vmem:[#allocation14 + $0x300] sm:$0xff]
    %v7649 = vld [vmem:[#allocation14 + $0x308] sm:$0xff]
    %v7650 = vld [vmem:[#allocation14 + $0x310] sm:$0xff]
    %v7651 = vld [vmem:[#allocation14 + $0x318] sm:$0xff]
    %v7652 = vld [vmem:[#allocation14 + $0x320] sm:$0xff]
    %v7653 = vld [vmem:[#allocation14 + $0x328] sm:$0xff]
    %v7654 = vld [vmem:[#allocation14 + $0x330] sm:$0xff]
    %v7655 = vld [vmem:[#allocation14 + $0x338] sm:$0xff]
    %v7656 = vld [vmem:[#allocation14 + $0x340] sm:$0xff]
    %v7657 = vld [vmem:[#allocation14 + $0x348] sm:$0xff]
    %v7658 = vld [vmem:[#allocation14 + $0x350] sm:$0xff]
    %v7659 = vld [vmem:[#allocation14 + $0x358] sm:$0xff]
    %v7660 = vld [vmem:[#allocation14 + $0x360] sm:$0xff]
    %v7661 = vld [vmem:[#allocation14 + $0x368] sm:$0xff]
    %v7662 = vld [vmem:[#allocation14 + $0x370] sm:$0xff]
    %v7663 = vld [vmem:[#allocation14 + $0x378] sm:$0xff]
    %v7664 = vld [vmem:[#allocation14 + $0x380] sm:$0xff]
    %v7665 = vld [vmem:[#allocation14 + $0x388] sm:$0xff]
    %v7666 = vld [vmem:[#allocation14 + $0x390] sm:$0xff]
    %v7667 = vld [vmem:[#allocation14 + $0x398] sm:$0xff]
    %v7668 = vld [vmem:[#allocation14 + $0x3a0] sm:$0xff]
    %v7669 = vld [vmem:[#allocation14 + $0x3a8] sm:$0xff]
    %v7670 = vld [vmem:[#allocation14 + $0x3b0] sm:$0xff]
    %v7671 = vld [vmem:[#allocation14 + $0x3b8] sm:$0xff]
    %v7672 = vld [vmem:[#allocation14 + $0x3c0] sm:$0xff]
    %v7673 = vld [vmem:[#allocation14 + $0x3c8] sm:$0xff]
    %v7674 = vld [vmem:[#allocation14 + $0x3d0] sm:$0xff]
    %v7675 = vld [vmem:[#allocation14 + $0x3d8] sm:$0xff]
    %v7676 = vld [vmem:[#allocation14 + $0x3e0] sm:$0xff]
    %v7677 = vld [vmem:[#allocation14 + $0x3e8] sm:$0xff]
    %v7678 = vld [vmem:[#allocation14 + $0x3f0] sm:$0xff]
    %v7679 = vld [vmem:[#allocation14 + $0x3f8] sm:$0xff]
    %v7680 = vld [vmem:[#allocation16] sm:$0xf]
    %v7682 = vperm.slane %v7680, 0
    %v7683 = vperm.slane %v7680, 1
    %v7684 = vperm.slane %v7680, 2
    %v7685 = vperm.slane %v7680, 3
    %7690 = vmatpush.msra.mxu0 %v7612
    %7691 = vmatpush.msra.mxu0 %v7608
    %7692 = vmatpush.msra.mxu0 %v7604
    %7693 = vmatpush.msra.mxu0 %v7600
    %7694 = vmatpush.msra.mxu0 %v7596
    %7695 = vmatpush.msra.mxu0 %v7592
    %7696 = vmatpush.msra.mxu0 %v7588
    %7697 = vmatpush.msra.mxu0 %v7584
    %7698 = vmatpush.msra.mxu0 %v7580
    %7699 = vmatpush.msra.mxu0 %v7576
    %7700 = vmatpush.msra.mxu0 %v7572
    %7701 = vmatpush.msra.mxu0 %v7568
    %7702 = vmatpush.msra.mxu0 %v7564
    %7703 = vmatpush.msra.mxu0 %v7560
    %7704 = vmatpush.msra.mxu0 %v7556
    %7705 = vmatpush.msra.mxu0 %v7552
    %7706 = vmatmul.f32.gmra.mxu0 %v7550
    %v7707 = vpop.f32.mrf.mxu0
    %v7708 = vadd.f32 %v7682, %v7707
    %7709 = vdwg.mxu0
    %7710 = vmatpush.msra.mxu0 %v7676
    %7711 = vmatpush.msra.mxu0 %v7672
    %7712 = vmatpush.msra.mxu0 %v7668
    %7713 = vmatpush.msra.mxu0 %v7664
    %7714 = vmatpush.msra.mxu0 %v7660
    %7715 = vmatpush.msra.mxu0 %v7656
    %7716 = vmatpush.msra.mxu0 %v7652
    %7717 = vmatpush.msra.mxu0 %v7648
    %7718 = vmatpush.msra.mxu0 %v7644
    %7719 = vmatpush.msra.mxu0 %v7640
    %7720 = vmatpush.msra.mxu0 %v7636
    %7721 = vmatpush.msra.mxu0 %v7632
    %7722 = vmatpush.msra.mxu0 %v7628
    %7723 = vmatpush.msra.mxu0 %v7624
    %7724 = vmatpush.msra.mxu0 %v7620
    %7725 = vmatpush.msra.mxu0 %v7616
    %7726 = vmatmul.f32.gmra.mxu0 %v7551
    %v7727 = vpop.f32.mrf.mxu0
    %v7728 = vadd.f32 %v7708, %v7727
    %7729 = vdwg.mxu0
    %7730 = vmatpush.msra.mxu0 %v7613
    %7731 = vmatpush.msra.mxu0 %v7609
    %7732 = vmatpush.msra.mxu0 %v7605
    %7733 = vmatpush.msra.mxu0 %v7601
    %7734 = vmatpush.msra.mxu0 %v7597
    %7735 = vmatpush.msra.mxu0 %v7593
    %7736 = vmatpush.msra.mxu0 %v7589
    %7737 = vmatpush.msra.mxu0 %v7585
    %7738 = vmatpush.msra.mxu0 %v7581
    %7739 = vmatpush.msra.mxu0 %v7577
    %7740 = vmatpush.msra.mxu0 %v7573
    %7741 = vmatpush.msra.mxu0 %v7569
    %7742 = vmatpush.msra.mxu0 %v7565
    %7743 = vmatpush.msra.mxu0 %v7561
    %7744 = vmatpush.msra.mxu0 %v7557
    %7745 = vmatpush.msra.mxu0 %v7553
    %7746 = vmatmul.f32.gmra.mxu0 %v7550
    %v7747 = vpop.f32.mrf.mxu0
    %v7748 = vadd.f32 %v7683, %v7747
    %7749 = vdwg.mxu0
    %7750 = vmatpush.msra.mxu0 %v7677
    %7751 = vmatpush.msra.mxu0 %v7673
    %7752 = vmatpush.msra.mxu0 %v7669
    %7753 = vmatpush.msra.mxu0 %v7665
    %7754 = vmatpush.msra.mxu0 %v7661
    %7755 = vmatpush.msra.mxu0 %v7657
    %7756 = vmatpush.msra.mxu0 %v7653
    %7757 = vmatpush.msra.mxu0 %v7649
    %7758 = vmatpush.msra.mxu0 %v7645
    %7759 = vmatpush.msra.mxu0 %v7641
    %7760 = vmatpush.msra.mxu0 %v7637
    %7761 = vmatpush.msra.mxu0 %v7633
    %7762 = vmatpush.msra.mxu0 %v7629
    %7763 = vmatpush.msra.mxu0 %v7625
    %7764 = vmatpush.msra.mxu0 %v7621
    %7765 = vmatpush.msra.mxu0 %v7617
    %7766 = vmatmul.f32.gmra.mxu0 %v7551
    %v7767 = vpop.f32.mrf.mxu0
    %v7768 = vadd.f32 %v7748, %v7767
    %7769 = vdwg.mxu0
    %7770 = vmatpush.msra.mxu0 %v7614
    %7771 = vmatpush.msra.mxu0 %v7610
    %7772 = vmatpush.msra.mxu0 %v7606
    %7773 = vmatpush.msra.mxu0 %v7602
    %7774 = vmatpush.msra.mxu0 %v7598
    %7775 = vmatpush.msra.mxu0 %v7594
    %7776 = vmatpush.msra.mxu0 %v7590
    %7777 = vmatpush.msra.mxu0 %v7586
    %7778 = vmatpush.msra.mxu0 %v7582
    %7779 = vmatpush.msra.mxu0 %v7578
    %7780 = vmatpush.msra.mxu0 %v7574
    %7781 = vmatpush.msra.mxu0 %v7570
    %7782 = vmatpush.msra.mxu0 %v7566
    %7783 = vmatpush.msra.mxu0 %v7562
    %7784 = vmatpush.msra.mxu0 %v7558
    %7785 = vmatpush.msra.mxu0 %v7554
    %7786 = vmatmul.f32.gmra.mxu0 %v7550
    %v7787 = vpop.f32.mrf.mxu0
    %v7788 = vadd.f32 %v7684, %v7787
    %7789 = vdwg.mxu0
    %7790 = vmatpush.msra.mxu0 %v7678
    %7791 = vmatpush.msra.mxu0 %v7674
    %7792 = vmatpush.msra.mxu0 %v7670
    %7793 = vmatpush.msra.mxu0 %v7666
    %7794 = vmatpush.msra.mxu0 %v7662
    %7795 = vmatpush.msra.mxu0 %v7658
    %7796 = vmatpush.msra.mxu0 %v7654
    %7797 = vmatpush.msra.mxu0 %v7650
    %7798 = vmatpush.msra.mxu0 %v7646
    %7799 = vmatpush.msra.mxu0 %v7642
    %7800 = vmatpush.msra.mxu0 %v7638
    %7801 = vmatpush.msra.mxu0 %v7634
    %7802 = vmatpush.msra.mxu0 %v7630
    %7803 = vmatpush.msra.mxu0 %v7626
    %7804 = vmatpush.msra.mxu0 %v7622
    %7805 = vmatpush.msra.mxu0 %v7618
    %7806 = vmatmul.f32.gmra.mxu0 %v7551
    %v7807 = vpop.f32.mrf.mxu0
    %v7808 = vadd.f32 %v7788, %v7807
    %7809 = vdwg.mxu0
    %7810 = vmatpush.msra.mxu0 %v7615
    %7811 = vmatpush.msra.mxu0 %v7611
    %7812 = vmatpush.msra.mxu0 %v7607
    %7813 = vmatpush.msra.mxu0 %v7603
    %7814 = vmatpush.msra.mxu0 %v7599
    %7815 = vmatpush.msra.mxu0 %v7595
    %7816 = vmatpush.msra.mxu0 %v7591
    %7817 = vmatpush.msra.mxu0 %v7587
    %7818 = vmatpush.msra.mxu0 %v7583
    %7819 = vmatpush.msra.mxu0 %v7579
    %7820 = vmatpush.msra.mxu0 %v7575
    %7821 = vmatpush.msra.mxu0 %v7571
    %7822 = vmatpush.msra.mxu0 %v7567
    %7823 = vmatpush.msra.mxu0 %v7563
    %7824 = vmatpush.msra.mxu0 %v7559
    %7825 = vmatpush.msra.mxu0 %v7555
    %7826 = vmatmul.f32.gmra.mxu0 %v7550
    %v7827 = vpop.f32.mrf.mxu0
    %v7828 = vadd.f32 %v7685, %v7827
    %7829 = vdwg.mxu0
    %7830 = vmatpush.msra.mxu0 %v7679
    %7831 = vmatpush.msra.mxu0 %v7675
    %7832 = vmatpush.msra.mxu0 %v7671
    %7833 = vmatpush.msra.mxu0 %v7667
    %7834 = vmatpush.msra.mxu0 %v7663
    %7835 = vmatpush.msra.mxu0 %v7659
    %7836 = vmatpush.msra.mxu0 %v7655
    %7837 = vmatpush.msra.mxu0 %v7651
    %7838 = vmatpush.msra.mxu0 %v7647
    %7839 = vmatpush.msra.mxu0 %v7643
    %7840 = vmatpush.msra.mxu0 %v7639
    %7841 = vmatpush.msra.mxu0 %v7635
    %7842 = vmatpush.msra.mxu0 %v7631
    %7843 = vmatpush.msra.mxu0 %v7627
    %7844 = vmatpush.msra.mxu0 %v7623
    %7845 = vmatpush.msra.mxu0 %v7619
    %7846 = vmatmul.f32.gmra.mxu0 %v7551
    %v7847 = vpop.f32.mrf.mxu0
    %v7848 = vadd.f32 %v7828, %v7847
    %7849 = vdwg.mxu0
    %v7850 = vmax.f32 %v7728, 0.0
    %v7851 = vmax.f32 %v7768, 0.0
    %v7852 = vmax.f32 %v7808, 0.0
    %v7853 = vmax.f32 %v7848, 0.0
    %v7854 = vld [vmem:[#allocation17] sm:$0xff]
    %v7855 = vld [vmem:[#allocation17 + $0x8] sm:$0xff]
    %v7856 = vld [vmem:[#allocation17 + $0x10] sm:$0xff]
    %v7857 = vld [vmem:[#allocation17 + $0x18] sm:$0xff]
    %v7858 = vld [vmem:[#allocation17 + $0x20] sm:$0xff]
    %v7859 = vld [vmem:[#allocation17 + $0x28] sm:$0xff]
    %v7860 = vld [vmem:[#allocation17 + $0x30] sm:$0xff]
    %v7861 = vld [vmem:[#allocation17 + $0x38] sm:$0xff]
    %v7862 = vld [vmem:[#allocation17 + $0x40] sm:$0xff]
    %v7863 = vld [vmem:[#allocation17 + $0x48] sm:$0xff]
    %v7864 = vld [vmem:[#allocation17 + $0x50] sm:$0xff]
    %v7865 = vld [vmem:[#allocation17 + $0x58] sm:$0xff]
    %v7866 = vld [vmem:[#allocation17 + $0x60] sm:$0xff]
    %v7867 = vld [vmem:[#allocation17 + $0x68] sm:$0xff]
    %v7868 = vld [vmem:[#allocation17 + $0x70] sm:$0xff]
    %v7869 = vld [vmem:[#allocation17 + $0x78] sm:$0xff]
    %v7870 = vld [vmem:[#allocation17 + $0x80] sm:$0xff]
    %v7871 = vld [vmem:[#allocation17 + $0x88] sm:$0xff]
    %v7872 = vld [vmem:[#allocation17 + $0x90] sm:$0xff]
    %v7873 = vld [vmem:[#allocation17 + $0x98] sm:$0xff]
    %v7874 = vld [vmem:[#allocation17 + $0xa0] sm:$0xff]
    %v7875 = vld [vmem:[#allocation17 + $0xa8] sm:$0xff]
    %v7876 = vld [vmem:[#allocation17 + $0xb0] sm:$0xff]
    %v7877 = vld [vmem:[#allocation17 + $0xb8] sm:$0xff]
    %v7878 = vld [vmem:[#allocation17 + $0xc0] sm:$0xff]
    %v7879 = vld [vmem:[#allocation17 + $0xc8] sm:$0xff]
    %v7880 = vld [vmem:[#allocation17 + $0xd0] sm:$0xff]
    %v7881 = vld [vmem:[#allocation17 + $0xd8] sm:$0xff]
    %v7882 = vld [vmem:[#allocation17 + $0xe0] sm:$0xff]
    %v7883 = vld [vmem:[#allocation17 + $0xe8] sm:$0xff]
    %v7884 = vld [vmem:[#allocation17 + $0xf0] sm:$0xff]
    %v7885 = vld [vmem:[#allocation17 + $0xf8] sm:$0xff]
    %v7886 = vld [vmem:[#allocation17 + $0x100] sm:$0xff]
    %v7887 = vld [vmem:[#allocation17 + $0x108] sm:$0xff]
    %v7888 = vld [vmem:[#allocation17 + $0x110] sm:$0xff]
    %v7889 = vld [vmem:[#allocation17 + $0x118] sm:$0xff]
    %v7890 = vld [vmem:[#allocation17 + $0x120] sm:$0xff]
    %v7891 = vld [vmem:[#allocation17 + $0x128] sm:$0xff]
    %v7892 = vld [vmem:[#allocation17 + $0x130] sm:$0xff]
    %v7893 = vld [vmem:[#allocation17 + $0x138] sm:$0xff]
    %v7894 = vld [vmem:[#allocation17 + $0x140] sm:$0xff]
    %v7895 = vld [vmem:[#allocation17 + $0x148] sm:$0xff]
    %v7896 = vld [vmem:[#allocation17 + $0x150] sm:$0xff]
    %v7897 = vld [vmem:[#allocation17 + $0x158] sm:$0xff]
    %v7898 = vld [vmem:[#allocation17 + $0x160] sm:$0xff]
    %v7899 = vld [vmem:[#allocation17 + $0x168] sm:$0xff]
    %v7900 = vld [vmem:[#allocation17 + $0x170] sm:$0xff]
    %v7901 = vld [vmem:[#allocation17 + $0x178] sm:$0xff]
    %v7902 = vld [vmem:[#allocation17 + $0x180] sm:$0xff]
    %v7903 = vld [vmem:[#allocation17 + $0x188] sm:$0xff]
    %v7904 = vld [vmem:[#allocation17 + $0x190] sm:$0xff]
    %v7905 = vld [vmem:[#allocation17 + $0x198] sm:$0xff]
    %v7906 = vld [vmem:[#allocation17 + $0x1a0] sm:$0xff]
    %v7907 = vld [vmem:[#allocation17 + $0x1a8] sm:$0xff]
    %v7908 = vld [vmem:[#allocation17 + $0x1b0] sm:$0xff]
    %v7909 = vld [vmem:[#allocation17 + $0x1b8] sm:$0xff]
    %v7910 = vld [vmem:[#allocation17 + $0x1c0] sm:$0xff]
    %v7911 = vld [vmem:[#allocation17 + $0x1c8] sm:$0xff]
    %v7912 = vld [vmem:[#allocation17 + $0x1d0] sm:$0xff]
    %v7913 = vld [vmem:[#allocation17 + $0x1d8] sm:$0xff]
    %v7914 = vld [vmem:[#allocation17 + $0x1e0] sm:$0xff]
    %v7915 = vld [vmem:[#allocation17 + $0x1e8] sm:$0xff]
    %v7916 = vld [vmem:[#allocation17 + $0x1f0] sm:$0xff]
    %v7917 = vld [vmem:[#allocation17 + $0x1f8] sm:$0xff]
    %v7918 = vld [vmem:[#allocation17 + $0x200] sm:$0xff]
    %v7919 = vld [vmem:[#allocation17 + $0x208] sm:$0xff]
    %v7920 = vld [vmem:[#allocation17 + $0x210] sm:$0xff]
    %v7921 = vld [vmem:[#allocation17 + $0x218] sm:$0xff]
    %v7922 = vld [vmem:[#allocation17 + $0x220] sm:$0xff]
    %v7923 = vld [vmem:[#allocation17 + $0x228] sm:$0xff]
    %v7924 = vld [vmem:[#allocation17 + $0x230] sm:$0xff]
    %v7925 = vld [vmem:[#allocation17 + $0x238] sm:$0xff]
    %v7926 = vld [vmem:[#allocation17 + $0x240] sm:$0xff]
    %v7927 = vld [vmem:[#allocation17 + $0x248] sm:$0xff]
    %v7928 = vld [vmem:[#allocation17 + $0x250] sm:$0xff]
    %v7929 = vld [vmem:[#allocation17 + $0x258] sm:$0xff]
    %v7930 = vld [vmem:[#allocation17 + $0x260] sm:$0xff]
    %v7931 = vld [vmem:[#allocation17 + $0x268] sm:$0xff]
    %v7932 = vld [vmem:[#allocation17 + $0x270] sm:$0xff]
    %v7933 = vld [vmem:[#allocation17 + $0x278] sm:$0xff]
    %v7934 = vld [vmem:[#allocation17 + $0x280] sm:$0xff]
    %v7935 = vld [vmem:[#allocation17 + $0x288] sm:$0xff]
    %v7936 = vld [vmem:[#allocation17 + $0x290] sm:$0xff]
    %v7937 = vld [vmem:[#allocation17 + $0x298] sm:$0xff]
    %v7938 = vld [vmem:[#allocation17 + $0x2a0] sm:$0xff]
    %v7939 = vld [vmem:[#allocation17 + $0x2a8] sm:$0xff]
    %v7940 = vld [vmem:[#allocation17 + $0x2b0] sm:$0xff]
    %v7941 = vld [vmem:[#allocation17 + $0x2b8] sm:$0xff]
    %v7942 = vld [vmem:[#allocation17 + $0x2c0] sm:$0xff]
    %v7943 = vld [vmem:[#allocation17 + $0x2c8] sm:$0xff]
    %v7944 = vld [vmem:[#allocation17 + $0x2d0] sm:$0xff]
    %v7945 = vld [vmem:[#allocation17 + $0x2d8] sm:$0xff]
    %v7946 = vld [vmem:[#allocation17 + $0x2e0] sm:$0xff]
    %v7947 = vld [vmem:[#allocation17 + $0x2e8] sm:$0xff]
    %v7948 = vld [vmem:[#allocation17 + $0x2f0] sm:$0xff]
    %v7949 = vld [vmem:[#allocation17 + $0x2f8] sm:$0xff]
    %v7950 = vld [vmem:[#allocation17 + $0x300] sm:$0xff]
    %v7951 = vld [vmem:[#allocation17 + $0x308] sm:$0xff]
    %v7952 = vld [vmem:[#allocation17 + $0x310] sm:$0xff]
    %v7953 = vld [vmem:[#allocation17 + $0x318] sm:$0xff]
    %v7954 = vld [vmem:[#allocation17 + $0x320] sm:$0xff]
    %v7955 = vld [vmem:[#allocation17 + $0x328] sm:$0xff]
    %v7956 = vld [vmem:[#allocation17 + $0x330] sm:$0xff]
    %v7957 = vld [vmem:[#allocation17 + $0x338] sm:$0xff]
    %v7958 = vld [vmem:[#allocation17 + $0x340] sm:$0xff]
    %v7959 = vld [vmem:[#allocation17 + $0x348] sm:$0xff]
    %v7960 = vld [vmem:[#allocation17 + $0x350] sm:$0xff]
    %v7961 = vld [vmem:[#allocation17 + $0x358] sm:$0xff]
    %v7962 = vld [vmem:[#allocation17 + $0x360] sm:$0xff]
    %v7963 = vld [vmem:[#allocation17 + $0x368] sm:$0xff]
    %v7964 = vld [vmem:[#allocation17 + $0x370] sm:$0xff]
    %v7965 = vld [vmem:[#allocation17 + $0x378] sm:$0xff]
    %v7966 = vld [vmem:[#allocation17 + $0x380] sm:$0xff]
    %v7967 = vld [vmem:[#allocation17 + $0x388] sm:$0xff]
    %v7968 = vld [vmem:[#allocation17 + $0x390] sm:$0xff]
    %v7969 = vld [vmem:[#allocation17 + $0x398] sm:$0xff]
    %v7970 = vld [vmem:[#allocation17 + $0x3a0] sm:$0xff]
    %v7971 = vld [vmem:[#allocation17 + $0x3a8] sm:$0xff]
    %v7972 = vld [vmem:[#allocation17 + $0x3b0] sm:$0xff]
    %v7973 = vld [vmem:[#allocation17 + $0x3b8] sm:$0xff]
    %v7974 = vld [vmem:[#allocation17 + $0x3c0] sm:$0xff]
    %v7975 = vld [vmem:[#allocation17 + $0x3c8] sm:$0xff]
    %v7976 = vld [vmem:[#allocation17 + $0x3d0] sm:$0xff]
    %v7977 = vld [vmem:[#allocation17 + $0x3d8] sm:$0xff]
    %v7978 = vld [vmem:[#allocation17 + $0x3e0] sm:$0xff]
    %v7979 = vld [vmem:[#allocation17 + $0x3e8] sm:$0xff]
    %v7980 = vld [vmem:[#allocation17 + $0x3f0] sm:$0xff]
    %v7981 = vld [vmem:[#allocation17 + $0x3f8] sm:$0xff]
    %v7982 = vld [vmem:[#allocation17 + $0x400] sm:$0xff]
    %v7983 = vld [vmem:[#allocation17 + $0x408] sm:$0xff]
    %v7984 = vld [vmem:[#allocation17 + $0x410] sm:$0xff]
    %v7985 = vld [vmem:[#allocation17 + $0x418] sm:$0xff]
    %v7986 = vld [vmem:[#allocation17 + $0x420] sm:$0xff]
    %v7987 = vld [vmem:[#allocation17 + $0x428] sm:$0xff]
    %v7988 = vld [vmem:[#allocation17 + $0x430] sm:$0xff]
    %v7989 = vld [vmem:[#allocation17 + $0x438] sm:$0xff]
    %v7990 = vld [vmem:[#allocation17 + $0x440] sm:$0xff]
    %v7991 = vld [vmem:[#allocation17 + $0x448] sm:$0xff]
    %v7992 = vld [vmem:[#allocation17 + $0x450] sm:$0xff]
    %v7993 = vld [vmem:[#allocation17 + $0x458] sm:$0xff]
    %v7994 = vld [vmem:[#allocation17 + $0x460] sm:$0xff]
    %v7995 = vld [vmem:[#allocation17 + $0x468] sm:$0xff]
    %v7996 = vld [vmem:[#allocation17 + $0x470] sm:$0xff]
    %v7997 = vld [vmem:[#allocation17 + $0x478] sm:$0xff]
    %v7998 = vld [vmem:[#allocation17 + $0x480] sm:$0xff]
    %v7999 = vld [vmem:[#allocation17 + $0x488] sm:$0xff]
    %v8000 = vld [vmem:[#allocation17 + $0x490] sm:$0xff]
    %v8001 = vld [vmem:[#allocation17 + $0x498] sm:$0xff]
    %v8002 = vld [vmem:[#allocation17 + $0x4a0] sm:$0xff]
    %v8003 = vld [vmem:[#allocation17 + $0x4a8] sm:$0xff]
    %v8004 = vld [vmem:[#allocation17 + $0x4b0] sm:$0xff]
    %v8005 = vld [vmem:[#allocation17 + $0x4b8] sm:$0xff]
    %v8006 = vld [vmem:[#allocation17 + $0x4c0] sm:$0xff]
    %v8007 = vld [vmem:[#allocation17 + $0x4c8] sm:$0xff]
    %v8008 = vld [vmem:[#allocation17 + $0x4d0] sm:$0xff]
    %v8009 = vld [vmem:[#allocation17 + $0x4d8] sm:$0xff]
    %v8010 = vld [vmem:[#allocation17 + $0x4e0] sm:$0xff]
    %v8011 = vld [vmem:[#allocation17 + $0x4e8] sm:$0xff]
    %v8012 = vld [vmem:[#allocation17 + $0x4f0] sm:$0xff]
    %v8013 = vld [vmem:[#allocation17 + $0x4f8] sm:$0xff]
    %v8014 = vld [vmem:[#allocation17 + $0x500] sm:$0xff]
    %v8015 = vld [vmem:[#allocation17 + $0x508] sm:$0xff]
    %v8016 = vld [vmem:[#allocation17 + $0x510] sm:$0xff]
    %v8017 = vld [vmem:[#allocation17 + $0x518] sm:$0xff]
    %v8018 = vld [vmem:[#allocation17 + $0x520] sm:$0xff]
    %v8019 = vld [vmem:[#allocation17 + $0x528] sm:$0xff]
    %v8020 = vld [vmem:[#allocation17 + $0x530] sm:$0xff]
    %v8021 = vld [vmem:[#allocation17 + $0x538] sm:$0xff]
    %v8022 = vld [vmem:[#allocation17 + $0x540] sm:$0xff]
    %v8023 = vld [vmem:[#allocation17 + $0x548] sm:$0xff]
    %v8024 = vld [vmem:[#allocation17 + $0x550] sm:$0xff]
    %v8025 = vld [vmem:[#allocation17 + $0x558] sm:$0xff]
    %v8026 = vld [vmem:[#allocation17 + $0x560] sm:$0xff]
    %v8027 = vld [vmem:[#allocation17 + $0x568] sm:$0xff]
    %v8028 = vld [vmem:[#allocation17 + $0x570] sm:$0xff]
    %v8029 = vld [vmem:[#allocation17 + $0x578] sm:$0xff]
    %v8030 = vld [vmem:[#allocation17 + $0x580] sm:$0xff]
    %v8031 = vld [vmem:[#allocation17 + $0x588] sm:$0xff]
    %v8032 = vld [vmem:[#allocation17 + $0x590] sm:$0xff]
    %v8033 = vld [vmem:[#allocation17 + $0x598] sm:$0xff]
    %v8034 = vld [vmem:[#allocation17 + $0x5a0] sm:$0xff]
    %v8035 = vld [vmem:[#allocation17 + $0x5a8] sm:$0xff]
    %v8036 = vld [vmem:[#allocation17 + $0x5b0] sm:$0xff]
    %v8037 = vld [vmem:[#allocation17 + $0x5b8] sm:$0xff]
    %v8038 = vld [vmem:[#allocation17 + $0x5c0] sm:$0xff]
    %v8039 = vld [vmem:[#allocation17 + $0x5c8] sm:$0xff]
    %v8040 = vld [vmem:[#allocation17 + $0x5d0] sm:$0xff]
    %v8041 = vld [vmem:[#allocation17 + $0x5d8] sm:$0xff]
    %v8042 = vld [vmem:[#allocation17 + $0x5e0] sm:$0xff]
    %v8043 = vld [vmem:[#allocation17 + $0x5e8] sm:$0xff]
    %v8044 = vld [vmem:[#allocation17 + $0x5f0] sm:$0xff]
    %v8045 = vld [vmem:[#allocation17 + $0x5f8] sm:$0xff]
    %v8046 = vld [vmem:[#allocation17 + $0x600] sm:$0xff]
    %v8047 = vld [vmem:[#allocation17 + $0x608] sm:$0xff]
    %v8048 = vld [vmem:[#allocation17 + $0x610] sm:$0xff]
    %v8049 = vld [vmem:[#allocation17 + $0x618] sm:$0xff]
    %v8050 = vld [vmem:[#allocation17 + $0x620] sm:$0xff]
    %v8051 = vld [vmem:[#allocation17 + $0x628] sm:$0xff]
    %v8052 = vld [vmem:[#allocation17 + $0x630] sm:$0xff]
    %v8053 = vld [vmem:[#allocation17 + $0x638] sm:$0xff]
    %v8054 = vld [vmem:[#allocation17 + $0x640] sm:$0xff]
    %v8055 = vld [vmem:[#allocation17 + $0x648] sm:$0xff]
    %v8056 = vld [vmem:[#allocation17 + $0x650] sm:$0xff]
    %v8057 = vld [vmem:[#allocation17 + $0x658] sm:$0xff]
    %v8058 = vld [vmem:[#allocation17 + $0x660] sm:$0xff]
    %v8059 = vld [vmem:[#allocation17 + $0x668] sm:$0xff]
    %v8060 = vld [vmem:[#allocation17 + $0x670] sm:$0xff]
    %v8061 = vld [vmem:[#allocation17 + $0x678] sm:$0xff]
    %v8062 = vld [vmem:[#allocation17 + $0x680] sm:$0xff]
    %v8063 = vld [vmem:[#allocation17 + $0x688] sm:$0xff]
    %v8064 = vld [vmem:[#allocation17 + $0x690] sm:$0xff]
    %v8065 = vld [vmem:[#allocation17 + $0x698] sm:$0xff]
    %v8066 = vld [vmem:[#allocation17 + $0x6a0] sm:$0xff]
    %v8067 = vld [vmem:[#allocation17 + $0x6a8] sm:$0xff]
    %v8068 = vld [vmem:[#allocation17 + $0x6b0] sm:$0xff]
    %v8069 = vld [vmem:[#allocation17 + $0x6b8] sm:$0xff]
    %v8070 = vld [vmem:[#allocation17 + $0x6c0] sm:$0xff]
    %v8071 = vld [vmem:[#allocation17 + $0x6c8] sm:$0xff]
    %v8072 = vld [vmem:[#allocation17 + $0x6d0] sm:$0xff]
    %v8073 = vld [vmem:[#allocation17 + $0x6d8] sm:$0xff]
    %v8074 = vld [vmem:[#allocation17 + $0x6e0] sm:$0xff]
    %v8075 = vld [vmem:[#allocation17 + $0x6e8] sm:$0xff]
    %v8076 = vld [vmem:[#allocation17 + $0x6f0] sm:$0xff]
    %v8077 = vld [vmem:[#allocation17 + $0x6f8] sm:$0xff]
    %v8078 = vld [vmem:[#allocation17 + $0x700] sm:$0xff]
    %v8079 = vld [vmem:[#allocation17 + $0x708] sm:$0xff]
    %v8080 = vld [vmem:[#allocation17 + $0x710] sm:$0xff]
    %v8081 = vld [vmem:[#allocation17 + $0x718] sm:$0xff]
    %v8082 = vld [vmem:[#allocation17 + $0x720] sm:$0xff]
    %v8083 = vld [vmem:[#allocation17 + $0x728] sm:$0xff]
    %v8084 = vld [vmem:[#allocation17 + $0x730] sm:$0xff]
    %v8085 = vld [vmem:[#allocation17 + $0x738] sm:$0xff]
    %v8086 = vld [vmem:[#allocation17 + $0x740] sm:$0xff]
    %v8087 = vld [vmem:[#allocation17 + $0x748] sm:$0xff]
    %v8088 = vld [vmem:[#allocation17 + $0x750] sm:$0xff]
    %v8089 = vld [vmem:[#allocation17 + $0x758] sm:$0xff]
    %v8090 = vld [vmem:[#allocation17 + $0x760] sm:$0xff]
    %v8091 = vld [vmem:[#allocation17 + $0x768] sm:$0xff]
    %v8092 = vld [vmem:[#allocation17 + $0x770] sm:$0xff]
    %v8093 = vld [vmem:[#allocation17 + $0x778] sm:$0xff]
    %v8094 = vld [vmem:[#allocation17 + $0x780] sm:$0xff]
    %v8095 = vld [vmem:[#allocation17 + $0x788] sm:$0xff]
    %v8096 = vld [vmem:[#allocation17 + $0x790] sm:$0xff]
    %v8097 = vld [vmem:[#allocation17 + $0x798] sm:$0xff]
    %v8098 = vld [vmem:[#allocation17 + $0x7a0] sm:$0xff]
    %v8099 = vld [vmem:[#allocation17 + $0x7a8] sm:$0xff]
    %v8100 = vld [vmem:[#allocation17 + $0x7b0] sm:$0xff]
    %v8101 = vld [vmem:[#allocation17 + $0x7b8] sm:$0xff]
    %v8102 = vld [vmem:[#allocation17 + $0x7c0] sm:$0xff]
    %v8103 = vld [vmem:[#allocation17 + $0x7c8] sm:$0xff]
    %v8104 = vld [vmem:[#allocation17 + $0x7d0] sm:$0xff]
    %v8105 = vld [vmem:[#allocation17 + $0x7d8] sm:$0xff]
    %v8106 = vld [vmem:[#allocation17 + $0x7e0] sm:$0xff]
    %v8107 = vld [vmem:[#allocation17 + $0x7e8] sm:$0xff]
    %v8108 = vld [vmem:[#allocation17 + $0x7f0] sm:$0xff]
    %v8109 = vld [vmem:[#allocation17 + $0x7f8] sm:$0xff]
    %v8110 = vld [vmem:[#allocation17 + $0x800] sm:$0xff]
    %v8111 = vld [vmem:[#allocation17 + $0x808] sm:$0xff]
    %v8112 = vld [vmem:[#allocation17 + $0x810] sm:$0xff]
    %v8113 = vld [vmem:[#allocation17 + $0x818] sm:$0xff]
    %v8114 = vld [vmem:[#allocation17 + $0x820] sm:$0xff]
    %v8115 = vld [vmem:[#allocation17 + $0x828] sm:$0xff]
    %v8116 = vld [vmem:[#allocation17 + $0x830] sm:$0xff]
    %v8117 = vld [vmem:[#allocation17 + $0x838] sm:$0xff]
    %v8118 = vld [vmem:[#allocation17 + $0x840] sm:$0xff]
    %v8119 = vld [vmem:[#allocation17 + $0x848] sm:$0xff]
    %v8120 = vld [vmem:[#allocation17 + $0x850] sm:$0xff]
    %v8121 = vld [vmem:[#allocation17 + $0x858] sm:$0xff]
    %v8122 = vld [vmem:[#allocation17 + $0x860] sm:$0xff]
    %v8123 = vld [vmem:[#allocation17 + $0x868] sm:$0xff]
    %v8124 = vld [vmem:[#allocation17 + $0x870] sm:$0xff]
    %v8125 = vld [vmem:[#allocation17 + $0x878] sm:$0xff]
    %v8126 = vld [vmem:[#allocation17 + $0x880] sm:$0xff]
    %v8127 = vld [vmem:[#allocation17 + $0x888] sm:$0xff]
    %v8128 = vld [vmem:[#allocation17 + $0x890] sm:$0xff]
    %v8129 = vld [vmem:[#allocation17 + $0x898] sm:$0xff]
    %v8130 = vld [vmem:[#allocation17 + $0x8a0] sm:$0xff]
    %v8131 = vld [vmem:[#allocation17 + $0x8a8] sm:$0xff]
    %v8132 = vld [vmem:[#allocation17 + $0x8b0] sm:$0xff]
    %v8133 = vld [vmem:[#allocation17 + $0x8b8] sm:$0xff]
    %v8134 = vld [vmem:[#allocation17 + $0x8c0] sm:$0xff]
    %v8135 = vld [vmem:[#allocation17 + $0x8c8] sm:$0xff]
    %v8136 = vld [vmem:[#allocation17 + $0x8d0] sm:$0xff]
    %v8137 = vld [vmem:[#allocation17 + $0x8d8] sm:$0xff]
    %v8138 = vld [vmem:[#allocation17 + $0x8e0] sm:$0xff]
    %v8139 = vld [vmem:[#allocation17 + $0x8e8] sm:$0xff]
    %v8140 = vld [vmem:[#allocation17 + $0x8f0] sm:$0xff]
    %v8141 = vld [vmem:[#allocation17 + $0x8f8] sm:$0xff]
    %v8142 = vld [vmem:[#allocation17 + $0x900] sm:$0xff]
    %v8143 = vld [vmem:[#allocation17 + $0x908] sm:$0xff]
    %v8144 = vld [vmem:[#allocation17 + $0x910] sm:$0xff]
    %v8145 = vld [vmem:[#allocation17 + $0x918] sm:$0xff]
    %v8146 = vld [vmem:[#allocation17 + $0x920] sm:$0xff]
    %v8147 = vld [vmem:[#allocation17 + $0x928] sm:$0xff]
    %v8148 = vld [vmem:[#allocation17 + $0x930] sm:$0xff]
    %v8149 = vld [vmem:[#allocation17 + $0x938] sm:$0xff]
    %v8150 = vld [vmem:[#allocation17 + $0x940] sm:$0xff]
    %v8151 = vld [vmem:[#allocation17 + $0x948] sm:$0xff]
    %v8152 = vld [vmem:[#allocation17 + $0x950] sm:$0xff]
    %v8153 = vld [vmem:[#allocation17 + $0x958] sm:$0xff]
    %v8154 = vld [vmem:[#allocation17 + $0x960] sm:$0xff]
    %v8155 = vld [vmem:[#allocation17 + $0x968] sm:$0xff]
    %v8156 = vld [vmem:[#allocation17 + $0x970] sm:$0xff]
    %v8157 = vld [vmem:[#allocation17 + $0x978] sm:$0xff]
    %v8158 = vld [vmem:[#allocation17 + $0x980] sm:$0xff]
    %v8159 = vld [vmem:[#allocation17 + $0x988] sm:$0xff]
    %v8160 = vld [vmem:[#allocation17 + $0x990] sm:$0xff]
    %v8161 = vld [vmem:[#allocation17 + $0x998] sm:$0xff]
    %v8162 = vld [vmem:[#allocation17 + $0x9a0] sm:$0xff]
    %v8163 = vld [vmem:[#allocation17 + $0x9a8] sm:$0xff]
    %v8164 = vld [vmem:[#allocation17 + $0x9b0] sm:$0xff]
    %v8165 = vld [vmem:[#allocation17 + $0x9b8] sm:$0xff]
    %v8166 = vld [vmem:[#allocation17 + $0x9c0] sm:$0xff]
    %v8167 = vld [vmem:[#allocation17 + $0x9c8] sm:$0xff]
    %v8168 = vld [vmem:[#allocation17 + $0x9d0] sm:$0xff]
    %v8169 = vld [vmem:[#allocation17 + $0x9d8] sm:$0xff]
    %v8170 = vld [vmem:[#allocation17 + $0x9e0] sm:$0xff]
    %v8171 = vld [vmem:[#allocation17 + $0x9e8] sm:$0xff]
    %v8172 = vld [vmem:[#allocation17 + $0x9f0] sm:$0xff]
    %v8173 = vld [vmem:[#allocation17 + $0x9f8] sm:$0xff]
    %v8174 = vld [vmem:[#allocation17 + $0xa00] sm:$0xff]
    %v8175 = vld [vmem:[#allocation17 + $0xa08] sm:$0xff]
    %v8176 = vld [vmem:[#allocation17 + $0xa10] sm:$0xff]
    %v8177 = vld [vmem:[#allocation17 + $0xa18] sm:$0xff]
    %v8178 = vld [vmem:[#allocation17 + $0xa20] sm:$0xff]
    %v8179 = vld [vmem:[#allocation17 + $0xa28] sm:$0xff]
    %v8180 = vld [vmem:[#allocation17 + $0xa30] sm:$0xff]
    %v8181 = vld [vmem:[#allocation17 + $0xa38] sm:$0xff]
    %v8182 = vld [vmem:[#allocation17 + $0xa40] sm:$0xff]
    %v8183 = vld [vmem:[#allocation17 + $0xa48] sm:$0xff]
    %v8184 = vld [vmem:[#allocation17 + $0xa50] sm:$0xff]
    %v8185 = vld [vmem:[#allocation17 + $0xa58] sm:$0xff]
    %v8186 = vld [vmem:[#allocation17 + $0xa60] sm:$0xff]
    %v8187 = vld [vmem:[#allocation17 + $0xa68] sm:$0xff]
    %v8188 = vld [vmem:[#allocation17 + $0xa70] sm:$0xff]
    %v8189 = vld [vmem:[#allocation17 + $0xa78] sm:$0xff]
    %v8190 = vld [vmem:[#allocation17 + $0xa80] sm:$0xff]
    %v8191 = vld [vmem:[#allocation17 + $0xa88] sm:$0xff]
    %v8192 = vld [vmem:[#allocation17 + $0xa90] sm:$0xff]
    %v8193 = vld [vmem:[#allocation17 + $0xa98] sm:$0xff]
    %v8194 = vld [vmem:[#allocation17 + $0xaa0] sm:$0xff]
    %v8195 = vld [vmem:[#allocation17 + $0xaa8] sm:$0xff]
    %v8196 = vld [vmem:[#allocation17 + $0xab0] sm:$0xff]
    %v8197 = vld [vmem:[#allocation17 + $0xab8] sm:$0xff]
    %v8198 = vld [vmem:[#allocation17 + $0xac0] sm:$0xff]
    %v8199 = vld [vmem:[#allocation17 + $0xac8] sm:$0xff]
    %v8200 = vld [vmem:[#allocation17 + $0xad0] sm:$0xff]
    %v8201 = vld [vmem:[#allocation17 + $0xad8] sm:$0xff]
    %v8202 = vld [vmem:[#allocation17 + $0xae0] sm:$0xff]
    %v8203 = vld [vmem:[#allocation17 + $0xae8] sm:$0xff]
    %v8204 = vld [vmem:[#allocation17 + $0xaf0] sm:$0xff]
    %v8205 = vld [vmem:[#allocation17 + $0xaf8] sm:$0xff]
    %v8206 = vld [vmem:[#allocation17 + $0xb00] sm:$0xff]
    %v8207 = vld [vmem:[#allocation17 + $0xb08] sm:$0xff]
    %v8208 = vld [vmem:[#allocation17 + $0xb10] sm:$0xff]
    %v8209 = vld [vmem:[#allocation17 + $0xb18] sm:$0xff]
    %v8210 = vld [vmem:[#allocation17 + $0xb20] sm:$0xff]
    %v8211 = vld [vmem:[#allocation17 + $0xb28] sm:$0xff]
    %v8212 = vld [vmem:[#allocation17 + $0xb30] sm:$0xff]
    %v8213 = vld [vmem:[#allocation17 + $0xb38] sm:$0xff]
    %v8214 = vld [vmem:[#allocation17 + $0xb40] sm:$0xff]
    %v8215 = vld [vmem:[#allocation17 + $0xb48] sm:$0xff]
    %v8216 = vld [vmem:[#allocation17 + $0xb50] sm:$0xff]
    %v8217 = vld [vmem:[#allocation17 + $0xb58] sm:$0xff]
    %v8218 = vld [vmem:[#allocation17 + $0xb60] sm:$0xff]
    %v8219 = vld [vmem:[#allocation17 + $0xb68] sm:$0xff]
    %v8220 = vld [vmem:[#allocation17 + $0xb70] sm:$0xff]
    %v8221 = vld [vmem:[#allocation17 + $0xb78] sm:$0xff]
    %v8222 = vld [vmem:[#allocation17 + $0xb80] sm:$0xff]
    %v8223 = vld [vmem:[#allocation17 + $0xb88] sm:$0xff]
    %v8224 = vld [vmem:[#allocation17 + $0xb90] sm:$0xff]
    %v8225 = vld [vmem:[#allocation17 + $0xb98] sm:$0xff]
    %v8226 = vld [vmem:[#allocation17 + $0xba0] sm:$0xff]
    %v8227 = vld [vmem:[#allocation17 + $0xba8] sm:$0xff]
    %v8228 = vld [vmem:[#allocation17 + $0xbb0] sm:$0xff]
    %v8229 = vld [vmem:[#allocation17 + $0xbb8] sm:$0xff]
    %v8230 = vld [vmem:[#allocation17 + $0xbc0] sm:$0xff]
    %v8231 = vld [vmem:[#allocation17 + $0xbc8] sm:$0xff]
    %v8232 = vld [vmem:[#allocation17 + $0xbd0] sm:$0xff]
    %v8233 = vld [vmem:[#allocation17 + $0xbd8] sm:$0xff]
    %v8234 = vld [vmem:[#allocation17 + $0xbe0] sm:$0xff]
    %v8235 = vld [vmem:[#allocation17 + $0xbe8] sm:$0xff]
    %v8236 = vld [vmem:[#allocation17 + $0xbf0] sm:$0xff]
    %v8237 = vld [vmem:[#allocation17 + $0xbf8] sm:$0xff]
    %v8238 = vld [vmem:[#allocation17 + $0xc00] sm:$0xff]
    %v8239 = vld [vmem:[#allocation17 + $0xc08] sm:$0xff]
    %v8240 = vld [vmem:[#allocation17 + $0xc10] sm:$0xff]
    %v8241 = vld [vmem:[#allocation17 + $0xc18] sm:$0xff]
    %v8242 = vld [vmem:[#allocation17 + $0xc20] sm:$0xff]
    %v8243 = vld [vmem:[#allocation17 + $0xc28] sm:$0xff]
    %v8244 = vld [vmem:[#allocation17 + $0xc30] sm:$0xff]
    %v8245 = vld [vmem:[#allocation17 + $0xc38] sm:$0xff]
    %v8246 = vld [vmem:[#allocation17 + $0xc40] sm:$0xff]
    %v8247 = vld [vmem:[#allocation17 + $0xc48] sm:$0xff]
    %v8248 = vld [vmem:[#allocation17 + $0xc50] sm:$0xff]
    %v8249 = vld [vmem:[#allocation17 + $0xc58] sm:$0xff]
    %v8250 = vld [vmem:[#allocation17 + $0xc60] sm:$0xff]
    %v8251 = vld [vmem:[#allocation17 + $0xc68] sm:$0xff]
    %v8252 = vld [vmem:[#allocation17 + $0xc70] sm:$0xff]
    %v8253 = vld [vmem:[#allocation17 + $0xc78] sm:$0xff]
    %v8254 = vld [vmem:[#allocation17 + $0xc80] sm:$0xff]
    %v8255 = vld [vmem:[#allocation17 + $0xc88] sm:$0xff]
    %v8256 = vld [vmem:[#allocation17 + $0xc90] sm:$0xff]
    %v8257 = vld [vmem:[#allocation17 + $0xc98] sm:$0xff]
    %v8258 = vld [vmem:[#allocation17 + $0xca0] sm:$0xff]
    %v8259 = vld [vmem:[#allocation17 + $0xca8] sm:$0xff]
    %v8260 = vld [vmem:[#allocation17 + $0xcb0] sm:$0xff]
    %v8261 = vld [vmem:[#allocation17 + $0xcb8] sm:$0xff]
    %v8262 = vld [vmem:[#allocation17 + $0xcc0] sm:$0xff]
    %v8263 = vld [vmem:[#allocation17 + $0xcc8] sm:$0xff]
    %v8264 = vld [vmem:[#allocation17 + $0xcd0] sm:$0xff]
    %v8265 = vld [vmem:[#allocation17 + $0xcd8] sm:$0xff]
    %v8266 = vld [vmem:[#allocation17 + $0xce0] sm:$0xff]
    %v8267 = vld [vmem:[#allocation17 + $0xce8] sm:$0xff]
    %v8268 = vld [vmem:[#allocation17 + $0xcf0] sm:$0xff]
    %v8269 = vld [vmem:[#allocation17 + $0xcf8] sm:$0xff]
    %v8270 = vld [vmem:[#allocation17 + $0xd00] sm:$0xff]
    %v8271 = vld [vmem:[#allocation17 + $0xd08] sm:$0xff]
    %v8272 = vld [vmem:[#allocation17 + $0xd10] sm:$0xff]
    %v8273 = vld [vmem:[#allocation17 + $0xd18] sm:$0xff]
    %v8274 = vld [vmem:[#allocation17 + $0xd20] sm:$0xff]
    %v8275 = vld [vmem:[#allocation17 + $0xd28] sm:$0xff]
    %v8276 = vld [vmem:[#allocation17 + $0xd30] sm:$0xff]
    %v8277 = vld [vmem:[#allocation17 + $0xd38] sm:$0xff]
    %v8278 = vld [vmem:[#allocation17 + $0xd40] sm:$0xff]
    %v8279 = vld [vmem:[#allocation17 + $0xd48] sm:$0xff]
    %v8280 = vld [vmem:[#allocation17 + $0xd50] sm:$0xff]
    %v8281 = vld [vmem:[#allocation17 + $0xd58] sm:$0xff]
    %v8282 = vld [vmem:[#allocation17 + $0xd60] sm:$0xff]
    %v8283 = vld [vmem:[#allocation17 + $0xd68] sm:$0xff]
    %v8284 = vld [vmem:[#allocation17 + $0xd70] sm:$0xff]
    %v8285 = vld [vmem:[#allocation17 + $0xd78] sm:$0xff]
    %v8286 = vld [vmem:[#allocation17 + $0xd80] sm:$0xff]
    %v8287 = vld [vmem:[#allocation17 + $0xd88] sm:$0xff]
    %v8288 = vld [vmem:[#allocation17 + $0xd90] sm:$0xff]
    %v8289 = vld [vmem:[#allocation17 + $0xd98] sm:$0xff]
    %v8290 = vld [vmem:[#allocation17 + $0xda0] sm:$0xff]
    %v8291 = vld [vmem:[#allocation17 + $0xda8] sm:$0xff]
    %v8292 = vld [vmem:[#allocation17 + $0xdb0] sm:$0xff]
    %v8293 = vld [vmem:[#allocation17 + $0xdb8] sm:$0xff]
    %v8294 = vld [vmem:[#allocation17 + $0xdc0] sm:$0xff]
    %v8295 = vld [vmem:[#allocation17 + $0xdc8] sm:$0xff]
    %v8296 = vld [vmem:[#allocation17 + $0xdd0] sm:$0xff]
    %v8297 = vld [vmem:[#allocation17 + $0xdd8] sm:$0xff]
    %v8298 = vld [vmem:[#allocation17 + $0xde0] sm:$0xff]
    %v8299 = vld [vmem:[#allocation17 + $0xde8] sm:$0xff]
    %v8300 = vld [vmem:[#allocation17 + $0xdf0] sm:$0xff]
    %v8301 = vld [vmem:[#allocation17 + $0xdf8] sm:$0xff]
    %v8302 = vld [vmem:[#allocation17 + $0xe00] sm:$0xff]
    %v8303 = vld [vmem:[#allocation17 + $0xe08] sm:$0xff]
    %v8304 = vld [vmem:[#allocation17 + $0xe10] sm:$0xff]
    %v8305 = vld [vmem:[#allocation17 + $0xe18] sm:$0xff]
    %v8306 = vld [vmem:[#allocation17 + $0xe20] sm:$0xff]
    %v8307 = vld [vmem:[#allocation17 + $0xe28] sm:$0xff]
    %v8308 = vld [vmem:[#allocation17 + $0xe30] sm:$0xff]
    %v8309 = vld [vmem:[#allocation17 + $0xe38] sm:$0xff]
    %v8310 = vld [vmem:[#allocation17 + $0xe40] sm:$0xff]
    %v8311 = vld [vmem:[#allocation17 + $0xe48] sm:$0xff]
    %v8312 = vld [vmem:[#allocation17 + $0xe50] sm:$0xff]
    %v8313 = vld [vmem:[#allocation17 + $0xe58] sm:$0xff]
    %v8314 = vld [vmem:[#allocation17 + $0xe60] sm:$0xff]
    %v8315 = vld [vmem:[#allocation17 + $0xe68] sm:$0xff]
    %v8316 = vld [vmem:[#allocation17 + $0xe70] sm:$0xff]
    %v8317 = vld [vmem:[#allocation17 + $0xe78] sm:$0xff]
    %v8318 = vld [vmem:[#allocation17 + $0xe80] sm:$0xff]
    %v8319 = vld [vmem:[#allocation17 + $0xe88] sm:$0xff]
    %v8320 = vld [vmem:[#allocation17 + $0xe90] sm:$0xff]
    %v8321 = vld [vmem:[#allocation17 + $0xe98] sm:$0xff]
    %v8322 = vld [vmem:[#allocation17 + $0xea0] sm:$0xff]
    %v8323 = vld [vmem:[#allocation17 + $0xea8] sm:$0xff]
    %v8324 = vld [vmem:[#allocation17 + $0xeb0] sm:$0xff]
    %v8325 = vld [vmem:[#allocation17 + $0xeb8] sm:$0xff]
    %v8326 = vld [vmem:[#allocation17 + $0xec0] sm:$0xff]
    %v8327 = vld [vmem:[#allocation17 + $0xec8] sm:$0xff]
    %v8328 = vld [vmem:[#allocation17 + $0xed0] sm:$0xff]
    %v8329 = vld [vmem:[#allocation17 + $0xed8] sm:$0xff]
    %v8330 = vld [vmem:[#allocation17 + $0xee0] sm:$0xff]
    %v8331 = vld [vmem:[#allocation17 + $0xee8] sm:$0xff]
    %v8332 = vld [vmem:[#allocation17 + $0xef0] sm:$0xff]
    %v8333 = vld [vmem:[#allocation17 + $0xef8] sm:$0xff]
    %v8334 = vld [vmem:[#allocation17 + $0xf00] sm:$0xff]
    %v8335 = vld [vmem:[#allocation17 + $0xf08] sm:$0xff]
    %v8336 = vld [vmem:[#allocation17 + $0xf10] sm:$0xff]
    %v8337 = vld [vmem:[#allocation17 + $0xf18] sm:$0xff]
    %v8338 = vld [vmem:[#allocation17 + $0xf20] sm:$0xff]
    %v8339 = vld [vmem:[#allocation17 + $0xf28] sm:$0xff]
    %v8340 = vld [vmem:[#allocation17 + $0xf30] sm:$0xff]
    %v8341 = vld [vmem:[#allocation17 + $0xf38] sm:$0xff]
    %v8342 = vld [vmem:[#allocation17 + $0xf40] sm:$0xff]
    %v8343 = vld [vmem:[#allocation17 + $0xf48] sm:$0xff]
    %v8344 = vld [vmem:[#allocation17 + $0xf50] sm:$0xff]
    %v8345 = vld [vmem:[#allocation17 + $0xf58] sm:$0xff]
    %v8346 = vld [vmem:[#allocation17 + $0xf60] sm:$0xff]
    %v8347 = vld [vmem:[#allocation17 + $0xf68] sm:$0xff]
    %v8348 = vld [vmem:[#allocation17 + $0xf70] sm:$0xff]
    %v8349 = vld [vmem:[#allocation17 + $0xf78] sm:$0xff]
    %v8350 = vld [vmem:[#allocation17 + $0xf80] sm:$0xff]
    %v8351 = vld [vmem:[#allocation17 + $0xf88] sm:$0xff]
    %v8352 = vld [vmem:[#allocation17 + $0xf90] sm:$0xff]
    %v8353 = vld [vmem:[#allocation17 + $0xf98] sm:$0xff]
    %v8354 = vld [vmem:[#allocation17 + $0xfa0] sm:$0xff]
    %v8355 = vld [vmem:[#allocation17 + $0xfa8] sm:$0xff]
    %v8356 = vld [vmem:[#allocation17 + $0xfb0] sm:$0xff]
    %v8357 = vld [vmem:[#allocation17 + $0xfb8] sm:$0xff]
    %v8358 = vld [vmem:[#allocation17 + $0xfc0] sm:$0xff]
    %v8359 = vld [vmem:[#allocation17 + $0xfc8] sm:$0xff]
    %v8360 = vld [vmem:[#allocation17 + $0xfd0] sm:$0xff]
    %v8361 = vld [vmem:[#allocation17 + $0xfd8] sm:$0xff]
    %v8362 = vld [vmem:[#allocation17 + $0xfe0] sm:$0xff]
    %v8363 = vld [vmem:[#allocation17 + $0xfe8] sm:$0xff]
    %v8364 = vld [vmem:[#allocation17 + $0xff0] sm:$0xff]
    %v8365 = vld [vmem:[#allocation17 + $0xff8] sm:$0xff]
    %v8366 = vld [vmem:[#allocation19] sm:$0xff]
    %v8368 = vperm.slane %v8366, 0
    %v8369 = vperm.slane %v8366, 1
    %v8370 = vperm.slane %v8366, 2
    %v8371 = vperm.slane %v8366, 3
    %v8372 = vperm.slane %v8366, 4
    %v8373 = vperm.slane %v8366, 5
    %v8374 = vperm.slane %v8366, 6
    %v8375 = vperm.slane %v8366, 7
    %8384 = vmatpush.msra.mxu0 %v7974
    %8385 = vmatpush.msra.mxu0 %v7966
    %8386 = vmatpush.msra.mxu0 %v7958
    %8387 = vmatpush.msra.mxu0 %v7950
    %8388 = vmatpush.msra.mxu0 %v7942
    %8389 = vmatpush.msra.mxu0 %v7934
    %8390 = vmatpush.msra.mxu0 %v7926
    %8391 = vmatpush.msra.mxu0 %v7918
    %8392 = vmatpush.msra.mxu0 %v7910
    %8393 = vmatpush.msra.mxu0 %v7902
    %8394 = vmatpush.msra.mxu0 %v7894
    %8395 = vmatpush.msra.mxu0 %v7886
    %8396 = vmatpush.msra.mxu0 %v7878
    %8397 = vmatpush.msra.mxu0 %v7870
    %8398 = vmatpush.msra.mxu0 %v7862
    %8399 = vmatpush.msra.mxu0 %v7854
    %8400 = vmatmul.f32.gmra.mxu0 %v7850
    %v8401 = vpop.f32.mrf.mxu0
    %v8402 = vadd.f32 %v8368, %v8401
    %8403 = vdwg.mxu0
    %8404 = vmatpush.msra.mxu0 %v8102
    %8405 = vmatpush.msra.mxu0 %v8094
    %8406 = vmatpush.msra.mxu0 %v8086
    %8407 = vmatpush.msra.mxu0 %v8078
    %8408 = vmatpush.msra.mxu0 %v8070
    %8409 = vmatpush.msra.mxu0 %v8062
    %8410 = vmatpush.msra.mxu0 %v8054
    %8411 = vmatpush.msra.mxu0 %v8046
    %8412 = vmatpush.msra.mxu0 %v8038
    %8413 = vmatpush.msra.mxu0 %v8030
    %8414 = vmatpush.msra.mxu0 %v8022
    %8415 = vmatpush.msra.mxu0 %v8014
    %8416 = vmatpush.msra.mxu0 %v8006
    %8417 = vmatpush.msra.mxu0 %v7998
    %8418 = vmatpush.msra.mxu0 %v7990
    %8419 = vmatpush.msra.mxu0 %v7982
    %8420 = vmatmul.f32.gmra.mxu0 %v7851
    %v8421 = vpop.f32.mrf.mxu0
    %v8422 = vadd.f32 %v8402, %v8421
    %8423 = vdwg.mxu0
    %8424 = vmatpush.msra.mxu0 %v8230
    %8425 = vmatpush.msra.mxu0 %v8222
    %8426 = vmatpush.msra.mxu0 %v8214
    %8427 = vmatpush.msra.mxu0 %v8206
    %8428 = vmatpush.msra.mxu0 %v8198
    %8429 = vmatpush.msra.mxu0 %v8190
    %8430 = vmatpush.msra.mxu0 %v8182
    %8431 = vmatpush.msra.mxu0 %v8174
    %8432 = vmatpush.msra.mxu0 %v8166
    %8433 = vmatpush.msra.mxu0 %v8158
    %8434 = vmatpush.msra.mxu0 %v8150
    %8435 = vmatpush.msra.mxu0 %v8142
    %8436 = vmatpush.msra.mxu0 %v8134
    %8437 = vmatpush.msra.mxu0 %v8126
    %8438 = vmatpush.msra.mxu0 %v8118
    %8439 = vmatpush.msra.mxu0 %v8110
    %8440 = vmatmul.f32.gmra.mxu0 %v7852
    %v8441 = vpop.f32.mrf.mxu0
    %v8442 = vadd.f32 %v8422, %v8441
    %8443 = vdwg.mxu0
    %8444 = vmatpush.msra.mxu0 %v8358
    %8445 = vmatpush.msra.mxu0 %v8350
    %8446 = vmatpush.msra.mxu0 %v8342
    %8447 = vmatpush.msra.mxu0 %v8334
    %8448 = vmatpush.msra.mxu0 %v8326
    %8449 = vmatpush.msra.mxu0 %v8318
    %8450 = vmatpush.msra.mxu0 %v8310
    %8451 = vmatpush.msra.mxu0 %v8302
    %8452 = vmatpush.msra.mxu0 %v8294
    %8453 = vmatpush.msra.mxu0 %v8286
    %8454 = vmatpush.msra.mxu0 %v8278
    %8455 = vmatpush.msra.mxu0 %v8270
    %8456 = vmatpush.msra.mxu0 %v8262
    %8457 = vmatpush.msra.mxu0 %v8254
    %8458 = vmatpush.msra.mxu0 %v8246
    %8459 = vmatpush.msra.mxu0 %v8238
    %8460 = vmatmul.f32.gmra.mxu0 %v7853
    %v8461 = vpop.f32.mrf.mxu0
    %v8462 = vadd.f32 %v8442, %v8461
    %8463 = vdwg.mxu0
    %8464 = vmatpush.msra.mxu0 %v7975
    %8465 = vmatpush.msra.mxu0 %v7967
    %8466 = vmatpush.msra.mxu0 %v7959
    %8467 = vmatpush.msra.mxu0 %v7951
    %8468 = vmatpush.msra.mxu0 %v7943
    %8469 = vmatpush.msra.mxu0 %v7935
    %8470 = vmatpush.msra.mxu0 %v7927
    %8471 = vmatpush.msra.mxu0 %v7919
    %8472 = vmatpush.msra.mxu0 %v7911
    %8473 = vmatpush.msra.mxu0 %v7903
    %8474 = vmatpush.msra.mxu0 %v7895
    %8475 = vmatpush.msra.mxu0 %v7887
    %8476 = vmatpush.msra.mxu0 %v7879
    %8477 = vmatpush.msra.mxu0 %v7871
    %8478 = vmatpush.msra.mxu0 %v7863
    %8479 = vmatpush.msra.mxu0 %v7855
    %8480 = vmatmul.f32.gmra.mxu0 %v7850
    %v8481 = vpop.f32.mrf.mxu0
    %v8482 = vadd.f32 %v8369, %v8481
    %8483 = vdwg.mxu0
    %8484 = vmatpush.msra.mxu0 %v8103
    %8485 = vmatpush.msra.mxu0 %v8095
    %8486 = vmatpush.msra.mxu0 %v8087
    %8487 = vmatpush.msra.mxu0 %v8079
    %8488 = vmatpush.msra.mxu0 %v8071
    %8489 = vmatpush.msra.mxu0 %v8063
    %8490 = vmatpush.msra.mxu0 %v8055
    %8491 = vmatpush.msra.mxu0 %v8047
    %8492 = vmatpush.msra.mxu0 %v8039
    %8493 = vmatpush.msra.mxu0 %v8031
    %8494 = vmatpush.msra.mxu0 %v8023
    %8495 = vmatpush.msra.mxu0 %v8015
    %8496 = vmatpush.msra.mxu0 %v8007
    %8497 = vmatpush.msra.mxu0 %v7999
    %8498 = vmatpush.msra.mxu0 %v7991
    %8499 = vmatpush.msra.mxu0 %v7983
    %8500 = vmatmul.f32.gmra.mxu0 %v7851
    %v8501 = vpop.f32.mrf.mxu0
    %v8502 = vadd.f32 %v8482, %v8501
    %8503 = vdwg.mxu0
    %8504 = vmatpush.msra.mxu0 %v8231
    %8505 = vmatpush.msra.mxu0 %v8223
    %8506 = vmatpush.msra.mxu0 %v8215
    %8507 = vmatpush.msra.mxu0 %v8207
    %8508 = vmatpush.msra.mxu0 %v8199
    %8509 = vmatpush.msra.mxu0 %v8191
    %8510 = vmatpush.msra.mxu0 %v8183
    %8511 = vmatpush.msra.mxu0 %v8175
    %8512 = vmatpush.msra.mxu0 %v8167
    %8513 = vmatpush.msra.mxu0 %v8159
    %8514 = vmatpush.msra.mxu0 %v8151
    %8515 = vmatpush.msra.mxu0 %v8143
    %8516 = vmatpush.msra.mxu0 %v8135
    %8517 = vmatpush.msra.mxu0 %v8127
    %8518 = vmatpush.msra.mxu0 %v8119
    %8519 = vmatpush.msra.mxu0 %v8111
    %8520 = vmatmul.f32.gmra.mxu0 %v7852
    %v8521 = vpop.f32.mrf.mxu0
    %v8522 = vadd.f32 %v8502, %v8521
    %8523 = vdwg.mxu0
    %8524 = vmatpush.msra.mxu0 %v8359
    %8525 = vmatpush.msra.mxu0 %v8351
    %8526 = vmatpush.msra.mxu0 %v8343
    %8527 = vmatpush.msra.mxu0 %v8335
    %8528 = vmatpush.msra.mxu0 %v8327
    %8529 = vmatpush.msra.mxu0 %v8319
    %8530 = vmatpush.msra.mxu0 %v8311
    %8531 = vmatpush.msra.mxu0 %v8303
    %8532 = vmatpush.msra.mxu0 %v8295
    %8533 = vmatpush.msra.mxu0 %v8287
    %8534 = vmatpush.msra.mxu0 %v8279
    %8535 = vmatpush.msra.mxu0 %v8271
    %8536 = vmatpush.msra.mxu0 %v8263
    %8537 = vmatpush.msra.mxu0 %v8255
    %8538 = vmatpush.msra.mxu0 %v8247
    %8539 = vmatpush.msra.mxu0 %v8239
    %8540 = vmatmul.f32.gmra.mxu0 %v7853
    %v8541 = vpop.f32.mrf.mxu0
    %v8542 = vadd.f32 %v8522, %v8541
    %8543 = vdwg.mxu0
    %8544 = vmatpush.msra.mxu0 %v7976
    %8545 = vmatpush.msra.mxu0 %v7968
    %8546 = vmatpush.msra.mxu0 %v7960
    %8547 = vmatpush.msra.mxu0 %v7952
    %8548 = vmatpush.msra.mxu0 %v7944
    %8549 = vmatpush.msra.mxu0 %v7936
    %8550 = vmatpush.msra.mxu0 %v7928
    %8551 = vmatpush.msra.mxu0 %v7920
    %8552 = vmatpush.msra.mxu0 %v7912
    %8553 = vmatpush.msra.mxu0 %v7904
    %8554 = vmatpush.msra.mxu0 %v7896
    %8555 = vmatpush.msra.mxu0 %v7888
    %8556 = vmatpush.msra.mxu0 %v7880
    %8557 = vmatpush.msra.mxu0 %v7872
    %8558 = vmatpush.msra.mxu0 %v7864
    %8559 = vmatpush.msra.mxu0 %v7856
    %8560 = vmatmul.f32.gmra.mxu0 %v7850
    %v8561 = vpop.f32.mrf.mxu0
    %v8562 = vadd.f32 %v8370, %v8561
    %8563 = vdwg.mxu0
    %8564 = vmatpush.msra.mxu0 %v8104
    %8565 = vmatpush.msra.mxu0 %v8096
    %8566 = vmatpush.msra.mxu0 %v8088
    %8567 = vmatpush.msra.mxu0 %v8080
    %8568 = vmatpush.msra.mxu0 %v8072
    %8569 = vmatpush.msra.mxu0 %v8064
    %8570 = vmatpush.msra.mxu0 %v8056
    %8571 = vmatpush.msra.mxu0 %v8048
    %8572 = vmatpush.msra.mxu0 %v8040
    %8573 = vmatpush.msra.mxu0 %v8032
    %8574 = vmatpush.msra.mxu0 %v8024
    %8575 = vmatpush.msra.mxu0 %v8016
    %8576 = vmatpush.msra.mxu0 %v8008
    %8577 = vmatpush.msra.mxu0 %v8000
    %8578 = vmatpush.msra.mxu0 %v7992
    %8579 = vmatpush.msra.mxu0 %v7984
    %8580 = vmatmul.f32.gmra.mxu0 %v7851
    %v8581 = vpop.f32.mrf.mxu0
    %v8582 = vadd.f32 %v8562, %v8581
    %8583 = vdwg.mxu0
    %8584 = vmatpush.msra.mxu0 %v8232
    %8585 = vmatpush.msra.mxu0 %v8224
    %8586 = vmatpush.msra.mxu0 %v8216
    %8587 = vmatpush.msra.mxu0 %v8208
    %8588 = vmatpush.msra.mxu0 %v8200
    %8589 = vmatpush.msra.mxu0 %v8192
    %8590 = vmatpush.msra.mxu0 %v8184
    %8591 = vmatpush.msra.mxu0 %v8176
    %8592 = vmatpush.msra.mxu0 %v8168
    %8593 = vmatpush.msra.mxu0 %v8160
    %8594 = vmatpush.msra.mxu0 %v8152
    %8595 = vmatpush.msra.mxu0 %v8144
    %8596 = vmatpush.msra.mxu0 %v8136
    %8597 = vmatpush.msra.mxu0 %v8128
    %8598 = vmatpush.msra.mxu0 %v8120
    %8599 = vmatpush.msra.mxu0 %v8112
    %8600 = vmatmul.f32.gmra.mxu0 %v7852
    %v8601 = vpop.f32.mrf.mxu0
    %v8602 = vadd.f32 %v8582, %v8601
    %8603 = vdwg.mxu0
    %8604 = vmatpush.msra.mxu0 %v8360
    %8605 = vmatpush.msra.mxu0 %v8352
    %8606 = vmatpush.msra.mxu0 %v8344
    %8607 = vmatpush.msra.mxu0 %v8336
    %8608 = vmatpush.msra.mxu0 %v8328
    %8609 = vmatpush.msra.mxu0 %v8320
    %8610 = vmatpush.msra.mxu0 %v8312
    %8611 = vmatpush.msra.mxu0 %v8304
    %8612 = vmatpush.msra.mxu0 %v8296
    %8613 = vmatpush.msra.mxu0 %v8288
    %8614 = vmatpush.msra.mxu0 %v8280
    %8615 = vmatpush.msra.mxu0 %v8272
    %8616 = vmatpush.msra.mxu0 %v8264
    %8617 = vmatpush.msra.mxu0 %v8256
    %8618 = vmatpush.msra.mxu0 %v8248
    %8619 = vmatpush.msra.mxu0 %v8240
    %8620 = vmatmul.f32.gmra.mxu0 %v7853
    %v8621 = vpop.f32.mrf.mxu0
    %v8622 = vadd.f32 %v8602, %v8621
    %8623 = vdwg.mxu0
    %8624 = vmatpush.msra.mxu0 %v7977
    %8625 = vmatpush.msra.mxu0 %v7969
    %8626 = vmatpush.msra.mxu0 %v7961
    %8627 = vmatpush.msra.mxu0 %v7953
    %8628 = vmatpush.msra.mxu0 %v7945
    %8629 = vmatpush.msra.mxu0 %v7937
    %8630 = vmatpush.msra.mxu0 %v7929
    %8631 = vmatpush.msra.mxu0 %v7921
    %8632 = vmatpush.msra.mxu0 %v7913
    %8633 = vmatpush.msra.mxu0 %v7905
    %8634 = vmatpush.msra.mxu0 %v7897
    %8635 = vmatpush.msra.mxu0 %v7889
    %8636 = vmatpush.msra.mxu0 %v7881
    %8637 = vmatpush.msra.mxu0 %v7873
    %8638 = vmatpush.msra.mxu0 %v7865
    %8639 = vmatpush.msra.mxu0 %v7857
    %8640 = vmatmul.f32.gmra.mxu0 %v7850
    %v8641 = vpop.f32.mrf.mxu0
    %v8642 = vadd.f32 %v8371, %v8641
    %8643 = vdwg.mxu0
    %8644 = vmatpush.msra.mxu0 %v8105
    %8645 = vmatpush.msra.mxu0 %v8097
    %8646 = vmatpush.msra.mxu0 %v8089
    %8647 = vmatpush.msra.mxu0 %v8081
    %8648 = vmatpush.msra.mxu0 %v8073
    %8649 = vmatpush.msra.mxu0 %v8065
    %8650 = vmatpush.msra.mxu0 %v8057
    %8651 = vmatpush.msra.mxu0 %v8049
    %8652 = vmatpush.msra.mxu0 %v8041
    %8653 = vmatpush.msra.mxu0 %v8033
    %8654 = vmatpush.msra.mxu0 %v8025
    %8655 = vmatpush.msra.mxu0 %v8017
    %8656 = vmatpush.msra.mxu0 %v8009
    %8657 = vmatpush.msra.mxu0 %v8001
    %8658 = vmatpush.msra.mxu0 %v7993
    %8659 = vmatpush.msra.mxu0 %v7985
    %8660 = vmatmul.f32.gmra.mxu0 %v7851
    %v8661 = vpop.f32.mrf.mxu0
    %v8662 = vadd.f32 %v8642, %v8661
    %8663 = vdwg.mxu0
    %8664 = vmatpush.msra.mxu0 %v8233
    %8665 = vmatpush.msra.mxu0 %v8225
    %8666 = vmatpush.msra.mxu0 %v8217
    %8667 = vmatpush.msra.mxu0 %v8209
    %8668 = vmatpush.msra.mxu0 %v8201
    %8669 = vmatpush.msra.mxu0 %v8193
    %8670 = vmatpush.msra.mxu0 %v8185
    %8671 = vmatpush.msra.mxu0 %v8177
    %8672 = vmatpush.msra.mxu0 %v8169
    %8673 = vmatpush.msra.mxu0 %v8161
    %8674 = vmatpush.msra.mxu0 %v8153
    %8675 = vmatpush.msra.mxu0 %v8145
    %8676 = vmatpush.msra.mxu0 %v8137
    %8677 = vmatpush.msra.mxu0 %v8129
    %8678 = vmatpush.msra.mxu0 %v8121
    %8679 = vmatpush.msra.mxu0 %v8113
    %8680 = vmatmul.f32.gmra.mxu0 %v7852
    %v8681 = vpop.f32.mrf.mxu0
    %v8682 = vadd.f32 %v8662, %v8681
    %8683 = vdwg.mxu0
    %8684 = vmatpush.msra.mxu0 %v8361
    %8685 = vmatpush.msra.mxu0 %v8353
    %8686 = vmatpush.msra.mxu0 %v8345
    %8687 = vmatpush.msra.mxu0 %v8337
    %8688 = vmatpush.msra.mxu0 %v8329
    %8689 = vmatpush.msra.mxu0 %v8321
    %8690 = vmatpush.msra.mxu0 %v8313
    %8691 = vmatpush.msra.mxu0 %v8305
    %8692 = vmatpush.msra.mxu0 %v8297
    %8693 = vmatpush.msra.mxu0 %v8289
    %8694 = vmatpush.msra.mxu0 %v8281
    %8695 = vmatpush.msra.mxu0 %v8273
    %8696 = vmatpush.msra.mxu0 %v8265
    %8697 = vmatpush.msra.mxu0 %v8257
    %8698 = vmatpush.msra.mxu0 %v8249
    %8699 = vmatpush.msra.mxu0 %v8241
    %8700 = vmatmul.f32.gmra.mxu0 %v7853
    %v8701 = vpop.f32.mrf.mxu0
    %v8702 = vadd.f32 %v8682, %v8701
    %8703 = vdwg.mxu0
    %8704 = vmatpush.msra.mxu0 %v7978
    %8705 = vmatpush.msra.mxu0 %v7970
    %8706 = vmatpush.msra.mxu0 %v7962
    %8707 = vmatpush.msra.mxu0 %v7954
    %8708 = vmatpush.msra.mxu0 %v7946
    %8709 = vmatpush.msra.mxu0 %v7938
    %8710 = vmatpush.msra.mxu0 %v7930
    %8711 = vmatpush.msra.mxu0 %v7922
    %8712 = vmatpush.msra.mxu0 %v7914
    %8713 = vmatpush.msra.mxu0 %v7906
    %8714 = vmatpush.msra.mxu0 %v7898
    %8715 = vmatpush.msra.mxu0 %v7890
    %8716 = vmatpush.msra.mxu0 %v7882
    %8717 = vmatpush.msra.mxu0 %v7874
    %8718 = vmatpush.msra.mxu0 %v7866
    %8719 = vmatpush.msra.mxu0 %v7858
    %8720 = vmatmul.f32.gmra.mxu0 %v7850
    %v8721 = vpop.f32.mrf.mxu0
    %v8722 = vadd.f32 %v8372, %v8721
    %8723 = vdwg.mxu0
    %8724 = vmatpush.msra.mxu0 %v8106
    %8725 = vmatpush.msra.mxu0 %v8098
    %8726 = vmatpush.msra.mxu0 %v8090
    %8727 = vmatpush.msra.mxu0 %v8082
    %8728 = vmatpush.msra.mxu0 %v8074
    %8729 = vmatpush.msra.mxu0 %v8066
    %8730 = vmatpush.msra.mxu0 %v8058
    %8731 = vmatpush.msra.mxu0 %v8050
    %8732 = vmatpush.msra.mxu0 %v8042
    %8733 = vmatpush.msra.mxu0 %v8034
    %8734 = vmatpush.msra.mxu0 %v8026
    %8735 = vmatpush.msra.mxu0 %v8018
    %8736 = vmatpush.msra.mxu0 %v8010
    %8737 = vmatpush.msra.mxu0 %v8002
    %8738 = vmatpush.msra.mxu0 %v7994
    %8739 = vmatpush.msra.mxu0 %v7986
    %8740 = vmatmul.f32.gmra.mxu0 %v7851
    %v8741 = vpop.f32.mrf.mxu0
    %v8742 = vadd.f32 %v8722, %v8741
    %8743 = vdwg.mxu0
    %8744 = vmatpush.msra.mxu0 %v8234
    %8745 = vmatpush.msra.mxu0 %v8226
    %8746 = vmatpush.msra.mxu0 %v8218
    %8747 = vmatpush.msra.mxu0 %v8210
    %8748 = vmatpush.msra.mxu0 %v8202
    %8749 = vmatpush.msra.mxu0 %v8194
    %8750 = vmatpush.msra.mxu0 %v8186
    %8751 = vmatpush.msra.mxu0 %v8178
    %8752 = vmatpush.msra.mxu0 %v8170
    %8753 = vmatpush.msra.mxu0 %v8162
    %8754 = vmatpush.msra.mxu0 %v8154
    %8755 = vmatpush.msra.mxu0 %v8146
    %8756 = vmatpush.msra.mxu0 %v8138
    %8757 = vmatpush.msra.mxu0 %v8130
    %8758 = vmatpush.msra.mxu0 %v8122
    %8759 = vmatpush.msra.mxu0 %v8114
    %8760 = vmatmul.f32.gmra.mxu0 %v7852
    %v8761 = vpop.f32.mrf.mxu0
    %v8762 = vadd.f32 %v8742, %v8761
    %8763 = vdwg.mxu0
    %8764 = vmatpush.msra.mxu0 %v8362
    %8765 = vmatpush.msra.mxu0 %v8354
    %8766 = vmatpush.msra.mxu0 %v8346
    %8767 = vmatpush.msra.mxu0 %v8338
    %8768 = vmatpush.msra.mxu0 %v8330
    %8769 = vmatpush.msra.mxu0 %v8322
    %8770 = vmatpush.msra.mxu0 %v8314
    %8771 = vmatpush.msra.mxu0 %v8306
    %8772 = vmatpush.msra.mxu0 %v8298
    %8773 = vmatpush.msra.mxu0 %v8290
    %8774 = vmatpush.msra.mxu0 %v8282
    %8775 = vmatpush.msra.mxu0 %v8274
    %8776 = vmatpush.msra.mxu0 %v8266
    %8777 = vmatpush.msra.mxu0 %v8258
    %8778 = vmatpush.msra.mxu0 %v8250
    %8779 = vmatpush.msra.mxu0 %v8242
    %8780 = vmatmul.f32.gmra.mxu0 %v7853
    %v8781 = vpop.f32.mrf.mxu0
    %v8782 = vadd.f32 %v8762, %v8781
    %8783 = vdwg.mxu0
    %8784 = vmatpush.msra.mxu0 %v7979
    %8785 = vmatpush.msra.mxu0 %v7971
    %8786 = vmatpush.msra.mxu0 %v7963
    %8787 = vmatpush.msra.mxu0 %v7955
    %8788 = vmatpush.msra.mxu0 %v7947
    %8789 = vmatpush.msra.mxu0 %v7939
    %8790 = vmatpush.msra.mxu0 %v7931
    %8791 = vmatpush.msra.mxu0 %v7923
    %8792 = vmatpush.msra.mxu0 %v7915
    %8793 = vmatpush.msra.mxu0 %v7907
    %8794 = vmatpush.msra.mxu0 %v7899
    %8795 = vmatpush.msra.mxu0 %v7891
    %8796 = vmatpush.msra.mxu0 %v7883
    %8797 = vmatpush.msra.mxu0 %v7875
    %8798 = vmatpush.msra.mxu0 %v7867
    %8799 = vmatpush.msra.mxu0 %v7859
    %8800 = vmatmul.f32.gmra.mxu0 %v7850
    %v8801 = vpop.f32.mrf.mxu0
    %v8802 = vadd.f32 %v8373, %v8801
    %8803 = vdwg.mxu0
    %8804 = vmatpush.msra.mxu0 %v8107
    %8805 = vmatpush.msra.mxu0 %v8099
    %8806 = vmatpush.msra.mxu0 %v8091
    %8807 = vmatpush.msra.mxu0 %v8083
    %8808 = vmatpush.msra.mxu0 %v8075
    %8809 = vmatpush.msra.mxu0 %v8067
    %8810 = vmatpush.msra.mxu0 %v8059
    %8811 = vmatpush.msra.mxu0 %v8051
    %8812 = vmatpush.msra.mxu0 %v8043
    %8813 = vmatpush.msra.mxu0 %v8035
    %8814 = vmatpush.msra.mxu0 %v8027
    %8815 = vmatpush.msra.mxu0 %v8019
    %8816 = vmatpush.msra.mxu0 %v8011
    %8817 = vmatpush.msra.mxu0 %v8003
    %8818 = vmatpush.msra.mxu0 %v7995
    %8819 = vmatpush.msra.mxu0 %v7987
    %8820 = vmatmul.f32.gmra.mxu0 %v7851
    %v8821 = vpop.f32.mrf.mxu0
    %v8822 = vadd.f32 %v8802, %v8821
    %8823 = vdwg.mxu0
    %8824 = vmatpush.msra.mxu0 %v8235
    %8825 = vmatpush.msra.mxu0 %v8227
    %8826 = vmatpush.msra.mxu0 %v8219
    %8827 = vmatpush.msra.mxu0 %v8211
    %8828 = vmatpush.msra.mxu0 %v8203
    %8829 = vmatpush.msra.mxu0 %v8195
    %8830 = vmatpush.msra.mxu0 %v8187
    %8831 = vmatpush.msra.mxu0 %v8179
    %8832 = vmatpush.msra.mxu0 %v8171
    %8833 = vmatpush.msra.mxu0 %v8163
    %8834 = vmatpush.msra.mxu0 %v8155
    %8835 = vmatpush.msra.mxu0 %v8147
    %8836 = vmatpush.msra.mxu0 %v8139
    %8837 = vmatpush.msra.mxu0 %v8131
    %8838 = vmatpush.msra.mxu0 %v8123
    %8839 = vmatpush.msra.mxu0 %v8115
    %8840 = vmatmul.f32.gmra.mxu0 %v7852
    %v8841 = vpop.f32.mrf.mxu0
    %v8842 = vadd.f32 %v8822, %v8841
    %8843 = vdwg.mxu0
    %8844 = vmatpush.msra.mxu0 %v8363
    %8845 = vmatpush.msra.mxu0 %v8355
    %8846 = vmatpush.msra.mxu0 %v8347
    %8847 = vmatpush.msra.mxu0 %v8339
    %8848 = vmatpush.msra.mxu0 %v8331
    %8849 = vmatpush.msra.mxu0 %v8323
    %8850 = vmatpush.msra.mxu0 %v8315
    %8851 = vmatpush.msra.mxu0 %v8307
    %8852 = vmatpush.msra.mxu0 %v8299
    %8853 = vmatpush.msra.mxu0 %v8291
    %8854 = vmatpush.msra.mxu0 %v8283
    %8855 = vmatpush.msra.mxu0 %v8275
    %8856 = vmatpush.msra.mxu0 %v8267
    %8857 = vmatpush.msra.mxu0 %v8259
    %8858 = vmatpush.msra.mxu0 %v8251
    %8859 = vmatpush.msra.mxu0 %v8243
    %8860 = vmatmul.f32.gmra.mxu0 %v7853
    %v8861 = vpop.f32.mrf.mxu0
    %v8862 = vadd.f32 %v8842, %v8861
    %8863 = vdwg.mxu0
    %8864 = vmatpush.msra.mxu0 %v7980
    %8865 = vmatpush.msra.mxu0 %v7972
    %8866 = vmatpush.msra.mxu0 %v7964
    %8867 = vmatpush.msra.mxu0 %v7956
    %8868 = vmatpush.msra.mxu0 %v7948
    %8869 = vmatpush.msra.mxu0 %v7940
    %8870 = vmatpush.msra.mxu0 %v7932
    %8871 = vmatpush.msra.mxu0 %v7924
    %8872 = vmatpush.msra.mxu0 %v7916
    %8873 = vmatpush.msra.mxu0 %v7908
    %8874 = vmatpush.msra.mxu0 %v7900
    %8875 = vmatpush.msra.mxu0 %v7892
    %8876 = vmatpush.msra.mxu0 %v7884
    %8877 = vmatpush.msra.mxu0 %v7876
    %8878 = vmatpush.msra.mxu0 %v7868
    %8879 = vmatpush.msra.mxu0 %v7860
    %8880 = vmatmul.f32.gmra.mxu0 %v7850
    %v8881 = vpop.f32.mrf.mxu0
    %v8882 = vadd.f32 %v8374, %v8881
    %8883 = vdwg.mxu0
    %8884 = vmatpush.msra.mxu0 %v8108
    %8885 = vmatpush.msra.mxu0 %v8100
    %8886 = vmatpush.msra.mxu0 %v8092
    %8887 = vmatpush.msra.mxu0 %v8084
    %8888 = vmatpush.msra.mxu0 %v8076
    %8889 = vmatpush.msra.mxu0 %v8068
    %8890 = vmatpush.msra.mxu0 %v8060
    %8891 = vmatpush.msra.mxu0 %v8052
    %8892 = vmatpush.msra.mxu0 %v8044
    %8893 = vmatpush.msra.mxu0 %v8036
    %8894 = vmatpush.msra.mxu0 %v8028
    %8895 = vmatpush.msra.mxu0 %v8020
    %8896 = vmatpush.msra.mxu0 %v8012
    %8897 = vmatpush.msra.mxu0 %v8004
    %8898 = vmatpush.msra.mxu0 %v7996
    %8899 = vmatpush.msra.mxu0 %v7988
    %8900 = vmatmul.f32.gmra.mxu0 %v7851
    %v8901 = vpop.f32.mrf.mxu0
    %v8902 = vadd.f32 %v8882, %v8901
    %8903 = vdwg.mxu0
    %8904 = vmatpush.msra.mxu0 %v8236
    %8905 = vmatpush.msra.mxu0 %v8228
    %8906 = vmatpush.msra.mxu0 %v8220
    %8907 = vmatpush.msra.mxu0 %v8212
    %8908 = vmatpush.msra.mxu0 %v8204
    %8909 = vmatpush.msra.mxu0 %v8196
    %8910 = vmatpush.msra.mxu0 %v8188
    %8911 = vmatpush.msra.mxu0 %v8180
    %8912 = vmatpush.msra.mxu0 %v8172
    %8913 = vmatpush.msra.mxu0 %v8164
    %8914 = vmatpush.msra.mxu0 %v8156
    %8915 = vmatpush.msra.mxu0 %v8148
    %8916 = vmatpush.msra.mxu0 %v8140
    %8917 = vmatpush.msra.mxu0 %v8132
    %8918 = vmatpush.msra.mxu0 %v8124
    %8919 = vmatpush.msra.mxu0 %v8116
    %8920 = vmatmul.f32.gmra.mxu0 %v7852
    %v8921 = vpop.f32.mrf.mxu0
    %v8922 = vadd.f32 %v8902, %v8921
    %8923 = vdwg.mxu0
    %8924 = vmatpush.msra.mxu0 %v8364
    %8925 = vmatpush.msra.mxu0 %v8356
    %8926 = vmatpush.msra.mxu0 %v8348
    %8927 = vmatpush.msra.mxu0 %v8340
    %8928 = vmatpush.msra.mxu0 %v8332
    %8929 = vmatpush.msra.mxu0 %v8324
    %8930 = vmatpush.msra.mxu0 %v8316
    %8931 = vmatpush.msra.mxu0 %v8308
    %8932 = vmatpush.msra.mxu0 %v8300
    %8933 = vmatpush.msra.mxu0 %v8292
    %8934 = vmatpush.msra.mxu0 %v8284
    %8935 = vmatpush.msra.mxu0 %v8276
    %8936 = vmatpush.msra.mxu0 %v8268
    %8937 = vmatpush.msra.mxu0 %v8260
    %8938 = vmatpush.msra.mxu0 %v8252
    %8939 = vmatpush.msra.mxu0 %v8244
    %8940 = vmatmul.f32.gmra.mxu0 %v7853
    %v8941 = vpop.f32.mrf.mxu0
    %v8942 = vadd.f32 %v8922, %v8941
    %8943 = vdwg.mxu0
    %8944 = vmatpush.msra.mxu0 %v7981
    %8945 = vmatpush.msra.mxu0 %v7973
    %8946 = vmatpush.msra.mxu0 %v7965
    %8947 = vmatpush.msra.mxu0 %v7957
    %8948 = vmatpush.msra.mxu0 %v7949
    %8949 = vmatpush.msra.mxu0 %v7941
    %8950 = vmatpush.msra.mxu0 %v7933
    %8951 = vmatpush.msra.mxu0 %v7925
    %8952 = vmatpush.msra.mxu0 %v7917
    %8953 = vmatpush.msra.mxu0 %v7909
    %8954 = vmatpush.msra.mxu0 %v7901
    %8955 = vmatpush.msra.mxu0 %v7893
    %8956 = vmatpush.msra.mxu0 %v7885
    %8957 = vmatpush.msra.mxu0 %v7877
    %8958 = vmatpush.msra.mxu0 %v7869
    %8959 = vmatpush.msra.mxu0 %v7861
    %8960 = vmatmul.f32.gmra.mxu0 %v7850
    %v8961 = vpop.f32.mrf.mxu0
    %v8962 = vadd.f32 %v8375, %v8961
    %8963 = vdwg.mxu0
    %8964 = vmatpush.msra.mxu0 %v8109
    %8965 = vmatpush.msra.mxu0 %v8101
    %8966 = vmatpush.msra.mxu0 %v8093
    %8967 = vmatpush.msra.mxu0 %v8085
    %8968 = vmatpush.msra.mxu0 %v8077
    %8969 = vmatpush.msra.mxu0 %v8069
    %8970 = vmatpush.msra.mxu0 %v8061
    %8971 = vmatpush.msra.mxu0 %v8053
    %8972 = vmatpush.msra.mxu0 %v8045
    %8973 = vmatpush.msra.mxu0 %v8037
    %8974 = vmatpush.msra.mxu0 %v8029
    %8975 = vmatpush.msra.mxu0 %v8021
    %8976 = vmatpush.msra.mxu0 %v8013
    %8977 = vmatpush.msra.mxu0 %v8005
    %8978 = vmatpush.msra.mxu0 %v7997
    %8979 = vmatpush.msra.mxu0 %v7989
    %8980 = vmatmul.f32.gmra.mxu0 %v7851
    %v8981 = vpop.f32.mrf.mxu0
    %v8982 = vadd.f32 %v8962, %v8981
    %8983 = vdwg.mxu0
    %8984 = vmatpush.msra.mxu0 %v8237
    %8985 = vmatpush.msra.mxu0 %v8229
    %8986 = vmatpush.msra.mxu0 %v8221
    %8987 = vmatpush.msra.mxu0 %v8213
    %8988 = vmatpush.msra.mxu0 %v8205
    %8989 = vmatpush.msra.mxu0 %v8197
    %8990 = vmatpush.msra.mxu0 %v8189
    %8991 = vmatpush.msra.mxu0 %v8181
    %8992 = vmatpush.msra.mxu0 %v8173
    %8993 = vmatpush.msra.mxu0 %v8165
    %8994 = vmatpush.msra.mxu0 %v8157
    %8995 = vmatpush.msra.mxu0 %v8149
    %8996 = vmatpush.msra.mxu0 %v8141
    %8997 = vmatpush.msra.mxu0 %v8133
    %8998 = vmatpush.msra.mxu0 %v8125
    %8999 = vmatpush.msra.mxu0 %v8117
    %9000 = vmatmul.f32.gmra.mxu0 %v7852
    %v9001 = vpop.f32.mrf.mxu0
    %v9002 = vadd.f32 %v8982, %v9001
    %9003 = vdwg.mxu0
    %9004 = vmatpush.msra.mxu0 %v8365
    %9005 = vmatpush.msra.mxu0 %v8357
    %9006 = vmatpush.msra.mxu0 %v8349
    %9007 = vmatpush.msra.mxu0 %v8341
    %9008 = vmatpush.msra.mxu0 %v8333
    %9009 = vmatpush.msra.mxu0 %v8325
    %9010 = vmatpush.msra.mxu0 %v8317
    %9011 = vmatpush.msra.mxu0 %v8309
    %9012 = vmatpush.msra.mxu0 %v8301
    %9013 = vmatpush.msra.mxu0 %v8293
    %9014 = vmatpush.msra.mxu0 %v8285
    %9015 = vmatpush.msra.mxu0 %v8277
    %9016 = vmatpush.msra.mxu0 %v8269
    %9017 = vmatpush.msra.mxu0 %v8261
    %9018 = vmatpush.msra.mxu0 %v8253
    %9019 = vmatpush.msra.mxu0 %v8245
    %9020 = vmatmul.f32.gmra.mxu0 %v7853
    %v9021 = vpop.f32.mrf.mxu0
    %v9022 = vadd.f32 %v9002, %v9021
    %9023 = vdwg.mxu0
    %v9024 = vmax.f32 %v8462, 0.0
    %v9025 = vmax.f32 %v8542, 0.0
    %v9026 = vmax.f32 %v8622, 0.0
    %v9027 = vmax.f32 %v8702, 0.0
    %v9028 = vmax.f32 %v8782, 0.0
    %v9029 = vmax.f32 %v8862, 0.0
    %v9030 = vmax.f32 %v8942, 0.0
    %v9031 = vmax.f32 %v9022, 0.0
    %v9032 = vld [vmem:[#allocation20] sm:$0xff]
    %v9033 = vld [vmem:[#allocation20 + $0x8] sm:$0xff]
    %v9034 = vld [vmem:[#allocation20 + $0x10] sm:$0xff]
    %v9035 = vld [vmem:[#allocation20 + $0x18] sm:$0xff]
    %v9036 = vld [vmem:[#allocation20 + $0x20] sm:$0xff]
    %v9037 = vld [vmem:[#allocation20 + $0x28] sm:$0xff]
    %v9038 = vld [vmem:[#allocation20 + $0x30] sm:$0xff]
    %v9039 = vld [vmem:[#allocation20 + $0x38] sm:$0xff]
    %v9040 = vld [vmem:[#allocation20 + $0x40] sm:$0xff]
    %v9041 = vld [vmem:[#allocation20 + $0x48] sm:$0xff]
    %v9042 = vld [vmem:[#allocation20 + $0x50] sm:$0xff]
    %v9043 = vld [vmem:[#allocation20 + $0x58] sm:$0xff]
    %v9044 = vld [vmem:[#allocation20 + $0x60] sm:$0xff]
    %v9045 = vld [vmem:[#allocation20 + $0x68] sm:$0xff]
    %v9046 = vld [vmem:[#allocation20 + $0x70] sm:$0xff]
    %v9047 = vld [vmem:[#allocation20 + $0x78] sm:$0xff]
    %v9048 = vld [vmem:[#allocation20 + $0x80] sm:$0xff]
    %v9049 = vld [vmem:[#allocation20 + $0x88] sm:$0xff]
    %v9050 = vld [vmem:[#allocation20 + $0x90] sm:$0xff]
    %v9051 = vld [vmem:[#allocation20 + $0x98] sm:$0xff]
    %v9052 = vld [vmem:[#allocation20 + $0xa0] sm:$0xff]
    %v9053 = vld [vmem:[#allocation20 + $0xa8] sm:$0xff]
    %v9054 = vld [vmem:[#allocation20 + $0xb0] sm:$0xff]
    %v9055 = vld [vmem:[#allocation20 + $0xb8] sm:$0xff]
    %v9056 = vld [vmem:[#allocation20 + $0xc0] sm:$0xff]
    %v9057 = vld [vmem:[#allocation20 + $0xc8] sm:$0xff]
    %v9058 = vld [vmem:[#allocation20 + $0xd0] sm:$0xff]
    %v9059 = vld [vmem:[#allocation20 + $0xd8] sm:$0xff]
    %v9060 = vld [vmem:[#allocation20 + $0xe0] sm:$0xff]
    %v9061 = vld [vmem:[#allocation20 + $0xe8] sm:$0xff]
    %v9062 = vld [vmem:[#allocation20 + $0xf0] sm:$0xff]
    %v9063 = vld [vmem:[#allocation20 + $0xf8] sm:$0xff]
    %v9064 = vld [vmem:[#allocation20 + $0x100] sm:$0xff]
    %v9065 = vld [vmem:[#allocation20 + $0x108] sm:$0xff]
    %v9066 = vld [vmem:[#allocation20 + $0x110] sm:$0xff]
    %v9067 = vld [vmem:[#allocation20 + $0x118] sm:$0xff]
    %v9068 = vld [vmem:[#allocation20 + $0x120] sm:$0xff]
    %v9069 = vld [vmem:[#allocation20 + $0x128] sm:$0xff]
    %v9070 = vld [vmem:[#allocation20 + $0x130] sm:$0xff]
    %v9071 = vld [vmem:[#allocation20 + $0x138] sm:$0xff]
    %v9072 = vld [vmem:[#allocation20 + $0x140] sm:$0xff]
    %v9073 = vld [vmem:[#allocation20 + $0x148] sm:$0xff]
    %v9074 = vld [vmem:[#allocation20 + $0x150] sm:$0xff]
    %v9075 = vld [vmem:[#allocation20 + $0x158] sm:$0xff]
    %v9076 = vld [vmem:[#allocation20 + $0x160] sm:$0xff]
    %v9077 = vld [vmem:[#allocation20 + $0x168] sm:$0xff]
    %v9078 = vld [vmem:[#allocation20 + $0x170] sm:$0xff]
    %v9079 = vld [vmem:[#allocation20 + $0x178] sm:$0xff]
    %v9080 = vld [vmem:[#allocation20 + $0x180] sm:$0xff]
    %v9081 = vld [vmem:[#allocation20 + $0x188] sm:$0xff]
    %v9082 = vld [vmem:[#allocation20 + $0x190] sm:$0xff]
    %v9083 = vld [vmem:[#allocation20 + $0x198] sm:$0xff]
    %v9084 = vld [vmem:[#allocation20 + $0x1a0] sm:$0xff]
    %v9085 = vld [vmem:[#allocation20 + $0x1a8] sm:$0xff]
    %v9086 = vld [vmem:[#allocation20 + $0x1b0] sm:$0xff]
    %v9087 = vld [vmem:[#allocation20 + $0x1b8] sm:$0xff]
    %v9088 = vld [vmem:[#allocation20 + $0x1c0] sm:$0xff]
    %v9089 = vld [vmem:[#allocation20 + $0x1c8] sm:$0xff]
    %v9090 = vld [vmem:[#allocation20 + $0x1d0] sm:$0xff]
    %v9091 = vld [vmem:[#allocation20 + $0x1d8] sm:$0xff]
    %v9092 = vld [vmem:[#allocation20 + $0x1e0] sm:$0xff]
    %v9093 = vld [vmem:[#allocation20 + $0x1e8] sm:$0xff]
    %v9094 = vld [vmem:[#allocation20 + $0x1f0] sm:$0xff]
    %v9095 = vld [vmem:[#allocation20 + $0x1f8] sm:$0xff]
    %v9096 = vld [vmem:[#allocation20 + $0x200] sm:$0xff]
    %v9097 = vld [vmem:[#allocation20 + $0x208] sm:$0xff]
    %v9098 = vld [vmem:[#allocation20 + $0x210] sm:$0xff]
    %v9099 = vld [vmem:[#allocation20 + $0x218] sm:$0xff]
    %v9100 = vld [vmem:[#allocation20 + $0x220] sm:$0xff]
    %v9101 = vld [vmem:[#allocation20 + $0x228] sm:$0xff]
    %v9102 = vld [vmem:[#allocation20 + $0x230] sm:$0xff]
    %v9103 = vld [vmem:[#allocation20 + $0x238] sm:$0xff]
    %v9104 = vld [vmem:[#allocation20 + $0x240] sm:$0xff]
    %v9105 = vld [vmem:[#allocation20 + $0x248] sm:$0xff]
    %v9106 = vld [vmem:[#allocation20 + $0x250] sm:$0xff]
    %v9107 = vld [vmem:[#allocation20 + $0x258] sm:$0xff]
    %v9108 = vld [vmem:[#allocation20 + $0x260] sm:$0xff]
    %v9109 = vld [vmem:[#allocation20 + $0x268] sm:$0xff]
    %v9110 = vld [vmem:[#allocation20 + $0x270] sm:$0xff]
    %v9111 = vld [vmem:[#allocation20 + $0x278] sm:$0xff]
    %v9112 = vld [vmem:[#allocation20 + $0x280] sm:$0xff]
    %v9113 = vld [vmem:[#allocation20 + $0x288] sm:$0xff]
    %v9114 = vld [vmem:[#allocation20 + $0x290] sm:$0xff]
    %v9115 = vld [vmem:[#allocation20 + $0x298] sm:$0xff]
    %v9116 = vld [vmem:[#allocation20 + $0x2a0] sm:$0xff]
    %v9117 = vld [vmem:[#allocation20 + $0x2a8] sm:$0xff]
    %v9118 = vld [vmem:[#allocation20 + $0x2b0] sm:$0xff]
    %v9119 = vld [vmem:[#allocation20 + $0x2b8] sm:$0xff]
    %v9120 = vld [vmem:[#allocation20 + $0x2c0] sm:$0xff]
    %v9121 = vld [vmem:[#allocation20 + $0x2c8] sm:$0xff]
    %v9122 = vld [vmem:[#allocation20 + $0x2d0] sm:$0xff]
    %v9123 = vld [vmem:[#allocation20 + $0x2d8] sm:$0xff]
    %v9124 = vld [vmem:[#allocation20 + $0x2e0] sm:$0xff]
    %v9125 = vld [vmem:[#allocation20 + $0x2e8] sm:$0xff]
    %v9126 = vld [vmem:[#allocation20 + $0x2f0] sm:$0xff]
    %v9127 = vld [vmem:[#allocation20 + $0x2f8] sm:$0xff]
    %v9128 = vld [vmem:[#allocation20 + $0x300] sm:$0xff]
    %v9129 = vld [vmem:[#allocation20 + $0x308] sm:$0xff]
    %v9130 = vld [vmem:[#allocation20 + $0x310] sm:$0xff]
    %v9131 = vld [vmem:[#allocation20 + $0x318] sm:$0xff]
    %v9132 = vld [vmem:[#allocation20 + $0x320] sm:$0xff]
    %v9133 = vld [vmem:[#allocation20 + $0x328] sm:$0xff]
    %v9134 = vld [vmem:[#allocation20 + $0x330] sm:$0xff]
    %v9135 = vld [vmem:[#allocation20 + $0x338] sm:$0xff]
    %v9136 = vld [vmem:[#allocation20 + $0x340] sm:$0xff]
    %v9137 = vld [vmem:[#allocation20 + $0x348] sm:$0xff]
    %v9138 = vld [vmem:[#allocation20 + $0x350] sm:$0xff]
    %v9139 = vld [vmem:[#allocation20 + $0x358] sm:$0xff]
    %v9140 = vld [vmem:[#allocation20 + $0x360] sm:$0xff]
    %v9141 = vld [vmem:[#allocation20 + $0x368] sm:$0xff]
    %v9142 = vld [vmem:[#allocation20 + $0x370] sm:$0xff]
    %v9143 = vld [vmem:[#allocation20 + $0x378] sm:$0xff]
    %v9144 = vld [vmem:[#allocation20 + $0x380] sm:$0xff]
    %v9145 = vld [vmem:[#allocation20 + $0x388] sm:$0xff]
    %v9146 = vld [vmem:[#allocation20 + $0x390] sm:$0xff]
    %v9147 = vld [vmem:[#allocation20 + $0x398] sm:$0xff]
    %v9148 = vld [vmem:[#allocation20 + $0x3a0] sm:$0xff]
    %v9149 = vld [vmem:[#allocation20 + $0x3a8] sm:$0xff]
    %v9150 = vld [vmem:[#allocation20 + $0x3b0] sm:$0xff]
    %v9151 = vld [vmem:[#allocation20 + $0x3b8] sm:$0xff]
    %v9152 = vld [vmem:[#allocation20 + $0x3c0] sm:$0xff]
    %v9153 = vld [vmem:[#allocation20 + $0x3c8] sm:$0xff]
    %v9154 = vld [vmem:[#allocation20 + $0x3d0] sm:$0xff]
    %v9155 = vld [vmem:[#allocation20 + $0x3d8] sm:$0xff]
    %v9156 = vld [vmem:[#allocation20 + $0x3e0] sm:$0xff]
    %v9157 = vld [vmem:[#allocation20 + $0x3e8] sm:$0xff]
    %v9158 = vld [vmem:[#allocation20 + $0x3f0] sm:$0xff]
    %v9159 = vld [vmem:[#allocation20 + $0x3f8] sm:$0xff]
    %v9160 = vld [vmem:[#allocation22] sm:$0x1]
    %v9162 = vperm.slane %v9160, 0
    %9164 = vmatpush.msra.mxu0 %v9047
    %9165 = vmatpush.msra.mxu0 %v9046
    %9166 = vmatpush.msra.mxu0 %v9045
    %9167 = vmatpush.msra.mxu0 %v9044
    %9168 = vmatpush.msra.mxu0 %v9043
    %9169 = vmatpush.msra.mxu0 %v9042
    %9170 = vmatpush.msra.mxu0 %v9041
    %9171 = vmatpush.msra.mxu0 %v9040
    %9172 = vmatpush.msra.mxu0 %v9039
    %9173 = vmatpush.msra.mxu0 %v9038
    %9174 = vmatpush.msra.mxu0 %v9037
    %9175 = vmatpush.msra.mxu0 %v9036
    %9176 = vmatpush.msra.mxu0 %v9035
    %9177 = vmatpush.msra.mxu0 %v9034
    %9178 = vmatpush.msra.mxu0 %v9033
    %9179 = vmatpush.msra.mxu0 %v9032
    %9180 = vmatmul.f32.gmra.mxu0 %v9024
    %v9181 = vpop.f32.mrf.mxu0
    %v9182 = vadd.f32 %v9162, %v9181
    %9183 = vdwg.mxu0
    %9184 = vmatpush.msra.mxu0 %v9063
    %9185 = vmatpush.msra.mxu0 %v9062
    %9186 = vmatpush.msra.mxu0 %v9061
    %9187 = vmatpush.msra.mxu0 %v9060
    %9188 = vmatpush.msra.mxu0 %v9059
    %9189 = vmatpush.msra.mxu0 %v9058
    %9190 = vmatpush.msra.mxu0 %v9057
    %9191 = vmatpush.msra.mxu0 %v9056
    %9192 = vmatpush.msra.mxu0 %v9055
    %9193 = vmatpush.msra.mxu0 %v9054
    %9194 = vmatpush.msra.mxu0 %v9053
    %9195 = vmatpush.msra.mxu0 %v9052
    %9196 = vmatpush.msra.mxu0 %v9051
    %9197 = vmatpush.msra.mxu0 %v9050
    %9198 = vmatpush.msra.mxu0 %v9049
    %9199 = vmatpush.msra.mxu0 %v9048
    %9200 = vmatmul.f32.gmra.mxu0 %v9025
    %v9201 = vpop.f32.mrf.mxu0
    %v9202 = vadd.f32 %v9182, %v9201
    %9203 = vdwg.mxu0
    %9204 = vmatpush.msra.mxu0 %v9079
    %9205 = vmatpush.msra.mxu0 %v9078
    %9206 = vmatpush.msra.mxu0 %v9077
    %9207 = vmatpush.msra.mxu0 %v9076
    %9208 = vmatpush.msra.mxu0 %v9075
    %9209 = vmatpush.msra.mxu0 %v9074
    %9210 = vmatpush.msra.mxu0 %v9073
    %9211 = vmatpush.msra.mxu0 %v9072
    %9212 = vmatpush.msra.mxu0 %v9071
    %9213 = vmatpush.msra.mxu0 %v9070
    %9214 = vmatpush.msra.mxu0 %v9069
    %9215 = vmatpush.msra.mxu0 %v9068
    %9216 = vmatpush.msra.mxu0 %v9067
    %9217 = vmatpush.msra.mxu0 %v9066
    %9218 = vmatpush.msra.mxu0 %v9065
    %9219 = vmatpush.msra.mxu0 %v9064
    %9220 = vmatmul.f32.gmra.mxu0 %v9026
    %v9221 = vpop.f32.mrf.mxu0
    %v9222 = vadd.f32 %v9202, %v9221
    %9223 = vdwg.mxu0
    %9224 = vmatpush.msra.mxu0 %v9095
    %9225 = vmatpush.msra.mxu0 %v9094
    %9226 = vmatpush.msra.mxu0 %v9093
    %9227 = vmatpush.msra.mxu0 %v9092
    %9228 = vmatpush.msra.mxu0 %v9091
    %9229 = vmatpush.msra.mxu0 %v9090
    %9230 = vmatpush.msra.mxu0 %v9089
    %9231 = vmatpush.msra.mxu0 %v9088
    %9232 = vmatpush.msra.mxu0 %v9087
    %9233 = vmatpush.msra.mxu0 %v9086
    %9234 = vmatpush.msra.mxu0 %v9085
    %9235 = vmatpush.msra.mxu0 %v9084
    %9236 = vmatpush.msra.mxu0 %v9083
    %9237 = vmatpush.msra.mxu0 %v9082
    %9238 = vmatpush.msra.mxu0 %v9081
    %9239 = vmatpush.msra.mxu0 %v9080
    %9240 = vmatmul.f32.gmra.mxu0 %v9027
    %v9241 = vpop.f32.mrf.mxu0
    %v9242 = vadd.f32 %v9222, %v9241
    %9243 = vdwg.mxu0
    %9244 = vmatpush.msra.mxu0 %v9111
    %9245 = vmatpush.msra.mxu0 %v9110
    %9246 = vmatpush.msra.mxu0 %v9109
    %9247 = vmatpush.msra.mxu0 %v9108
    %9248 = vmatpush.msra.mxu0 %v9107
    %9249 = vmatpush.msra.mxu0 %v9106
    %9250 = vmatpush.msra.mxu0 %v9105
    %9251 = vmatpush.msra.mxu0 %v9104
    %9252 = vmatpush.msra.mxu0 %v9103
    %9253 = vmatpush.msra.mxu0 %v9102
    %9254 = vmatpush.msra.mxu0 %v9101
    %9255 = vmatpush.msra.mxu0 %v9100
    %9256 = vmatpush.msra.mxu0 %v9099
    %9257 = vmatpush.msra.mxu0 %v9098
    %9258 = vmatpush.msra.mxu0 %v9097
    %9259 = vmatpush.msra.mxu0 %v9096
    %9260 = vmatmul.f32.gmra.mxu0 %v9028
    %v9261 = vpop.f32.mrf.mxu0
    %v9262 = vadd.f32 %v9242, %v9261
    %9263 = vdwg.mxu0
    %9264 = vmatpush.msra.mxu0 %v9127
    %9265 = vmatpush.msra.mxu0 %v9126
    %9266 = vmatpush.msra.mxu0 %v9125
    %9267 = vmatpush.msra.mxu0 %v9124
    %9268 = vmatpush.msra.mxu0 %v9123
    %9269 = vmatpush.msra.mxu0 %v9122
    %9270 = vmatpush.msra.mxu0 %v9121
    %9271 = vmatpush.msra.mxu0 %v9120
    %9272 = vmatpush.msra.mxu0 %v9119
    %9273 = vmatpush.msra.mxu0 %v9118
    %9274 = vmatpush.msra.mxu0 %v9117
    %9275 = vmatpush.msra.mxu0 %v9116
    %9276 = vmatpush.msra.mxu0 %v9115
    %9277 = vmatpush.msra.mxu0 %v9114
    %9278 = vmatpush.msra.mxu0 %v9113
    %9279 = vmatpush.msra.mxu0 %v9112
    %9280 = vmatmul.f32.gmra.mxu0 %v9029
    %v9281 = vpop.f32.mrf.mxu0
    %v9282 = vadd.f32 %v9262, %v9281
    %9283 = vdwg.mxu0
    %9284 = vmatpush.msra.mxu0 %v9143
    %9285 = vmatpush.msra.mxu0 %v9142
    %9286 = vmatpush.msra.mxu0 %v9141
    %9287 = vmatpush.msra.mxu0 %v9140
    %9288 = vmatpush.msra.mxu0 %v9139
    %9289 = vmatpush.msra.mxu0 %v9138
    %9290 = vmatpush.msra.mxu0 %v9137
    %9291 = vmatpush.msra.mxu0 %v9136
    %9292 = vmatpush.msra.mxu0 %v9135
    %9293 = vmatpush.msra.mxu0 %v9134
    %9294 = vmatpush.msra.mxu0 %v9133
    %9295 = vmatpush.msra.mxu0 %v9132
    %9296 = vmatpush.msra.mxu0 %v9131
    %9297 = vmatpush.msra.mxu0 %v9130
    %9298 = vmatpush.msra.mxu0 %v9129
    %9299 = vmatpush.msra.mxu0 %v9128
    %9300 = vmatmul.f32.gmra.mxu0 %v9030
    %v9301 = vpop.f32.mrf.mxu0
    %v9302 = vadd.f32 %v9282, %v9301
    %9303 = vdwg.mxu0
    %9304 = vmatpush.msra.mxu0 %v9159
    %9305 = vmatpush.msra.mxu0 %v9158
    %9306 = vmatpush.msra.mxu0 %v9157
    %9307 = vmatpush.msra.mxu0 %v9156
    %9308 = vmatpush.msra.mxu0 %v9155
    %9309 = vmatpush.msra.mxu0 %v9154
    %9310 = vmatpush.msra.mxu0 %v9153
    %9311 = vmatpush.msra.mxu0 %v9152
    %9312 = vmatpush.msra.mxu0 %v9151
    %9313 = vmatpush.msra.mxu0 %v9150
    %9314 = vmatpush.msra.mxu0 %v9149
    %9315 = vmatpush.msra.mxu0 %v9148
    %9316 = vmatpush.msra.mxu0 %v9147
    %9317 = vmatpush.msra.mxu0 %v9146
    %9318 = vmatpush.msra.mxu0 %v9145
    %9319 = vmatpush.msra.mxu0 %v9144
    %9320 = vmatmul.f32.gmra.mxu0 %v9031
    %v9321 = vpop.f32.mrf.mxu0
    %v9322 = vadd.f32 %v9302, %v9321
    %9323 = vdwg.mxu0
    %9324 = vst [vmem:[#allocation23] sm:$0x3] %v9322
    // Predicated region
    $region106: #{net_forward.1} parent=1 // pred_check
      _
    $region107: #{net_forward.1} parent=1 // pred_check_branch
      %9326 = sbr.rel (0) target = $region109
    $region108: #{net_forward.1} parent=1 // pred_region
      %9328 = vsyncadd [#allocation4], 0
      %s9330 = sshll.u32 [#allocation23], 4
      %s9331 = int_to_ptr.vmem [resolvable:$true] %s9330
      %s9332 = sshll.u32 %s13, 4
      %s9333 = int_to_ptr.hbm [resolvable:$true] %s9332
      %9335 = dma.vmem_to_hbm [thread:$0]  %s9331, 32, %s9333, [#allocation4]
    $region109: #{net_forward.1} parent=1 // pred_fallthru
      _
    // Predicated region
    $region110: #{net_forward.1} parent=1 // pred_check
      _
    $region111: #{net_forward.1} parent=1 // pred_check_branch
      %9337 = sbr.rel (0) target = $region113
    $region112: #{net_forward.1} parent=1 // pred_region
      %9339 = dma.done [#allocation4], 32
    $region113: #{net_forward.1} parent=1 // pred_fallthru
      _
    %9340 = vsyncpa [#allocation3], 1
    %9341 = vsyncpa [#allocation6], 1
    %9342 = vsyncpa [#allocation9], 1
    %9343 = vsyncpa [#allocation12], 1
    %9344 = vsyncpa [#allocation15], 1
    %9345 = vsyncpa [#allocation18], 1
    %9346 = vsyncpa [#allocation21], 1
    %9347 = vsyncpa [#allocation4], 1

</llo_original>
